<compile_context>
chip_gen: v7x
topology: tpu7x:2x2x1
jax: 0.10.0
libtpu: 0.0.40
codegen_flags: <defaults>
</compile_context>

<pallas_src>
import functools

import jax
import jax.numpy as jnp
from jax import lax
from jax.experimental import pallas as pl
from jax.experimental.pallas import tpu as pltpu

EPS_BN = 1e-5
EPS_LN = 1e-5


# ----------------------------------------------------------------------------
# In-kernel building blocks (operate on loaded arrays / Refs)
# ----------------------------------------------------------------------------
def _lin(x, p):
    return jnp.dot(x, p["w"][...], preferred_element_type=jnp.float32) + p["b"][...]


def _layer_norm(y, g_ref, b_ref):
    m = jnp.mean(y, axis=-1, keepdims=True)
    v = jnp.mean((y - m) ** 2, axis=-1, keepdims=True)
    return (y - m) * lax.rsqrt(v + EPS_LN) * g_ref[...] + b_ref[...]


def _batch_norm_relu(y, g_ref, b_ref):
    # Training-mode BatchNorm1d: per-view batch statistics, biased variance.
    m = jnp.mean(y, axis=0, keepdims=True)
    v = jnp.mean((y - m) ** 2, axis=0, keepdims=True)
    return jnp.maximum((y - m) * lax.rsqrt(v + EPS_BN) * g_ref[...] + b_ref[...], 0.0)


def _projection_mlp(x, p):
    h = _batch_norm_relu(_lin(x, p["l1"]), p["bn1_g"], p["bn1_b"])
    h = _batch_norm_relu(_lin(h, p["l2"]), p["bn2_g"], p["bn2_b"])
    return _lin(h, p["l3"])


# ----------------------------------------------------------------------------
# Fully fused kernel: both views' encoder -> projector -> predictor -> loss
# ----------------------------------------------------------------------------
def _byol_kernel(treedef, n_w, batch, x_ref, *refs):
    params = jax.tree_util.tree_unflatten(treedef, list(refs[:n_w]))
    loss_ref = refs[n_w]
    enc, prj, prd = params["encoder"], params["projector"], params["predictor"]

    # ---- Encoder on the combined (2B, d_in) batch (seq_len == 1 implicit) ----
    x = x_ref[...]
    h = _lin(x, enc["emb"])

    for layer in enc["layers"]:
        # MHA with seq_len == 1: attention weight is exactly 1.0 -> out_proj(v_proj(x)).
        v = jnp.dot(h, layer["wv"][...], preferred_element_type=jnp.float32) + layer["bv"][...]
        a = jnp.dot(v, layer["wo"][...], preferred_element_type=jnp.float32) + layer["bo"][...]
        h = _layer_norm(h + a, layer["ln1_g"], layer["ln1_b"])

        # FFN: bf16 operands on the MXU, f32 accumulation (w1/w2 stored as bf16).
        f = jnp.maximum(
            jnp.dot(h.astype(jnp.bfloat16), layer["w1"][...],
                    preferred_element_type=jnp.float32) + layer["b1"][...],
            0.0,
        )
        f = jnp.dot(f.astype(jnp.bfloat16), layer["w2"][...],
                    preferred_element_type=jnp.float32) + layer["b2"][...]
        h = _layer_norm(h + f, layer["ln2_g"], layer["ln2_b"])

    h = _lin(h, enc["fc"])                     # mean over seq dim (length 1) == identity

    # ---- Projector / predictor per view (per-view BatchNorm statistics) ----
    h1, h2 = h[:batch], h[batch:]              # static sublane-aligned slices (B == 8)
    proj1 = _projection_mlp(h1, prj)           # online projector (== target projector)
    proj2 = _projection_mlp(h2, prj)
    pred1 = _projection_mlp(proj1, prd)        # online predictor
    pred2 = _projection_mlp(proj2, prd)

    # ---- loss = MSE(pred1, target_proj2) + MSE(pred2, target_proj1)
    # target nets are exact weight copies at __init__, so target_proj == online_proj.
    d1 = pred1 - proj2
    d2 = pred2 - proj1
    s = jnp.sum(d1 * d1 + d2 * d2, axis=1, keepdims=True)   # (B, 1)
    s = jnp.sum(s, axis=0, keepdims=True)                   # (1, 1)
    loss_ref[...] = s / d1.size


# ----------------------------------------------------------------------------
# Forward pass (single pallas_call launch)
# ----------------------------------------------------------------------------
def byol_forward(params, x1, x2):
    leaves, treedef = jax.tree_util.tree_flatten(params)
    n_w = len(leaves)
    B = x1.shape[0]

    # Stack the two views along the batch axis: encoder is view-independent per row.
    x = jnp.concatenate([x1, x2], axis=0)      # (2B, d_in)

    kernel = functools.partial(_byol_kernel, treedef, n_w, B)

    loss = pl.pallas_call(
        kernel,
        out_shape=jax.ShapeDtypeStruct((1, 1), jnp.float32),
        in_specs=[pl.BlockSpec(memory_space=pltpu.MemorySpace.VMEM)
                  for _ in range(1 + n_w)],
        out_specs=pl.BlockSpec(memory_space=pltpu.MemorySpace.VMEM),
    )(x, *leaves)
    return loss[0, 0]


byol_forward_jit = jax.jit(byol_forward)


# ----------------------------------------------------------------------------
# Parameter construction (deterministic, in-script)
# ----------------------------------------------------------------------------
class KeyGen:
    def __init__(self, key):
        self._key = key

    def __call__(self):
        self._key, k = jax.random.split(self._key)
        return k


def _lin_params(kg, d_in, d_out, scale=0.05):
    return {
        "w": scale * jax.random.normal(kg(), (d_in, d_out), jnp.float32),
        "b": scale * jax.random.normal(kg(), (1, d_out), jnp.float32),
    }


def init_encoder(kg, d_in, h, ff, n_layers):
    params = {"emb": _lin_params(kg, d_in, h), "layers": [], "fc": None}
    for _ in range(n_layers):
        # packed q|k|v in_proj weights (pre-transposed: (h, 3h)); only the V slice
        # affects the output when seq_len == 1.
        w_in = 0.05 * jax.random.normal(kg(), (h, 3 * h), jnp.float32)
        b_in = 0.05 * jax.random.normal(kg(), (1, 3 * h), jnp.float32)
        out_proj = _lin_params(kg, h, h)
        l1 = _lin_params(kg, h, ff)
        l2 = _lin_params(kg, ff, h)
        params["layers"].append({
            "wv": w_in[:, 2 * h:], "bv": b_in[:, 2 * h:],
            "wo": out_proj["w"], "bo": out_proj["b"],
            # FFN matmul weights stored in bf16 (f32 accumulation in-kernel).
            "w1": l1["w"].astype(jnp.bfloat16), "b1": l1["b"],
            "w2": l2["w"].astype(jnp.bfloat16), "b2": l2["b"],
            "ln1_g": jnp.ones((1, h), jnp.float32), "ln1_b": jnp.zeros((1, h), jnp.float32),
            "ln2_g": jnp.ones((1, h), jnp.float32), "ln2_b": jnp.zeros((1, h), jnp.float32),
        })
    params["fc"] = _lin_params(kg, h, h)
    return params


def init_projection_mlp(kg, d_in, hdim, d_out):
    return {
        "l1": _lin_params(kg, d_in, hdim),
        "l2": _lin_params(kg, hdim, hdim),
        "l3": _lin_params(kg, hdim, d_out),
        "bn1_g": jnp.ones((1, hdim), jnp.float32), "bn1_b": jnp.zeros((1, hdim), jnp.float32),
        "bn2_g": jnp.ones((1, hdim), jnp.float32), "bn2_b": jnp.zeros((1, hdim), jnp.float32),
    }


# ----------------------------------------------------------------------------
# Main
# ----------------------------------------------------------------------------
if __name__ == "__main__":
    INPUT_DIM = 16
    HIDDEN_DIM = 32
    PROJECTION_DIM = 16
    NUM_HEADS = 4          # must divide HIDDEN_DIM (PyTorch MHA constraint)
    NUM_LAYERS = 2
    DIM_FF = 2048          # PyTorch TransformerEncoderLayer default dim_feedforward
    BATCH = 8

    kg = KeyGen(jax.random.PRNGKey(0))
    params = {
        "encoder": init_encoder(kg, INPUT_DIM, HIDDEN_DIM, DIM_FF, NUM_LAYERS),
        "projector": init_projection_mlp(kg, HIDDEN_DIM, HIDDEN_DIM, PROJECTION_DIM),
        "predictor": init_projection_mlp(kg, PROJECTION_DIM, HIDDEN_DIM, PROJECTION_DIM),
    }

    x1 = jax.random.normal(jax.random.PRNGKey(1), (BATCH, INPUT_DIM), jnp.float32)
    x2 = jax.random.normal(jax.random.PRNGKey(2), (BATCH, INPUT_DIM), jnp.float32)

    loss = byol_forward_jit(params, x1, x2)
    jax.block_until_ready(loss)
    assert loss.shape == () and jnp.isfinite(loss)
    print("KERNEL_OK")
</pallas_src>

<mosaic_0001>
module attributes {stable_mosaic.version = 11 : i64} {
  func.func @_byol_kernel(%arg0: memref<16x16xf32, #tpu.memory_space<vmem>>, %arg1: memref<1x32xf32, #tpu.memory_space<vmem>>, %arg2: memref<16x32xf32, #tpu.memory_space<vmem>>, %arg3: memref<1x32xf32, #tpu.memory_space<vmem>>, %arg4: memref<32x32xf32, #tpu.memory_space<vmem>>, %arg5: memref<1x2048xf32, #tpu.memory_space<vmem>>, %arg6: memref<1x32xf32, #tpu.memory_space<vmem>>, %arg7: memref<1x32xf32, #tpu.memory_space<vmem>>, %arg8: memref<1x32xf32, #tpu.memory_space<vmem>>, %arg9: memref<1x32xf32, #tpu.memory_space<vmem>>, %arg10: memref<1x32xf32, #tpu.memory_space<vmem>>, %arg11: memref<1x32xf32, #tpu.memory_space<vmem>>, %arg12: memref<1x32xf32, #tpu.memory_space<vmem>>, %arg13: memref<32x2048xbf16, #tpu.memory_space<vmem>>, %arg14: memref<2048x32xbf16, #tpu.memory_space<vmem>>, %arg15: memref<32x32xf32, #tpu.memory_space<vmem>>, %arg16: memref<32x32xf32, #tpu.memory_space<vmem>>, %arg17: memref<1x2048xf32, #tpu.memory_space<vmem>>, %arg18: memref<1x32xf32, #tpu.memory_space<vmem>>, %arg19: memref<1x32xf32, #tpu.memory_space<vmem>>, %arg20: memref<1x32xf32, #tpu.memory_space<vmem>>, %arg21: memref<1x32xf32, #tpu.memory_space<vmem>>, %arg22: memref<1x32xf32, #tpu.memory_space<vmem>>, %arg23: memref<1x32xf32, #tpu.memory_space<vmem>>, %arg24: memref<1x32xf32, #tpu.memory_space<vmem>>, %arg25: memref<32x2048xbf16, #tpu.memory_space<vmem>>, %arg26: memref<2048x32xbf16, #tpu.memory_space<vmem>>, %arg27: memref<32x32xf32, #tpu.memory_space<vmem>>, %arg28: memref<32x32xf32, #tpu.memory_space<vmem>>, %arg29: memref<1x32xf32, #tpu.memory_space<vmem>>, %arg30: memref<1x32xf32, #tpu.memory_space<vmem>>, %arg31: memref<1x32xf32, #tpu.memory_space<vmem>>, %arg32: memref<1x32xf32, #tpu.memory_space<vmem>>, %arg33: memref<1x32xf32, #tpu.memory_space<vmem>>, %arg34: memref<16x32xf32, #tpu.memory_space<vmem>>, %arg35: memref<1x32xf32, #tpu.memory_space<vmem>>, %arg36: memref<32x32xf32, #tpu.memory_space<vmem>>, %arg37: memref<1x16xf32, #tpu.memory_space<vmem>>, %arg38: memref<32x16xf32, #tpu.memory_space<vmem>>, %arg39: memref<1x32xf32, #tpu.memory_space<vmem>>, %arg40: memref<1x32xf32, #tpu.memory_space<vmem>>, %arg41: memref<1x32xf32, #tpu.memory_space<vmem>>, %arg42: memref<1x32xf32, #tpu.memory_space<vmem>>, %arg43: memref<1x32xf32, #tpu.memory_space<vmem>>, %arg44: memref<32x32xf32, #tpu.memory_space<vmem>>, %arg45: memref<1x32xf32, #tpu.memory_space<vmem>>, %arg46: memref<32x32xf32, #tpu.memory_space<vmem>>, %arg47: memref<1x16xf32, #tpu.memory_space<vmem>>, %arg48: memref<32x16xf32, #tpu.memory_space<vmem>>, %arg49: memref<1x1xf32, #tpu.memory_space<vmem>>) attributes {dimension_semantics = [], scalar_prefetch = 0 : i64, scratch_operands = 0 : i64, tpu.core_type = #tpu.core_type<tc>} {
    %c0 = arith.constant 0 : index
    %c0_0 = arith.constant 0 : index
    %0 = vector.load %arg0[%c0, %c0_0] : memref<16x16xf32, #tpu.memory_space<vmem>>, vector<16x16xf32>
    %c0_1 = arith.constant 0 : index
    %c0_2 = arith.constant 0 : index
    %1 = vector.load %arg2[%c0_1, %c0_2] : memref<16x32xf32, #tpu.memory_space<vmem>>, vector<16x32xf32>
    %cst = arith.constant dense<0.000000e+00> : vector<16x32xf32>
    %2 = tpu.matmul %0, %1, %cst {dimension_numbers = #tpu.dot_dimension_numbers<[1], [0], [0], [1], [0, 0, 1, 1], [], []>} : vector<16x16xf32>, vector<16x32xf32>, vector<16x32xf32> -> vector<16x32xf32>
    %c0_3 = arith.constant 0 : index
    %c0_4 = arith.constant 0 : index
    %3 = vector.load %arg1[%c0_3, %c0_4] : memref<1x32xf32, #tpu.memory_space<vmem>>, vector<1x32xf32>
    %4 = vector.broadcast %3 : vector<1x32xf32> to vector<16x32xf32>
    %5 = arith.addf %2, %4 : vector<16x32xf32>
    %c0_5 = arith.constant 0 : index
    %c0_6 = arith.constant 0 : index
    %6 = vector.load %arg16[%c0_5, %c0_6] : memref<32x32xf32, #tpu.memory_space<vmem>>, vector<32x32xf32>
    %cst_7 = arith.constant dense<0.000000e+00> : vector<16x32xf32>
    %7 = tpu.matmul %5, %6, %cst_7 {dimension_numbers = #tpu.dot_dimension_numbers<[1], [0], [0], [1], [0, 0, 1, 1], [], []>} : vector<16x32xf32>, vector<32x32xf32>, vector<16x32xf32> -> vector<16x32xf32>
    %c0_8 = arith.constant 0 : index
    %c0_9 = arith.constant 0 : index
    %8 = vector.load %arg8[%c0_8, %c0_9] : memref<1x32xf32, #tpu.memory_space<vmem>>, vector<1x32xf32>
    %9 = vector.broadcast %8 : vector<1x32xf32> to vector<16x32xf32>
    %10 = arith.addf %7, %9 : vector<16x32xf32>
    %c0_10 = arith.constant 0 : index
    %c0_11 = arith.constant 0 : index
    %11 = vector.load %arg15[%c0_10, %c0_11] : memref<32x32xf32, #tpu.memory_space<vmem>>, vector<32x32xf32>
    %cst_12 = arith.constant dense<0.000000e+00> : vector<16x32xf32>
    %12 = tpu.matmul %10, %11, %cst_12 {dimension_numbers = #tpu.dot_dimension_numbers<[1], [0], [0], [1], [0, 0, 1, 1], [], []>} : vector<16x32xf32>, vector<32x32xf32>, vector<16x32xf32> -> vector<16x32xf32>
    %c0_13 = arith.constant 0 : index
    %c0_14 = arith.constant 0 : index
    %13 = vector.load %arg7[%c0_13, %c0_14] : memref<1x32xf32, #tpu.memory_space<vmem>>, vector<1x32xf32>
    %14 = vector.broadcast %13 : vector<1x32xf32> to vector<16x32xf32>
    %15 = arith.addf %12, %14 : vector<16x32xf32>
    %16 = arith.addf %5, %15 : vector<16x32xf32>
    %cst_15 = arith.constant dense<0.000000e+00> : vector<16xf32>
    %17 = vector.multi_reduction <add>, %16, %cst_15 [1] : vector<16x32xf32> to vector<16xf32>
    %18 = vector.shape_cast %17 : vector<16xf32> to vector<16x1xf32>
    %cst_16 = arith.constant 3.200000e+01 : f32
    %19 = vector.broadcast %cst_16 : f32 to vector<16x1xf32>
    %20 = arith.divf %18, %19 : vector<16x1xf32>
    %21 = vector.broadcast %20 : vector<16x1xf32> to vector<16x32xf32>
    %22 = arith.subf %16, %21 : vector<16x32xf32>
    %23 = arith.mulf %22, %22 : vector<16x32xf32>
    %cst_17 = arith.constant dense<0.000000e+00> : vector<16xf32>
    %24 = vector.multi_reduction <add>, %23, %cst_17 [1] : vector<16x32xf32> to vector<16xf32>
    %25 = vector.shape_cast %24 : vector<16xf32> to vector<16x1xf32>
    %cst_18 = arith.constant 3.200000e+01 : f32
    %26 = vector.broadcast %cst_18 : f32 to vector<16x1xf32>
    %27 = arith.divf %25, %26 : vector<16x1xf32>
    %28 = vector.broadcast %20 : vector<16x1xf32> to vector<16x32xf32>
    %29 = arith.subf %16, %28 : vector<16x32xf32>
    %cst_19 = arith.constant 9.99999974E-6 : f32
    %30 = vector.broadcast %cst_19 : f32 to vector<16x1xf32>
    %31 = arith.addf %27, %30 : vector<16x1xf32>
    %32 = math.rsqrt %31 : vector<16x1xf32>
    %33 = vector.broadcast %32 : vector<16x1xf32> to vector<16x32xf32>
    %34 = arith.mulf %29, %33 : vector<16x32xf32>
    %c0_20 = arith.constant 0 : index
    %c0_21 = arith.constant 0 : index
    %35 = vector.load %arg10[%c0_20, %c0_21] : memref<1x32xf32, #tpu.memory_space<vmem>>, vector<1x32xf32>
    %36 = vector.broadcast %35 : vector<1x32xf32> to vector<16x32xf32>
    %37 = arith.mulf %34, %36 : vector<16x32xf32>
    %c0_22 = arith.constant 0 : index
    %c0_23 = arith.constant 0 : index
    %38 = vector.load %arg9[%c0_22, %c0_23] : memref<1x32xf32, #tpu.memory_space<vmem>>, vector<1x32xf32>
    %39 = vector.broadcast %38 : vector<1x32xf32> to vector<16x32xf32>
    %40 = arith.addf %37, %39 : vector<16x32xf32>
    %41 = arith.truncf %40 : vector<16x32xf32> to vector<16x32xbf16>
    %c0_24 = arith.constant 0 : index
    %c0_25 = arith.constant 0 : index
    %42 = vector.load %arg13[%c0_24, %c0_25] : memref<32x2048xbf16, #tpu.memory_space<vmem>>, vector<32x2048xbf16>
    %cst_26 = arith.constant dense<0.000000e+00> : vector<16x2048xf32>
    %43 = tpu.matmul %41, %42, %cst_26 {dimension_numbers = #tpu.dot_dimension_numbers<[1], [0], [0], [1], [0, 0, 1, 1], [], []>} : vector<16x32xbf16>, vector<32x2048xbf16>, vector<16x2048xf32> -> vector<16x2048xf32>
    %c0_27 = arith.constant 0 : index
    %c0_28 = arith.constant 0 : index
    %44 = vector.load %arg5[%c0_27, %c0_28] : memref<1x2048xf32, #tpu.memory_space<vmem>>, vector<1x2048xf32>
    %45 = vector.broadcast %44 : vector<1x2048xf32> to vector<16x2048xf32>
    %46 = arith.addf %43, %45 : vector<16x2048xf32>
    %cst_29 = arith.constant 0.000000e+00 : f32
    %47 = vector.broadcast %cst_29 : f32 to vector<16x2048xf32>
    %48 = arith.maximumf %46, %47 : vector<16x2048xf32>
    %49 = arith.truncf %48 : vector<16x2048xf32> to vector<16x2048xbf16>
    %c0_30 = arith.constant 0 : index
    %c0_31 = arith.constant 0 : index
    %50 = vector.load %arg14[%c0_30, %c0_31] : memref<2048x32xbf16, #tpu.memory_space<vmem>>, vector<2048x32xbf16>
    %cst_32 = arith.constant dense<0.000000e+00> : vector<16x32xf32>
    %51 = tpu.matmul %49, %50, %cst_32 {dimension_numbers = #tpu.dot_dimension_numbers<[1], [0], [0], [1], [0, 0, 1, 1], [], []>} : vector<16x2048xbf16>, vector<2048x32xbf16>, vector<16x32xf32> -> vector<16x32xf32>
    %c0_33 = arith.constant 0 : index
    %c0_34 = arith.constant 0 : index
    %52 = vector.load %arg6[%c0_33, %c0_34] : memref<1x32xf32, #tpu.memory_space<vmem>>, vector<1x32xf32>
    %53 = vector.broadcast %52 : vector<1x32xf32> to vector<16x32xf32>
    %54 = arith.addf %51, %53 : vector<16x32xf32>
    %55 = arith.addf %40, %54 : vector<16x32xf32>
    %cst_35 = arith.constant dense<0.000000e+00> : vector<16xf32>
    %56 = vector.multi_reduction <add>, %55, %cst_35 [1] : vector<16x32xf32> to vector<16xf32>
    %57 = vector.shape_cast %56 : vector<16xf32> to vector<16x1xf32>
    %cst_36 = arith.constant 3.200000e+01 : f32
    %58 = vector.broadcast %cst_36 : f32 to vector<16x1xf32>
    %59 = arith.divf %57, %58 : vector<16x1xf32>
    %60 = vector.broadcast %59 : vector<16x1xf32> to vector<16x32xf32>
    %61 = arith.subf %55, %60 : vector<16x32xf32>
    %62 = arith.mulf %61, %61 : vector<16x32xf32>
    %cst_37 = arith.constant dense<0.000000e+00> : vector<16xf32>
    %63 = vector.multi_reduction <add>, %62, %cst_37 [1] : vector<16x32xf32> to vector<16xf32>
    %64 = vector.shape_cast %63 : vector<16xf32> to vector<16x1xf32>
    %cst_38 = arith.constant 3.200000e+01 : f32
    %65 = vector.broadcast %cst_38 : f32 to vector<16x1xf32>
    %66 = arith.divf %64, %65 : vector<16x1xf32>
    %67 = vector.broadcast %59 : vector<16x1xf32> to vector<16x32xf32>
    %68 = arith.subf %55, %67 : vector<16x32xf32>
    %cst_39 = arith.constant 9.99999974E-6 : f32
    %69 = vector.broadcast %cst_39 : f32 to vector<16x1xf32>
    %70 = arith.addf %66, %69 : vector<16x1xf32>
    %71 = math.rsqrt %70 : vector<16x1xf32>
    %72 = vector.broadcast %71 : vector<16x1xf32> to vector<16x32xf32>
    %73 = arith.mulf %68, %72 : vector<16x32xf32>
    %c0_40 = arith.constant 0 : index
    %c0_41 = arith.constant 0 : index
    %74 = vector.load %arg12[%c0_40, %c0_41] : memref<1x32xf32, #tpu.memory_space<vmem>>, vector<1x32xf32>
    %75 = vector.broadcast %74 : vector<1x32xf32> to vector<16x32xf32>
    %76 = arith.mulf %73, %75 : vector<16x32xf32>
    %c0_42 = arith.constant 0 : index
    %c0_43 = arith.constant 0 : index
    %77 = vector.load %arg11[%c0_42, %c0_43] : memref<1x32xf32, #tpu.memory_space<vmem>>, vector<1x32xf32>
    %78 = vector.broadcast %77 : vector<1x32xf32> to vector<16x32xf32>
    %79 = arith.addf %76, %78 : vector<16x32xf32>
    %c0_44 = arith.constant 0 : index
    %c0_45 = arith.constant 0 : index
    %80 = vector.load %arg28[%c0_44, %c0_45] : memref<32x32xf32, #tpu.memory_space<vmem>>, vector<32x32xf32>
    %cst_46 = arith.constant dense<0.000000e+00> : vector<16x32xf32>
    %81 = tpu.matmul %79, %80, %cst_46 {dimension_numbers = #tpu.dot_dimension_numbers<[1], [0], [0], [1], [0, 0, 1, 1], [], []>} : vector<16x32xf32>, vector<32x32xf32>, vector<16x32xf32> -> vector<16x32xf32>
    %c0_47 = arith.constant 0 : index
    %c0_48 = arith.constant 0 : index
    %82 = vector.load %arg20[%c0_47, %c0_48] : memref<1x32xf32, #tpu.memory_space<vmem>>, vector<1x32xf32>
    %83 = vector.broadcast %82 : vector<1x32xf32> to vector<16x32xf32>
    %84 = arith.addf %81, %83 : vector<16x32xf32>
    %c0_49 = arith.constant 0 : index
    %c0_50 = arith.constant 0 : index
    %85 = vector.load %arg27[%c0_49, %c0_50] : memref<32x32xf32, #tpu.memory_space<vmem>>, vector<32x32xf32>
    %cst_51 = arith.constant dense<0.000000e+00> : vector<16x32xf32>
    %86 = tpu.matmul %84, %85, %cst_51 {dimension_numbers = #tpu.dot_dimension_numbers<[1], [0], [0], [1], [0, 0, 1, 1], [], []>} : vector<16x32xf32>, vector<32x32xf32>, vector<16x32xf32> -> vector<16x32xf32>
    %c0_52 = arith.constant 0 : index
    %c0_53 = arith.constant 0 : index
    %87 = vector.load %arg19[%c0_52, %c0_53] : memref<1x32xf32, #tpu.memory_space<vmem>>, vector<1x32xf32>
    %88 = vector.broadcast %87 : vector<1x32xf32> to vector<16x32xf32>
    %89 = arith.addf %86, %88 : vector<16x32xf32>
    %90 = arith.addf %79, %89 : vector<16x32xf32>
    %cst_54 = arith.constant dense<0.000000e+00> : vector<16xf32>
    %91 = vector.multi_reduction <add>, %90, %cst_54 [1] : vector<16x32xf32> to vector<16xf32>
    %92 = vector.shape_cast %91 : vector<16xf32> to vector<16x1xf32>
    %cst_55 = arith.constant 3.200000e+01 : f32
    %93 = vector.broadcast %cst_55 : f32 to vector<16x1xf32>
    %94 = arith.divf %92, %93 : vector<16x1xf32>
    %95 = vector.broadcast %94 : vector<16x1xf32> to vector<16x32xf32>
    %96 = arith.subf %90, %95 : vector<16x32xf32>
    %97 = arith.mulf %96, %96 : vector<16x32xf32>
    %cst_56 = arith.constant dense<0.000000e+00> : vector<16xf32>
    %98 = vector.multi_reduction <add>, %97, %cst_56 [1] : vector<16x32xf32> to vector<16xf32>
    %99 = vector.shape_cast %98 : vector<16xf32> to vector<16x1xf32>
    %cst_57 = arith.constant 3.200000e+01 : f32
    %100 = vector.broadcast %cst_57 : f32 to vector<16x1xf32>
    %101 = arith.divf %99, %100 : vector<16x1xf32>
    %102 = vector.broadcast %94 : vector<16x1xf32> to vector<16x32xf32>
    %103 = arith.subf %90, %102 : vector<16x32xf32>
    %cst_58 = arith.constant 9.99999974E-6 : f32
    %104 = vector.broadcast %cst_58 : f32 to vector<16x1xf32>
    %105 = arith.addf %101, %104 : vector<16x1xf32>
    %106 = math.rsqrt %105 : vector<16x1xf32>
    %107 = vector.broadcast %106 : vector<16x1xf32> to vector<16x32xf32>
    %108 = arith.mulf %103, %107 : vector<16x32xf32>
    %c0_59 = arith.constant 0 : index
    %c0_60 = arith.constant 0 : index
    %109 = vector.load %arg22[%c0_59, %c0_60] : memref<1x32xf32, #tpu.memory_space<vmem>>, vector<1x32xf32>
    %110 = vector.broadcast %109 : vector<1x32xf32> to vector<16x32xf32>
    %111 = arith.mulf %108, %110 : vector<16x32xf32>
    %c0_61 = arith.constant 0 : index
    %c0_62 = arith.constant 0 : index
    %112 = vector.load %arg21[%c0_61, %c0_62] : memref<1x32xf32, #tpu.memory_space<vmem>>, vector<1x32xf32>
    %113 = vector.broadcast %112 : vector<1x32xf32> to vector<16x32xf32>
    %114 = arith.addf %111, %113 : vector<16x32xf32>
    %115 = arith.truncf %114 : vector<16x32xf32> to vector<16x32xbf16>
    %c0_63 = arith.constant 0 : index
    %c0_64 = arith.constant 0 : index
    %116 = vector.load %arg25[%c0_63, %c0_64] : memref<32x2048xbf16, #tpu.memory_space<vmem>>, vector<32x2048xbf16>
    %cst_65 = arith.constant dense<0.000000e+00> : vector<16x2048xf32>
    %117 = tpu.matmul %115, %116, %cst_65 {dimension_numbers = #tpu.dot_dimension_numbers<[1], [0], [0], [1], [0, 0, 1, 1], [], []>} : vector<16x32xbf16>, vector<32x2048xbf16>, vector<16x2048xf32> -> vector<16x2048xf32>
    %c0_66 = arith.constant 0 : index
    %c0_67 = arith.constant 0 : index
    %118 = vector.load %arg17[%c0_66, %c0_67] : memref<1x2048xf32, #tpu.memory_space<vmem>>, vector<1x2048xf32>
    %119 = vector.broadcast %118 : vector<1x2048xf32> to vector<16x2048xf32>
    %120 = arith.addf %117, %119 : vector<16x2048xf32>
    %cst_68 = arith.constant 0.000000e+00 : f32
    %121 = vector.broadcast %cst_68 : f32 to vector<16x2048xf32>
    %122 = arith.maximumf %120, %121 : vector<16x2048xf32>
    %123 = arith.truncf %122 : vector<16x2048xf32> to vector<16x2048xbf16>
    %c0_69 = arith.constant 0 : index
    %c0_70 = arith.constant 0 : index
    %124 = vector.load %arg26[%c0_69, %c0_70] : memref<2048x32xbf16, #tpu.memory_space<vmem>>, vector<2048x32xbf16>
    %cst_71 = arith.constant dense<0.000000e+00> : vector<16x32xf32>
    %125 = tpu.matmul %123, %124, %cst_71 {dimension_numbers = #tpu.dot_dimension_numbers<[1], [0], [0], [1], [0, 0, 1, 1], [], []>} : vector<16x2048xbf16>, vector<2048x32xbf16>, vector<16x32xf32> -> vector<16x32xf32>
    %c0_72 = arith.constant 0 : index
    %c0_73 = arith.constant 0 : index
    %126 = vector.load %arg18[%c0_72, %c0_73] : memref<1x32xf32, #tpu.memory_space<vmem>>, vector<1x32xf32>
    %127 = vector.broadcast %126 : vector<1x32xf32> to vector<16x32xf32>
    %128 = arith.addf %125, %127 : vector<16x32xf32>
    %129 = arith.addf %114, %128 : vector<16x32xf32>
    %cst_74 = arith.constant dense<0.000000e+00> : vector<16xf32>
    %130 = vector.multi_reduction <add>, %129, %cst_74 [1] : vector<16x32xf32> to vector<16xf32>
    %131 = vector.shape_cast %130 : vector<16xf32> to vector<16x1xf32>
    %cst_75 = arith.constant 3.200000e+01 : f32
    %132 = vector.broadcast %cst_75 : f32 to vector<16x1xf32>
    %133 = arith.divf %131, %132 : vector<16x1xf32>
    %134 = vector.broadcast %133 : vector<16x1xf32> to vector<16x32xf32>
    %135 = arith.subf %129, %134 : vector<16x32xf32>
    %136 = arith.mulf %135, %135 : vector<16x32xf32>
    %cst_76 = arith.constant dense<0.000000e+00> : vector<16xf32>
    %137 = vector.multi_reduction <add>, %136, %cst_76 [1] : vector<16x32xf32> to vector<16xf32>
    %138 = vector.shape_cast %137 : vector<16xf32> to vector<16x1xf32>
    %cst_77 = arith.constant 3.200000e+01 : f32
    %139 = vector.broadcast %cst_77 : f32 to vector<16x1xf32>
    %140 = arith.divf %138, %139 : vector<16x1xf32>
    %141 = vector.broadcast %133 : vector<16x1xf32> to vector<16x32xf32>
    %142 = arith.subf %129, %141 : vector<16x32xf32>
    %cst_78 = arith.constant 9.99999974E-6 : f32
    %143 = vector.broadcast %cst_78 : f32 to vector<16x1xf32>
    %144 = arith.addf %140, %143 : vector<16x1xf32>
    %145 = math.rsqrt %144 : vector<16x1xf32>
    %146 = vector.broadcast %145 : vector<16x1xf32> to vector<16x32xf32>
    %147 = arith.mulf %142, %146 : vector<16x32xf32>
    %c0_79 = arith.constant 0 : index
    %c0_80 = arith.constant 0 : index
    %148 = vector.load %arg24[%c0_79, %c0_80] : memref<1x32xf32, #tpu.memory_space<vmem>>, vector<1x32xf32>
    %149 = vector.broadcast %148 : vector<1x32xf32> to vector<16x32xf32>
    %150 = arith.mulf %147, %149 : vector<16x32xf32>
    %c0_81 = arith.constant 0 : index
    %c0_82 = arith.constant 0 : index
    %151 = vector.load %arg23[%c0_81, %c0_82] : memref<1x32xf32, #tpu.memory_space<vmem>>, vector<1x32xf32>
    %152 = vector.broadcast %151 : vector<1x32xf32> to vector<16x32xf32>
    %153 = arith.addf %150, %152 : vector<16x32xf32>
    %c0_83 = arith.constant 0 : index
    %c0_84 = arith.constant 0 : index
    %154 = vector.load %arg4[%c0_83, %c0_84] : memref<32x32xf32, #tpu.memory_space<vmem>>, vector<32x32xf32>
    %cst_85 = arith.constant dense<0.000000e+00> : vector<16x32xf32>
    %155 = tpu.matmul %153, %154, %cst_85 {dimension_numbers = #tpu.dot_dimension_numbers<[1], [0], [0], [1], [0, 0, 1, 1], [], []>} : vector<16x32xf32>, vector<32x32xf32>, vector<16x32xf32> -> vector<16x32xf32>
    %c0_86 = arith.constant 0 : index
    %c0_87 = arith.constant 0 : index
    %156 = vector.load %arg3[%c0_86, %c0_87] : memref<1x32xf32, #tpu.memory_space<vmem>>, vector<1x32xf32>
    %157 = vector.broadcast %156 : vector<1x32xf32> to vector<16x32xf32>
    %158 = arith.addf %155, %157 : vector<16x32xf32>
    %159 = vector.extract_strided_slice %158 {offsets = [0, 0], sizes = [8, 32], strides = [1, 1]} : vector<16x32xf32> to vector<8x32xf32>
    %160 = vector.extract_strided_slice %158 {offsets = [8, 0], sizes = [8, 32], strides = [1, 1]} : vector<16x32xf32> to vector<8x32xf32>
    %c0_88 = arith.constant 0 : index
    %c0_89 = arith.constant 0 : index
    %161 = vector.load %arg44[%c0_88, %c0_89] : memref<32x32xf32, #tpu.memory_space<vmem>>, vector<32x32xf32>
    %cst_90 = arith.constant dense<0.000000e+00> : vector<8x32xf32>
    %162 = tpu.matmul %159, %161, %cst_90 {dimension_numbers = #tpu.dot_dimension_numbers<[1], [0], [0], [1], [0, 0, 1, 1], [], []>} : vector<8x32xf32>, vector<32x32xf32>, vector<8x32xf32> -> vector<8x32xf32>
    %c0_91 = arith.constant 0 : index
    %c0_92 = arith.constant 0 : index
    %163 = vector.load %arg43[%c0_91, %c0_92] : memref<1x32xf32, #tpu.memory_space<vmem>>, vector<1x32xf32>
    %164 = vector.broadcast %163 : vector<1x32xf32> to vector<8x32xf32>
    %165 = arith.addf %162, %164 : vector<8x32xf32>
    %cst_93 = arith.constant dense<0.000000e+00> : vector<32xf32>
    %166 = vector.multi_reduction <add>, %165, %cst_93 [0] : vector<8x32xf32> to vector<32xf32>
    %167 = vector.shape_cast %166 : vector<32xf32> to vector<1x32xf32>
    %cst_94 = arith.constant 8.000000e+00 : f32
    %168 = vector.broadcast %cst_94 : f32 to vector<1x32xf32>
    %169 = arith.divf %167, %168 : vector<1x32xf32>
    %170 = vector.broadcast %169 : vector<1x32xf32> to vector<8x32xf32>
    %171 = arith.subf %165, %170 : vector<8x32xf32>
    %172 = arith.mulf %171, %171 : vector<8x32xf32>
    %cst_95 = arith.constant dense<0.000000e+00> : vector<32xf32>
    %173 = vector.multi_reduction <add>, %172, %cst_95 [0] : vector<8x32xf32> to vector<32xf32>
    %174 = vector.shape_cast %173 : vector<32xf32> to vector<1x32xf32>
    %cst_96 = arith.constant 8.000000e+00 : f32
    %175 = vector.broadcast %cst_96 : f32 to vector<1x32xf32>
    %176 = arith.divf %174, %175 : vector<1x32xf32>
    %177 = vector.broadcast %169 : vector<1x32xf32> to vector<8x32xf32>
    %178 = arith.subf %165, %177 : vector<8x32xf32>
    %cst_97 = arith.constant 9.99999974E-6 : f32
    %179 = vector.broadcast %cst_97 : f32 to vector<1x32xf32>
    %180 = arith.addf %176, %179 : vector<1x32xf32>
    %181 = math.rsqrt %180 : vector<1x32xf32>
    %182 = vector.broadcast %181 : vector<1x32xf32> to vector<8x32xf32>
    %183 = arith.mulf %178, %182 : vector<8x32xf32>
    %c0_98 = arith.constant 0 : index
    %c0_99 = arith.constant 0 : index
    %184 = vector.load %arg40[%c0_98, %c0_99] : memref<1x32xf32, #tpu.memory_space<vmem>>, vector<1x32xf32>
    %185 = vector.broadcast %184 : vector<1x32xf32> to vector<8x32xf32>
    %186 = arith.mulf %183, %185 : vector<8x32xf32>
    %c0_100 = arith.constant 0 : index
    %c0_101 = arith.constant 0 : index
    %187 = vector.load %arg39[%c0_100, %c0_101] : memref<1x32xf32, #tpu.memory_space<vmem>>, vector<1x32xf32>
    %188 = vector.broadcast %187 : vector<1x32xf32> to vector<8x32xf32>
    %189 = arith.addf %186, %188 : vector<8x32xf32>
    %cst_102 = arith.constant 0.000000e+00 : f32
    %190 = vector.broadcast %cst_102 : f32 to vector<8x32xf32>
    %191 = arith.maximumf %189, %190 : vector<8x32xf32>
    %c0_103 = arith.constant 0 : index
    %c0_104 = arith.constant 0 : index
    %192 = vector.load %arg46[%c0_103, %c0_104] : memref<32x32xf32, #tpu.memory_space<vmem>>, vector<32x32xf32>
    %cst_105 = arith.constant dense<0.000000e+00> : vector<8x32xf32>
    %193 = tpu.matmul %191, %192, %cst_105 {dimension_numbers = #tpu.dot_dimension_numbers<[1], [0], [0], [1], [0, 0, 1, 1], [], []>} : vector<8x32xf32>, vector<32x32xf32>, vector<8x32xf32> -> vector<8x32xf32>
    %c0_106 = arith.constant 0 : index
    %c0_107 = arith.constant 0 : index
    %194 = vector.load %arg45[%c0_106, %c0_107] : memref<1x32xf32, #tpu.memory_space<vmem>>, vector<1x32xf32>
    %195 = vector.broadcast %194 : vector<1x32xf32> to vector<8x32xf32>
    %196 = arith.addf %193, %195 : vector<8x32xf32>
    %cst_108 = arith.constant dense<0.000000e+00> : vector<32xf32>
    %197 = vector.multi_reduction <add>, %196, %cst_108 [0] : vector<8x32xf32> to vector<32xf32>
    %198 = vector.shape_cast %197 : vector<32xf32> to vector<1x32xf32>
    %cst_109 = arith.constant 8.000000e+00 : f32
    %199 = vector.broadcast %cst_109 : f32 to vector<1x32xf32>
    %200 = arith.divf %198, %199 : vector<1x32xf32>
    %201 = vector.broadcast %200 : vector<1x32xf32> to vector<8x32xf32>
    %202 = arith.subf %196, %201 : vector<8x32xf32>
    %203 = arith.mulf %202, %202 : vector<8x32xf32>
    %cst_110 = arith.constant dense<0.000000e+00> : vector<32xf32>
    %204 = vector.multi_reduction <add>, %203, %cst_110 [0] : vector<8x32xf32> to vector<32xf32>
    %205 = vector.shape_cast %204 : vector<32xf32> to vector<1x32xf32>
    %cst_111 = arith.constant 8.000000e+00 : f32
    %206 = vector.broadcast %cst_111 : f32 to vector<1x32xf32>
    %207 = arith.divf %205, %206 : vector<1x32xf32>
    %208 = vector.broadcast %200 : vector<1x32xf32> to vector<8x32xf32>
    %209 = arith.subf %196, %208 : vector<8x32xf32>
    %cst_112 = arith.constant 9.99999974E-6 : f32
    %210 = vector.broadcast %cst_112 : f32 to vector<1x32xf32>
    %211 = arith.addf %207, %210 : vector<1x32xf32>
    %212 = math.rsqrt %211 : vector<1x32xf32>
    %213 = vector.broadcast %212 : vector<1x32xf32> to vector<8x32xf32>
    %214 = arith.mulf %209, %213 : vector<8x32xf32>
    %c0_113 = arith.constant 0 : index
    %c0_114 = arith.constant 0 : index
    %215 = vector.load %arg42[%c0_113, %c0_114] : memref<1x32xf32, #tpu.memory_space<vmem>>, vector<1x32xf32>
    %216 = vector.broadcast %215 : vector<1x32xf32> to vector<8x32xf32>
    %217 = arith.mulf %214, %216 : vector<8x32xf32>
    %c0_115 = arith.constant 0 : index
    %c0_116 = arith.constant 0 : index
    %218 = vector.load %arg41[%c0_115, %c0_116] : memref<1x32xf32, #tpu.memory_space<vmem>>, vector<1x32xf32>
    %219 = vector.broadcast %218 : vector<1x32xf32> to vector<8x32xf32>
    %220 = arith.addf %217, %219 : vector<8x32xf32>
    %cst_117 = arith.constant 0.000000e+00 : f32
    %221 = vector.broadcast %cst_117 : f32 to vector<8x32xf32>
    %222 = arith.maximumf %220, %221 : vector<8x32xf32>
    %c0_118 = arith.constant 0 : index
    %c0_119 = arith.constant 0 : index
    %223 = vector.load %arg48[%c0_118, %c0_119] : memref<32x16xf32, #tpu.memory_space<vmem>>, vector<32x16xf32>
    %cst_120 = arith.constant dense<0.000000e+00> : vector<8x16xf32>
    %224 = tpu.matmul %222, %223, %cst_120 {dimension_numbers = #tpu.dot_dimension_numbers<[1], [0], [0], [1], [0, 0, 1, 1], [], []>} : vector<8x32xf32>, vector<32x16xf32>, vector<8x16xf32> -> vector<8x16xf32>
    %c0_121 = arith.constant 0 : index
    %c0_122 = arith.constant 0 : index
    %225 = vector.load %arg47[%c0_121, %c0_122] : memref<1x16xf32, #tpu.memory_space<vmem>>, vector<1x16xf32>
    %226 = vector.broadcast %225 : vector<1x16xf32> to vector<8x16xf32>
    %227 = arith.addf %224, %226 : vector<8x16xf32>
    %c0_123 = arith.constant 0 : index
    %c0_124 = arith.constant 0 : index
    %228 = vector.load %arg44[%c0_123, %c0_124] : memref<32x32xf32, #tpu.memory_space<vmem>>, vector<32x32xf32>
    %cst_125 = arith.constant dense<0.000000e+00> : vector<8x32xf32>
    %229 = tpu.matmul %160, %228, %cst_125 {dimension_numbers = #tpu.dot_dimension_numbers<[1], [0], [0], [1], [0, 0, 1, 1], [], []>} : vector<8x32xf32>, vector<32x32xf32>, vector<8x32xf32> -> vector<8x32xf32>
    %c0_126 = arith.constant 0 : index
    %c0_127 = arith.constant 0 : index
    %230 = vector.load %arg43[%c0_126, %c0_127] : memref<1x32xf32, #tpu.memory_space<vmem>>, vector<1x32xf32>
    %231 = vector.broadcast %230 : vector<1x32xf32> to vector<8x32xf32>
    %232 = arith.addf %229, %231 : vector<8x32xf32>
    %cst_128 = arith.constant dense<0.000000e+00> : vector<32xf32>
    %233 = vector.multi_reduction <add>, %232, %cst_128 [0] : vector<8x32xf32> to vector<32xf32>
    %234 = vector.shape_cast %233 : vector<32xf32> to vector<1x32xf32>
    %cst_129 = arith.constant 8.000000e+00 : f32
    %235 = vector.broadcast %cst_129 : f32 to vector<1x32xf32>
    %236 = arith.divf %234, %235 : vector<1x32xf32>
    %237 = vector.broadcast %236 : vector<1x32xf32> to vector<8x32xf32>
    %238 = arith.subf %232, %237 : vector<8x32xf32>
    %239 = arith.mulf %238, %238 : vector<8x32xf32>
    %cst_130 = arith.constant dense<0.000000e+00> : vector<32xf32>
    %240 = vector.multi_reduction <add>, %239, %cst_130 [0] : vector<8x32xf32> to vector<32xf32>
    %241 = vector.shape_cast %240 : vector<32xf32> to vector<1x32xf32>
    %cst_131 = arith.constant 8.000000e+00 : f32
    %242 = vector.broadcast %cst_131 : f32 to vector<1x32xf32>
    %243 = arith.divf %241, %242 : vector<1x32xf32>
    %244 = vector.broadcast %236 : vector<1x32xf32> to vector<8x32xf32>
    %245 = arith.subf %232, %244 : vector<8x32xf32>
    %cst_132 = arith.constant 9.99999974E-6 : f32
    %246 = vector.broadcast %cst_132 : f32 to vector<1x32xf32>
    %247 = arith.addf %243, %246 : vector<1x32xf32>
    %248 = math.rsqrt %247 : vector<1x32xf32>
    %249 = vector.broadcast %248 : vector<1x32xf32> to vector<8x32xf32>
    %250 = arith.mulf %245, %249 : vector<8x32xf32>
    %c0_133 = arith.constant 0 : index
    %c0_134 = arith.constant 0 : index
    %251 = vector.load %arg40[%c0_133, %c0_134] : memref<1x32xf32, #tpu.memory_space<vmem>>, vector<1x32xf32>
    %252 = vector.broadcast %251 : vector<1x32xf32> to vector<8x32xf32>
    %253 = arith.mulf %250, %252 : vector<8x32xf32>
    %c0_135 = arith.constant 0 : index
    %c0_136 = arith.constant 0 : index
    %254 = vector.load %arg39[%c0_135, %c0_136] : memref<1x32xf32, #tpu.memory_space<vmem>>, vector<1x32xf32>
    %255 = vector.broadcast %254 : vector<1x32xf32> to vector<8x32xf32>
    %256 = arith.addf %253, %255 : vector<8x32xf32>
    %cst_137 = arith.constant 0.000000e+00 : f32
    %257 = vector.broadcast %cst_137 : f32 to vector<8x32xf32>
    %258 = arith.maximumf %256, %257 : vector<8x32xf32>
    %c0_138 = arith.constant 0 : index
    %c0_139 = arith.constant 0 : index
    %259 = vector.load %arg46[%c0_138, %c0_139] : memref<32x32xf32, #tpu.memory_space<vmem>>, vector<32x32xf32>
    %cst_140 = arith.constant dense<0.000000e+00> : vector<8x32xf32>
    %260 = tpu.matmul %258, %259, %cst_140 {dimension_numbers = #tpu.dot_dimension_numbers<[1], [0], [0], [1], [0, 0, 1, 1], [], []>} : vector<8x32xf32>, vector<32x32xf32>, vector<8x32xf32> -> vector<8x32xf32>
    %c0_141 = arith.constant 0 : index
    %c0_142 = arith.constant 0 : index
    %261 = vector.load %arg45[%c0_141, %c0_142] : memref<1x32xf32, #tpu.memory_space<vmem>>, vector<1x32xf32>
    %262 = vector.broadcast %261 : vector<1x32xf32> to vector<8x32xf32>
    %263 = arith.addf %260, %262 : vector<8x32xf32>
    %cst_143 = arith.constant dense<0.000000e+00> : vector<32xf32>
    %264 = vector.multi_reduction <add>, %263, %cst_143 [0] : vector<8x32xf32> to vector<32xf32>
    %265 = vector.shape_cast %264 : vector<32xf32> to vector<1x32xf32>
    %cst_144 = arith.constant 8.000000e+00 : f32
    %266 = vector.broadcast %cst_144 : f32 to vector<1x32xf32>
    %267 = arith.divf %265, %266 : vector<1x32xf32>
    %268 = vector.broadcast %267 : vector<1x32xf32> to vector<8x32xf32>
    %269 = arith.subf %263, %268 : vector<8x32xf32>
    %270 = arith.mulf %269, %269 : vector<8x32xf32>
    %cst_145 = arith.constant dense<0.000000e+00> : vector<32xf32>
    %271 = vector.multi_reduction <add>, %270, %cst_145 [0] : vector<8x32xf32> to vector<32xf32>
    %272 = vector.shape_cast %271 : vector<32xf32> to vector<1x32xf32>
    %cst_146 = arith.constant 8.000000e+00 : f32
    %273 = vector.broadcast %cst_146 : f32 to vector<1x32xf32>
    %274 = arith.divf %272, %273 : vector<1x32xf32>
    %275 = vector.broadcast %267 : vector<1x32xf32> to vector<8x32xf32>
    %276 = arith.subf %263, %275 : vector<8x32xf32>
    %cst_147 = arith.constant 9.99999974E-6 : f32
    %277 = vector.broadcast %cst_147 : f32 to vector<1x32xf32>
    %278 = arith.addf %274, %277 : vector<1x32xf32>
    %279 = math.rsqrt %278 : vector<1x32xf32>
    %280 = vector.broadcast %279 : vector<1x32xf32> to vector<8x32xf32>
    %281 = arith.mulf %276, %280 : vector<8x32xf32>
    %c0_148 = arith.constant 0 : index
    %c0_149 = arith.constant 0 : index
    %282 = vector.load %arg42[%c0_148, %c0_149] : memref<1x32xf32, #tpu.memory_space<vmem>>, vector<1x32xf32>
    %283 = vector.broadcast %282 : vector<1x32xf32> to vector<8x32xf32>
    %284 = arith.mulf %281, %283 : vector<8x32xf32>
    %c0_150 = arith.constant 0 : index
    %c0_151 = arith.constant 0 : index
    %285 = vector.load %arg41[%c0_150, %c0_151] : memref<1x32xf32, #tpu.memory_space<vmem>>, vector<1x32xf32>
    %286 = vector.broadcast %285 : vector<1x32xf32> to vector<8x32xf32>
    %287 = arith.addf %284, %286 : vector<8x32xf32>
    %cst_152 = arith.constant 0.000000e+00 : f32
    %288 = vector.broadcast %cst_152 : f32 to vector<8x32xf32>
    %289 = arith.maximumf %287, %288 : vector<8x32xf32>
    %c0_153 = arith.constant 0 : index
    %c0_154 = arith.constant 0 : index
    %290 = vector.load %arg48[%c0_153, %c0_154] : memref<32x16xf32, #tpu.memory_space<vmem>>, vector<32x16xf32>
    %cst_155 = arith.constant dense<0.000000e+00> : vector<8x16xf32>
    %291 = tpu.matmul %289, %290, %cst_155 {dimension_numbers = #tpu.dot_dimension_numbers<[1], [0], [0], [1], [0, 0, 1, 1], [], []>} : vector<8x32xf32>, vector<32x16xf32>, vector<8x16xf32> -> vector<8x16xf32>
    %c0_156 = arith.constant 0 : index
    %c0_157 = arith.constant 0 : index
    %292 = vector.load %arg47[%c0_156, %c0_157] : memref<1x16xf32, #tpu.memory_space<vmem>>, vector<1x16xf32>
    %293 = vector.broadcast %292 : vector<1x16xf32> to vector<8x16xf32>
    %294 = arith.addf %291, %293 : vector<8x16xf32>
    %c0_158 = arith.constant 0 : index
    %c0_159 = arith.constant 0 : index
    %295 = vector.load %arg34[%c0_158, %c0_159] : memref<16x32xf32, #tpu.memory_space<vmem>>, vector<16x32xf32>
    %cst_160 = arith.constant dense<0.000000e+00> : vector<8x32xf32>
    %296 = tpu.matmul %227, %295, %cst_160 {dimension_numbers = #tpu.dot_dimension_numbers<[1], [0], [0], [1], [0, 0, 1, 1], [], []>} : vector<8x16xf32>, vector<16x32xf32>, vector<8x32xf32> -> vector<8x32xf32>
    %c0_161 = arith.constant 0 : index
    %c0_162 = arith.constant 0 : index
    %297 = vector.load %arg33[%c0_161, %c0_162] : memref<1x32xf32, #tpu.memory_space<vmem>>, vector<1x32xf32>
    %298 = vector.broadcast %297 : vector<1x32xf32> to vector<8x32xf32>
    %299 = arith.addf %296, %298 : vector<8x32xf32>
    %cst_163 = arith.constant dense<0.000000e+00> : vector<32xf32>
    %300 = vector.multi_reduction <add>, %299, %cst_163 [0] : vector<8x32xf32> to vector<32xf32>
    %301 = vector.shape_cast %300 : vector<32xf32> to vector<1x32xf32>
    %cst_164 = arith.constant 8.000000e+00 : f32
    %302 = vector.broadcast %cst_164 : f32 to vector<1x32xf32>
    %303 = arith.divf %301, %302 : vector<1x32xf32>
    %304 = vector.broadcast %303 : vector<1x32xf32> to vector<8x32xf32>
    %305 = arith.subf %299, %304 : vector<8x32xf32>
    %306 = arith.mulf %305, %305 : vector<8x32xf32>
    %cst_165 = arith.constant dense<0.000000e+00> : vector<32xf32>
    %307 = vector.multi_reduction <add>, %306, %cst_165 [0] : vector<8x32xf32> to vector<32xf32>
    %308 = vector.shape_cast %307 : vector<32xf32> to vector<1x32xf32>
    %cst_166 = arith.constant 8.000000e+00 : f32
    %309 = vector.broadcast %cst_166 : f32 to vector<1x32xf32>
    %310 = arith.divf %308, %309 : vector<1x32xf32>
    %311 = vector.broadcast %303 : vector<1x32xf32> to vector<8x32xf32>
    %312 = arith.subf %299, %311 : vector<8x32xf32>
    %cst_167 = arith.constant 9.99999974E-6 : f32
    %313 = vector.broadcast %cst_167 : f32 to vector<1x32xf32>
    %314 = arith.addf %310, %313 : vector<1x32xf32>
    %315 = math.rsqrt %314 : vector<1x32xf32>
    %316 = vector.broadcast %315 : vector<1x32xf32> to vector<8x32xf32>
    %317 = arith.mulf %312, %316 : vector<8x32xf32>
    %c0_168 = arith.constant 0 : index
    %c0_169 = arith.constant 0 : index
    %318 = vector.load %arg30[%c0_168, %c0_169] : memref<1x32xf32, #tpu.memory_space<vmem>>, vector<1x32xf32>
    %319 = vector.broadcast %318 : vector<1x32xf32> to vector<8x32xf32>
    %320 = arith.mulf %317, %319 : vector<8x32xf32>
    %c0_170 = arith.constant 0 : index
    %c0_171 = arith.constant 0 : index
    %321 = vector.load %arg29[%c0_170, %c0_171] : memref<1x32xf32, #tpu.memory_space<vmem>>, vector<1x32xf32>
    %322 = vector.broadcast %321 : vector<1x32xf32> to vector<8x32xf32>
    %323 = arith.addf %320, %322 : vector<8x32xf32>
    %cst_172 = arith.constant 0.000000e+00 : f32
    %324 = vector.broadcast %cst_172 : f32 to vector<8x32xf32>
    %325 = arith.maximumf %323, %324 : vector<8x32xf32>
    %c0_173 = arith.constant 0 : index
    %c0_174 = arith.constant 0 : index
    %326 = vector.load %arg36[%c0_173, %c0_174] : memref<32x32xf32, #tpu.memory_space<vmem>>, vector<32x32xf32>
    %cst_175 = arith.constant dense<0.000000e+00> : vector<8x32xf32>
    %327 = tpu.matmul %325, %326, %cst_175 {dimension_numbers = #tpu.dot_dimension_numbers<[1], [0], [0], [1], [0, 0, 1, 1], [], []>} : vector<8x32xf32>, vector<32x32xf32>, vector<8x32xf32> -> vector<8x32xf32>
    %c0_176 = arith.constant 0 : index
    %c0_177 = arith.constant 0 : index
    %328 = vector.load %arg35[%c0_176, %c0_177] : memref<1x32xf32, #tpu.memory_space<vmem>>, vector<1x32xf32>
    %329 = vector.broadcast %328 : vector<1x32xf32> to vector<8x32xf32>
    %330 = arith.addf %327, %329 : vector<8x32xf32>
    %cst_178 = arith.constant dense<0.000000e+00> : vector<32xf32>
    %331 = vector.multi_reduction <add>, %330, %cst_178 [0] : vector<8x32xf32> to vector<32xf32>
    %332 = vector.shape_cast %331 : vector<32xf32> to vector<1x32xf32>
    %cst_179 = arith.constant 8.000000e+00 : f32
    %333 = vector.broadcast %cst_179 : f32 to vector<1x32xf32>
    %334 = arith.divf %332, %333 : vector<1x32xf32>
    %335 = vector.broadcast %334 : vector<1x32xf32> to vector<8x32xf32>
    %336 = arith.subf %330, %335 : vector<8x32xf32>
    %337 = arith.mulf %336, %336 : vector<8x32xf32>
    %cst_180 = arith.constant dense<0.000000e+00> : vector<32xf32>
    %338 = vector.multi_reduction <add>, %337, %cst_180 [0] : vector<8x32xf32> to vector<32xf32>
    %339 = vector.shape_cast %338 : vector<32xf32> to vector<1x32xf32>
    %cst_181 = arith.constant 8.000000e+00 : f32
    %340 = vector.broadcast %cst_181 : f32 to vector<1x32xf32>
    %341 = arith.divf %339, %340 : vector<1x32xf32>
    %342 = vector.broadcast %334 : vector<1x32xf32> to vector<8x32xf32>
    %343 = arith.subf %330, %342 : vector<8x32xf32>
    %cst_182 = arith.constant 9.99999974E-6 : f32
    %344 = vector.broadcast %cst_182 : f32 to vector<1x32xf32>
    %345 = arith.addf %341, %344 : vector<1x32xf32>
    %346 = math.rsqrt %345 : vector<1x32xf32>
    %347 = vector.broadcast %346 : vector<1x32xf32> to vector<8x32xf32>
    %348 = arith.mulf %343, %347 : vector<8x32xf32>
    %c0_183 = arith.constant 0 : index
    %c0_184 = arith.constant 0 : index
    %349 = vector.load %arg32[%c0_183, %c0_184] : memref<1x32xf32, #tpu.memory_space<vmem>>, vector<1x32xf32>
    %350 = vector.broadcast %349 : vector<1x32xf32> to vector<8x32xf32>
    %351 = arith.mulf %348, %350 : vector<8x32xf32>
    %c0_185 = arith.constant 0 : index
    %c0_186 = arith.constant 0 : index
    %352 = vector.load %arg31[%c0_185, %c0_186] : memref<1x32xf32, #tpu.memory_space<vmem>>, vector<1x32xf32>
    %353 = vector.broadcast %352 : vector<1x32xf32> to vector<8x32xf32>
    %354 = arith.addf %351, %353 : vector<8x32xf32>
    %cst_187 = arith.constant 0.000000e+00 : f32
    %355 = vector.broadcast %cst_187 : f32 to vector<8x32xf32>
    %356 = arith.maximumf %354, %355 : vector<8x32xf32>
    %c0_188 = arith.constant 0 : index
    %c0_189 = arith.constant 0 : index
    %357 = vector.load %arg38[%c0_188, %c0_189] : memref<32x16xf32, #tpu.memory_space<vmem>>, vector<32x16xf32>
    %cst_190 = arith.constant dense<0.000000e+00> : vector<8x16xf32>
    %358 = tpu.matmul %356, %357, %cst_190 {dimension_numbers = #tpu.dot_dimension_numbers<[1], [0], [0], [1], [0, 0, 1, 1], [], []>} : vector<8x32xf32>, vector<32x16xf32>, vector<8x16xf32> -> vector<8x16xf32>
    %c0_191 = arith.constant 0 : index
    %c0_192 = arith.constant 0 : index
    %359 = vector.load %arg37[%c0_191, %c0_192] : memref<1x16xf32, #tpu.memory_space<vmem>>, vector<1x16xf32>
    %360 = vector.broadcast %359 : vector<1x16xf32> to vector<8x16xf32>
    %361 = arith.addf %358, %360 : vector<8x16xf32>
    %c0_193 = arith.constant 0 : index
    %c0_194 = arith.constant 0 : index
    %362 = vector.load %arg34[%c0_193, %c0_194] : memref<16x32xf32, #tpu.memory_space<vmem>>, vector<16x32xf32>
    %cst_195 = arith.constant dense<0.000000e+00> : vector<8x32xf32>
    %363 = tpu.matmul %294, %362, %cst_195 {dimension_numbers = #tpu.dot_dimension_numbers<[1], [0], [0], [1], [0, 0, 1, 1], [], []>} : vector<8x16xf32>, vector<16x32xf32>, vector<8x32xf32> -> vector<8x32xf32>
    %c0_196 = arith.constant 0 : index
    %c0_197 = arith.constant 0 : index
    %364 = vector.load %arg33[%c0_196, %c0_197] : memref<1x32xf32, #tpu.memory_space<vmem>>, vector<1x32xf32>
    %365 = vector.broadcast %364 : vector<1x32xf32> to vector<8x32xf32>
    %366 = arith.addf %363, %365 : vector<8x32xf32>
    %cst_198 = arith.constant dense<0.000000e+00> : vector<32xf32>
    %367 = vector.multi_reduction <add>, %366, %cst_198 [0] : vector<8x32xf32> to vector<32xf32>
    %368 = vector.shape_cast %367 : vector<32xf32> to vector<1x32xf32>
    %cst_199 = arith.constant 8.000000e+00 : f32
    %369 = vector.broadcast %cst_199 : f32 to vector<1x32xf32>
    %370 = arith.divf %368, %369 : vector<1x32xf32>
    %371 = vector.broadcast %370 : vector<1x32xf32> to vector<8x32xf32>
    %372 = arith.subf %366, %371 : vector<8x32xf32>
    %373 = arith.mulf %372, %372 : vector<8x32xf32>
    %cst_200 = arith.constant dense<0.000000e+00> : vector<32xf32>
    %374 = vector.multi_reduction <add>, %373, %cst_200 [0] : vector<8x32xf32> to vector<32xf32>
    %375 = vector.shape_cast %374 : vector<32xf32> to vector<1x32xf32>
    %cst_201 = arith.constant 8.000000e+00 : f32
    %376 = vector.broadcast %cst_201 : f32 to vector<1x32xf32>
    %377 = arith.divf %375, %376 : vector<1x32xf32>
    %378 = vector.broadcast %370 : vector<1x32xf32> to vector<8x32xf32>
    %379 = arith.subf %366, %378 : vector<8x32xf32>
    %cst_202 = arith.constant 9.99999974E-6 : f32
    %380 = vector.broadcast %cst_202 : f32 to vector<1x32xf32>
    %381 = arith.addf %377, %380 : vector<1x32xf32>
    %382 = math.rsqrt %381 : vector<1x32xf32>
    %383 = vector.broadcast %382 : vector<1x32xf32> to vector<8x32xf32>
    %384 = arith.mulf %379, %383 : vector<8x32xf32>
    %c0_203 = arith.constant 0 : index
    %c0_204 = arith.constant 0 : index
    %385 = vector.load %arg30[%c0_203, %c0_204] : memref<1x32xf32, #tpu.memory_space<vmem>>, vector<1x32xf32>
    %386 = vector.broadcast %385 : vector<1x32xf32> to vector<8x32xf32>
    %387 = arith.mulf %384, %386 : vector<8x32xf32>
    %c0_205 = arith.constant 0 : index
    %c0_206 = arith.constant 0 : index
    %388 = vector.load %arg29[%c0_205, %c0_206] : memref<1x32xf32, #tpu.memory_space<vmem>>, vector<1x32xf32>
    %389 = vector.broadcast %388 : vector<1x32xf32> to vector<8x32xf32>
    %390 = arith.addf %387, %389 : vector<8x32xf32>
    %cst_207 = arith.constant 0.000000e+00 : f32
    %391 = vector.broadcast %cst_207 : f32 to vector<8x32xf32>
    %392 = arith.maximumf %390, %391 : vector<8x32xf32>
    %c0_208 = arith.constant 0 : index
    %c0_209 = arith.constant 0 : index
    %393 = vector.load %arg36[%c0_208, %c0_209] : memref<32x32xf32, #tpu.memory_space<vmem>>, vector<32x32xf32>
    %cst_210 = arith.constant dense<0.000000e+00> : vector<8x32xf32>
    %394 = tpu.matmul %392, %393, %cst_210 {dimension_numbers = #tpu.dot_dimension_numbers<[1], [0], [0], [1], [0, 0, 1, 1], [], []>} : vector<8x32xf32>, vector<32x32xf32>, vector<8x32xf32> -> vector<8x32xf32>
    %c0_211 = arith.constant 0 : index
    %c0_212 = arith.constant 0 : index
    %395 = vector.load %arg35[%c0_211, %c0_212] : memref<1x32xf32, #tpu.memory_space<vmem>>, vector<1x32xf32>
    %396 = vector.broadcast %395 : vector<1x32xf32> to vector<8x32xf32>
    %397 = arith.addf %394, %396 : vector<8x32xf32>
    %cst_213 = arith.constant dense<0.000000e+00> : vector<32xf32>
    %398 = vector.multi_reduction <add>, %397, %cst_213 [0] : vector<8x32xf32> to vector<32xf32>
    %399 = vector.shape_cast %398 : vector<32xf32> to vector<1x32xf32>
    %cst_214 = arith.constant 8.000000e+00 : f32
    %400 = vector.broadcast %cst_214 : f32 to vector<1x32xf32>
    %401 = arith.divf %399, %400 : vector<1x32xf32>
    %402 = vector.broadcast %401 : vector<1x32xf32> to vector<8x32xf32>
    %403 = arith.subf %397, %402 : vector<8x32xf32>
    %404 = arith.mulf %403, %403 : vector<8x32xf32>
    %cst_215 = arith.constant dense<0.000000e+00> : vector<32xf32>
    %405 = vector.multi_reduction <add>, %404, %cst_215 [0] : vector<8x32xf32> to vector<32xf32>
    %406 = vector.shape_cast %405 : vector<32xf32> to vector<1x32xf32>
    %cst_216 = arith.constant 8.000000e+00 : f32
    %407 = vector.broadcast %cst_216 : f32 to vector<1x32xf32>
    %408 = arith.divf %406, %407 : vector<1x32xf32>
    %409 = vector.broadcast %401 : vector<1x32xf32> to vector<8x32xf32>
    %410 = arith.subf %397, %409 : vector<8x32xf32>
    %cst_217 = arith.constant 9.99999974E-6 : f32
    %411 = vector.broadcast %cst_217 : f32 to vector<1x32xf32>
    %412 = arith.addf %408, %411 : vector<1x32xf32>
    %413 = math.rsqrt %412 : vector<1x32xf32>
    %414 = vector.broadcast %413 : vector<1x32xf32> to vector<8x32xf32>
    %415 = arith.mulf %410, %414 : vector<8x32xf32>
    %c0_218 = arith.constant 0 : index
    %c0_219 = arith.constant 0 : index
    %416 = vector.load %arg32[%c0_218, %c0_219] : memref<1x32xf32, #tpu.memory_space<vmem>>, vector<1x32xf32>
    %417 = vector.broadcast %416 : vector<1x32xf32> to vector<8x32xf32>
    %418 = arith.mulf %415, %417 : vector<8x32xf32>
    %c0_220 = arith.constant 0 : index
    %c0_221 = arith.constant 0 : index
    %419 = vector.load %arg31[%c0_220, %c0_221] : memref<1x32xf32, #tpu.memory_space<vmem>>, vector<1x32xf32>
    %420 = vector.broadcast %419 : vector<1x32xf32> to vector<8x32xf32>
    %421 = arith.addf %418, %420 : vector<8x32xf32>
    %cst_222 = arith.constant 0.000000e+00 : f32
    %422 = vector.broadcast %cst_222 : f32 to vector<8x32xf32>
    %423 = arith.maximumf %421, %422 : vector<8x32xf32>
    %c0_223 = arith.constant 0 : index
    %c0_224 = arith.constant 0 : index
    %424 = vector.load %arg38[%c0_223, %c0_224] : memref<32x16xf32, #tpu.memory_space<vmem>>, vector<32x16xf32>
    %cst_225 = arith.constant dense<0.000000e+00> : vector<8x16xf32>
    %425 = tpu.matmul %423, %424, %cst_225 {dimension_numbers = #tpu.dot_dimension_numbers<[1], [0], [0], [1], [0, 0, 1, 1], [], []>} : vector<8x32xf32>, vector<32x16xf32>, vector<8x16xf32> -> vector<8x16xf32>
    %c0_226 = arith.constant 0 : index
    %c0_227 = arith.constant 0 : index
    %426 = vector.load %arg37[%c0_226, %c0_227] : memref<1x16xf32, #tpu.memory_space<vmem>>, vector<1x16xf32>
    %427 = vector.broadcast %426 : vector<1x16xf32> to vector<8x16xf32>
    %428 = arith.addf %425, %427 : vector<8x16xf32>
    %429 = arith.subf %361, %294 : vector<8x16xf32>
    %430 = arith.subf %428, %227 : vector<8x16xf32>
    %431 = arith.mulf %429, %429 : vector<8x16xf32>
    %432 = arith.mulf %430, %430 : vector<8x16xf32>
    %433 = arith.addf %431, %432 : vector<8x16xf32>
    %cst_228 = arith.constant dense<0.000000e+00> : vector<8xf32>
    %434 = vector.multi_reduction <add>, %433, %cst_228 [1] : vector<8x16xf32> to vector<8xf32>
    %435 = vector.shape_cast %434 : vector<8xf32> to vector<8x1xf32>
    %cst_229 = arith.constant dense<0.000000e+00> : vector<1xf32>
    %436 = vector.multi_reduction <add>, %435, %cst_229 [0] : vector<8x1xf32> to vector<1xf32>
    %437 = vector.shape_cast %436 : vector<1xf32> to vector<1x1xf32>
    %cst_230 = arith.constant 1.280000e+02 : f32
    %438 = vector.broadcast %cst_230 : f32 to vector<1x1xf32>
    %439 = arith.divf %437, %438 : vector<1x1xf32>
    %c0_231 = arith.constant 0 : index
    %c0_232 = arith.constant 0 : index
    %440 = vector.load %arg49[%c0_231, %c0_232] : memref<1x1xf32, #tpu.memory_space<vmem>>, vector<1x1xf32>
    tpu.vector_store %arg49[%c0_231, %c0_232], %439 {strides = array<i32>} : memref<1x1xf32, #tpu.memory_space<vmem>>, vector<1x1xf32>,
    return
  }
}

</mosaic_0001>

<llo_original>
// kernel: byol_forward.1
$region0: #{byol_forward.1}
  #allocation0 [shape = 'u32[]', space=smem, size = 0x4, offset = 0x4, fixed_abs, tag = 'smem constant byte address 0x4 - core index']
  #allocation1 [shape = 'u32[144,128]{1,0:T(1,128)}', space=vmem, size = 0x12000, scoped, tag = 'internal scratch']
  %s0 = inlined_call_operand.smem [shape: u32[50], index: -1, kind: input, shape index: {}]
  %s1 = sld [smem:[%s0]]
  %s2 = scalar_lea.smem %s0, 1
  %s3 = sld [smem:[%s2]]
  %s4 = scalar_lea.smem %s0, 2
  %s5 = sld [smem:[%s4]]
  %s6 = scalar_lea.smem %s0, 3
  %s7 = sld [smem:[%s6]]
  %s8 = scalar_lea.smem %s0, 4
  %s9 = sld [smem:[%s8]]
  %s10 = scalar_lea.smem %s0, 5
  %s11 = sld [smem:[%s10]]
  %s12 = scalar_lea.smem %s0, 6
  %s13 = sld [smem:[%s12]]
  %s14 = scalar_lea.smem %s0, 7
  %s15 = sld [smem:[%s14]]
  %s16 = scalar_lea.smem %s0, 8
  %s17 = sld [smem:[%s16]]
  %s18 = scalar_lea.smem %s0, 9
  %s19 = sld [smem:[%s18]]
  %s20 = scalar_lea.smem %s0, 10
  %s21 = sld [smem:[%s20]]
  %s22 = scalar_lea.smem %s0, 11
  %s23 = sld [smem:[%s22]]
  %s24 = scalar_lea.smem %s0, 12
  %s25 = sld [smem:[%s24]]
  %s26 = scalar_lea.smem %s0, 13
  %s27 = sld [smem:[%s26]]
  %s28 = scalar_lea.smem %s0, 14
  %s29 = sld [smem:[%s28]]
  %s30 = scalar_lea.smem %s0, 15
  %s31 = sld [smem:[%s30]]
  %s32 = scalar_lea.smem %s0, 16
  %s33 = sld [smem:[%s32]]
  %s34 = scalar_lea.smem %s0, 17
  %s35 = sld [smem:[%s34]]
  %s36 = scalar_lea.smem %s0, 18
  %s37 = sld [smem:[%s36]]
  %s38 = scalar_lea.smem %s0, 19
  %s39 = sld [smem:[%s38]]
  %s40 = scalar_lea.smem %s0, 20
  %s41 = sld [smem:[%s40]]
  %s42 = scalar_lea.smem %s0, 21
  %s43 = sld [smem:[%s42]]
  %s44 = scalar_lea.smem %s0, 22
  %s45 = sld [smem:[%s44]]
  %s46 = scalar_lea.smem %s0, 23
  %s47 = sld [smem:[%s46]]
  %s48 = scalar_lea.smem %s0, 24
  %s49 = sld [smem:[%s48]]
  %s50 = scalar_lea.smem %s0, 25
  %s51 = sld [smem:[%s50]]
  %s52 = scalar_lea.smem %s0, 26
  %s53 = sld [smem:[%s52]]
  %s54 = scalar_lea.smem %s0, 27
  %s55 = sld [smem:[%s54]]
  %s56 = scalar_lea.smem %s0, 28
  %s57 = sld [smem:[%s56]]
  %s58 = scalar_lea.smem %s0, 29
  %s59 = sld [smem:[%s58]]
  %s60 = scalar_lea.smem %s0, 30
  %s61 = sld [smem:[%s60]]
  %s62 = scalar_lea.smem %s0, 31
  %s63 = sld [smem:[%s62]]
  %s64 = scalar_lea.smem %s0, 32
  %s65 = sld [smem:[%s64]]
  %s66 = scalar_lea.smem %s0, 33
  %s67 = sld [smem:[%s66]]
  %s68 = scalar_lea.smem %s0, 34
  %s69 = sld [smem:[%s68]]
  %s70 = scalar_lea.smem %s0, 35
  %s71 = sld [smem:[%s70]]
  %s72 = scalar_lea.smem %s0, 36
  %s73 = sld [smem:[%s72]]
  %s74 = scalar_lea.smem %s0, 37
  %s75 = sld [smem:[%s74]]
  %s76 = scalar_lea.smem %s0, 38
  %s77 = sld [smem:[%s76]]
  %s78 = scalar_lea.smem %s0, 39
  %s79 = sld [smem:[%s78]]
  %s80 = scalar_lea.smem %s0, 40
  %s81 = sld [smem:[%s80]]
  %s82 = scalar_lea.smem %s0, 41
  %s83 = sld [smem:[%s82]]
  %s84 = scalar_lea.smem %s0, 42
  %s85 = sld [smem:[%s84]]
  %s86 = scalar_lea.smem %s0, 43
  %s87 = sld [smem:[%s86]]
  %s88 = scalar_lea.smem %s0, 44
  %s89 = sld [smem:[%s88]]
  %s90 = scalar_lea.smem %s0, 45
  %s91 = sld [smem:[%s90]]
  %s92 = scalar_lea.smem %s0, 46
  %s93 = sld [smem:[%s92]]
  %s94 = scalar_lea.smem %s0, 47
  %s95 = sld [smem:[%s94]]
  %s96 = scalar_lea.smem %s0, 48
  %s97 = sld [smem:[%s96]]
  %s98 = scalar_lea.smem %s0, 49
  %s99 = sld [smem:[%s98]]
  %s100 = sld [smem:[#allocation0]]
  $region226: #{byol_forward.1} parent=0
    _
  %s102 = ssub.s32 1, %s100
  %s103 = scalar_select 0, %s102, %s100
  $region1: #{byol_forward.1} parent=0
    #allocation2 [shape = 'u8[512]{0}', space=vmem, size = 0x400, scoped, tag = 'input window, operand 41, single buffered']
    #allocation3 [shape = 's32[1]{0}', space=sflag, size = 0x4, scoped, tag = 'scoped memory for byol_forward.1']
    #allocation4 [shape = 's32[1]{0}', space=sflag, size = 0x4, scoped, tag = 'scoped memory for byol_forward.1']
    #allocation5 [shape = 'u8[512]{0}', space=vmem, size = 0x400, scoped, tag = 'input window, operand 42, single buffered']
    #allocation6 [shape = 's32[1]{0}', space=sflag, size = 0x4, scoped, tag = 'scoped memory for byol_forward.1']
    #allocation7 [shape = 'u8[512]{0}', space=vmem, size = 0x400, scoped, tag = 'input window, operand 43, single buffered']
    #allocation8 [shape = 'u8[512]{0}', space=vmem, size = 0x400, scoped, tag = 'input window, operand 45, single buffered']
    #allocation9 [shape = 's32[1]{0}', space=sflag, size = 0x4, scoped, tag = 'scoped memory for byol_forward.1']
    #allocation10 [shape = 'u8[512]{0}', space=vmem, size = 0x400, scoped, tag = 'input window, operand 47, single buffered']
    #allocation11 [shape = 'u8[512]{0}', space=vmem, size = 0x400, scoped, tag = 'output window, operand 0, single buffered']
    %104 = vsyncpa [#allocation3], 0
    %105 = vsyncpa [#allocation6], 0
    %106 = vsyncpa [#allocation9], 0
    %107 = vsyncpa [#allocation4], 0
    // Predicated region
    $region2: #{byol_forward.1} parent=1 // pred_check
      _
    $region3: #{byol_forward.1} parent=1 // pred_check_branch
      %109 = sbr.rel (0) target = $region5
    $region4: #{byol_forward.1} parent=1 // pred_region
      _
    $region5: #{byol_forward.1} parent=1 // pred_fallthru
      _
    // Predicated region
    $region6: #{byol_forward.1} parent=1 // pred_check
      _
    $region7: #{byol_forward.1} parent=1 // pred_check_branch
      %111 = sbr.rel (0) target = $region9
    $region8: #{byol_forward.1} parent=1 // pred_region
      _
    $region9: #{byol_forward.1} parent=1 // pred_fallthru
      _
    // Predicated region
    $region10: #{byol_forward.1} parent=1 // pred_check
      _
    $region11: #{byol_forward.1} parent=1 // pred_check_branch
      %113 = sbr.rel (0) target = $region13
    $region12: #{byol_forward.1} parent=1 // pred_region
      _
    $region13: #{byol_forward.1} parent=1 // pred_fallthru
      _
    // Predicated region
    $region14: #{byol_forward.1} parent=1 // pred_check
      _
    $region15: #{byol_forward.1} parent=1 // pred_check_branch
      %115 = sbr.rel (0) target = $region17
    $region16: #{byol_forward.1} parent=1 // pred_region
      _
    $region17: #{byol_forward.1} parent=1 // pred_fallthru
      _
    // Predicated region
    $region18: #{byol_forward.1} parent=1 // pred_check
      _
    $region19: #{byol_forward.1} parent=1 // pred_check_branch
      %117 = sbr.rel (0) target = $region21
    $region20: #{byol_forward.1} parent=1 // pred_region
      _
    $region21: #{byol_forward.1} parent=1 // pred_fallthru
      _
    // Predicated region
    $region22: #{byol_forward.1} parent=1 // pred_check
      _
    $region23: #{byol_forward.1} parent=1 // pred_check_branch
      %119 = sbr.rel (0) target = $region25
    $region24: #{byol_forward.1} parent=1 // pred_region
      _
    $region25: #{byol_forward.1} parent=1 // pred_fallthru
      _
    // Predicated region
    $region26: #{byol_forward.1} parent=1 // pred_check
      _
    $region27: #{byol_forward.1} parent=1 // pred_check_branch
      %121 = sbr.rel (0) target = $region29
    $region28: #{byol_forward.1} parent=1 // pred_region
      _
    $region29: #{byol_forward.1} parent=1 // pred_fallthru
      _
    // Predicated region
    $region30: #{byol_forward.1} parent=1 // pred_check
      _
    $region31: #{byol_forward.1} parent=1 // pred_check_branch
      %123 = sbr.rel (0) target = $region33
    $region32: #{byol_forward.1} parent=1 // pred_region
      _
    $region33: #{byol_forward.1} parent=1 // pred_fallthru
      _
    // Predicated region
    $region34: #{byol_forward.1} parent=1 // pred_check
      _
    $region35: #{byol_forward.1} parent=1 // pred_check_branch
      %125 = sbr.rel (0) target = $region37
    $region36: #{byol_forward.1} parent=1 // pred_region
      _
    $region37: #{byol_forward.1} parent=1 // pred_fallthru
      _
    // Predicated region
    $region38: #{byol_forward.1} parent=1 // pred_check
      _
    $region39: #{byol_forward.1} parent=1 // pred_check_branch
      %127 = sbr.rel (0) target = $region41
    $region40: #{byol_forward.1} parent=1 // pred_region
      _
    $region41: #{byol_forward.1} parent=1 // pred_fallthru
      _
    // Predicated region
    $region42: #{byol_forward.1} parent=1 // pred_check
      _
    $region43: #{byol_forward.1} parent=1 // pred_check_branch
      %129 = sbr.rel (0) target = $region45
    $region44: #{byol_forward.1} parent=1 // pred_region
      _
    $region45: #{byol_forward.1} parent=1 // pred_fallthru
      _
    // Predicated region
    $region46: #{byol_forward.1} parent=1 // pred_check
      _
    $region47: #{byol_forward.1} parent=1 // pred_check_branch
      %131 = sbr.rel (0) target = $region49
    $region48: #{byol_forward.1} parent=1 // pred_region
      _
    $region49: #{byol_forward.1} parent=1 // pred_fallthru
      _
    // Predicated region
    $region50: #{byol_forward.1} parent=1 // pred_check
      _
    $region51: #{byol_forward.1} parent=1 // pred_check_branch
      %133 = sbr.rel (0) target = $region53
    $region52: #{byol_forward.1} parent=1 // pred_region
      _
    $region53: #{byol_forward.1} parent=1 // pred_fallthru
      _
    // Predicated region
    $region54: #{byol_forward.1} parent=1 // pred_check
      _
    $region55: #{byol_forward.1} parent=1 // pred_check_branch
      %135 = sbr.rel (0) target = $region57
    $region56: #{byol_forward.1} parent=1 // pred_region
      _
    $region57: #{byol_forward.1} parent=1 // pred_fallthru
      _
    // Predicated region
    $region58: #{byol_forward.1} parent=1 // pred_check
      _
    $region59: #{byol_forward.1} parent=1 // pred_check_branch
      %137 = sbr.rel (0) target = $region61
    $region60: #{byol_forward.1} parent=1 // pred_region
      _
    $region61: #{byol_forward.1} parent=1 // pred_fallthru
      _
    // Predicated region
    $region62: #{byol_forward.1} parent=1 // pred_check
      _
    $region63: #{byol_forward.1} parent=1 // pred_check_branch
      %139 = sbr.rel (0) target = $region65
    $region64: #{byol_forward.1} parent=1 // pred_region
      _
    $region65: #{byol_forward.1} parent=1 // pred_fallthru
      _
    // Predicated region
    $region66: #{byol_forward.1} parent=1 // pred_check
      _
    $region67: #{byol_forward.1} parent=1 // pred_check_branch
      %141 = sbr.rel (0) target = $region69
    $region68: #{byol_forward.1} parent=1 // pred_region
      _
    $region69: #{byol_forward.1} parent=1 // pred_fallthru
      _
    // Predicated region
    $region70: #{byol_forward.1} parent=1 // pred_check
      _
    $region71: #{byol_forward.1} parent=1 // pred_check_branch
      %143 = sbr.rel (0) target = $region73
    $region72: #{byol_forward.1} parent=1 // pred_region
      _
    $region73: #{byol_forward.1} parent=1 // pred_fallthru
      _
    // Predicated region
    $region74: #{byol_forward.1} parent=1 // pred_check
      _
    $region75: #{byol_forward.1} parent=1 // pred_check_branch
      %145 = sbr.rel (0) target = $region77
    $region76: #{byol_forward.1} parent=1 // pred_region
      _
    $region77: #{byol_forward.1} parent=1 // pred_fallthru
      _
    // Predicated region
    $region78: #{byol_forward.1} parent=1 // pred_check
      _
    $region79: #{byol_forward.1} parent=1 // pred_check_branch
      %147 = sbr.rel (0) target = $region81
    $region80: #{byol_forward.1} parent=1 // pred_region
      _
    $region81: #{byol_forward.1} parent=1 // pred_fallthru
      _
    // Predicated region
    $region82: #{byol_forward.1} parent=1 // pred_check
      _
    $region83: #{byol_forward.1} parent=1 // pred_check_branch
      %149 = sbr.rel (0) target = $region85
    $region84: #{byol_forward.1} parent=1 // pred_region
      _
    $region85: #{byol_forward.1} parent=1 // pred_fallthru
      _
    // Predicated region
    $region86: #{byol_forward.1} parent=1 // pred_check
      _
    $region87: #{byol_forward.1} parent=1 // pred_check_branch
      %151 = sbr.rel (0) target = $region89
    $region88: #{byol_forward.1} parent=1 // pred_region
      _
    $region89: #{byol_forward.1} parent=1 // pred_fallthru
      _
    // Predicated region
    $region90: #{byol_forward.1} parent=1 // pred_check
      _
    $region91: #{byol_forward.1} parent=1 // pred_check_branch
      %153 = sbr.rel (0) target = $region93
    $region92: #{byol_forward.1} parent=1 // pred_region
      _
    $region93: #{byol_forward.1} parent=1 // pred_fallthru
      _
    // Predicated region
    $region94: #{byol_forward.1} parent=1 // pred_check
      _
    $region95: #{byol_forward.1} parent=1 // pred_check_branch
      %155 = sbr.rel (0) target = $region97
    $region96: #{byol_forward.1} parent=1 // pred_region
      _
    $region97: #{byol_forward.1} parent=1 // pred_fallthru
      _
    // Predicated region
    $region98: #{byol_forward.1} parent=1 // pred_check
      _
    $region99: #{byol_forward.1} parent=1 // pred_check_branch
      %157 = sbr.rel (0) target = $region101
    $region100: #{byol_forward.1} parent=1 // pred_region
      _
    $region101: #{byol_forward.1} parent=1 // pred_fallthru
      _
    // Predicated region
    $region102: #{byol_forward.1} parent=1 // pred_check
      _
    $region103: #{byol_forward.1} parent=1 // pred_check_branch
      %159 = sbr.rel (0) target = $region105
    $region104: #{byol_forward.1} parent=1 // pred_region
      _
    $region105: #{byol_forward.1} parent=1 // pred_fallthru
      _
    // Predicated region
    $region106: #{byol_forward.1} parent=1 // pred_check
      _
    $region107: #{byol_forward.1} parent=1 // pred_check_branch
      %161 = sbr.rel (0) target = $region109
    $region108: #{byol_forward.1} parent=1 // pred_region
      _
    $region109: #{byol_forward.1} parent=1 // pred_fallthru
      _
    // Predicated region
    $region110: #{byol_forward.1} parent=1 // pred_check
      _
    $region111: #{byol_forward.1} parent=1 // pred_check_branch
      %163 = sbr.rel (0) target = $region113
    $region112: #{byol_forward.1} parent=1 // pred_region
      _
    $region113: #{byol_forward.1} parent=1 // pred_fallthru
      _
    // Predicated region
    $region114: #{byol_forward.1} parent=1 // pred_check
      _
    $region115: #{byol_forward.1} parent=1 // pred_check_branch
      %165 = sbr.rel (0) target = $region117
    $region116: #{byol_forward.1} parent=1 // pred_region
      _
    $region117: #{byol_forward.1} parent=1 // pred_fallthru
      _
    // Predicated region
    $region118: #{byol_forward.1} parent=1 // pred_check
      _
    $region119: #{byol_forward.1} parent=1 // pred_check_branch
      %167 = sbr.rel (0) target = $region121
    $region120: #{byol_forward.1} parent=1 // pred_region
      _
    $region121: #{byol_forward.1} parent=1 // pred_fallthru
      _
    // Predicated region
    $region122: #{byol_forward.1} parent=1 // pred_check
      _
    $region123: #{byol_forward.1} parent=1 // pred_check_branch
      %169 = sbr.rel (0) target = $region125
    $region124: #{byol_forward.1} parent=1 // pred_region
      _
    $region125: #{byol_forward.1} parent=1 // pred_fallthru
      _
    // Predicated region
    $region126: #{byol_forward.1} parent=1 // pred_check
      _
    $region127: #{byol_forward.1} parent=1 // pred_check_branch
      %171 = sbr.rel (0) target = $region129
    $region128: #{byol_forward.1} parent=1 // pred_region
      _
    $region129: #{byol_forward.1} parent=1 // pred_fallthru
      _
    // Predicated region
    $region130: #{byol_forward.1} parent=1 // pred_check
      _
    $region131: #{byol_forward.1} parent=1 // pred_check_branch
      %173 = sbr.rel (0) target = $region133
    $region132: #{byol_forward.1} parent=1 // pred_region
      _
    $region133: #{byol_forward.1} parent=1 // pred_fallthru
      _
    // Predicated region
    $region134: #{byol_forward.1} parent=1 // pred_check
      _
    $region135: #{byol_forward.1} parent=1 // pred_check_branch
      %175 = sbr.rel (0) target = $region137
    $region136: #{byol_forward.1} parent=1 // pred_region
      _
    $region137: #{byol_forward.1} parent=1 // pred_fallthru
      _
    // Predicated region
    $region138: #{byol_forward.1} parent=1 // pred_check
      _
    $region139: #{byol_forward.1} parent=1 // pred_check_branch
      %177 = sbr.rel (0) target = $region141
    $region140: #{byol_forward.1} parent=1 // pred_region
      _
    $region141: #{byol_forward.1} parent=1 // pred_fallthru
      _
    // Predicated region
    $region142: #{byol_forward.1} parent=1 // pred_check
      _
    $region143: #{byol_forward.1} parent=1 // pred_check_branch
      %179 = sbr.rel (0) target = $region145
    $region144: #{byol_forward.1} parent=1 // pred_region
      _
    $region145: #{byol_forward.1} parent=1 // pred_fallthru
      _
    // Predicated region
    $region146: #{byol_forward.1} parent=1 // pred_check
      _
    $region147: #{byol_forward.1} parent=1 // pred_check_branch
      %181 = sbr.rel (0) target = $region149
    $region148: #{byol_forward.1} parent=1 // pred_region
      _
    $region149: #{byol_forward.1} parent=1 // pred_fallthru
      _
    // Predicated region
    $region150: #{byol_forward.1} parent=1 // pred_check
      _
    $region151: #{byol_forward.1} parent=1 // pred_check_branch
      %183 = sbr.rel (0) target = $region153
    $region152: #{byol_forward.1} parent=1 // pred_region
      _
    $region153: #{byol_forward.1} parent=1 // pred_fallthru
      _
    // Predicated region
    $region154: #{byol_forward.1} parent=1 // pred_check
      _
    $region155: #{byol_forward.1} parent=1 // pred_check_branch
      %185 = sbr.rel (0) target = $region157
    $region156: #{byol_forward.1} parent=1 // pred_region
      _
    $region157: #{byol_forward.1} parent=1 // pred_fallthru
      _
    // Predicated region
    $region158: #{byol_forward.1} parent=1 // pred_check
      _
    $region159: #{byol_forward.1} parent=1 // pred_check_branch
      %187 = sbr.rel (0) target = $region161
    $region160: #{byol_forward.1} parent=1 // pred_region
      _
    $region161: #{byol_forward.1} parent=1 // pred_fallthru
      _
    // Predicated region
    $region162: #{byol_forward.1} parent=1 // pred_check
      _
    $region163: #{byol_forward.1} parent=1 // pred_check_branch
      %189 = sbr.rel (0) target = $region165
    $region164: #{byol_forward.1} parent=1 // pred_region
      _
    $region165: #{byol_forward.1} parent=1 // pred_fallthru
      _
    // Predicated region
    $region166: #{byol_forward.1} parent=1 // pred_check
      _
    $region167: #{byol_forward.1} parent=1 // pred_check_branch
      %191 = sbr.rel (0) target = $region169
    $region168: #{byol_forward.1} parent=1 // pred_region
      %s193 = ssub.s32 16, 16
      %194 = vsyncadd [#allocation3], %s193
      %s196 = sshll.u32 [#allocation2], 4
      %s197 = int_to_ptr.vmem [resolvable:$true] %s196
      %199 = dma.hbm_to_vmem [thread:$0]  %s83, 16, %s197, [#allocation3]
    $region169: #{byol_forward.1} parent=1 // pred_fallthru
      _
    // Predicated region
    $region170: #{byol_forward.1} parent=1 // pred_check
      _
    $region171: #{byol_forward.1} parent=1 // pred_check_branch
      %201 = sbr.rel (0) target = $region173
    $region172: #{byol_forward.1} parent=1 // pred_region
      %s203 = ssub.s32 16, 16
      %204 = vsyncadd [#allocation6], %s203
      %s206 = sshll.u32 [#allocation5], 4
      %s207 = int_to_ptr.vmem [resolvable:$true] %s206
      %209 = dma.hbm_to_vmem [thread:$0]  %s85, 16, %s207, [#allocation6]
    $region173: #{byol_forward.1} parent=1 // pred_fallthru
      _
    // Predicated region
    $region174: #{byol_forward.1} parent=1 // pred_check
      _
    $region175: #{byol_forward.1} parent=1 // pred_check_branch
      %211 = sbr.rel (0) target = $region177
    $region176: #{byol_forward.1} parent=1 // pred_region
      %s213 = ssub.s32 16, 16
      %214 = vsyncadd [#allocation6], %s213
      %s216 = sshll.u32 [#allocation7], 4
      %s217 = int_to_ptr.vmem [resolvable:$true] %s216
      %219 = dma.hbm_to_vmem [thread:$0]  %s87, 16, %s217, [#allocation6]
    $region177: #{byol_forward.1} parent=1 // pred_fallthru
      _
    // Predicated region
    $region178: #{byol_forward.1} parent=1 // pred_check
      _
    $region179: #{byol_forward.1} parent=1 // pred_check_branch
      %221 = sbr.rel (0) target = $region181
    $region180: #{byol_forward.1} parent=1 // pred_region
      _
    $region181: #{byol_forward.1} parent=1 // pred_fallthru
      _
    // Predicated region
    $region182: #{byol_forward.1} parent=1 // pred_check
      _
    $region183: #{byol_forward.1} parent=1 // pred_check_branch
      %223 = sbr.rel (0) target = $region185
    $region184: #{byol_forward.1} parent=1 // pred_region
      %s225 = ssub.s32 16, 16
      %226 = vsyncadd [#allocation9], %s225
      %s228 = sshll.u32 [#allocation8], 4
      %s229 = int_to_ptr.vmem [resolvable:$true] %s228
      %231 = dma.hbm_to_vmem [thread:$0]  %s91, 16, %s229, [#allocation9]
    $region185: #{byol_forward.1} parent=1 // pred_fallthru
      _
    // Predicated region
    $region186: #{byol_forward.1} parent=1 // pred_check
      _
    $region187: #{byol_forward.1} parent=1 // pred_check_branch
      %233 = sbr.rel (0) target = $region189
    $region188: #{byol_forward.1} parent=1 // pred_region
      _
    $region189: #{byol_forward.1} parent=1 // pred_fallthru
      _
    // Predicated region
    $region190: #{byol_forward.1} parent=1 // pred_check
      _
    $region191: #{byol_forward.1} parent=1 // pred_check_branch
      %235 = sbr.rel (0) target = $region193
    $region192: #{byol_forward.1} parent=1 // pred_region
      %s237 = ssub.s32 16, 16
      %238 = vsyncadd [#allocation9], %s237
      %s240 = sshll.u32 [#allocation10], 4
      %s241 = int_to_ptr.vmem [resolvable:$true] %s240
      %243 = dma.hbm_to_vmem [thread:$0]  %s95, 16, %s241, [#allocation9]
    $region193: #{byol_forward.1} parent=1 // pred_fallthru
      _
    // Predicated region
    $region194: #{byol_forward.1} parent=1 // pred_check
      _
    $region195: #{byol_forward.1} parent=1 // pred_check_branch
      %245 = sbr.rel (0) target = $region197
    $region196: #{byol_forward.1} parent=1 // pred_region
      _
    $region197: #{byol_forward.1} parent=1 // pred_fallthru
      _
    // Predicated region
    $region198: #{byol_forward.1} parent=1 // pred_check
      _
    $region199: #{byol_forward.1} parent=1 // pred_check_branch
      %247 = sbr.rel (0) target = $region201
    $region200: #{byol_forward.1} parent=1 // pred_region
      %248 = dma.done [#allocation3], 16
    $region201: #{byol_forward.1} parent=1 // pred_fallthru
      _
    // Predicated region
    $region202: #{byol_forward.1} parent=1 // pred_check
      _
    $region203: #{byol_forward.1} parent=1 // pred_check_branch
      %250 = sbr.rel (0) target = $region205
    $region204: #{byol_forward.1} parent=1 // pred_region
      %251 = dma.done [#allocation6], 16
    $region205: #{byol_forward.1} parent=1 // pred_fallthru
      _
    // Predicated region
    $region206: #{byol_forward.1} parent=1 // pred_check
      _
    $region207: #{byol_forward.1} parent=1 // pred_check_branch
      %253 = sbr.rel (0) target = $region209
    $region208: #{byol_forward.1} parent=1 // pred_region
      %254 = dma.done [#allocation6], 16
    $region209: #{byol_forward.1} parent=1 // pred_fallthru
      _
    // Predicated region
    $region210: #{byol_forward.1} parent=1 // pred_check
      _
    $region211: #{byol_forward.1} parent=1 // pred_check_branch
      %256 = sbr.rel (0) target = $region213
    $region212: #{byol_forward.1} parent=1 // pred_region
      %257 = dma.done [#allocation9], 16
    $region213: #{byol_forward.1} parent=1 // pred_fallthru
      _
    // Predicated region
    $region214: #{byol_forward.1} parent=1 // pred_check
      _
    $region215: #{byol_forward.1} parent=1 // pred_check_branch
      %259 = sbr.rel (0) target = $region217
    $region216: #{byol_forward.1} parent=1 // pred_region
      %260 = dma.done [#allocation9], 16
    $region217: #{byol_forward.1} parent=1 // pred_fallthru
      _
    %v262 = vld [vmem:[%s1] sm:$0xff]
    %v263 = vld [vmem:[%s1 + $0x8] sm:$0xff]
    %v264 = vld [vmem:[%s5] sm:$0xff]
    %v265 = vld [vmem:[%s5 + $0x8] sm:$0xff]
    %v266 = vld [vmem:[%s3] sm:$0x1]
    %v268 = vlaneseq
    %v269 = vshrl.u32 %v268, 7
    %v270 = vsub.s32 0, %v269
    %v271 = vrot.slane %v266, %v270
    %vm273 = vcmask 130048
    %v275 = vsel %vm273, %v262, 0
    %v278 = vsel %vm273, %v263, 0
    %280 = vmatprep.subr.mxu0 0.0
    %281 = vmatpush1.msra.mxu0 %v264
    %282 = vmatprep.subr.mxu0 0.0
    %283 = vmatpush1.msra.mxu0 %v265
    %284 = vmatprep.subr.mxu0 0.0
    %285 = vmatpush1.msra.mxu0 0.0
    %286 = vmatprep.subr.mxu0 0.0
    %287 = vmatpush1.msra.mxu0 0.0
    %288 = vmatprep.subr.mxu0 0.0
    %289 = vmatpush1.msra.mxu0 0.0
    %290 = vmatprep.subr.mxu0 0.0
    %291 = vmatpush1.msra.mxu0 0.0
    %292 = vmatprep.subr.mxu0 0.0
    %293 = vmatpush1.msra.mxu0 0.0
    %294 = vmatprep.subr.mxu0 0.0
    %295 = vmatpush1.msra.mxu0 0.0
    %296 = vmatprep.subr.mxu0 0.0
    %297 = vmatpush1.msra.mxu0 0.0
    %298 = vmatprep.subr.mxu0 0.0
    %299 = vmatpush1.msra.mxu0 0.0
    %300 = vmatprep.subr.mxu0 0.0
    %301 = vmatpush1.msra.mxu0 0.0
    %302 = vmatprep.subr.mxu0 0.0
    %303 = vmatpush1.msra.mxu0 0.0
    %304 = vmatprep.subr.mxu0 0.0
    %305 = vmatpush1.msra.mxu0 0.0
    %306 = vmatprep.subr.mxu0 0.0
    %307 = vmatpush1.msra.mxu0 0.0
    %308 = vmatprep.subr.mxu0 0.0
    %309 = vmatpush1.msra.mxu0 0.0
    %310 = vmatprep.subr.mxu0 0.0
    %311 = vmatpush1.msra.mxu0 0.0
    %312 = vmatprep.subr.mxu0 0.0
    %313 = vmatpush1.msra.mxu0 0.0
    %314 = vmatprep.subr.mxu0 0.0
    %315 = vmatpush1.msra.mxu0 0.0
    %316 = vmatprep.subr.mxu0 0.0
    %317 = vmatpush1.msra.mxu0 0.0
    %318 = vmatprep.subr.mxu0 0.0
    %319 = vmatpush1.msra.mxu0 0.0
    %320 = vmatprep.subr.mxu0 0.0
    %321 = vmatpush1.msra.mxu0 0.0
    %322 = vmatprep.subr.mxu0 0.0
    %323 = vmatpush1.msra.mxu0 0.0
    %324 = vmatprep.subr.mxu0 0.0
    %325 = vmatpush1.msra.mxu0 0.0
    %326 = vmatprep.subr.mxu0 0.0
    %327 = vmatpush1.msra.mxu0 0.0
    %328 = vmatprep.subr.mxu0 0.0
    %329 = vmatpush1.msra.mxu0 0.0
    %330 = vmatprep.subr.mxu0 0.0
    %331 = vmatpush1.msra.mxu0 0.0
    %332 = vmatprep.subr.mxu0 0.0
    %333 = vmatpush1.msra.mxu0 0.0
    %334 = vmatprep.subr.mxu0 0.0
    %335 = vmatpush1.msra.mxu0 0.0
    %336 = vmatprep.subr.mxu0 0.0
    %337 = vmatpush1.msra.mxu0 0.0
    %338 = vmatprep.subr.mxu0 0.0
    %339 = vmatpush1.msra.mxu0 0.0
    %340 = vmatprep.subr.mxu0 0.0
    %341 = vmatpush1.msra.mxu0 0.0
    %342 = vmatprep.subr.mxu0 0.0
    %343 = vmatpush1.msra.mxu0 0.0
    %344 = vmatprep.mubr.f32.mxu0 0.0
    %345 = vmatmul.mubr.f32.gmra.mrb[0].mxu0 %v275
    %v346 = vpop.f32.mrb[0].mxu0
    %v347 = vadd.f32 %v271, %v346
    %v348 = vpop.f32.mrb[0].mxu0
    %349 = vmatprep.mubr.f32.mxu0 0.0
    %350 = vmatmul.mubr.f32.gmra.mrb[0].mxu0 %v278
    %v351 = vpop.f32.mrb[0].mxu0
    %v352 = vadd.f32 %v271, %v351
    %v353 = vpop.f32.mrb[0].mxu0
    %354 = vdwg.mxu0
    %v355 = vld [vmem:[%s33] sm:$0xff]
    %v356 = vld [vmem:[%s33 + $0x8] sm:$0xff]
    %v357 = vld [vmem:[%s33 + $0x10] sm:$0xff]
    %v358 = vld [vmem:[%s33 + $0x18] sm:$0xff]
    %v359 = vld [vmem:[%s17] sm:$0x1]
    %v361 = vlaneseq
    %v362 = vshrl.u32 %v361, 7
    %v363 = vsub.s32 0, %v362
    %v364 = vrot.slane %v359, %v363
    %vm366 = vcmask 261120
    %v368 = vsel %vm366, %v347, 0
    %v371 = vsel %vm366, %v352, 0
    %373 = vmatprep.subr.mxu0 0.0
    %374 = vmatpush1.msra.mxu0 %v355
    %375 = vmatprep.subr.mxu0 0.0
    %376 = vmatpush1.msra.mxu0 %v356
    %377 = vmatprep.subr.mxu0 0.0
    %378 = vmatpush1.msra.mxu0 %v357
    %379 = vmatprep.subr.mxu0 0.0
    %380 = vmatpush1.msra.mxu0 %v358
    %381 = vmatprep.subr.mxu0 0.0
    %382 = vmatpush1.msra.mxu0 0.0
    %383 = vmatprep.subr.mxu0 0.0
    %384 = vmatpush1.msra.mxu0 0.0
    %385 = vmatprep.subr.mxu0 0.0
    %386 = vmatpush1.msra.mxu0 0.0
    %387 = vmatprep.subr.mxu0 0.0
    %388 = vmatpush1.msra.mxu0 0.0
    %389 = vmatprep.subr.mxu0 0.0
    %390 = vmatpush1.msra.mxu0 0.0
    %391 = vmatprep.subr.mxu0 0.0
    %392 = vmatpush1.msra.mxu0 0.0
    %393 = vmatprep.subr.mxu0 0.0
    %394 = vmatpush1.msra.mxu0 0.0
    %395 = vmatprep.subr.mxu0 0.0
    %396 = vmatpush1.msra.mxu0 0.0
    %397 = vmatprep.subr.mxu0 0.0
    %398 = vmatpush1.msra.mxu0 0.0
    %399 = vmatprep.subr.mxu0 0.0
    %400 = vmatpush1.msra.mxu0 0.0
    %401 = vmatprep.subr.mxu0 0.0
    %402 = vmatpush1.msra.mxu0 0.0
    %403 = vmatprep.subr.mxu0 0.0
    %404 = vmatpush1.msra.mxu0 0.0
    %405 = vmatprep.subr.mxu0 0.0
    %406 = vmatpush1.msra.mxu0 0.0
    %407 = vmatprep.subr.mxu0 0.0
    %408 = vmatpush1.msra.mxu0 0.0
    %409 = vmatprep.subr.mxu0 0.0
    %410 = vmatpush1.msra.mxu0 0.0
    %411 = vmatprep.subr.mxu0 0.0
    %412 = vmatpush1.msra.mxu0 0.0
    %413 = vmatprep.subr.mxu0 0.0
    %414 = vmatpush1.msra.mxu0 0.0
    %415 = vmatprep.subr.mxu0 0.0
    %416 = vmatpush1.msra.mxu0 0.0
    %417 = vmatprep.subr.mxu0 0.0
    %418 = vmatpush1.msra.mxu0 0.0
    %419 = vmatprep.subr.mxu0 0.0
    %420 = vmatpush1.msra.mxu0 0.0
    %421 = vmatprep.subr.mxu0 0.0
    %422 = vmatpush1.msra.mxu0 0.0
    %423 = vmatprep.subr.mxu0 0.0
    %424 = vmatpush1.msra.mxu0 0.0
    %425 = vmatprep.subr.mxu0 0.0
    %426 = vmatpush1.msra.mxu0 0.0
    %427 = vmatprep.subr.mxu0 0.0
    %428 = vmatpush1.msra.mxu0 0.0
    %429 = vmatprep.subr.mxu0 0.0
    %430 = vmatpush1.msra.mxu0 0.0
    %431 = vmatprep.subr.mxu0 0.0
    %432 = vmatpush1.msra.mxu0 0.0
    %433 = vmatprep.subr.mxu0 0.0
    %434 = vmatpush1.msra.mxu0 0.0
    %435 = vmatprep.subr.mxu0 0.0
    %436 = vmatpush1.msra.mxu0 0.0
    %437 = vmatprep.mubr.f32.mxu0 0.0
    %438 = vmatmul.mubr.f32.gmra.mrb[0].mxu0 %v368
    %v439 = vpop.f32.mrb[0].mxu0
    %v440 = vadd.f32 %v364, %v439
    %v441 = vpop.f32.mrb[0].mxu0
    %442 = vmatprep.mubr.f32.mxu0 0.0
    %443 = vmatmul.mubr.f32.gmra.mrb[0].mxu0 %v371
    %v444 = vpop.f32.mrb[0].mxu0
    %v445 = vadd.f32 %v364, %v444
    %v446 = vpop.f32.mrb[0].mxu0
    %447 = vdwg.mxu0
    %v448 = vld [vmem:[%s31] sm:$0xff]
    %v449 = vld [vmem:[%s31 + $0x8] sm:$0xff]
    %v450 = vld [vmem:[%s31 + $0x10] sm:$0xff]
    %v451 = vld [vmem:[%s31 + $0x18] sm:$0xff]
    %v452 = vld [vmem:[%s15] sm:$0x1]
    %v454 = vlaneseq
    %v455 = vshrl.u32 %v454, 7
    %v456 = vsub.s32 0, %v455
    %v457 = vrot.slane %v452, %v456
    %v460 = vsel %vm366, %v440, 0
    %v463 = vsel %vm366, %v445, 0
    %465 = vmatprep.subr.mxu0 0.0
    %466 = vmatpush1.msra.mxu0 %v448
    %467 = vmatprep.subr.mxu0 0.0
    %468 = vmatpush1.msra.mxu0 %v449
    %469 = vmatprep.subr.mxu0 0.0
    %470 = vmatpush1.msra.mxu0 %v450
    %471 = vmatprep.subr.mxu0 0.0
    %472 = vmatpush1.msra.mxu0 %v451
    %473 = vmatprep.subr.mxu0 0.0
    %474 = vmatpush1.msra.mxu0 0.0
    %475 = vmatprep.subr.mxu0 0.0
    %476 = vmatpush1.msra.mxu0 0.0
    %477 = vmatprep.subr.mxu0 0.0
    %478 = vmatpush1.msra.mxu0 0.0
    %479 = vmatprep.subr.mxu0 0.0
    %480 = vmatpush1.msra.mxu0 0.0
    %481 = vmatprep.subr.mxu0 0.0
    %482 = vmatpush1.msra.mxu0 0.0
    %483 = vmatprep.subr.mxu0 0.0
    %484 = vmatpush1.msra.mxu0 0.0
    %485 = vmatprep.subr.mxu0 0.0
    %486 = vmatpush1.msra.mxu0 0.0
    %487 = vmatprep.subr.mxu0 0.0
    %488 = vmatpush1.msra.mxu0 0.0
    %489 = vmatprep.subr.mxu0 0.0
    %490 = vmatpush1.msra.mxu0 0.0
    %491 = vmatprep.subr.mxu0 0.0
    %492 = vmatpush1.msra.mxu0 0.0
    %493 = vmatprep.subr.mxu0 0.0
    %494 = vmatpush1.msra.mxu0 0.0
    %495 = vmatprep.subr.mxu0 0.0
    %496 = vmatpush1.msra.mxu0 0.0
    %497 = vmatprep.subr.mxu0 0.0
    %498 = vmatpush1.msra.mxu0 0.0
    %499 = vmatprep.subr.mxu0 0.0
    %500 = vmatpush1.msra.mxu0 0.0
    %501 = vmatprep.subr.mxu0 0.0
    %502 = vmatpush1.msra.mxu0 0.0
    %503 = vmatprep.subr.mxu0 0.0
    %504 = vmatpush1.msra.mxu0 0.0
    %505 = vmatprep.subr.mxu0 0.0
    %506 = vmatpush1.msra.mxu0 0.0
    %507 = vmatprep.subr.mxu0 0.0
    %508 = vmatpush1.msra.mxu0 0.0
    %509 = vmatprep.subr.mxu0 0.0
    %510 = vmatpush1.msra.mxu0 0.0
    %511 = vmatprep.subr.mxu0 0.0
    %512 = vmatpush1.msra.mxu0 0.0
    %513 = vmatprep.subr.mxu0 0.0
    %514 = vmatpush1.msra.mxu0 0.0
    %515 = vmatprep.subr.mxu0 0.0
    %516 = vmatpush1.msra.mxu0 0.0
    %517 = vmatprep.subr.mxu0 0.0
    %518 = vmatpush1.msra.mxu0 0.0
    %519 = vmatprep.subr.mxu0 0.0
    %520 = vmatpush1.msra.mxu0 0.0
    %521 = vmatprep.subr.mxu0 0.0
    %522 = vmatpush1.msra.mxu0 0.0
    %523 = vmatprep.subr.mxu0 0.0
    %524 = vmatpush1.msra.mxu0 0.0
    %525 = vmatprep.subr.mxu0 0.0
    %526 = vmatpush1.msra.mxu0 0.0
    %527 = vmatprep.subr.mxu0 0.0
    %528 = vmatpush1.msra.mxu0 0.0
    %529 = vmatprep.mubr.f32.mxu0 0.0
    %530 = vmatmul.mubr.f32.gmra.mrb[0].mxu0 %v460
    %v531 = vpop.f32.mrb[0].mxu0
    %v532 = vadd.f32 %v457, %v531
    %v533 = vpop.f32.mrb[0].mxu0
    %534 = vmatprep.mubr.f32.mxu0 0.0
    %535 = vmatmul.mubr.f32.gmra.mrb[0].mxu0 %v463
    %v536 = vpop.f32.mrb[0].mxu0
    %v537 = vadd.f32 %v457, %v536
    %v538 = vpop.f32.mrb[0].mxu0
    %539 = vdwg.mxu0
    %v540 = vadd.f32 %v347, %v532
    %v541 = vadd.f32 %v352, %v537
    %v542 = vsel %vm366, %v540, 0.0
    %543 = vadd.xlane.f32.xlu0 %v542
    %v544 = vpop.xlane.xlu0 %543
    %v545 = vsel %vm366, %v541, 0.0
    %546 = vadd.xlane.f32.xlu0 %v545
    %v547 = vpop.xlane.xlu0 %546
    %v548 = vrcp.pop 32.0
    %v549 = vmul.f32 %v544, %v548
    %v550 = vmul.f32 %v547, %v548
    %v551 = vsub.f32 %v540, %v549
    %v552 = vsub.f32 %v541, %v550
    %v553 = vmul.f32 %v551, %v551
    %v554 = vmul.f32 %v552, %v552
    %v555 = vsel %vm366, %v553, 0.0
    %556 = vadd.xlane.f32.xlu0 %v555
    %v557 = vpop.xlane.xlu0 %556
    %v558 = vsel %vm366, %v554, 0.0
    %559 = vadd.xlane.f32.xlu0 %v558
    %v560 = vpop.xlane.xlu0 %559
    %v561 = vmul.f32 %v557, %v548
    %v562 = vmul.f32 %v560, %v548
    %v563 = vadd.f32 %v561, 1e-05
    %v564 = vadd.f32 %v562, 1e-05
    %v565 = vrsqrt.pop %v563
    %v566 = vrsqrt.pop %v564
    %v567 = vmul.f32 %v551, %v565
    %v568 = vmul.f32 %v552, %v566
    %v569 = vld [vmem:[%s21] sm:$0x1]
    %v571 = vlaneseq
    %v572 = vshrl.u32 %v571, 7
    %v573 = vsub.s32 0, %v572
    %v574 = vrot.slane %v569, %v573
    %v576 = vmul.f32 %v567, %v574
    %v577 = vmul.f32 %v568, %v574
    %v578 = vld [vmem:[%s19] sm:$0x1]
    %v580 = vlaneseq
    %v581 = vshrl.u32 %v580, 7
    %v582 = vsub.s32 0, %v581
    %v583 = vrot.slane %v578, %v582
    %v585 = vadd.f32 %v576, %v583
    %v586 = vadd.f32 %v577, %v583
    %v587 = vpack.c.bf16 %v586, %v585
    %v588 = vld [vmem:[%s27] sm:$0xff]
    %v589 = vld [vmem:[%s27 + $0x8] sm:$0xff]
    %v590 = vld [vmem:[%s27 + $0x10] sm:$0xff]
    %v591 = vld [vmem:[%s27 + $0x18] sm:$0xff]
    %v592 = vld [vmem:[%s27 + $0x20] sm:$0xff]
    %v593 = vld [vmem:[%s27 + $0x28] sm:$0xff]
    %v594 = vld [vmem:[%s27 + $0x30] sm:$0xff]
    %v595 = vld [vmem:[%s27 + $0x38] sm:$0xff]
    %v596 = vld [vmem:[%s27 + $0x40] sm:$0xff]
    %v597 = vld [vmem:[%s27 + $0x48] sm:$0xff]
    %v598 = vld [vmem:[%s27 + $0x50] sm:$0xff]
    %v599 = vld [vmem:[%s27 + $0x58] sm:$0xff]
    %v600 = vld [vmem:[%s27 + $0x60] sm:$0xff]
    %v601 = vld [vmem:[%s27 + $0x68] sm:$0xff]
    %v602 = vld [vmem:[%s27 + $0x70] sm:$0xff]
    %v603 = vld [vmem:[%s27 + $0x78] sm:$0xff]
    %v604 = vld [vmem:[%s27 + $0x80] sm:$0xff]
    %v605 = vld [vmem:[%s27 + $0x88] sm:$0xff]
    %v606 = vld [vmem:[%s27 + $0x90] sm:$0xff]
    %v607 = vld [vmem:[%s27 + $0x98] sm:$0xff]
    %v608 = vld [vmem:[%s27 + $0xa0] sm:$0xff]
    %v609 = vld [vmem:[%s27 + $0xa8] sm:$0xff]
    %v610 = vld [vmem:[%s27 + $0xb0] sm:$0xff]
    %v611 = vld [vmem:[%s27 + $0xb8] sm:$0xff]
    %v612 = vld [vmem:[%s27 + $0xc0] sm:$0xff]
    %v613 = vld [vmem:[%s27 + $0xc8] sm:$0xff]
    %v614 = vld [vmem:[%s27 + $0xd0] sm:$0xff]
    %v615 = vld [vmem:[%s27 + $0xd8] sm:$0xff]
    %v616 = vld [vmem:[%s27 + $0xe0] sm:$0xff]
    %v617 = vld [vmem:[%s27 + $0xe8] sm:$0xff]
    %v618 = vld [vmem:[%s27 + $0xf0] sm:$0xff]
    %v619 = vld [vmem:[%s27 + $0xf8] sm:$0xff]
    %v620 = vld [vmem:[%s11] sm:$0xff]
    %v621 = vld [vmem:[%s11 + $0x8] sm:$0xff]
    %v624 = vlaneseq
    %v625 = vshrl.u32 %v624, 7
    %v626 = vsub.s32 0, %v625
    %v627 = vrot.slane %v620, %v626
    %v628 = vlaneseq
    %v629 = vshrl.u32 %v628, 7
    %v630 = vsub.s32 1, %v629
    %v631 = vrot.slane %v620, %v630
    %v632 = vlaneseq
    %v633 = vshrl.u32 %v632, 7
    %v634 = vsub.s32 2, %v633
    %v635 = vrot.slane %v620, %v634
    %v636 = vlaneseq
    %v637 = vshrl.u32 %v636, 7
    %v638 = vsub.s32 3, %v637
    %v639 = vrot.slane %v620, %v638
    %v640 = vlaneseq
    %v641 = vshrl.u32 %v640, 7
    %v642 = vsub.s32 4, %v641
    %v643 = vrot.slane %v620, %v642
    %v644 = vlaneseq
    %v645 = vshrl.u32 %v644, 7
    %v646 = vsub.s32 5, %v645
    %v647 = vrot.slane %v620, %v646
    %v648 = vlaneseq
    %v649 = vshrl.u32 %v648, 7
    %v650 = vsub.s32 6, %v649
    %v651 = vrot.slane %v620, %v650
    %v652 = vlaneseq
    %v653 = vshrl.u32 %v652, 7
    %v654 = vsub.s32 7, %v653
    %v655 = vrot.slane %v620, %v654
    %v656 = vlaneseq
    %v657 = vshrl.u32 %v656, 7
    %v658 = vsub.s32 0, %v657
    %v659 = vrot.slane %v621, %v658
    %v660 = vlaneseq
    %v661 = vshrl.u32 %v660, 7
    %v662 = vsub.s32 1, %v661
    %v663 = vrot.slane %v621, %v662
    %v664 = vlaneseq
    %v665 = vshrl.u32 %v664, 7
    %v666 = vsub.s32 2, %v665
    %v667 = vrot.slane %v621, %v666
    %v668 = vlaneseq
    %v669 = vshrl.u32 %v668, 7
    %v670 = vsub.s32 3, %v669
    %v671 = vrot.slane %v621, %v670
    %v672 = vlaneseq
    %v673 = vshrl.u32 %v672, 7
    %v674 = vsub.s32 4, %v673
    %v675 = vrot.slane %v621, %v674
    %v676 = vlaneseq
    %v677 = vshrl.u32 %v676, 7
    %v678 = vsub.s32 5, %v677
    %v679 = vrot.slane %v621, %v678
    %v680 = vlaneseq
    %v681 = vshrl.u32 %v680, 7
    %v682 = vsub.s32 6, %v681
    %v683 = vrot.slane %v621, %v682
    %v684 = vlaneseq
    %v685 = vshrl.u32 %v684, 7
    %v686 = vsub.s32 7, %v685
    %v687 = vrot.slane %v621, %v686
    %v736 = vunpack.c.l.b16 %v588
    %v737 = vunpack.c.h.b16 %v588
    %v738 = vunpack.c.l.b16 %v589
    %v739 = vunpack.c.h.b16 %v589
    %v740 = vunpack.c.l.b16 %v590
    %v741 = vunpack.c.h.b16 %v590
    %v742 = vunpack.c.l.b16 %v591
    %v743 = vunpack.c.h.b16 %v591
    %v744 = vunpack.c.l.b16 %v592
    %v745 = vunpack.c.h.b16 %v592
    %v746 = vunpack.c.l.b16 %v593
    %v747 = vunpack.c.h.b16 %v593
    %v748 = vunpack.c.l.b16 %v594
    %v749 = vunpack.c.h.b16 %v594
    %v750 = vunpack.c.l.b16 %v595
    %v751 = vunpack.c.h.b16 %v595
    %v752 = vunpack.c.l.b16 %v596
    %v753 = vunpack.c.h.b16 %v596
    %v754 = vunpack.c.l.b16 %v597
    %v755 = vunpack.c.h.b16 %v597
    %v756 = vunpack.c.l.b16 %v598
    %v757 = vunpack.c.h.b16 %v598
    %v758 = vunpack.c.l.b16 %v599
    %v759 = vunpack.c.h.b16 %v599
    %v760 = vunpack.c.l.b16 %v600
    %v761 = vunpack.c.h.b16 %v600
    %v762 = vunpack.c.l.b16 %v601
    %v763 = vunpack.c.h.b16 %v601
    %v764 = vunpack.c.l.b16 %v602
    %v765 = vunpack.c.h.b16 %v602
    %v766 = vunpack.c.l.b16 %v603
    %v767 = vunpack.c.h.b16 %v603
    %v768 = vunpack.c.l.b16 %v604
    %v769 = vunpack.c.h.b16 %v604
    %v770 = vunpack.c.l.b16 %v605
    %v771 = vunpack.c.h.b16 %v605
    %v772 = vunpack.c.l.b16 %v606
    %v773 = vunpack.c.h.b16 %v606
    %v774 = vunpack.c.l.b16 %v607
    %v775 = vunpack.c.h.b16 %v607
    %v776 = vunpack.c.l.b16 %v608
    %v777 = vunpack.c.h.b16 %v608
    %v778 = vunpack.c.l.b16 %v609
    %v779 = vunpack.c.h.b16 %v609
    %v780 = vunpack.c.l.b16 %v610
    %v781 = vunpack.c.h.b16 %v610
    %v782 = vunpack.c.l.b16 %v611
    %v783 = vunpack.c.h.b16 %v611
    %v784 = vunpack.c.l.b16 %v612
    %v785 = vunpack.c.h.b16 %v612
    %v786 = vunpack.c.l.b16 %v613
    %v787 = vunpack.c.h.b16 %v613
    %v788 = vunpack.c.l.b16 %v614
    %v789 = vunpack.c.h.b16 %v614
    %v790 = vunpack.c.l.b16 %v615
    %v791 = vunpack.c.h.b16 %v615
    %v792 = vunpack.c.l.b16 %v616
    %v793 = vunpack.c.h.b16 %v616
    %v794 = vunpack.c.l.b16 %v617
    %v795 = vunpack.c.h.b16 %v617
    %v796 = vunpack.c.l.b16 %v618
    %v797 = vunpack.c.h.b16 %v618
    %v798 = vunpack.c.l.b16 %v619
    %v799 = vunpack.c.h.b16 %v619
    %v800 = vpack.c.b16 %v752, %v736
    %v801 = vpack.c.b16 %v753, %v737
    %v802 = vpack.c.b16 %v754, %v738
    %v803 = vpack.c.b16 %v755, %v739
    %v804 = vpack.c.b16 %v756, %v740
    %v805 = vpack.c.b16 %v757, %v741
    %v806 = vpack.c.b16 %v758, %v742
    %v807 = vpack.c.b16 %v759, %v743
    %v808 = vpack.c.b16 %v760, %v744
    %v809 = vpack.c.b16 %v761, %v745
    %v810 = vpack.c.b16 %v762, %v746
    %v811 = vpack.c.b16 %v763, %v747
    %v812 = vpack.c.b16 %v764, %v748
    %v813 = vpack.c.b16 %v765, %v749
    %v814 = vpack.c.b16 %v766, %v750
    %v815 = vpack.c.b16 %v767, %v751
    %v816 = vpack.c.b16 %v784, %v768
    %v817 = vpack.c.b16 %v785, %v769
    %v818 = vpack.c.b16 %v786, %v770
    %v819 = vpack.c.b16 %v787, %v771
    %v820 = vpack.c.b16 %v788, %v772
    %v821 = vpack.c.b16 %v789, %v773
    %v822 = vpack.c.b16 %v790, %v774
    %v823 = vpack.c.b16 %v791, %v775
    %v824 = vpack.c.b16 %v792, %v776
    %v825 = vpack.c.b16 %v793, %v777
    %v826 = vpack.c.b16 %v794, %v778
    %v827 = vpack.c.b16 %v795, %v779
    %v828 = vpack.c.b16 %v796, %v780
    %v829 = vpack.c.b16 %v797, %v781
    %v830 = vpack.c.b16 %v798, %v782
    %v831 = vpack.c.b16 %v799, %v783
    %v865 = vsel %vm366, %v587, 0
    %867 = vmatprep.subr.bf16.mxu0 %v801
    %868 = vmatpush1.bf16.msra.mxu0 %v800
    %869 = vmatprep.subr.bf16.mxu0 %v817
    %870 = vmatpush1.bf16.msra.mxu0 %v816
    %871 = vmatprep.subr.bf16.mxu0 0
    %872 = vmatpush1.bf16.msra.mxu0 0
    %873 = vmatprep.subr.bf16.mxu0 0
    %874 = vmatpush1.bf16.msra.mxu0 0
    %875 = vmatprep.subr.bf16.mxu0 0
    %876 = vmatpush1.bf16.msra.mxu0 0
    %877 = vmatprep.subr.bf16.mxu0 0
    %878 = vmatpush1.bf16.msra.mxu0 0
    %879 = vmatprep.subr.bf16.mxu0 0
    %880 = vmatpush1.bf16.msra.mxu0 0
    %881 = vmatprep.subr.bf16.mxu0 0
    %882 = vmatpush1.bf16.msra.mxu0 0
    %883 = vmatprep.subr.bf16.mxu0 0
    %884 = vmatpush1.bf16.msra.mxu0 0
    %885 = vmatprep.subr.bf16.mxu0 0
    %886 = vmatpush1.bf16.msra.mxu0 0
    %887 = vmatprep.subr.bf16.mxu0 0
    %888 = vmatpush1.bf16.msra.mxu0 0
    %889 = vmatprep.subr.bf16.mxu0 0
    %890 = vmatpush1.bf16.msra.mxu0 0
    %891 = vmatprep.subr.bf16.mxu0 0
    %892 = vmatpush1.bf16.msra.mxu0 0
    %893 = vmatprep.subr.bf16.mxu0 0
    %894 = vmatpush1.bf16.msra.mxu0 0
    %895 = vmatprep.subr.bf16.mxu0 0
    %896 = vmatpush1.bf16.msra.mxu0 0
    %897 = vmatprep.subr.bf16.mxu0 0
    %898 = vmatpush1.bf16.msra.mxu0 0
    %899 = vmatprep.mubr.bf16.mxu0 0
    %900 = vmatmul.mubr.bf16.gmra.mrb[0].mxu0 %v865
    %v901 = vpop.f32.mrb[0].mxu0
    %v902 = vadd.f32 %v627, %v901
    %v903 = vpop.f32.mrb[0].mxu0
    %v904 = vadd.f32 %v631, %v903
    %v905 = vpop.f32.mrb[0].mxu0
    %v906 = vadd.f32 %v627, %v905
    %v907 = vpop.f32.mrb[0].mxu0
    %v908 = vadd.f32 %v631, %v907
    %909 = vdwg.mxu0
    %910 = vmatprep.subr.bf16.mxu0 %v803
    %911 = vmatpush1.bf16.msra.mxu0 %v802
    %912 = vmatprep.subr.bf16.mxu0 %v819
    %913 = vmatpush1.bf16.msra.mxu0 %v818
    %914 = vmatprep.subr.bf16.mxu0 0
    %915 = vmatpush1.bf16.msra.mxu0 0
    %916 = vmatprep.subr.bf16.mxu0 0
    %917 = vmatpush1.bf16.msra.mxu0 0
    %918 = vmatprep.subr.bf16.mxu0 0
    %919 = vmatpush1.bf16.msra.mxu0 0
    %920 = vmatprep.subr.bf16.mxu0 0
    %921 = vmatpush1.bf16.msra.mxu0 0
    %922 = vmatprep.subr.bf16.mxu0 0
    %923 = vmatpush1.bf16.msra.mxu0 0
    %924 = vmatprep.subr.bf16.mxu0 0
    %925 = vmatpush1.bf16.msra.mxu0 0
    %926 = vmatprep.subr.bf16.mxu0 0
    %927 = vmatpush1.bf16.msra.mxu0 0
    %928 = vmatprep.subr.bf16.mxu0 0
    %929 = vmatpush1.bf16.msra.mxu0 0
    %930 = vmatprep.subr.bf16.mxu0 0
    %931 = vmatpush1.bf16.msra.mxu0 0
    %932 = vmatprep.subr.bf16.mxu0 0
    %933 = vmatpush1.bf16.msra.mxu0 0
    %934 = vmatprep.subr.bf16.mxu0 0
    %935 = vmatpush1.bf16.msra.mxu0 0
    %936 = vmatprep.subr.bf16.mxu0 0
    %937 = vmatpush1.bf16.msra.mxu0 0
    %938 = vmatprep.subr.bf16.mxu0 0
    %939 = vmatpush1.bf16.msra.mxu0 0
    %940 = vmatprep.subr.bf16.mxu0 0
    %941 = vmatpush1.bf16.msra.mxu0 0
    %942 = vmatprep.mubr.bf16.mxu0 0
    %943 = vmatmul.mubr.bf16.gmra.mrb[0].mxu0 %v865
    %v944 = vpop.f32.mrb[0].mxu0
    %v945 = vadd.f32 %v635, %v944
    %v946 = vpop.f32.mrb[0].mxu0
    %v947 = vadd.f32 %v639, %v946
    %v948 = vpop.f32.mrb[0].mxu0
    %v949 = vadd.f32 %v635, %v948
    %v950 = vpop.f32.mrb[0].mxu0
    %v951 = vadd.f32 %v639, %v950
    %952 = vdwg.mxu0
    %953 = vmatprep.subr.bf16.mxu0 %v805
    %954 = vmatpush1.bf16.msra.mxu0 %v804
    %955 = vmatprep.subr.bf16.mxu0 %v821
    %956 = vmatpush1.bf16.msra.mxu0 %v820
    %957 = vmatprep.subr.bf16.mxu0 0
    %958 = vmatpush1.bf16.msra.mxu0 0
    %959 = vmatprep.subr.bf16.mxu0 0
    %960 = vmatpush1.bf16.msra.mxu0 0
    %961 = vmatprep.subr.bf16.mxu0 0
    %962 = vmatpush1.bf16.msra.mxu0 0
    %963 = vmatprep.subr.bf16.mxu0 0
    %964 = vmatpush1.bf16.msra.mxu0 0
    %965 = vmatprep.subr.bf16.mxu0 0
    %966 = vmatpush1.bf16.msra.mxu0 0
    %967 = vmatprep.subr.bf16.mxu0 0
    %968 = vmatpush1.bf16.msra.mxu0 0
    %969 = vmatprep.subr.bf16.mxu0 0
    %970 = vmatpush1.bf16.msra.mxu0 0
    %971 = vmatprep.subr.bf16.mxu0 0
    %972 = vmatpush1.bf16.msra.mxu0 0
    %973 = vmatprep.subr.bf16.mxu0 0
    %974 = vmatpush1.bf16.msra.mxu0 0
    %975 = vmatprep.subr.bf16.mxu0 0
    %976 = vmatpush1.bf16.msra.mxu0 0
    %977 = vmatprep.subr.bf16.mxu0 0
    %978 = vmatpush1.bf16.msra.mxu0 0
    %979 = vmatprep.subr.bf16.mxu0 0
    %980 = vmatpush1.bf16.msra.mxu0 0
    %981 = vmatprep.subr.bf16.mxu0 0
    %982 = vmatpush1.bf16.msra.mxu0 0
    %983 = vmatprep.subr.bf16.mxu0 0
    %984 = vmatpush1.bf16.msra.mxu0 0
    %985 = vmatprep.mubr.bf16.mxu0 0
    %986 = vmatmul.mubr.bf16.gmra.mrb[0].mxu0 %v865
    %v987 = vpop.f32.mrb[0].mxu0
    %v988 = vadd.f32 %v643, %v987
    %v989 = vpop.f32.mrb[0].mxu0
    %v990 = vadd.f32 %v647, %v989
    %v991 = vpop.f32.mrb[0].mxu0
    %v992 = vadd.f32 %v643, %v991
    %v993 = vpop.f32.mrb[0].mxu0
    %v994 = vadd.f32 %v647, %v993
    %995 = vdwg.mxu0
    %996 = vmatprep.subr.bf16.mxu0 %v807
    %997 = vmatpush1.bf16.msra.mxu0 %v806
    %998 = vmatprep.subr.bf16.mxu0 %v823
    %999 = vmatpush1.bf16.msra.mxu0 %v822
    %1000 = vmatprep.subr.bf16.mxu0 0
    %1001 = vmatpush1.bf16.msra.mxu0 0
    %1002 = vmatprep.subr.bf16.mxu0 0
    %1003 = vmatpush1.bf16.msra.mxu0 0
    %1004 = vmatprep.subr.bf16.mxu0 0
    %1005 = vmatpush1.bf16.msra.mxu0 0
    %1006 = vmatprep.subr.bf16.mxu0 0
    %1007 = vmatpush1.bf16.msra.mxu0 0
    %1008 = vmatprep.subr.bf16.mxu0 0
    %1009 = vmatpush1.bf16.msra.mxu0 0
    %1010 = vmatprep.subr.bf16.mxu0 0
    %1011 = vmatpush1.bf16.msra.mxu0 0
    %1012 = vmatprep.subr.bf16.mxu0 0
    %1013 = vmatpush1.bf16.msra.mxu0 0
    %1014 = vmatprep.subr.bf16.mxu0 0
    %1015 = vmatpush1.bf16.msra.mxu0 0
    %1016 = vmatprep.subr.bf16.mxu0 0
    %1017 = vmatpush1.bf16.msra.mxu0 0
    %1018 = vmatprep.subr.bf16.mxu0 0
    %1019 = vmatpush1.bf16.msra.mxu0 0
    %1020 = vmatprep.subr.bf16.mxu0 0
    %1021 = vmatpush1.bf16.msra.mxu0 0
    %1022 = vmatprep.subr.bf16.mxu0 0
    %1023 = vmatpush1.bf16.msra.mxu0 0
    %1024 = vmatprep.subr.bf16.mxu0 0
    %1025 = vmatpush1.bf16.msra.mxu0 0
    %1026 = vmatprep.subr.bf16.mxu0 0
    %1027 = vmatpush1.bf16.msra.mxu0 0
    %1028 = vmatprep.mubr.bf16.mxu0 0
    %1029 = vmatmul.mubr.bf16.gmra.mrb[0].mxu0 %v865
    %v1030 = vpop.f32.mrb[0].mxu0
    %v1031 = vadd.f32 %v651, %v1030
    %v1032 = vpop.f32.mrb[0].mxu0
    %v1033 = vadd.f32 %v655, %v1032
    %v1034 = vpop.f32.mrb[0].mxu0
    %v1035 = vadd.f32 %v651, %v1034
    %v1036 = vpop.f32.mrb[0].mxu0
    %v1037 = vadd.f32 %v655, %v1036
    %1038 = vdwg.mxu0
    %1039 = vmatprep.subr.bf16.mxu0 %v809
    %1040 = vmatpush1.bf16.msra.mxu0 %v808
    %1041 = vmatprep.subr.bf16.mxu0 %v825
    %1042 = vmatpush1.bf16.msra.mxu0 %v824
    %1043 = vmatprep.subr.bf16.mxu0 0
    %1044 = vmatpush1.bf16.msra.mxu0 0
    %1045 = vmatprep.subr.bf16.mxu0 0
    %1046 = vmatpush1.bf16.msra.mxu0 0
    %1047 = vmatprep.subr.bf16.mxu0 0
    %1048 = vmatpush1.bf16.msra.mxu0 0
    %1049 = vmatprep.subr.bf16.mxu0 0
    %1050 = vmatpush1.bf16.msra.mxu0 0
    %1051 = vmatprep.subr.bf16.mxu0 0
    %1052 = vmatpush1.bf16.msra.mxu0 0
    %1053 = vmatprep.subr.bf16.mxu0 0
    %1054 = vmatpush1.bf16.msra.mxu0 0
    %1055 = vmatprep.subr.bf16.mxu0 0
    %1056 = vmatpush1.bf16.msra.mxu0 0
    %1057 = vmatprep.subr.bf16.mxu0 0
    %1058 = vmatpush1.bf16.msra.mxu0 0
    %1059 = vmatprep.subr.bf16.mxu0 0
    %1060 = vmatpush1.bf16.msra.mxu0 0
    %1061 = vmatprep.subr.bf16.mxu0 0
    %1062 = vmatpush1.bf16.msra.mxu0 0
    %1063 = vmatprep.subr.bf16.mxu0 0
    %1064 = vmatpush1.bf16.msra.mxu0 0
    %1065 = vmatprep.subr.bf16.mxu0 0
    %1066 = vmatpush1.bf16.msra.mxu0 0
    %1067 = vmatprep.subr.bf16.mxu0 0
    %1068 = vmatpush1.bf16.msra.mxu0 0
    %1069 = vmatprep.subr.bf16.mxu0 0
    %1070 = vmatpush1.bf16.msra.mxu0 0
    %1071 = vmatprep.mubr.bf16.mxu0 0
    %1072 = vmatmul.mubr.bf16.gmra.mrb[0].mxu0 %v865
    %v1073 = vpop.f32.mrb[0].mxu0
    %v1074 = vadd.f32 %v659, %v1073
    %v1075 = vpop.f32.mrb[0].mxu0
    %v1076 = vadd.f32 %v663, %v1075
    %v1077 = vpop.f32.mrb[0].mxu0
    %v1078 = vadd.f32 %v659, %v1077
    %v1079 = vpop.f32.mrb[0].mxu0
    %v1080 = vadd.f32 %v663, %v1079
    %1081 = vdwg.mxu0
    %1082 = vmatprep.subr.bf16.mxu0 %v811
    %1083 = vmatpush1.bf16.msra.mxu0 %v810
    %1084 = vmatprep.subr.bf16.mxu0 %v827
    %1085 = vmatpush1.bf16.msra.mxu0 %v826
    %1086 = vmatprep.subr.bf16.mxu0 0
    %1087 = vmatpush1.bf16.msra.mxu0 0
    %1088 = vmatprep.subr.bf16.mxu0 0
    %1089 = vmatpush1.bf16.msra.mxu0 0
    %1090 = vmatprep.subr.bf16.mxu0 0
    %1091 = vmatpush1.bf16.msra.mxu0 0
    %1092 = vmatprep.subr.bf16.mxu0 0
    %1093 = vmatpush1.bf16.msra.mxu0 0
    %1094 = vmatprep.subr.bf16.mxu0 0
    %1095 = vmatpush1.bf16.msra.mxu0 0
    %1096 = vmatprep.subr.bf16.mxu0 0
    %1097 = vmatpush1.bf16.msra.mxu0 0
    %1098 = vmatprep.subr.bf16.mxu0 0
    %1099 = vmatpush1.bf16.msra.mxu0 0
    %1100 = vmatprep.subr.bf16.mxu0 0
    %1101 = vmatpush1.bf16.msra.mxu0 0
    %1102 = vmatprep.subr.bf16.mxu0 0
    %1103 = vmatpush1.bf16.msra.mxu0 0
    %1104 = vmatprep.subr.bf16.mxu0 0
    %1105 = vmatpush1.bf16.msra.mxu0 0
    %1106 = vmatprep.subr.bf16.mxu0 0
    %1107 = vmatpush1.bf16.msra.mxu0 0
    %1108 = vmatprep.subr.bf16.mxu0 0
    %1109 = vmatpush1.bf16.msra.mxu0 0
    %1110 = vmatprep.subr.bf16.mxu0 0
    %1111 = vmatpush1.bf16.msra.mxu0 0
    %1112 = vmatprep.subr.bf16.mxu0 0
    %1113 = vmatpush1.bf16.msra.mxu0 0
    %1114 = vmatprep.mubr.bf16.mxu0 0
    %1115 = vmatmul.mubr.bf16.gmra.mrb[0].mxu0 %v865
    %v1116 = vpop.f32.mrb[0].mxu0
    %v1117 = vadd.f32 %v667, %v1116
    %v1118 = vpop.f32.mrb[0].mxu0
    %v1119 = vadd.f32 %v671, %v1118
    %v1120 = vpop.f32.mrb[0].mxu0
    %v1121 = vadd.f32 %v667, %v1120
    %v1122 = vpop.f32.mrb[0].mxu0
    %v1123 = vadd.f32 %v671, %v1122
    %1124 = vdwg.mxu0
    %1125 = vmatprep.subr.bf16.mxu0 %v813
    %1126 = vmatpush1.bf16.msra.mxu0 %v812
    %1127 = vmatprep.subr.bf16.mxu0 %v829
    %1128 = vmatpush1.bf16.msra.mxu0 %v828
    %1129 = vmatprep.subr.bf16.mxu0 0
    %1130 = vmatpush1.bf16.msra.mxu0 0
    %1131 = vmatprep.subr.bf16.mxu0 0
    %1132 = vmatpush1.bf16.msra.mxu0 0
    %1133 = vmatprep.subr.bf16.mxu0 0
    %1134 = vmatpush1.bf16.msra.mxu0 0
    %1135 = vmatprep.subr.bf16.mxu0 0
    %1136 = vmatpush1.bf16.msra.mxu0 0
    %1137 = vmatprep.subr.bf16.mxu0 0
    %1138 = vmatpush1.bf16.msra.mxu0 0
    %1139 = vmatprep.subr.bf16.mxu0 0
    %1140 = vmatpush1.bf16.msra.mxu0 0
    %1141 = vmatprep.subr.bf16.mxu0 0
    %1142 = vmatpush1.bf16.msra.mxu0 0
    %1143 = vmatprep.subr.bf16.mxu0 0
    %1144 = vmatpush1.bf16.msra.mxu0 0
    %1145 = vmatprep.subr.bf16.mxu0 0
    %1146 = vmatpush1.bf16.msra.mxu0 0
    %1147 = vmatprep.subr.bf16.mxu0 0
    %1148 = vmatpush1.bf16.msra.mxu0 0
    %1149 = vmatprep.subr.bf16.mxu0 0
    %1150 = vmatpush1.bf16.msra.mxu0 0
    %1151 = vmatprep.subr.bf16.mxu0 0
    %1152 = vmatpush1.bf16.msra.mxu0 0
    %1153 = vmatprep.subr.bf16.mxu0 0
    %1154 = vmatpush1.bf16.msra.mxu0 0
    %1155 = vmatprep.subr.bf16.mxu0 0
    %1156 = vmatpush1.bf16.msra.mxu0 0
    %1157 = vmatprep.mubr.bf16.mxu0 0
    %1158 = vmatmul.mubr.bf16.gmra.mrb[0].mxu0 %v865
    %v1159 = vpop.f32.mrb[0].mxu0
    %v1160 = vadd.f32 %v675, %v1159
    %v1161 = vpop.f32.mrb[0].mxu0
    %v1162 = vadd.f32 %v679, %v1161
    %v1163 = vpop.f32.mrb[0].mxu0
    %v1164 = vadd.f32 %v675, %v1163
    %v1165 = vpop.f32.mrb[0].mxu0
    %v1166 = vadd.f32 %v679, %v1165
    %1167 = vdwg.mxu0
    %1168 = vmatprep.subr.bf16.mxu0 %v815
    %1169 = vmatpush1.bf16.msra.mxu0 %v814
    %1170 = vmatprep.subr.bf16.mxu0 %v831
    %1171 = vmatpush1.bf16.msra.mxu0 %v830
    %1172 = vmatprep.subr.bf16.mxu0 0
    %1173 = vmatpush1.bf16.msra.mxu0 0
    %1174 = vmatprep.subr.bf16.mxu0 0
    %1175 = vmatpush1.bf16.msra.mxu0 0
    %1176 = vmatprep.subr.bf16.mxu0 0
    %1177 = vmatpush1.bf16.msra.mxu0 0
    %1178 = vmatprep.subr.bf16.mxu0 0
    %1179 = vmatpush1.bf16.msra.mxu0 0
    %1180 = vmatprep.subr.bf16.mxu0 0
    %1181 = vmatpush1.bf16.msra.mxu0 0
    %1182 = vmatprep.subr.bf16.mxu0 0
    %1183 = vmatpush1.bf16.msra.mxu0 0
    %1184 = vmatprep.subr.bf16.mxu0 0
    %1185 = vmatpush1.bf16.msra.mxu0 0
    %1186 = vmatprep.subr.bf16.mxu0 0
    %1187 = vmatpush1.bf16.msra.mxu0 0
    %1188 = vmatprep.subr.bf16.mxu0 0
    %1189 = vmatpush1.bf16.msra.mxu0 0
    %1190 = vmatprep.subr.bf16.mxu0 0
    %1191 = vmatpush1.bf16.msra.mxu0 0
    %1192 = vmatprep.subr.bf16.mxu0 0
    %1193 = vmatpush1.bf16.msra.mxu0 0
    %1194 = vmatprep.subr.bf16.mxu0 0
    %1195 = vmatpush1.bf16.msra.mxu0 0
    %1196 = vmatprep.subr.bf16.mxu0 0
    %1197 = vmatpush1.bf16.msra.mxu0 0
    %1198 = vmatprep.subr.bf16.mxu0 0
    %1199 = vmatpush1.bf16.msra.mxu0 0
    %1200 = vmatprep.mubr.bf16.mxu0 0
    %1201 = vmatmul.mubr.bf16.gmra.mrb[0].mxu0 %v865
    %v1202 = vpop.f32.mrb[0].mxu0
    %v1203 = vadd.f32 %v683, %v1202
    %v1204 = vpop.f32.mrb[0].mxu0
    %v1205 = vadd.f32 %v687, %v1204
    %v1206 = vpop.f32.mrb[0].mxu0
    %v1207 = vadd.f32 %v683, %v1206
    %v1208 = vpop.f32.mrb[0].mxu0
    %v1209 = vadd.f32 %v687, %v1208
    %1210 = vdwg.mxu0
    %v1211 = vmax.f32 %v902, 0.0
    %v1212 = vmax.f32 %v904, 0.0
    %v1213 = vmax.f32 %v945, 0.0
    %v1214 = vmax.f32 %v947, 0.0
    %v1215 = vmax.f32 %v988, 0.0
    %v1216 = vmax.f32 %v990, 0.0
    %v1217 = vmax.f32 %v1031, 0.0
    %v1218 = vmax.f32 %v1033, 0.0
    %v1219 = vmax.f32 %v1074, 0.0
    %v1220 = vmax.f32 %v1076, 0.0
    %v1221 = vmax.f32 %v1117, 0.0
    %v1222 = vmax.f32 %v1119, 0.0
    %v1223 = vmax.f32 %v1160, 0.0
    %v1224 = vmax.f32 %v1162, 0.0
    %v1225 = vmax.f32 %v1203, 0.0
    %v1226 = vmax.f32 %v1205, 0.0
    %v1227 = vmax.f32 %v906, 0.0
    %v1228 = vmax.f32 %v908, 0.0
    %v1229 = vmax.f32 %v949, 0.0
    %v1230 = vmax.f32 %v951, 0.0
    %v1231 = vmax.f32 %v992, 0.0
    %v1232 = vmax.f32 %v994, 0.0
    %v1233 = vmax.f32 %v1035, 0.0
    %v1234 = vmax.f32 %v1037, 0.0
    %v1235 = vmax.f32 %v1078, 0.0
    %v1236 = vmax.f32 %v1080, 0.0
    %v1237 = vmax.f32 %v1121, 0.0
    %v1238 = vmax.f32 %v1123, 0.0
    %v1239 = vmax.f32 %v1164, 0.0
    %v1240 = vmax.f32 %v1166, 0.0
    %v1241 = vmax.f32 %v1207, 0.0
    %v1242 = vmax.f32 %v1209, 0.0
    %v1243 = vpack.c.bf16 %v1227, %v1211
    %v1244 = vpack.c.bf16 %v1228, %v1212
    %v1245 = vpack.c.bf16 %v1229, %v1213
    %v1246 = vpack.c.bf16 %v1230, %v1214
    %v1247 = vpack.c.bf16 %v1231, %v1215
    %v1248 = vpack.c.bf16 %v1232, %v1216
    %v1249 = vpack.c.bf16 %v1233, %v1217
    %v1250 = vpack.c.bf16 %v1234, %v1218
    %v1251 = vpack.c.bf16 %v1235, %v1219
    %v1252 = vpack.c.bf16 %v1236, %v1220
    %v1253 = vpack.c.bf16 %v1237, %v1221
    %v1254 = vpack.c.bf16 %v1238, %v1222
    %v1255 = vpack.c.bf16 %v1239, %v1223
    %v1256 = vpack.c.bf16 %v1240, %v1224
    %v1257 = vpack.c.bf16 %v1241, %v1225
    %v1258 = vpack.c.bf16 %v1242, %v1226
    %v1259 = vld [vmem:[%s29] sm:$0xf]
    %v1260 = vld [vmem:[%s29 + $0x4] sm:$0xf]
    %v1261 = vld [vmem:[%s29 + $0x8] sm:$0xf]
    %v1262 = vld [vmem:[%s29 + $0xc] sm:$0xf]
    %v1263 = vld [vmem:[%s29 + $0x10] sm:$0xf]
    %v1264 = vld [vmem:[%s29 + $0x14] sm:$0xf]
    %v1265 = vld [vmem:[%s29 + $0x18] sm:$0xf]
    %v1266 = vld [vmem:[%s29 + $0x1c] sm:$0xf]
    %v1267 = vld [vmem:[%s29 + $0x20] sm:$0xf]
    %v1268 = vld [vmem:[%s29 + $0x24] sm:$0xf]
    %v1269 = vld [vmem:[%s29 + $0x28] sm:$0xf]
    %v1270 = vld [vmem:[%s29 + $0x2c] sm:$0xf]
    %v1271 = vld [vmem:[%s29 + $0x30] sm:$0xf]
    %v1272 = vld [vmem:[%s29 + $0x34] sm:$0xf]
    %v1273 = vld [vmem:[%s29 + $0x38] sm:$0xf]
    %v1274 = vld [vmem:[%s29 + $0x3c] sm:$0xf]
    %v1275 = vld [vmem:[%s29 + $0x40] sm:$0xf]
    %v1276 = vld [vmem:[%s29 + $0x44] sm:$0xf]
    %v1277 = vld [vmem:[%s29 + $0x48] sm:$0xf]
    %v1278 = vld [vmem:[%s29 + $0x4c] sm:$0xf]
    %v1279 = vld [vmem:[%s29 + $0x50] sm:$0xf]
    %v1280 = vld [vmem:[%s29 + $0x54] sm:$0xf]
    %v1281 = vld [vmem:[%s29 + $0x58] sm:$0xf]
    %v1282 = vld [vmem:[%s29 + $0x5c] sm:$0xf]
    %v1283 = vld [vmem:[%s29 + $0x60] sm:$0xf]
    %v1284 = vld [vmem:[%s29 + $0x64] sm:$0xf]
    %v1285 = vld [vmem:[%s29 + $0x68] sm:$0xf]
    %v1286 = vld [vmem:[%s29 + $0x6c] sm:$0xf]
    %v1287 = vld [vmem:[%s29 + $0x70] sm:$0xf]
    %v1288 = vld [vmem:[%s29 + $0x74] sm:$0xf]
    %v1289 = vld [vmem:[%s29 + $0x78] sm:$0xf]
    %v1290 = vld [vmem:[%s29 + $0x7c] sm:$0xf]
    %v1291 = vld [vmem:[%s29 + $0x80] sm:$0xf]
    %v1292 = vld [vmem:[%s29 + $0x84] sm:$0xf]
    %v1293 = vld [vmem:[%s29 + $0x88] sm:$0xf]
    %v1294 = vld [vmem:[%s29 + $0x8c] sm:$0xf]
    %v1295 = vld [vmem:[%s29 + $0x90] sm:$0xf]
    %v1296 = vld [vmem:[%s29 + $0x94] sm:$0xf]
    %v1297 = vld [vmem:[%s29 + $0x98] sm:$0xf]
    %v1298 = vld [vmem:[%s29 + $0x9c] sm:$0xf]
    %v1299 = vld [vmem:[%s29 + $0xa0] sm:$0xf]
    %v1300 = vld [vmem:[%s29 + $0xa4] sm:$0xf]
    %v1301 = vld [vmem:[%s29 + $0xa8] sm:$0xf]
    %v1302 = vld [vmem:[%s29 + $0xac] sm:$0xf]
    %v1303 = vld [vmem:[%s29 + $0xb0] sm:$0xf]
    %v1304 = vld [vmem:[%s29 + $0xb4] sm:$0xf]
    %v1305 = vld [vmem:[%s29 + $0xb8] sm:$0xf]
    %v1306 = vld [vmem:[%s29 + $0xbc] sm:$0xf]
    %v1307 = vld [vmem:[%s29 + $0xc0] sm:$0xf]
    %v1308 = vld [vmem:[%s29 + $0xc4] sm:$0xf]
    %v1309 = vld [vmem:[%s29 + $0xc8] sm:$0xf]
    %v1310 = vld [vmem:[%s29 + $0xcc] sm:$0xf]
    %v1311 = vld [vmem:[%s29 + $0xd0] sm:$0xf]
    %v1312 = vld [vmem:[%s29 + $0xd4] sm:$0xf]
    %v1313 = vld [vmem:[%s29 + $0xd8] sm:$0xf]
    %v1314 = vld [vmem:[%s29 + $0xdc] sm:$0xf]
    %v1315 = vld [vmem:[%s29 + $0xe0] sm:$0xf]
    %v1316 = vld [vmem:[%s29 + $0xe4] sm:$0xf]
    %v1317 = vld [vmem:[%s29 + $0xe8] sm:$0xf]
    %v1318 = vld [vmem:[%s29 + $0xec] sm:$0xf]
    %v1319 = vld [vmem:[%s29 + $0xf0] sm:$0xf]
    %v1320 = vld [vmem:[%s29 + $0xf4] sm:$0xf]
    %v1321 = vld [vmem:[%s29 + $0xf8] sm:$0xf]
    %v1322 = vld [vmem:[%s29 + $0xfc] sm:$0xf]
    %v1323 = vld [vmem:[%s29 + $0x100] sm:$0xf]
    %v1324 = vld [vmem:[%s29 + $0x104] sm:$0xf]
    %v1325 = vld [vmem:[%s29 + $0x108] sm:$0xf]
    %v1326 = vld [vmem:[%s29 + $0x10c] sm:$0xf]
    %v1327 = vld [vmem:[%s29 + $0x110] sm:$0xf]
    %v1328 = vld [vmem:[%s29 + $0x114] sm:$0xf]
    %v1329 = vld [vmem:[%s29 + $0x118] sm:$0xf]
    %v1330 = vld [vmem:[%s29 + $0x11c] sm:$0xf]
    %v1331 = vld [vmem:[%s29 + $0x120] sm:$0xf]
    %v1332 = vld [vmem:[%s29 + $0x124] sm:$0xf]
    %v1333 = vld [vmem:[%s29 + $0x128] sm:$0xf]
    %v1334 = vld [vmem:[%s29 + $0x12c] sm:$0xf]
    %v1335 = vld [vmem:[%s29 + $0x130] sm:$0xf]
    %v1336 = vld [vmem:[%s29 + $0x134] sm:$0xf]
    %v1337 = vld [vmem:[%s29 + $0x138] sm:$0xf]
    %v1338 = vld [vmem:[%s29 + $0x13c] sm:$0xf]
    %v1339 = vld [vmem:[%s29 + $0x140] sm:$0xf]
    %v1340 = vld [vmem:[%s29 + $0x144] sm:$0xf]
    %v1341 = vld [vmem:[%s29 + $0x148] sm:$0xf]
    %v1342 = vld [vmem:[%s29 + $0x14c] sm:$0xf]
    %v1343 = vld [vmem:[%s29 + $0x150] sm:$0xf]
    %v1344 = vld [vmem:[%s29 + $0x154] sm:$0xf]
    %v1345 = vld [vmem:[%s29 + $0x158] sm:$0xf]
    %v1346 = vld [vmem:[%s29 + $0x15c] sm:$0xf]
    %v1347 = vld [vmem:[%s29 + $0x160] sm:$0xf]
    %v1348 = vld [vmem:[%s29 + $0x164] sm:$0xf]
    %v1349 = vld [vmem:[%s29 + $0x168] sm:$0xf]
    %v1350 = vld [vmem:[%s29 + $0x16c] sm:$0xf]
    %v1351 = vld [vmem:[%s29 + $0x170] sm:$0xf]
    %v1352 = vld [vmem:[%s29 + $0x174] sm:$0xf]
    %v1353 = vld [vmem:[%s29 + $0x178] sm:$0xf]
    %v1354 = vld [vmem:[%s29 + $0x17c] sm:$0xf]
    %v1355 = vld [vmem:[%s29 + $0x180] sm:$0xf]
    %v1356 = vld [vmem:[%s29 + $0x184] sm:$0xf]
    %v1357 = vld [vmem:[%s29 + $0x188] sm:$0xf]
    %v1358 = vld [vmem:[%s29 + $0x18c] sm:$0xf]
    %v1359 = vld [vmem:[%s29 + $0x190] sm:$0xf]
    %v1360 = vld [vmem:[%s29 + $0x194] sm:$0xf]
    %v1361 = vld [vmem:[%s29 + $0x198] sm:$0xf]
    %v1362 = vld [vmem:[%s29 + $0x19c] sm:$0xf]
    %v1363 = vld [vmem:[%s29 + $0x1a0] sm:$0xf]
    %v1364 = vld [vmem:[%s29 + $0x1a4] sm:$0xf]
    %v1365 = vld [vmem:[%s29 + $0x1a8] sm:$0xf]
    %v1366 = vld [vmem:[%s29 + $0x1ac] sm:$0xf]
    %v1367 = vld [vmem:[%s29 + $0x1b0] sm:$0xf]
    %v1368 = vld [vmem:[%s29 + $0x1b4] sm:$0xf]
    %v1369 = vld [vmem:[%s29 + $0x1b8] sm:$0xf]
    %v1370 = vld [vmem:[%s29 + $0x1bc] sm:$0xf]
    %v1371 = vld [vmem:[%s29 + $0x1c0] sm:$0xf]
    %v1372 = vld [vmem:[%s29 + $0x1c4] sm:$0xf]
    %v1373 = vld [vmem:[%s29 + $0x1c8] sm:$0xf]
    %v1374 = vld [vmem:[%s29 + $0x1cc] sm:$0xf]
    %v1375 = vld [vmem:[%s29 + $0x1d0] sm:$0xf]
    %v1376 = vld [vmem:[%s29 + $0x1d4] sm:$0xf]
    %v1377 = vld [vmem:[%s29 + $0x1d8] sm:$0xf]
    %v1378 = vld [vmem:[%s29 + $0x1dc] sm:$0xf]
    %v1379 = vld [vmem:[%s29 + $0x1e0] sm:$0xf]
    %v1380 = vld [vmem:[%s29 + $0x1e4] sm:$0xf]
    %v1381 = vld [vmem:[%s29 + $0x1e8] sm:$0xf]
    %v1382 = vld [vmem:[%s29 + $0x1ec] sm:$0xf]
    %v1383 = vld [vmem:[%s29 + $0x1f0] sm:$0xf]
    %v1384 = vld [vmem:[%s29 + $0x1f4] sm:$0xf]
    %v1385 = vld [vmem:[%s29 + $0x1f8] sm:$0xf]
    %v1386 = vld [vmem:[%s29 + $0x1fc] sm:$0xf]
    %v1387 = vld [vmem:[%s29 + $0x200] sm:$0xf]
    %v1388 = vld [vmem:[%s29 + $0x204] sm:$0xf]
    %v1389 = vld [vmem:[%s29 + $0x208] sm:$0xf]
    %v1390 = vld [vmem:[%s29 + $0x20c] sm:$0xf]
    %v1391 = vld [vmem:[%s29 + $0x210] sm:$0xf]
    %v1392 = vld [vmem:[%s29 + $0x214] sm:$0xf]
    %v1393 = vld [vmem:[%s29 + $0x218] sm:$0xf]
    %v1394 = vld [vmem:[%s29 + $0x21c] sm:$0xf]
    %v1395 = vld [vmem:[%s29 + $0x220] sm:$0xf]
    %v1396 = vld [vmem:[%s29 + $0x224] sm:$0xf]
    %v1397 = vld [vmem:[%s29 + $0x228] sm:$0xf]
    %v1398 = vld [vmem:[%s29 + $0x22c] sm:$0xf]
    %v1399 = vld [vmem:[%s29 + $0x230] sm:$0xf]
    %v1400 = vld [vmem:[%s29 + $0x234] sm:$0xf]
    %v1401 = vld [vmem:[%s29 + $0x238] sm:$0xf]
    %v1402 = vld [vmem:[%s29 + $0x23c] sm:$0xf]
    %v1403 = vld [vmem:[%s29 + $0x240] sm:$0xf]
    %v1404 = vld [vmem:[%s29 + $0x244] sm:$0xf]
    %v1405 = vld [vmem:[%s29 + $0x248] sm:$0xf]
    %v1406 = vld [vmem:[%s29 + $0x24c] sm:$0xf]
    %v1407 = vld [vmem:[%s29 + $0x250] sm:$0xf]
    %v1408 = vld [vmem:[%s29 + $0x254] sm:$0xf]
    %v1409 = vld [vmem:[%s29 + $0x258] sm:$0xf]
    %v1410 = vld [vmem:[%s29 + $0x25c] sm:$0xf]
    %v1411 = vld [vmem:[%s29 + $0x260] sm:$0xf]
    %v1412 = vld [vmem:[%s29 + $0x264] sm:$0xf]
    %v1413 = vld [vmem:[%s29 + $0x268] sm:$0xf]
    %v1414 = vld [vmem:[%s29 + $0x26c] sm:$0xf]
    %v1415 = vld [vmem:[%s29 + $0x270] sm:$0xf]
    %v1416 = vld [vmem:[%s29 + $0x274] sm:$0xf]
    %v1417 = vld [vmem:[%s29 + $0x278] sm:$0xf]
    %v1418 = vld [vmem:[%s29 + $0x27c] sm:$0xf]
    %v1419 = vld [vmem:[%s29 + $0x280] sm:$0xf]
    %v1420 = vld [vmem:[%s29 + $0x284] sm:$0xf]
    %v1421 = vld [vmem:[%s29 + $0x288] sm:$0xf]
    %v1422 = vld [vmem:[%s29 + $0x28c] sm:$0xf]
    %v1423 = vld [vmem:[%s29 + $0x290] sm:$0xf]
    %v1424 = vld [vmem:[%s29 + $0x294] sm:$0xf]
    %v1425 = vld [vmem:[%s29 + $0x298] sm:$0xf]
    %v1426 = vld [vmem:[%s29 + $0x29c] sm:$0xf]
    %v1427 = vld [vmem:[%s29 + $0x2a0] sm:$0xf]
    %v1428 = vld [vmem:[%s29 + $0x2a4] sm:$0xf]
    %v1429 = vld [vmem:[%s29 + $0x2a8] sm:$0xf]
    %v1430 = vld [vmem:[%s29 + $0x2ac] sm:$0xf]
    %v1431 = vld [vmem:[%s29 + $0x2b0] sm:$0xf]
    %v1432 = vld [vmem:[%s29 + $0x2b4] sm:$0xf]
    %v1433 = vld [vmem:[%s29 + $0x2b8] sm:$0xf]
    %v1434 = vld [vmem:[%s29 + $0x2bc] sm:$0xf]
    %v1435 = vld [vmem:[%s29 + $0x2c0] sm:$0xf]
    %v1436 = vld [vmem:[%s29 + $0x2c4] sm:$0xf]
    %v1437 = vld [vmem:[%s29 + $0x2c8] sm:$0xf]
    %v1438 = vld [vmem:[%s29 + $0x2cc] sm:$0xf]
    %v1439 = vld [vmem:[%s29 + $0x2d0] sm:$0xf]
    %v1440 = vld [vmem:[%s29 + $0x2d4] sm:$0xf]
    %v1441 = vld [vmem:[%s29 + $0x2d8] sm:$0xf]
    %v1442 = vld [vmem:[%s29 + $0x2dc] sm:$0xf]
    %v1443 = vld [vmem:[%s29 + $0x2e0] sm:$0xf]
    %v1444 = vld [vmem:[%s29 + $0x2e4] sm:$0xf]
    %v1445 = vld [vmem:[%s29 + $0x2e8] sm:$0xf]
    %v1446 = vld [vmem:[%s29 + $0x2ec] sm:$0xf]
    %v1447 = vld [vmem:[%s29 + $0x2f0] sm:$0xf]
    %v1448 = vld [vmem:[%s29 + $0x2f4] sm:$0xf]
    %v1449 = vld [vmem:[%s29 + $0x2f8] sm:$0xf]
    %v1450 = vld [vmem:[%s29 + $0x2fc] sm:$0xf]
    %v1451 = vld [vmem:[%s29 + $0x300] sm:$0xf]
    %v1452 = vld [vmem:[%s29 + $0x304] sm:$0xf]
    %v1453 = vld [vmem:[%s29 + $0x308] sm:$0xf]
    %v1454 = vld [vmem:[%s29 + $0x30c] sm:$0xf]
    %v1455 = vld [vmem:[%s29 + $0x310] sm:$0xf]
    %v1456 = vld [vmem:[%s29 + $0x314] sm:$0xf]
    %v1457 = vld [vmem:[%s29 + $0x318] sm:$0xf]
    %v1458 = vld [vmem:[%s29 + $0x31c] sm:$0xf]
    %v1459 = vld [vmem:[%s29 + $0x320] sm:$0xf]
    %v1460 = vld [vmem:[%s29 + $0x324] sm:$0xf]
    %v1461 = vld [vmem:[%s29 + $0x328] sm:$0xf]
    %v1462 = vld [vmem:[%s29 + $0x32c] sm:$0xf]
    %v1463 = vld [vmem:[%s29 + $0x330] sm:$0xf]
    %v1464 = vld [vmem:[%s29 + $0x334] sm:$0xf]
    %v1465 = vld [vmem:[%s29 + $0x338] sm:$0xf]
    %v1466 = vld [vmem:[%s29 + $0x33c] sm:$0xf]
    %v1467 = vld [vmem:[%s29 + $0x340] sm:$0xf]
    %v1468 = vld [vmem:[%s29 + $0x344] sm:$0xf]
    %v1469 = vld [vmem:[%s29 + $0x348] sm:$0xf]
    %v1470 = vld [vmem:[%s29 + $0x34c] sm:$0xf]
    %v1471 = vld [vmem:[%s29 + $0x350] sm:$0xf]
    %v1472 = vld [vmem:[%s29 + $0x354] sm:$0xf]
    %v1473 = vld [vmem:[%s29 + $0x358] sm:$0xf]
    %v1474 = vld [vmem:[%s29 + $0x35c] sm:$0xf]
    %v1475 = vld [vmem:[%s29 + $0x360] sm:$0xf]
    %v1476 = vld [vmem:[%s29 + $0x364] sm:$0xf]
    %v1477 = vld [vmem:[%s29 + $0x368] sm:$0xf]
    %v1478 = vld [vmem:[%s29 + $0x36c] sm:$0xf]
    %v1479 = vld [vmem:[%s29 + $0x370] sm:$0xf]
    %v1480 = vld [vmem:[%s29 + $0x374] sm:$0xf]
    %v1481 = vld [vmem:[%s29 + $0x378] sm:$0xf]
    %v1482 = vld [vmem:[%s29 + $0x37c] sm:$0xf]
    %v1483 = vld [vmem:[%s29 + $0x380] sm:$0xf]
    %v1484 = vld [vmem:[%s29 + $0x384] sm:$0xf]
    %v1485 = vld [vmem:[%s29 + $0x388] sm:$0xf]
    %v1486 = vld [vmem:[%s29 + $0x38c] sm:$0xf]
    %v1487 = vld [vmem:[%s29 + $0x390] sm:$0xf]
    %v1488 = vld [vmem:[%s29 + $0x394] sm:$0xf]
    %v1489 = vld [vmem:[%s29 + $0x398] sm:$0xf]
    %v1490 = vld [vmem:[%s29 + $0x39c] sm:$0xf]
    %v1491 = vld [vmem:[%s29 + $0x3a0] sm:$0xf]
    %v1492 = vld [vmem:[%s29 + $0x3a4] sm:$0xf]
    %v1493 = vld [vmem:[%s29 + $0x3a8] sm:$0xf]
    %v1494 = vld [vmem:[%s29 + $0x3ac] sm:$0xf]
    %v1495 = vld [vmem:[%s29 + $0x3b0] sm:$0xf]
    %v1496 = vld [vmem:[%s29 + $0x3b4] sm:$0xf]
    %v1497 = vld [vmem:[%s29 + $0x3b8] sm:$0xf]
    %v1498 = vld [vmem:[%s29 + $0x3bc] sm:$0xf]
    %v1499 = vld [vmem:[%s29 + $0x3c0] sm:$0xf]
    %v1500 = vld [vmem:[%s29 + $0x3c4] sm:$0xf]
    %v1501 = vld [vmem:[%s29 + $0x3c8] sm:$0xf]
    %v1502 = vld [vmem:[%s29 + $0x3cc] sm:$0xf]
    %v1503 = vld [vmem:[%s29 + $0x3d0] sm:$0xf]
    %v1504 = vld [vmem:[%s29 + $0x3d4] sm:$0xf]
    %v1505 = vld [vmem:[%s29 + $0x3d8] sm:$0xf]
    %v1506 = vld [vmem:[%s29 + $0x3dc] sm:$0xf]
    %v1507 = vld [vmem:[%s29 + $0x3e0] sm:$0xf]
    %v1508 = vld [vmem:[%s29 + $0x3e4] sm:$0xf]
    %v1509 = vld [vmem:[%s29 + $0x3e8] sm:$0xf]
    %v1510 = vld [vmem:[%s29 + $0x3ec] sm:$0xf]
    %v1511 = vld [vmem:[%s29 + $0x3f0] sm:$0xf]
    %v1512 = vld [vmem:[%s29 + $0x3f4] sm:$0xf]
    %v1513 = vld [vmem:[%s29 + $0x3f8] sm:$0xf]
    %v1514 = vld [vmem:[%s29 + $0x3fc] sm:$0xf]
    %v1515 = vld [vmem:[%s13] sm:$0x1]
    %v1517 = vlaneseq
    %v1518 = vshrl.u32 %v1517, 7
    %v1519 = vsub.s32 0, %v1518
    %v1520 = vrot.slane %v1515, %v1519
    %v1778 = vunpack.c.l.b16 %v1259
    %v1779 = vunpack.c.l.b16 %v1260
    %v1780 = vunpack.c.l.b16 %v1261
    %v1781 = vunpack.c.l.b16 %v1262
    %v1782 = vunpack.c.l.b16 %v1263
    %v1783 = vunpack.c.l.b16 %v1264
    %v1784 = vunpack.c.l.b16 %v1265
    %v1785 = vunpack.c.l.b16 %v1266
    %v1786 = vunpack.c.l.b16 %v1267
    %v1787 = vunpack.c.l.b16 %v1268
    %v1788 = vunpack.c.l.b16 %v1269
    %v1789 = vunpack.c.l.b16 %v1270
    %v1790 = vunpack.c.l.b16 %v1271
    %v1791 = vunpack.c.l.b16 %v1272
    %v1792 = vunpack.c.l.b16 %v1273
    %v1793 = vunpack.c.l.b16 %v1274
    %v1794 = vunpack.c.l.b16 %v1275
    %v1795 = vunpack.c.l.b16 %v1276
    %v1796 = vunpack.c.l.b16 %v1277
    %v1797 = vunpack.c.l.b16 %v1278
    %v1798 = vunpack.c.l.b16 %v1279
    %v1799 = vunpack.c.l.b16 %v1280
    %v1800 = vunpack.c.l.b16 %v1281
    %v1801 = vunpack.c.l.b16 %v1282
    %v1802 = vunpack.c.l.b16 %v1283
    %v1803 = vunpack.c.l.b16 %v1284
    %v1804 = vunpack.c.l.b16 %v1285
    %v1805 = vunpack.c.l.b16 %v1286
    %v1806 = vunpack.c.l.b16 %v1287
    %v1807 = vunpack.c.l.b16 %v1288
    %v1808 = vunpack.c.l.b16 %v1289
    %v1809 = vunpack.c.l.b16 %v1290
    %v1810 = vunpack.c.l.b16 %v1291
    %v1811 = vunpack.c.l.b16 %v1292
    %v1812 = vunpack.c.l.b16 %v1293
    %v1813 = vunpack.c.l.b16 %v1294
    %v1814 = vunpack.c.l.b16 %v1295
    %v1815 = vunpack.c.l.b16 %v1296
    %v1816 = vunpack.c.l.b16 %v1297
    %v1817 = vunpack.c.l.b16 %v1298
    %v1818 = vunpack.c.l.b16 %v1299
    %v1819 = vunpack.c.l.b16 %v1300
    %v1820 = vunpack.c.l.b16 %v1301
    %v1821 = vunpack.c.l.b16 %v1302
    %v1822 = vunpack.c.l.b16 %v1303
    %v1823 = vunpack.c.l.b16 %v1304
    %v1824 = vunpack.c.l.b16 %v1305
    %v1825 = vunpack.c.l.b16 %v1306
    %v1826 = vunpack.c.l.b16 %v1307
    %v1827 = vunpack.c.l.b16 %v1308
    %v1828 = vunpack.c.l.b16 %v1309
    %v1829 = vunpack.c.l.b16 %v1310
    %v1830 = vunpack.c.l.b16 %v1311
    %v1831 = vunpack.c.l.b16 %v1312
    %v1832 = vunpack.c.l.b16 %v1313
    %v1833 = vunpack.c.l.b16 %v1314
    %v1834 = vunpack.c.l.b16 %v1315
    %v1835 = vunpack.c.l.b16 %v1316
    %v1836 = vunpack.c.l.b16 %v1317
    %v1837 = vunpack.c.l.b16 %v1318
    %v1838 = vunpack.c.l.b16 %v1319
    %v1839 = vunpack.c.l.b16 %v1320
    %v1840 = vunpack.c.l.b16 %v1321
    %v1841 = vunpack.c.l.b16 %v1322
    %v1842 = vunpack.c.l.b16 %v1323
    %v1843 = vunpack.c.l.b16 %v1324
    %v1844 = vunpack.c.l.b16 %v1325
    %v1845 = vunpack.c.l.b16 %v1326
    %v1846 = vunpack.c.l.b16 %v1327
    %v1847 = vunpack.c.l.b16 %v1328
    %v1848 = vunpack.c.l.b16 %v1329
    %v1849 = vunpack.c.l.b16 %v1330
    %v1850 = vunpack.c.l.b16 %v1331
    %v1851 = vunpack.c.l.b16 %v1332
    %v1852 = vunpack.c.l.b16 %v1333
    %v1853 = vunpack.c.l.b16 %v1334
    %v1854 = vunpack.c.l.b16 %v1335
    %v1855 = vunpack.c.l.b16 %v1336
    %v1856 = vunpack.c.l.b16 %v1337
    %v1857 = vunpack.c.l.b16 %v1338
    %v1858 = vunpack.c.l.b16 %v1339
    %v1859 = vunpack.c.l.b16 %v1340
    %v1860 = vunpack.c.l.b16 %v1341
    %v1861 = vunpack.c.l.b16 %v1342
    %v1862 = vunpack.c.l.b16 %v1343
    %v1863 = vunpack.c.l.b16 %v1344
    %v1864 = vunpack.c.l.b16 %v1345
    %v1865 = vunpack.c.l.b16 %v1346
    %v1866 = vunpack.c.l.b16 %v1347
    %v1867 = vunpack.c.l.b16 %v1348
    %v1868 = vunpack.c.l.b16 %v1349
    %v1869 = vunpack.c.l.b16 %v1350
    %v1870 = vunpack.c.l.b16 %v1351
    %v1871 = vunpack.c.l.b16 %v1352
    %v1872 = vunpack.c.l.b16 %v1353
    %v1873 = vunpack.c.l.b16 %v1354
    %v1874 = vunpack.c.l.b16 %v1355
    %v1875 = vunpack.c.l.b16 %v1356
    %v1876 = vunpack.c.l.b16 %v1357
    %v1877 = vunpack.c.l.b16 %v1358
    %v1878 = vunpack.c.l.b16 %v1359
    %v1879 = vunpack.c.l.b16 %v1360
    %v1880 = vunpack.c.l.b16 %v1361
    %v1881 = vunpack.c.l.b16 %v1362
    %v1882 = vunpack.c.l.b16 %v1363
    %v1883 = vunpack.c.l.b16 %v1364
    %v1884 = vunpack.c.l.b16 %v1365
    %v1885 = vunpack.c.l.b16 %v1366
    %v1886 = vunpack.c.l.b16 %v1367
    %v1887 = vunpack.c.l.b16 %v1368
    %v1888 = vunpack.c.l.b16 %v1369
    %v1889 = vunpack.c.l.b16 %v1370
    %v1890 = vunpack.c.l.b16 %v1371
    %v1891 = vunpack.c.l.b16 %v1372
    %v1892 = vunpack.c.l.b16 %v1373
    %v1893 = vunpack.c.l.b16 %v1374
    %v1894 = vunpack.c.l.b16 %v1375
    %v1895 = vunpack.c.l.b16 %v1376
    %v1896 = vunpack.c.l.b16 %v1377
    %v1897 = vunpack.c.l.b16 %v1378
    %v1898 = vunpack.c.l.b16 %v1379
    %v1899 = vunpack.c.l.b16 %v1380
    %v1900 = vunpack.c.l.b16 %v1381
    %v1901 = vunpack.c.l.b16 %v1382
    %v1902 = vunpack.c.l.b16 %v1383
    %v1903 = vunpack.c.l.b16 %v1384
    %v1904 = vunpack.c.l.b16 %v1385
    %v1905 = vunpack.c.l.b16 %v1386
    %v1906 = vunpack.c.l.b16 %v1387
    %v1907 = vunpack.c.l.b16 %v1388
    %v1908 = vunpack.c.l.b16 %v1389
    %v1909 = vunpack.c.l.b16 %v1390
    %v1910 = vunpack.c.l.b16 %v1391
    %v1911 = vunpack.c.l.b16 %v1392
    %v1912 = vunpack.c.l.b16 %v1393
    %v1913 = vunpack.c.l.b16 %v1394
    %v1914 = vunpack.c.l.b16 %v1395
    %v1915 = vunpack.c.l.b16 %v1396
    %v1916 = vunpack.c.l.b16 %v1397
    %v1917 = vunpack.c.l.b16 %v1398
    %v1918 = vunpack.c.l.b16 %v1399
    %v1919 = vunpack.c.l.b16 %v1400
    %v1920 = vunpack.c.l.b16 %v1401
    %v1921 = vunpack.c.l.b16 %v1402
    %v1922 = vunpack.c.l.b16 %v1403
    %v1923 = vunpack.c.l.b16 %v1404
    %v1924 = vunpack.c.l.b16 %v1405
    %v1925 = vunpack.c.l.b16 %v1406
    %v1926 = vunpack.c.l.b16 %v1407
    %v1927 = vunpack.c.l.b16 %v1408
    %v1928 = vunpack.c.l.b16 %v1409
    %v1929 = vunpack.c.l.b16 %v1410
    %v1930 = vunpack.c.l.b16 %v1411
    %v1931 = vunpack.c.l.b16 %v1412
    %v1932 = vunpack.c.l.b16 %v1413
    %v1933 = vunpack.c.l.b16 %v1414
    %v1934 = vunpack.c.l.b16 %v1415
    %v1935 = vunpack.c.l.b16 %v1416
    %v1936 = vunpack.c.l.b16 %v1417
    %v1937 = vunpack.c.l.b16 %v1418
    %v1938 = vunpack.c.l.b16 %v1419
    %v1939 = vunpack.c.l.b16 %v1420
    %v1940 = vunpack.c.l.b16 %v1421
    %v1941 = vunpack.c.l.b16 %v1422
    %v1942 = vunpack.c.l.b16 %v1423
    %v1943 = vunpack.c.l.b16 %v1424
    %v1944 = vunpack.c.l.b16 %v1425
    %v1945 = vunpack.c.l.b16 %v1426
    %v1946 = vunpack.c.l.b16 %v1427
    %v1947 = vunpack.c.l.b16 %v1428
    %v1948 = vunpack.c.l.b16 %v1429
    %v1949 = vunpack.c.l.b16 %v1430
    %v1950 = vunpack.c.l.b16 %v1431
    %v1951 = vunpack.c.l.b16 %v1432
    %v1952 = vunpack.c.l.b16 %v1433
    %v1953 = vunpack.c.l.b16 %v1434
    %v1954 = vunpack.c.l.b16 %v1435
    %v1955 = vunpack.c.l.b16 %v1436
    %v1956 = vunpack.c.l.b16 %v1437
    %v1957 = vunpack.c.l.b16 %v1438
    %v1958 = vunpack.c.l.b16 %v1439
    %v1959 = vunpack.c.l.b16 %v1440
    %v1960 = vunpack.c.l.b16 %v1441
    %v1961 = vunpack.c.l.b16 %v1442
    %v1962 = vunpack.c.l.b16 %v1443
    %v1963 = vunpack.c.l.b16 %v1444
    %v1964 = vunpack.c.l.b16 %v1445
    %v1965 = vunpack.c.l.b16 %v1446
    %v1966 = vunpack.c.l.b16 %v1447
    %v1967 = vunpack.c.l.b16 %v1448
    %v1968 = vunpack.c.l.b16 %v1449
    %v1969 = vunpack.c.l.b16 %v1450
    %v1970 = vunpack.c.l.b16 %v1451
    %v1971 = vunpack.c.l.b16 %v1452
    %v1972 = vunpack.c.l.b16 %v1453
    %v1973 = vunpack.c.l.b16 %v1454
    %v1974 = vunpack.c.l.b16 %v1455
    %v1975 = vunpack.c.l.b16 %v1456
    %v1976 = vunpack.c.l.b16 %v1457
    %v1977 = vunpack.c.l.b16 %v1458
    %v1978 = vunpack.c.l.b16 %v1459
    %v1979 = vunpack.c.l.b16 %v1460
    %v1980 = vunpack.c.l.b16 %v1461
    %v1981 = vunpack.c.l.b16 %v1462
    %v1982 = vunpack.c.l.b16 %v1463
    %v1983 = vunpack.c.l.b16 %v1464
    %v1984 = vunpack.c.l.b16 %v1465
    %v1985 = vunpack.c.l.b16 %v1466
    %v1986 = vunpack.c.l.b16 %v1467
    %v1987 = vunpack.c.l.b16 %v1468
    %v1988 = vunpack.c.l.b16 %v1469
    %v1989 = vunpack.c.l.b16 %v1470
    %v1990 = vunpack.c.l.b16 %v1471
    %v1991 = vunpack.c.l.b16 %v1472
    %v1992 = vunpack.c.l.b16 %v1473
    %v1993 = vunpack.c.l.b16 %v1474
    %v1994 = vunpack.c.l.b16 %v1475
    %v1995 = vunpack.c.l.b16 %v1476
    %v1996 = vunpack.c.l.b16 %v1477
    %v1997 = vunpack.c.l.b16 %v1478
    %v1998 = vunpack.c.l.b16 %v1479
    %v1999 = vunpack.c.l.b16 %v1480
    %v2000 = vunpack.c.l.b16 %v1481
    %v2001 = vunpack.c.l.b16 %v1482
    %v2002 = vunpack.c.l.b16 %v1483
    %v2003 = vunpack.c.l.b16 %v1484
    %v2004 = vunpack.c.l.b16 %v1485
    %v2005 = vunpack.c.l.b16 %v1486
    %v2006 = vunpack.c.l.b16 %v1487
    %v2007 = vunpack.c.l.b16 %v1488
    %v2008 = vunpack.c.l.b16 %v1489
    %v2009 = vunpack.c.l.b16 %v1490
    %v2010 = vunpack.c.l.b16 %v1491
    %v2011 = vunpack.c.l.b16 %v1492
    %v2012 = vunpack.c.l.b16 %v1493
    %v2013 = vunpack.c.l.b16 %v1494
    %v2014 = vunpack.c.l.b16 %v1495
    %v2015 = vunpack.c.l.b16 %v1496
    %v2016 = vunpack.c.l.b16 %v1497
    %v2017 = vunpack.c.l.b16 %v1498
    %v2018 = vunpack.c.l.b16 %v1499
    %v2019 = vunpack.c.l.b16 %v1500
    %v2020 = vunpack.c.l.b16 %v1501
    %v2021 = vunpack.c.l.b16 %v1502
    %v2022 = vunpack.c.l.b16 %v1503
    %v2023 = vunpack.c.l.b16 %v1504
    %v2024 = vunpack.c.l.b16 %v1505
    %v2025 = vunpack.c.l.b16 %v1506
    %v2026 = vunpack.c.l.b16 %v1507
    %v2027 = vunpack.c.l.b16 %v1508
    %v2028 = vunpack.c.l.b16 %v1509
    %v2029 = vunpack.c.l.b16 %v1510
    %v2030 = vunpack.c.l.b16 %v1511
    %v2031 = vunpack.c.l.b16 %v1512
    %v2032 = vunpack.c.l.b16 %v1513
    %v2033 = vunpack.c.l.b16 %v1514
    %v2034 = vpack.c.b16 %v1779, %v1778
    %v2035 = vpack.c.b16 %v1781, %v1780
    %v2036 = vpack.c.b16 %v1783, %v1782
    %v2037 = vpack.c.b16 %v1785, %v1784
    %v2038 = vpack.c.b16 %v1787, %v1786
    %v2039 = vpack.c.b16 %v1789, %v1788
    %v2040 = vpack.c.b16 %v1791, %v1790
    %v2041 = vpack.c.b16 %v1793, %v1792
    %v2042 = vpack.c.b16 %v1795, %v1794
    %v2043 = vpack.c.b16 %v1797, %v1796
    %v2044 = vpack.c.b16 %v1799, %v1798
    %v2045 = vpack.c.b16 %v1801, %v1800
    %v2046 = vpack.c.b16 %v1803, %v1802
    %v2047 = vpack.c.b16 %v1805, %v1804
    %v2048 = vpack.c.b16 %v1807, %v1806
    %v2049 = vpack.c.b16 %v1809, %v1808
    %v2050 = vpack.c.b16 %v1811, %v1810
    %v2051 = vpack.c.b16 %v1813, %v1812
    %v2052 = vpack.c.b16 %v1815, %v1814
    %v2053 = vpack.c.b16 %v1817, %v1816
    %v2054 = vpack.c.b16 %v1819, %v1818
    %v2055 = vpack.c.b16 %v1821, %v1820
    %v2056 = vpack.c.b16 %v1823, %v1822
    %v2057 = vpack.c.b16 %v1825, %v1824
    %v2058 = vpack.c.b16 %v1827, %v1826
    %v2059 = vpack.c.b16 %v1829, %v1828
    %v2060 = vpack.c.b16 %v1831, %v1830
    %v2061 = vpack.c.b16 %v1833, %v1832
    %v2062 = vpack.c.b16 %v1835, %v1834
    %v2063 = vpack.c.b16 %v1837, %v1836
    %v2064 = vpack.c.b16 %v1839, %v1838
    %v2065 = vpack.c.b16 %v1841, %v1840
    %v2066 = vpack.c.b16 %v1843, %v1842
    %v2067 = vpack.c.b16 %v1845, %v1844
    %v2068 = vpack.c.b16 %v1847, %v1846
    %v2069 = vpack.c.b16 %v1849, %v1848
    %v2070 = vpack.c.b16 %v1851, %v1850
    %v2071 = vpack.c.b16 %v1853, %v1852
    %v2072 = vpack.c.b16 %v1855, %v1854
    %v2073 = vpack.c.b16 %v1857, %v1856
    %v2074 = vpack.c.b16 %v1859, %v1858
    %v2075 = vpack.c.b16 %v1861, %v1860
    %v2076 = vpack.c.b16 %v1863, %v1862
    %v2077 = vpack.c.b16 %v1865, %v1864
    %v2078 = vpack.c.b16 %v1867, %v1866
    %v2079 = vpack.c.b16 %v1869, %v1868
    %v2080 = vpack.c.b16 %v1871, %v1870
    %v2081 = vpack.c.b16 %v1873, %v1872
    %v2082 = vpack.c.b16 %v1875, %v1874
    %v2083 = vpack.c.b16 %v1877, %v1876
    %v2084 = vpack.c.b16 %v1879, %v1878
    %v2085 = vpack.c.b16 %v1881, %v1880
    %v2086 = vpack.c.b16 %v1883, %v1882
    %v2087 = vpack.c.b16 %v1885, %v1884
    %v2088 = vpack.c.b16 %v1887, %v1886
    %v2089 = vpack.c.b16 %v1889, %v1888
    %v2090 = vpack.c.b16 %v1891, %v1890
    %v2091 = vpack.c.b16 %v1893, %v1892
    %v2092 = vpack.c.b16 %v1895, %v1894
    %v2093 = vpack.c.b16 %v1897, %v1896
    %v2094 = vpack.c.b16 %v1899, %v1898
    %v2095 = vpack.c.b16 %v1901, %v1900
    %v2096 = vpack.c.b16 %v1903, %v1902
    %v2097 = vpack.c.b16 %v1905, %v1904
    %v2098 = vpack.c.b16 %v1907, %v1906
    %v2099 = vpack.c.b16 %v1909, %v1908
    %v2100 = vpack.c.b16 %v1911, %v1910
    %v2101 = vpack.c.b16 %v1913, %v1912
    %v2102 = vpack.c.b16 %v1915, %v1914
    %v2103 = vpack.c.b16 %v1917, %v1916
    %v2104 = vpack.c.b16 %v1919, %v1918
    %v2105 = vpack.c.b16 %v1921, %v1920
    %v2106 = vpack.c.b16 %v1923, %v1922
    %v2107 = vpack.c.b16 %v1925, %v1924
    %v2108 = vpack.c.b16 %v1927, %v1926
    %v2109 = vpack.c.b16 %v1929, %v1928
    %v2110 = vpack.c.b16 %v1931, %v1930
    %v2111 = vpack.c.b16 %v1933, %v1932
    %v2112 = vpack.c.b16 %v1935, %v1934
    %v2113 = vpack.c.b16 %v1937, %v1936
    %v2114 = vpack.c.b16 %v1939, %v1938
    %v2115 = vpack.c.b16 %v1941, %v1940
    %v2116 = vpack.c.b16 %v1943, %v1942
    %v2117 = vpack.c.b16 %v1945, %v1944
    %v2118 = vpack.c.b16 %v1947, %v1946
    %v2119 = vpack.c.b16 %v1949, %v1948
    %v2120 = vpack.c.b16 %v1951, %v1950
    %v2121 = vpack.c.b16 %v1953, %v1952
    %v2122 = vpack.c.b16 %v1955, %v1954
    %v2123 = vpack.c.b16 %v1957, %v1956
    %v2124 = vpack.c.b16 %v1959, %v1958
    %v2125 = vpack.c.b16 %v1961, %v1960
    %v2126 = vpack.c.b16 %v1963, %v1962
    %v2127 = vpack.c.b16 %v1965, %v1964
    %v2128 = vpack.c.b16 %v1967, %v1966
    %v2129 = vpack.c.b16 %v1969, %v1968
    %v2130 = vpack.c.b16 %v1971, %v1970
    %v2131 = vpack.c.b16 %v1973, %v1972
    %v2132 = vpack.c.b16 %v1975, %v1974
    %v2133 = vpack.c.b16 %v1977, %v1976
    %v2134 = vpack.c.b16 %v1979, %v1978
    %v2135 = vpack.c.b16 %v1981, %v1980
    %v2136 = vpack.c.b16 %v1983, %v1982
    %v2137 = vpack.c.b16 %v1985, %v1984
    %v2138 = vpack.c.b16 %v1987, %v1986
    %v2139 = vpack.c.b16 %v1989, %v1988
    %v2140 = vpack.c.b16 %v1991, %v1990
    %v2141 = vpack.c.b16 %v1993, %v1992
    %v2142 = vpack.c.b16 %v1995, %v1994
    %v2143 = vpack.c.b16 %v1997, %v1996
    %v2144 = vpack.c.b16 %v1999, %v1998
    %v2145 = vpack.c.b16 %v2001, %v2000
    %v2146 = vpack.c.b16 %v2003, %v2002
    %v2147 = vpack.c.b16 %v2005, %v2004
    %v2148 = vpack.c.b16 %v2007, %v2006
    %v2149 = vpack.c.b16 %v2009, %v2008
    %v2150 = vpack.c.b16 %v2011, %v2010
    %v2151 = vpack.c.b16 %v2013, %v2012
    %v2152 = vpack.c.b16 %v2015, %v2014
    %v2153 = vpack.c.b16 %v2017, %v2016
    %v2154 = vpack.c.b16 %v2019, %v2018
    %v2155 = vpack.c.b16 %v2021, %v2020
    %v2156 = vpack.c.b16 %v2023, %v2022
    %v2157 = vpack.c.b16 %v2025, %v2024
    %v2158 = vpack.c.b16 %v2027, %v2026
    %v2159 = vpack.c.b16 %v2029, %v2028
    %v2160 = vpack.c.b16 %v2031, %v2030
    %v2161 = vpack.c.b16 %v2033, %v2032
    %2290 = vmatprep.subr.bf16.mxu0 0
    %2291 = vmatpush1.bf16.msra.mxu0 %v2034
    %2292 = vmatprep.subr.bf16.mxu0 0
    %2293 = vmatpush1.bf16.msra.mxu0 %v2035
    %2294 = vmatprep.subr.bf16.mxu0 0
    %2295 = vmatpush1.bf16.msra.mxu0 %v2036
    %2296 = vmatprep.subr.bf16.mxu0 0
    %2297 = vmatpush1.bf16.msra.mxu0 %v2037
    %2298 = vmatprep.subr.bf16.mxu0 0
    %2299 = vmatpush1.bf16.msra.mxu0 %v2038
    %2300 = vmatprep.subr.bf16.mxu0 0
    %2301 = vmatpush1.bf16.msra.mxu0 %v2039
    %2302 = vmatprep.subr.bf16.mxu0 0
    %2303 = vmatpush1.bf16.msra.mxu0 %v2040
    %2304 = vmatprep.subr.bf16.mxu0 0
    %2305 = vmatpush1.bf16.msra.mxu0 %v2041
    %2306 = vmatprep.subr.bf16.mxu0 0
    %2307 = vmatpush1.bf16.msra.mxu0 %v2042
    %2308 = vmatprep.subr.bf16.mxu0 0
    %2309 = vmatpush1.bf16.msra.mxu0 %v2043
    %2310 = vmatprep.subr.bf16.mxu0 0
    %2311 = vmatpush1.bf16.msra.mxu0 %v2044
    %2312 = vmatprep.subr.bf16.mxu0 0
    %2313 = vmatpush1.bf16.msra.mxu0 %v2045
    %2314 = vmatprep.subr.bf16.mxu0 0
    %2315 = vmatpush1.bf16.msra.mxu0 %v2046
    %2316 = vmatprep.subr.bf16.mxu0 0
    %2317 = vmatpush1.bf16.msra.mxu0 %v2047
    %2318 = vmatprep.subr.bf16.mxu0 0
    %2319 = vmatpush1.bf16.msra.mxu0 %v2048
    %2320 = vmatprep.subr.bf16.mxu0 0
    %2321 = vmatpush1.bf16.msra.mxu0 %v2049
    %2322 = vmatprep.mubr.bf16.mxu0 %v1244
    %2323 = vmatmul.mubr.bf16.gmra.mrb[0].mxu0 %v1243
    %v2324 = vpop.f32.mrb[0].mxu0
    %v2325 = vadd.f32 %v1520, %v2324
    %v2326 = vpop.f32.mrb[0].mxu0
    %v2327 = vpop.f32.mrb[0].mxu0
    %v2328 = vadd.f32 %v1520, %v2327
    %v2329 = vpop.f32.mrb[0].mxu0
    %2330 = vdwg.mxu0
    %2331 = vmatprep.subr.bf16.mxu0 0
    %2332 = vmatpush1.bf16.msra.mxu0 %v2050
    %2333 = vmatprep.subr.bf16.mxu0 0
    %2334 = vmatpush1.bf16.msra.mxu0 %v2051
    %2335 = vmatprep.subr.bf16.mxu0 0
    %2336 = vmatpush1.bf16.msra.mxu0 %v2052
    %2337 = vmatprep.subr.bf16.mxu0 0
    %2338 = vmatpush1.bf16.msra.mxu0 %v2053
    %2339 = vmatprep.subr.bf16.mxu0 0
    %2340 = vmatpush1.bf16.msra.mxu0 %v2054
    %2341 = vmatprep.subr.bf16.mxu0 0
    %2342 = vmatpush1.bf16.msra.mxu0 %v2055
    %2343 = vmatprep.subr.bf16.mxu0 0
    %2344 = vmatpush1.bf16.msra.mxu0 %v2056
    %2345 = vmatprep.subr.bf16.mxu0 0
    %2346 = vmatpush1.bf16.msra.mxu0 %v2057
    %2347 = vmatprep.subr.bf16.mxu0 0
    %2348 = vmatpush1.bf16.msra.mxu0 %v2058
    %2349 = vmatprep.subr.bf16.mxu0 0
    %2350 = vmatpush1.bf16.msra.mxu0 %v2059
    %2351 = vmatprep.subr.bf16.mxu0 0
    %2352 = vmatpush1.bf16.msra.mxu0 %v2060
    %2353 = vmatprep.subr.bf16.mxu0 0
    %2354 = vmatpush1.bf16.msra.mxu0 %v2061
    %2355 = vmatprep.subr.bf16.mxu0 0
    %2356 = vmatpush1.bf16.msra.mxu0 %v2062
    %2357 = vmatprep.subr.bf16.mxu0 0
    %2358 = vmatpush1.bf16.msra.mxu0 %v2063
    %2359 = vmatprep.subr.bf16.mxu0 0
    %2360 = vmatpush1.bf16.msra.mxu0 %v2064
    %2361 = vmatprep.subr.bf16.mxu0 0
    %2362 = vmatpush1.bf16.msra.mxu0 %v2065
    %2363 = vmatprep.mubr.bf16.mxu0 %v1246
    %2364 = vmatmul.mubr.bf16.gmra.mrb[0].mxu0 %v1245
    %v2365 = vpop.f32.mrb[0].mxu0
    %v2366 = vadd.f32 %v2325, %v2365
    %v2367 = vpop.f32.mrb[0].mxu0
    %v2368 = vpop.f32.mrb[0].mxu0
    %v2369 = vadd.f32 %v2328, %v2368
    %v2370 = vpop.f32.mrb[0].mxu0
    %2371 = vdwg.mxu0
    %2372 = vmatprep.subr.bf16.mxu0 0
    %2373 = vmatpush1.bf16.msra.mxu0 %v2066
    %2374 = vmatprep.subr.bf16.mxu0 0
    %2375 = vmatpush1.bf16.msra.mxu0 %v2067
    %2376 = vmatprep.subr.bf16.mxu0 0
    %2377 = vmatpush1.bf16.msra.mxu0 %v2068
    %2378 = vmatprep.subr.bf16.mxu0 0
    %2379 = vmatpush1.bf16.msra.mxu0 %v2069
    %2380 = vmatprep.subr.bf16.mxu0 0
    %2381 = vmatpush1.bf16.msra.mxu0 %v2070
    %2382 = vmatprep.subr.bf16.mxu0 0
    %2383 = vmatpush1.bf16.msra.mxu0 %v2071
    %2384 = vmatprep.subr.bf16.mxu0 0
    %2385 = vmatpush1.bf16.msra.mxu0 %v2072
    %2386 = vmatprep.subr.bf16.mxu0 0
    %2387 = vmatpush1.bf16.msra.mxu0 %v2073
    %2388 = vmatprep.subr.bf16.mxu0 0
    %2389 = vmatpush1.bf16.msra.mxu0 %v2074
    %2390 = vmatprep.subr.bf16.mxu0 0
    %2391 = vmatpush1.bf16.msra.mxu0 %v2075
    %2392 = vmatprep.subr.bf16.mxu0 0
    %2393 = vmatpush1.bf16.msra.mxu0 %v2076
    %2394 = vmatprep.subr.bf16.mxu0 0
    %2395 = vmatpush1.bf16.msra.mxu0 %v2077
    %2396 = vmatprep.subr.bf16.mxu0 0
    %2397 = vmatpush1.bf16.msra.mxu0 %v2078
    %2398 = vmatprep.subr.bf16.mxu0 0
    %2399 = vmatpush1.bf16.msra.mxu0 %v2079
    %2400 = vmatprep.subr.bf16.mxu0 0
    %2401 = vmatpush1.bf16.msra.mxu0 %v2080
    %2402 = vmatprep.subr.bf16.mxu0 0
    %2403 = vmatpush1.bf16.msra.mxu0 %v2081
    %2404 = vmatprep.mubr.bf16.mxu0 %v1248
    %2405 = vmatmul.mubr.bf16.gmra.mrb[0].mxu0 %v1247
    %v2406 = vpop.f32.mrb[0].mxu0
    %v2407 = vadd.f32 %v2366, %v2406
    %v2408 = vpop.f32.mrb[0].mxu0
    %v2409 = vpop.f32.mrb[0].mxu0
    %v2410 = vadd.f32 %v2369, %v2409
    %v2411 = vpop.f32.mrb[0].mxu0
    %2412 = vdwg.mxu0
    %2413 = vmatprep.subr.bf16.mxu0 0
    %2414 = vmatpush1.bf16.msra.mxu0 %v2082
    %2415 = vmatprep.subr.bf16.mxu0 0
    %2416 = vmatpush1.bf16.msra.mxu0 %v2083
    %2417 = vmatprep.subr.bf16.mxu0 0
    %2418 = vmatpush1.bf16.msra.mxu0 %v2084
    %2419 = vmatprep.subr.bf16.mxu0 0
    %2420 = vmatpush1.bf16.msra.mxu0 %v2085
    %2421 = vmatprep.subr.bf16.mxu0 0
    %2422 = vmatpush1.bf16.msra.mxu0 %v2086
    %2423 = vmatprep.subr.bf16.mxu0 0
    %2424 = vmatpush1.bf16.msra.mxu0 %v2087
    %2425 = vmatprep.subr.bf16.mxu0 0
    %2426 = vmatpush1.bf16.msra.mxu0 %v2088
    %2427 = vmatprep.subr.bf16.mxu0 0
    %2428 = vmatpush1.bf16.msra.mxu0 %v2089
    %2429 = vmatprep.subr.bf16.mxu0 0
    %2430 = vmatpush1.bf16.msra.mxu0 %v2090
    %2431 = vmatprep.subr.bf16.mxu0 0
    %2432 = vmatpush1.bf16.msra.mxu0 %v2091
    %2433 = vmatprep.subr.bf16.mxu0 0
    %2434 = vmatpush1.bf16.msra.mxu0 %v2092
    %2435 = vmatprep.subr.bf16.mxu0 0
    %2436 = vmatpush1.bf16.msra.mxu0 %v2093
    %2437 = vmatprep.subr.bf16.mxu0 0
    %2438 = vmatpush1.bf16.msra.mxu0 %v2094
    %2439 = vmatprep.subr.bf16.mxu0 0
    %2440 = vmatpush1.bf16.msra.mxu0 %v2095
    %2441 = vmatprep.subr.bf16.mxu0 0
    %2442 = vmatpush1.bf16.msra.mxu0 %v2096
    %2443 = vmatprep.subr.bf16.mxu0 0
    %2444 = vmatpush1.bf16.msra.mxu0 %v2097
    %2445 = vmatprep.mubr.bf16.mxu0 %v1250
    %2446 = vmatmul.mubr.bf16.gmra.mrb[0].mxu0 %v1249
    %v2447 = vpop.f32.mrb[0].mxu0
    %v2448 = vadd.f32 %v2407, %v2447
    %v2449 = vpop.f32.mrb[0].mxu0
    %v2450 = vpop.f32.mrb[0].mxu0
    %v2451 = vadd.f32 %v2410, %v2450
    %v2452 = vpop.f32.mrb[0].mxu0
    %2453 = vdwg.mxu0
    %2454 = vmatprep.subr.bf16.mxu0 0
    %2455 = vmatpush1.bf16.msra.mxu0 %v2098
    %2456 = vmatprep.subr.bf16.mxu0 0
    %2457 = vmatpush1.bf16.msra.mxu0 %v2099
    %2458 = vmatprep.subr.bf16.mxu0 0
    %2459 = vmatpush1.bf16.msra.mxu0 %v2100
    %2460 = vmatprep.subr.bf16.mxu0 0
    %2461 = vmatpush1.bf16.msra.mxu0 %v2101
    %2462 = vmatprep.subr.bf16.mxu0 0
    %2463 = vmatpush1.bf16.msra.mxu0 %v2102
    %2464 = vmatprep.subr.bf16.mxu0 0
    %2465 = vmatpush1.bf16.msra.mxu0 %v2103
    %2466 = vmatprep.subr.bf16.mxu0 0
    %2467 = vmatpush1.bf16.msra.mxu0 %v2104
    %2468 = vmatprep.subr.bf16.mxu0 0
    %2469 = vmatpush1.bf16.msra.mxu0 %v2105
    %2470 = vmatprep.subr.bf16.mxu0 0
    %2471 = vmatpush1.bf16.msra.mxu0 %v2106
    %2472 = vmatprep.subr.bf16.mxu0 0
    %2473 = vmatpush1.bf16.msra.mxu0 %v2107
    %2474 = vmatprep.subr.bf16.mxu0 0
    %2475 = vmatpush1.bf16.msra.mxu0 %v2108
    %2476 = vmatprep.subr.bf16.mxu0 0
    %2477 = vmatpush1.bf16.msra.mxu0 %v2109
    %2478 = vmatprep.subr.bf16.mxu0 0
    %2479 = vmatpush1.bf16.msra.mxu0 %v2110
    %2480 = vmatprep.subr.bf16.mxu0 0
    %2481 = vmatpush1.bf16.msra.mxu0 %v2111
    %2482 = vmatprep.subr.bf16.mxu0 0
    %2483 = vmatpush1.bf16.msra.mxu0 %v2112
    %2484 = vmatprep.subr.bf16.mxu0 0
    %2485 = vmatpush1.bf16.msra.mxu0 %v2113
    %2486 = vmatprep.mubr.bf16.mxu0 %v1252
    %2487 = vmatmul.mubr.bf16.gmra.mrb[0].mxu0 %v1251
    %v2488 = vpop.f32.mrb[0].mxu0
    %v2489 = vadd.f32 %v2448, %v2488
    %v2490 = vpop.f32.mrb[0].mxu0
    %v2491 = vpop.f32.mrb[0].mxu0
    %v2492 = vadd.f32 %v2451, %v2491
    %v2493 = vpop.f32.mrb[0].mxu0
    %2494 = vdwg.mxu0
    %2495 = vmatprep.subr.bf16.mxu0 0
    %2496 = vmatpush1.bf16.msra.mxu0 %v2114
    %2497 = vmatprep.subr.bf16.mxu0 0
    %2498 = vmatpush1.bf16.msra.mxu0 %v2115
    %2499 = vmatprep.subr.bf16.mxu0 0
    %2500 = vmatpush1.bf16.msra.mxu0 %v2116
    %2501 = vmatprep.subr.bf16.mxu0 0
    %2502 = vmatpush1.bf16.msra.mxu0 %v2117
    %2503 = vmatprep.subr.bf16.mxu0 0
    %2504 = vmatpush1.bf16.msra.mxu0 %v2118
    %2505 = vmatprep.subr.bf16.mxu0 0
    %2506 = vmatpush1.bf16.msra.mxu0 %v2119
    %2507 = vmatprep.subr.bf16.mxu0 0
    %2508 = vmatpush1.bf16.msra.mxu0 %v2120
    %2509 = vmatprep.subr.bf16.mxu0 0
    %2510 = vmatpush1.bf16.msra.mxu0 %v2121
    %2511 = vmatprep.subr.bf16.mxu0 0
    %2512 = vmatpush1.bf16.msra.mxu0 %v2122
    %2513 = vmatprep.subr.bf16.mxu0 0
    %2514 = vmatpush1.bf16.msra.mxu0 %v2123
    %2515 = vmatprep.subr.bf16.mxu0 0
    %2516 = vmatpush1.bf16.msra.mxu0 %v2124
    %2517 = vmatprep.subr.bf16.mxu0 0
    %2518 = vmatpush1.bf16.msra.mxu0 %v2125
    %2519 = vmatprep.subr.bf16.mxu0 0
    %2520 = vmatpush1.bf16.msra.mxu0 %v2126
    %2521 = vmatprep.subr.bf16.mxu0 0
    %2522 = vmatpush1.bf16.msra.mxu0 %v2127
    %2523 = vmatprep.subr.bf16.mxu0 0
    %2524 = vmatpush1.bf16.msra.mxu0 %v2128
    %2525 = vmatprep.subr.bf16.mxu0 0
    %2526 = vmatpush1.bf16.msra.mxu0 %v2129
    %2527 = vmatprep.mubr.bf16.mxu0 %v1254
    %2528 = vmatmul.mubr.bf16.gmra.mrb[0].mxu0 %v1253
    %v2529 = vpop.f32.mrb[0].mxu0
    %v2530 = vadd.f32 %v2489, %v2529
    %v2531 = vpop.f32.mrb[0].mxu0
    %v2532 = vpop.f32.mrb[0].mxu0
    %v2533 = vadd.f32 %v2492, %v2532
    %v2534 = vpop.f32.mrb[0].mxu0
    %2535 = vdwg.mxu0
    %2536 = vmatprep.subr.bf16.mxu0 0
    %2537 = vmatpush1.bf16.msra.mxu0 %v2130
    %2538 = vmatprep.subr.bf16.mxu0 0
    %2539 = vmatpush1.bf16.msra.mxu0 %v2131
    %2540 = vmatprep.subr.bf16.mxu0 0
    %2541 = vmatpush1.bf16.msra.mxu0 %v2132
    %2542 = vmatprep.subr.bf16.mxu0 0
    %2543 = vmatpush1.bf16.msra.mxu0 %v2133
    %2544 = vmatprep.subr.bf16.mxu0 0
    %2545 = vmatpush1.bf16.msra.mxu0 %v2134
    %2546 = vmatprep.subr.bf16.mxu0 0
    %2547 = vmatpush1.bf16.msra.mxu0 %v2135
    %2548 = vmatprep.subr.bf16.mxu0 0
    %2549 = vmatpush1.bf16.msra.mxu0 %v2136
    %2550 = vmatprep.subr.bf16.mxu0 0
    %2551 = vmatpush1.bf16.msra.mxu0 %v2137
    %2552 = vmatprep.subr.bf16.mxu0 0
    %2553 = vmatpush1.bf16.msra.mxu0 %v2138
    %2554 = vmatprep.subr.bf16.mxu0 0
    %2555 = vmatpush1.bf16.msra.mxu0 %v2139
    %2556 = vmatprep.subr.bf16.mxu0 0
    %2557 = vmatpush1.bf16.msra.mxu0 %v2140
    %2558 = vmatprep.subr.bf16.mxu0 0
    %2559 = vmatpush1.bf16.msra.mxu0 %v2141
    %2560 = vmatprep.subr.bf16.mxu0 0
    %2561 = vmatpush1.bf16.msra.mxu0 %v2142
    %2562 = vmatprep.subr.bf16.mxu0 0
    %2563 = vmatpush1.bf16.msra.mxu0 %v2143
    %2564 = vmatprep.subr.bf16.mxu0 0
    %2565 = vmatpush1.bf16.msra.mxu0 %v2144
    %2566 = vmatprep.subr.bf16.mxu0 0
    %2567 = vmatpush1.bf16.msra.mxu0 %v2145
    %2568 = vmatprep.mubr.bf16.mxu0 %v1256
    %2569 = vmatmul.mubr.bf16.gmra.mrb[0].mxu0 %v1255
    %v2570 = vpop.f32.mrb[0].mxu0
    %v2571 = vadd.f32 %v2530, %v2570
    %v2572 = vpop.f32.mrb[0].mxu0
    %v2573 = vpop.f32.mrb[0].mxu0
    %v2574 = vadd.f32 %v2533, %v2573
    %v2575 = vpop.f32.mrb[0].mxu0
    %2576 = vdwg.mxu0
    %2577 = vmatprep.subr.bf16.mxu0 0
    %2578 = vmatpush1.bf16.msra.mxu0 %v2146
    %2579 = vmatprep.subr.bf16.mxu0 0
    %2580 = vmatpush1.bf16.msra.mxu0 %v2147
    %2581 = vmatprep.subr.bf16.mxu0 0
    %2582 = vmatpush1.bf16.msra.mxu0 %v2148
    %2583 = vmatprep.subr.bf16.mxu0 0
    %2584 = vmatpush1.bf16.msra.mxu0 %v2149
    %2585 = vmatprep.subr.bf16.mxu0 0
    %2586 = vmatpush1.bf16.msra.mxu0 %v2150
    %2587 = vmatprep.subr.bf16.mxu0 0
    %2588 = vmatpush1.bf16.msra.mxu0 %v2151
    %2589 = vmatprep.subr.bf16.mxu0 0
    %2590 = vmatpush1.bf16.msra.mxu0 %v2152
    %2591 = vmatprep.subr.bf16.mxu0 0
    %2592 = vmatpush1.bf16.msra.mxu0 %v2153
    %2593 = vmatprep.subr.bf16.mxu0 0
    %2594 = vmatpush1.bf16.msra.mxu0 %v2154
    %2595 = vmatprep.subr.bf16.mxu0 0
    %2596 = vmatpush1.bf16.msra.mxu0 %v2155
    %2597 = vmatprep.subr.bf16.mxu0 0
    %2598 = vmatpush1.bf16.msra.mxu0 %v2156
    %2599 = vmatprep.subr.bf16.mxu0 0
    %2600 = vmatpush1.bf16.msra.mxu0 %v2157
    %2601 = vmatprep.subr.bf16.mxu0 0
    %2602 = vmatpush1.bf16.msra.mxu0 %v2158
    %2603 = vmatprep.subr.bf16.mxu0 0
    %2604 = vmatpush1.bf16.msra.mxu0 %v2159
    %2605 = vmatprep.subr.bf16.mxu0 0
    %2606 = vmatpush1.bf16.msra.mxu0 %v2160
    %2607 = vmatprep.subr.bf16.mxu0 0
    %2608 = vmatpush1.bf16.msra.mxu0 %v2161
    %2609 = vmatprep.mubr.bf16.mxu0 %v1258
    %2610 = vmatmul.mubr.bf16.gmra.mrb[0].mxu0 %v1257
    %v2611 = vpop.f32.mrb[0].mxu0
    %v2612 = vadd.f32 %v2571, %v2611
    %v2613 = vpop.f32.mrb[0].mxu0
    %v2614 = vpop.f32.mrb[0].mxu0
    %v2615 = vadd.f32 %v2574, %v2614
    %v2616 = vpop.f32.mrb[0].mxu0
    %2617 = vdwg.mxu0
    %v2618 = vadd.f32 %v585, %v2612
    %v2619 = vadd.f32 %v586, %v2615
    %v2620 = vsel %vm366, %v2618, 0.0
    %2621 = vadd.xlane.f32.xlu0 %v2620
    %v2622 = vpop.xlane.xlu0 %2621
    %v2623 = vsel %vm366, %v2619, 0.0
    %2624 = vadd.xlane.f32.xlu0 %v2623
    %v2625 = vpop.xlane.xlu0 %2624
    %v2626 = vmul.f32 %v2622, %v548
    %v2627 = vmul.f32 %v2625, %v548
    %v2628 = vsub.f32 %v2618, %v2626
    %v2629 = vsub.f32 %v2619, %v2627
    %v2630 = vmul.f32 %v2628, %v2628
    %v2631 = vmul.f32 %v2629, %v2629
    %v2632 = vsel %vm366, %v2630, 0.0
    %2633 = vadd.xlane.f32.xlu0 %v2632
    %v2634 = vpop.xlane.xlu0 %2633
    %v2635 = vsel %vm366, %v2631, 0.0
    %2636 = vadd.xlane.f32.xlu0 %v2635
    %v2637 = vpop.xlane.xlu0 %2636
    %v2638 = vmul.f32 %v2634, %v548
    %v2639 = vmul.f32 %v2637, %v548
    %v2640 = vadd.f32 %v2638, 1e-05
    %v2641 = vadd.f32 %v2639, 1e-05
    %v2642 = vrsqrt.pop %v2640
    %v2643 = vrsqrt.pop %v2641
    %v2644 = vmul.f32 %v2628, %v2642
    %v2645 = vmul.f32 %v2629, %v2643
    %v2646 = vld [vmem:[%s25] sm:$0x1]
    %v2648 = vlaneseq
    %v2649 = vshrl.u32 %v2648, 7
    %v2650 = vsub.s32 0, %v2649
    %v2651 = vrot.slane %v2646, %v2650
    %v2653 = vmul.f32 %v2644, %v2651
    %v2654 = vmul.f32 %v2645, %v2651
    %v2655 = vld [vmem:[%s23] sm:$0x1]
    %v2657 = vlaneseq
    %v2658 = vshrl.u32 %v2657, 7
    %v2659 = vsub.s32 0, %v2658
    %v2660 = vrot.slane %v2655, %v2659
    %v2662 = vadd.f32 %v2653, %v2660
    %v2663 = vadd.f32 %v2654, %v2660
    %v2664 = vld [vmem:[%s57] sm:$0xff]
    %v2665 = vld [vmem:[%s57 + $0x8] sm:$0xff]
    %v2666 = vld [vmem:[%s57 + $0x10] sm:$0xff]
    %v2667 = vld [vmem:[%s57 + $0x18] sm:$0xff]
    %v2668 = vld [vmem:[%s41] sm:$0x1]
    %v2670 = vlaneseq
    %v2671 = vshrl.u32 %v2670, 7
    %v2672 = vsub.s32 0, %v2671
    %v2673 = vrot.slane %v2668, %v2672
    %v2676 = vsel %vm366, %v2662, 0
    %v2679 = vsel %vm366, %v2663, 0
    %2681 = vmatprep.subr.mxu0 0.0
    %2682 = vmatpush1.msra.mxu0 %v2664
    %2683 = vmatprep.subr.mxu0 0.0
    %2684 = vmatpush1.msra.mxu0 %v2665
    %2685 = vmatprep.subr.mxu0 0.0
    %2686 = vmatpush1.msra.mxu0 %v2666
    %2687 = vmatprep.subr.mxu0 0.0
    %2688 = vmatpush1.msra.mxu0 %v2667
    %2689 = vmatprep.subr.mxu0 0.0
    %2690 = vmatpush1.msra.mxu0 0.0
    %2691 = vmatprep.subr.mxu0 0.0
    %2692 = vmatpush1.msra.mxu0 0.0
    %2693 = vmatprep.subr.mxu0 0.0
    %2694 = vmatpush1.msra.mxu0 0.0
    %2695 = vmatprep.subr.mxu0 0.0
    %2696 = vmatpush1.msra.mxu0 0.0
    %2697 = vmatprep.subr.mxu0 0.0
    %2698 = vmatpush1.msra.mxu0 0.0
    %2699 = vmatprep.subr.mxu0 0.0
    %2700 = vmatpush1.msra.mxu0 0.0
    %2701 = vmatprep.subr.mxu0 0.0
    %2702 = vmatpush1.msra.mxu0 0.0
    %2703 = vmatprep.subr.mxu0 0.0
    %2704 = vmatpush1.msra.mxu0 0.0
    %2705 = vmatprep.subr.mxu0 0.0
    %2706 = vmatpush1.msra.mxu0 0.0
    %2707 = vmatprep.subr.mxu0 0.0
    %2708 = vmatpush1.msra.mxu0 0.0
    %2709 = vmatprep.subr.mxu0 0.0
    %2710 = vmatpush1.msra.mxu0 0.0
    %2711 = vmatprep.subr.mxu0 0.0
    %2712 = vmatpush1.msra.mxu0 0.0
    %2713 = vmatprep.subr.mxu0 0.0
    %2714 = vmatpush1.msra.mxu0 0.0
    %2715 = vmatprep.subr.mxu0 0.0
    %2716 = vmatpush1.msra.mxu0 0.0
    %2717 = vmatprep.subr.mxu0 0.0
    %2718 = vmatpush1.msra.mxu0 0.0
    %2719 = vmatprep.subr.mxu0 0.0
    %2720 = vmatpush1.msra.mxu0 0.0
    %2721 = vmatprep.subr.mxu0 0.0
    %2722 = vmatpush1.msra.mxu0 0.0
    %2723 = vmatprep.subr.mxu0 0.0
    %2724 = vmatpush1.msra.mxu0 0.0
    %2725 = vmatprep.subr.mxu0 0.0
    %2726 = vmatpush1.msra.mxu0 0.0
    %2727 = vmatprep.subr.mxu0 0.0
    %2728 = vmatpush1.msra.mxu0 0.0
    %2729 = vmatprep.subr.mxu0 0.0
    %2730 = vmatpush1.msra.mxu0 0.0
    %2731 = vmatprep.subr.mxu0 0.0
    %2732 = vmatpush1.msra.mxu0 0.0
    %2733 = vmatprep.subr.mxu0 0.0
    %2734 = vmatpush1.msra.mxu0 0.0
    %2735 = vmatprep.subr.mxu0 0.0
    %2736 = vmatpush1.msra.mxu0 0.0
    %2737 = vmatprep.subr.mxu0 0.0
    %2738 = vmatpush1.msra.mxu0 0.0
    %2739 = vmatprep.subr.mxu0 0.0
    %2740 = vmatpush1.msra.mxu0 0.0
    %2741 = vmatprep.subr.mxu0 0.0
    %2742 = vmatpush1.msra.mxu0 0.0
    %2743 = vmatprep.subr.mxu0 0.0
    %2744 = vmatpush1.msra.mxu0 0.0
    %2745 = vmatprep.mubr.f32.mxu0 0.0
    %2746 = vmatmul.mubr.f32.gmra.mrb[0].mxu0 %v2676
    %v2747 = vpop.f32.mrb[0].mxu0
    %v2748 = vadd.f32 %v2673, %v2747
    %v2749 = vpop.f32.mrb[0].mxu0
    %2750 = vmatprep.mubr.f32.mxu0 0.0
    %2751 = vmatmul.mubr.f32.gmra.mrb[0].mxu0 %v2679
    %v2752 = vpop.f32.mrb[0].mxu0
    %v2753 = vadd.f32 %v2673, %v2752
    %v2754 = vpop.f32.mrb[0].mxu0
    %2755 = vdwg.mxu0
    %v2756 = vld [vmem:[%s55] sm:$0xff]
    %v2757 = vld [vmem:[%s55 + $0x8] sm:$0xff]
    %v2758 = vld [vmem:[%s55 + $0x10] sm:$0xff]
    %v2759 = vld [vmem:[%s55 + $0x18] sm:$0xff]
    %v2760 = vld [vmem:[%s39] sm:$0x1]
    %v2762 = vlaneseq
    %v2763 = vshrl.u32 %v2762, 7
    %v2764 = vsub.s32 0, %v2763
    %v2765 = vrot.slane %v2760, %v2764
    %v2768 = vsel %vm366, %v2748, 0
    %v2771 = vsel %vm366, %v2753, 0
    %2773 = vmatprep.subr.mxu0 0.0
    %2774 = vmatpush1.msra.mxu0 %v2756
    %2775 = vmatprep.subr.mxu0 0.0
    %2776 = vmatpush1.msra.mxu0 %v2757
    %2777 = vmatprep.subr.mxu0 0.0
    %2778 = vmatpush1.msra.mxu0 %v2758
    %2779 = vmatprep.subr.mxu0 0.0
    %2780 = vmatpush1.msra.mxu0 %v2759
    %2781 = vmatprep.subr.mxu0 0.0
    %2782 = vmatpush1.msra.mxu0 0.0
    %2783 = vmatprep.subr.mxu0 0.0
    %2784 = vmatpush1.msra.mxu0 0.0
    %2785 = vmatprep.subr.mxu0 0.0
    %2786 = vmatpush1.msra.mxu0 0.0
    %2787 = vmatprep.subr.mxu0 0.0
    %2788 = vmatpush1.msra.mxu0 0.0
    %2789 = vmatprep.subr.mxu0 0.0
    %2790 = vmatpush1.msra.mxu0 0.0
    %2791 = vmatprep.subr.mxu0 0.0
    %2792 = vmatpush1.msra.mxu0 0.0
    %2793 = vmatprep.subr.mxu0 0.0
    %2794 = vmatpush1.msra.mxu0 0.0
    %2795 = vmatprep.subr.mxu0 0.0
    %2796 = vmatpush1.msra.mxu0 0.0
    %2797 = vmatprep.subr.mxu0 0.0
    %2798 = vmatpush1.msra.mxu0 0.0
    %2799 = vmatprep.subr.mxu0 0.0
    %2800 = vmatpush1.msra.mxu0 0.0
    %2801 = vmatprep.subr.mxu0 0.0
    %2802 = vmatpush1.msra.mxu0 0.0
    %2803 = vmatprep.subr.mxu0 0.0
    %2804 = vmatpush1.msra.mxu0 0.0
    %2805 = vmatprep.subr.mxu0 0.0
    %2806 = vmatpush1.msra.mxu0 0.0
    %2807 = vmatprep.subr.mxu0 0.0
    %2808 = vmatpush1.msra.mxu0 0.0
    %2809 = vmatprep.subr.mxu0 0.0
    %2810 = vmatpush1.msra.mxu0 0.0
    %2811 = vmatprep.subr.mxu0 0.0
    %2812 = vmatpush1.msra.mxu0 0.0
    %2813 = vmatprep.subr.mxu0 0.0
    %2814 = vmatpush1.msra.mxu0 0.0
    %2815 = vmatprep.subr.mxu0 0.0
    %2816 = vmatpush1.msra.mxu0 0.0
    %2817 = vmatprep.subr.mxu0 0.0
    %2818 = vmatpush1.msra.mxu0 0.0
    %2819 = vmatprep.subr.mxu0 0.0
    %2820 = vmatpush1.msra.mxu0 0.0
    %2821 = vmatprep.subr.mxu0 0.0
    %2822 = vmatpush1.msra.mxu0 0.0
    %2823 = vmatprep.subr.mxu0 0.0
    %2824 = vmatpush1.msra.mxu0 0.0
    %2825 = vmatprep.subr.mxu0 0.0
    %2826 = vmatpush1.msra.mxu0 0.0
    %2827 = vmatprep.subr.mxu0 0.0
    %2828 = vmatpush1.msra.mxu0 0.0
    %2829 = vmatprep.subr.mxu0 0.0
    %2830 = vmatpush1.msra.mxu0 0.0
    %2831 = vmatprep.subr.mxu0 0.0
    %2832 = vmatpush1.msra.mxu0 0.0
    %2833 = vmatprep.subr.mxu0 0.0
    %2834 = vmatpush1.msra.mxu0 0.0
    %2835 = vmatprep.subr.mxu0 0.0
    %2836 = vmatpush1.msra.mxu0 0.0
    %2837 = vmatprep.mubr.f32.mxu0 0.0
    %2838 = vmatmul.mubr.f32.gmra.mrb[0].mxu0 %v2768
    %v2839 = vpop.f32.mrb[0].mxu0
    %v2840 = vadd.f32 %v2765, %v2839
    %v2841 = vpop.f32.mrb[0].mxu0
    %2842 = vmatprep.mubr.f32.mxu0 0.0
    %2843 = vmatmul.mubr.f32.gmra.mrb[0].mxu0 %v2771
    %v2844 = vpop.f32.mrb[0].mxu0
    %v2845 = vadd.f32 %v2765, %v2844
    %v2846 = vpop.f32.mrb[0].mxu0
    %2847 = vdwg.mxu0
    %v2848 = vadd.f32 %v2662, %v2840
    %v2849 = vadd.f32 %v2663, %v2845
    %v2850 = vsel %vm366, %v2848, 0.0
    %2851 = vadd.xlane.f32.xlu0 %v2850
    %v2852 = vpop.xlane.xlu0 %2851
    %v2853 = vsel %vm366, %v2849, 0.0
    %2854 = vadd.xlane.f32.xlu0 %v2853
    %v2855 = vpop.xlane.xlu0 %2854
    %v2856 = vmul.f32 %v2852, %v548
    %v2857 = vmul.f32 %v2855, %v548
    %v2858 = vsub.f32 %v2848, %v2856
    %v2859 = vsub.f32 %v2849, %v2857
    %v2860 = vmul.f32 %v2858, %v2858
    %v2861 = vmul.f32 %v2859, %v2859
    %v2862 = vsel %vm366, %v2860, 0.0
    %2863 = vadd.xlane.f32.xlu0 %v2862
    %v2864 = vpop.xlane.xlu0 %2863
    %v2865 = vsel %vm366, %v2861, 0.0
    %2866 = vadd.xlane.f32.xlu0 %v2865
    %v2867 = vpop.xlane.xlu0 %2866
    %v2868 = vmul.f32 %v2864, %v548
    %v2869 = vmul.f32 %v2867, %v548
    %v2870 = vadd.f32 %v2868, 1e-05
    %v2871 = vadd.f32 %v2869, 1e-05
    %v2872 = vrsqrt.pop %v2870
    %v2873 = vrsqrt.pop %v2871
    %v2874 = vmul.f32 %v2858, %v2872
    %v2875 = vmul.f32 %v2859, %v2873
    %v2876 = vld [vmem:[%s45] sm:$0x1]
    %v2878 = vlaneseq
    %v2879 = vshrl.u32 %v2878, 7
    %v2880 = vsub.s32 0, %v2879
    %v2881 = vrot.slane %v2876, %v2880
    %v2883 = vmul.f32 %v2874, %v2881
    %v2884 = vmul.f32 %v2875, %v2881
    %v2885 = vld [vmem:[%s43] sm:$0x1]
    %v2887 = vlaneseq
    %v2888 = vshrl.u32 %v2887, 7
    %v2889 = vsub.s32 0, %v2888
    %v2890 = vrot.slane %v2885, %v2889
    %v2892 = vadd.f32 %v2883, %v2890
    %v2893 = vadd.f32 %v2884, %v2890
    %v2894 = vpack.c.bf16 %v2893, %v2892
    %v2895 = vld [vmem:[%s51] sm:$0xff]
    %v2896 = vld [vmem:[%s51 + $0x8] sm:$0xff]
    %v2897 = vld [vmem:[%s51 + $0x10] sm:$0xff]
    %v2898 = vld [vmem:[%s51 + $0x18] sm:$0xff]
    %v2899 = vld [vmem:[%s51 + $0x20] sm:$0xff]
    %v2900 = vld [vmem:[%s51 + $0x28] sm:$0xff]
    %v2901 = vld [vmem:[%s51 + $0x30] sm:$0xff]
    %v2902 = vld [vmem:[%s51 + $0x38] sm:$0xff]
    %v2903 = vld [vmem:[%s51 + $0x40] sm:$0xff]
    %v2904 = vld [vmem:[%s51 + $0x48] sm:$0xff]
    %v2905 = vld [vmem:[%s51 + $0x50] sm:$0xff]
    %v2906 = vld [vmem:[%s51 + $0x58] sm:$0xff]
    %v2907 = vld [vmem:[%s51 + $0x60] sm:$0xff]
    %v2908 = vld [vmem:[%s51 + $0x68] sm:$0xff]
    %v2909 = vld [vmem:[%s51 + $0x70] sm:$0xff]
    %v2910 = vld [vmem:[%s51 + $0x78] sm:$0xff]
    %v2911 = vld [vmem:[%s51 + $0x80] sm:$0xff]
    %v2912 = vld [vmem:[%s51 + $0x88] sm:$0xff]
    %v2913 = vld [vmem:[%s51 + $0x90] sm:$0xff]
    %v2914 = vld [vmem:[%s51 + $0x98] sm:$0xff]
    %v2915 = vld [vmem:[%s51 + $0xa0] sm:$0xff]
    %v2916 = vld [vmem:[%s51 + $0xa8] sm:$0xff]
    %v2917 = vld [vmem:[%s51 + $0xb0] sm:$0xff]
    %v2918 = vld [vmem:[%s51 + $0xb8] sm:$0xff]
    %v2919 = vld [vmem:[%s51 + $0xc0] sm:$0xff]
    %v2920 = vld [vmem:[%s51 + $0xc8] sm:$0xff]
    %v2921 = vld [vmem:[%s51 + $0xd0] sm:$0xff]
    %v2922 = vld [vmem:[%s51 + $0xd8] sm:$0xff]
    %v2923 = vld [vmem:[%s51 + $0xe0] sm:$0xff]
    %v2924 = vld [vmem:[%s51 + $0xe8] sm:$0xff]
    %v2925 = vld [vmem:[%s51 + $0xf0] sm:$0xff]
    %v2926 = vld [vmem:[%s51 + $0xf8] sm:$0xff]
    %v2927 = vld [vmem:[%s35] sm:$0xff]
    %v2928 = vld [vmem:[%s35 + $0x8] sm:$0xff]
    %v2931 = vlaneseq
    %v2932 = vshrl.u32 %v2931, 7
    %v2933 = vsub.s32 0, %v2932
    %v2934 = vrot.slane %v2927, %v2933
    %v2935 = vlaneseq
    %v2936 = vshrl.u32 %v2935, 7
    %v2937 = vsub.s32 1, %v2936
    %v2938 = vrot.slane %v2927, %v2937
    %v2939 = vlaneseq
    %v2940 = vshrl.u32 %v2939, 7
    %v2941 = vsub.s32 2, %v2940
    %v2942 = vrot.slane %v2927, %v2941
    %v2943 = vlaneseq
    %v2944 = vshrl.u32 %v2943, 7
    %v2945 = vsub.s32 3, %v2944
    %v2946 = vrot.slane %v2927, %v2945
    %v2947 = vlaneseq
    %v2948 = vshrl.u32 %v2947, 7
    %v2949 = vsub.s32 4, %v2948
    %v2950 = vrot.slane %v2927, %v2949
    %v2951 = vlaneseq
    %v2952 = vshrl.u32 %v2951, 7
    %v2953 = vsub.s32 5, %v2952
    %v2954 = vrot.slane %v2927, %v2953
    %v2955 = vlaneseq
    %v2956 = vshrl.u32 %v2955, 7
    %v2957 = vsub.s32 6, %v2956
    %v2958 = vrot.slane %v2927, %v2957
    %v2959 = vlaneseq
    %v2960 = vshrl.u32 %v2959, 7
    %v2961 = vsub.s32 7, %v2960
    %v2962 = vrot.slane %v2927, %v2961
    %v2963 = vlaneseq
    %v2964 = vshrl.u32 %v2963, 7
    %v2965 = vsub.s32 0, %v2964
    %v2966 = vrot.slane %v2928, %v2965
    %v2967 = vlaneseq
    %v2968 = vshrl.u32 %v2967, 7
    %v2969 = vsub.s32 1, %v2968
    %v2970 = vrot.slane %v2928, %v2969
    %v2971 = vlaneseq
    %v2972 = vshrl.u32 %v2971, 7
    %v2973 = vsub.s32 2, %v2972
    %v2974 = vrot.slane %v2928, %v2973
    %v2975 = vlaneseq
    %v2976 = vshrl.u32 %v2975, 7
    %v2977 = vsub.s32 3, %v2976
    %v2978 = vrot.slane %v2928, %v2977
    %v2979 = vlaneseq
    %v2980 = vshrl.u32 %v2979, 7
    %v2981 = vsub.s32 4, %v2980
    %v2982 = vrot.slane %v2928, %v2981
    %v2983 = vlaneseq
    %v2984 = vshrl.u32 %v2983, 7
    %v2985 = vsub.s32 5, %v2984
    %v2986 = vrot.slane %v2928, %v2985
    %v2987 = vlaneseq
    %v2988 = vshrl.u32 %v2987, 7
    %v2989 = vsub.s32 6, %v2988
    %v2990 = vrot.slane %v2928, %v2989
    %v2991 = vlaneseq
    %v2992 = vshrl.u32 %v2991, 7
    %v2993 = vsub.s32 7, %v2992
    %v2994 = vrot.slane %v2928, %v2993
    %v3043 = vunpack.c.l.b16 %v2895
    %v3044 = vunpack.c.h.b16 %v2895
    %v3045 = vunpack.c.l.b16 %v2896
    %v3046 = vunpack.c.h.b16 %v2896
    %v3047 = vunpack.c.l.b16 %v2897
    %v3048 = vunpack.c.h.b16 %v2897
    %v3049 = vunpack.c.l.b16 %v2898
    %v3050 = vunpack.c.h.b16 %v2898
    %v3051 = vunpack.c.l.b16 %v2899
    %v3052 = vunpack.c.h.b16 %v2899
    %v3053 = vunpack.c.l.b16 %v2900
    %v3054 = vunpack.c.h.b16 %v2900
    %v3055 = vunpack.c.l.b16 %v2901
    %v3056 = vunpack.c.h.b16 %v2901
    %v3057 = vunpack.c.l.b16 %v2902
    %v3058 = vunpack.c.h.b16 %v2902
    %v3059 = vunpack.c.l.b16 %v2903
    %v3060 = vunpack.c.h.b16 %v2903
    %v3061 = vunpack.c.l.b16 %v2904
    %v3062 = vunpack.c.h.b16 %v2904
    %v3063 = vunpack.c.l.b16 %v2905
    %v3064 = vunpack.c.h.b16 %v2905
    %v3065 = vunpack.c.l.b16 %v2906
    %v3066 = vunpack.c.h.b16 %v2906
    %v3067 = vunpack.c.l.b16 %v2907
    %v3068 = vunpack.c.h.b16 %v2907
    %v3069 = vunpack.c.l.b16 %v2908
    %v3070 = vunpack.c.h.b16 %v2908
    %v3071 = vunpack.c.l.b16 %v2909
    %v3072 = vunpack.c.h.b16 %v2909
    %v3073 = vunpack.c.l.b16 %v2910
    %v3074 = vunpack.c.h.b16 %v2910
    %v3075 = vunpack.c.l.b16 %v2911
    %v3076 = vunpack.c.h.b16 %v2911
    %v3077 = vunpack.c.l.b16 %v2912
    %v3078 = vunpack.c.h.b16 %v2912
    %v3079 = vunpack.c.l.b16 %v2913
    %v3080 = vunpack.c.h.b16 %v2913
    %v3081 = vunpack.c.l.b16 %v2914
    %v3082 = vunpack.c.h.b16 %v2914
    %v3083 = vunpack.c.l.b16 %v2915
    %v3084 = vunpack.c.h.b16 %v2915
    %v3085 = vunpack.c.l.b16 %v2916
    %v3086 = vunpack.c.h.b16 %v2916
    %v3087 = vunpack.c.l.b16 %v2917
    %v3088 = vunpack.c.h.b16 %v2917
    %v3089 = vunpack.c.l.b16 %v2918
    %v3090 = vunpack.c.h.b16 %v2918
    %v3091 = vunpack.c.l.b16 %v2919
    %v3092 = vunpack.c.h.b16 %v2919
    %v3093 = vunpack.c.l.b16 %v2920
    %v3094 = vunpack.c.h.b16 %v2920
    %v3095 = vunpack.c.l.b16 %v2921
    %v3096 = vunpack.c.h.b16 %v2921
    %v3097 = vunpack.c.l.b16 %v2922
    %v3098 = vunpack.c.h.b16 %v2922
    %v3099 = vunpack.c.l.b16 %v2923
    %v3100 = vunpack.c.h.b16 %v2923
    %v3101 = vunpack.c.l.b16 %v2924
    %v3102 = vunpack.c.h.b16 %v2924
    %v3103 = vunpack.c.l.b16 %v2925
    %v3104 = vunpack.c.h.b16 %v2925
    %v3105 = vunpack.c.l.b16 %v2926
    %v3106 = vunpack.c.h.b16 %v2926
    %v3107 = vpack.c.b16 %v3059, %v3043
    %v3108 = vpack.c.b16 %v3060, %v3044
    %v3109 = vpack.c.b16 %v3061, %v3045
    %v3110 = vpack.c.b16 %v3062, %v3046
    %v3111 = vpack.c.b16 %v3063, %v3047
    %v3112 = vpack.c.b16 %v3064, %v3048
    %v3113 = vpack.c.b16 %v3065, %v3049
    %v3114 = vpack.c.b16 %v3066, %v3050
    %v3115 = vpack.c.b16 %v3067, %v3051
    %v3116 = vpack.c.b16 %v3068, %v3052
    %v3117 = vpack.c.b16 %v3069, %v3053
    %v3118 = vpack.c.b16 %v3070, %v3054
    %v3119 = vpack.c.b16 %v3071, %v3055
    %v3120 = vpack.c.b16 %v3072, %v3056
    %v3121 = vpack.c.b16 %v3073, %v3057
    %v3122 = vpack.c.b16 %v3074, %v3058
    %v3123 = vpack.c.b16 %v3091, %v3075
    %v3124 = vpack.c.b16 %v3092, %v3076
    %v3125 = vpack.c.b16 %v3093, %v3077
    %v3126 = vpack.c.b16 %v3094, %v3078
    %v3127 = vpack.c.b16 %v3095, %v3079
    %v3128 = vpack.c.b16 %v3096, %v3080
    %v3129 = vpack.c.b16 %v3097, %v3081
    %v3130 = vpack.c.b16 %v3098, %v3082
    %v3131 = vpack.c.b16 %v3099, %v3083
    %v3132 = vpack.c.b16 %v3100, %v3084
    %v3133 = vpack.c.b16 %v3101, %v3085
    %v3134 = vpack.c.b16 %v3102, %v3086
    %v3135 = vpack.c.b16 %v3103, %v3087
    %v3136 = vpack.c.b16 %v3104, %v3088
    %v3137 = vpack.c.b16 %v3105, %v3089
    %v3138 = vpack.c.b16 %v3106, %v3090
    %v3172 = vsel %vm366, %v2894, 0
    %3174 = vmatprep.subr.bf16.mxu0 %v3108
    %3175 = vmatpush1.bf16.msra.mxu0 %v3107
    %3176 = vmatprep.subr.bf16.mxu0 %v3124
    %3177 = vmatpush1.bf16.msra.mxu0 %v3123
    %3178 = vmatprep.subr.bf16.mxu0 0
    %3179 = vmatpush1.bf16.msra.mxu0 0
    %3180 = vmatprep.subr.bf16.mxu0 0
    %3181 = vmatpush1.bf16.msra.mxu0 0
    %3182 = vmatprep.subr.bf16.mxu0 0
    %3183 = vmatpush1.bf16.msra.mxu0 0
    %3184 = vmatprep.subr.bf16.mxu0 0
    %3185 = vmatpush1.bf16.msra.mxu0 0
    %3186 = vmatprep.subr.bf16.mxu0 0
    %3187 = vmatpush1.bf16.msra.mxu0 0
    %3188 = vmatprep.subr.bf16.mxu0 0
    %3189 = vmatpush1.bf16.msra.mxu0 0
    %3190 = vmatprep.subr.bf16.mxu0 0
    %3191 = vmatpush1.bf16.msra.mxu0 0
    %3192 = vmatprep.subr.bf16.mxu0 0
    %3193 = vmatpush1.bf16.msra.mxu0 0
    %3194 = vmatprep.subr.bf16.mxu0 0
    %3195 = vmatpush1.bf16.msra.mxu0 0
    %3196 = vmatprep.subr.bf16.mxu0 0
    %3197 = vmatpush1.bf16.msra.mxu0 0
    %3198 = vmatprep.subr.bf16.mxu0 0
    %3199 = vmatpush1.bf16.msra.mxu0 0
    %3200 = vmatprep.subr.bf16.mxu0 0
    %3201 = vmatpush1.bf16.msra.mxu0 0
    %3202 = vmatprep.subr.bf16.mxu0 0
    %3203 = vmatpush1.bf16.msra.mxu0 0
    %3204 = vmatprep.subr.bf16.mxu0 0
    %3205 = vmatpush1.bf16.msra.mxu0 0
    %3206 = vmatprep.mubr.bf16.mxu0 0
    %3207 = vmatmul.mubr.bf16.gmra.mrb[0].mxu0 %v3172
    %v3208 = vpop.f32.mrb[0].mxu0
    %v3209 = vadd.f32 %v2934, %v3208
    %v3210 = vpop.f32.mrb[0].mxu0
    %v3211 = vadd.f32 %v2938, %v3210
    %v3212 = vpop.f32.mrb[0].mxu0
    %v3213 = vadd.f32 %v2934, %v3212
    %v3214 = vpop.f32.mrb[0].mxu0
    %v3215 = vadd.f32 %v2938, %v3214
    %3216 = vdwg.mxu0
    %3217 = vmatprep.subr.bf16.mxu0 %v3110
    %3218 = vmatpush1.bf16.msra.mxu0 %v3109
    %3219 = vmatprep.subr.bf16.mxu0 %v3126
    %3220 = vmatpush1.bf16.msra.mxu0 %v3125
    %3221 = vmatprep.subr.bf16.mxu0 0
    %3222 = vmatpush1.bf16.msra.mxu0 0
    %3223 = vmatprep.subr.bf16.mxu0 0
    %3224 = vmatpush1.bf16.msra.mxu0 0
    %3225 = vmatprep.subr.bf16.mxu0 0
    %3226 = vmatpush1.bf16.msra.mxu0 0
    %3227 = vmatprep.subr.bf16.mxu0 0
    %3228 = vmatpush1.bf16.msra.mxu0 0
    %3229 = vmatprep.subr.bf16.mxu0 0
    %3230 = vmatpush1.bf16.msra.mxu0 0
    %3231 = vmatprep.subr.bf16.mxu0 0
    %3232 = vmatpush1.bf16.msra.mxu0 0
    %3233 = vmatprep.subr.bf16.mxu0 0
    %3234 = vmatpush1.bf16.msra.mxu0 0
    %3235 = vmatprep.subr.bf16.mxu0 0
    %3236 = vmatpush1.bf16.msra.mxu0 0
    %3237 = vmatprep.subr.bf16.mxu0 0
    %3238 = vmatpush1.bf16.msra.mxu0 0
    %3239 = vmatprep.subr.bf16.mxu0 0
    %3240 = vmatpush1.bf16.msra.mxu0 0
    %3241 = vmatprep.subr.bf16.mxu0 0
    %3242 = vmatpush1.bf16.msra.mxu0 0
    %3243 = vmatprep.subr.bf16.mxu0 0
    %3244 = vmatpush1.bf16.msra.mxu0 0
    %3245 = vmatprep.subr.bf16.mxu0 0
    %3246 = vmatpush1.bf16.msra.mxu0 0
    %3247 = vmatprep.subr.bf16.mxu0 0
    %3248 = vmatpush1.bf16.msra.mxu0 0
    %3249 = vmatprep.mubr.bf16.mxu0 0
    %3250 = vmatmul.mubr.bf16.gmra.mrb[0].mxu0 %v3172
    %v3251 = vpop.f32.mrb[0].mxu0
    %v3252 = vadd.f32 %v2942, %v3251
    %v3253 = vpop.f32.mrb[0].mxu0
    %v3254 = vadd.f32 %v2946, %v3253
    %v3255 = vpop.f32.mrb[0].mxu0
    %v3256 = vadd.f32 %v2942, %v3255
    %v3257 = vpop.f32.mrb[0].mxu0
    %v3258 = vadd.f32 %v2946, %v3257
    %3259 = vdwg.mxu0
    %3260 = vmatprep.subr.bf16.mxu0 %v3112
    %3261 = vmatpush1.bf16.msra.mxu0 %v3111
    %3262 = vmatprep.subr.bf16.mxu0 %v3128
    %3263 = vmatpush1.bf16.msra.mxu0 %v3127
    %3264 = vmatprep.subr.bf16.mxu0 0
    %3265 = vmatpush1.bf16.msra.mxu0 0
    %3266 = vmatprep.subr.bf16.mxu0 0
    %3267 = vmatpush1.bf16.msra.mxu0 0
    %3268 = vmatprep.subr.bf16.mxu0 0
    %3269 = vmatpush1.bf16.msra.mxu0 0
    %3270 = vmatprep.subr.bf16.mxu0 0
    %3271 = vmatpush1.bf16.msra.mxu0 0
    %3272 = vmatprep.subr.bf16.mxu0 0
    %3273 = vmatpush1.bf16.msra.mxu0 0
    %3274 = vmatprep.subr.bf16.mxu0 0
    %3275 = vmatpush1.bf16.msra.mxu0 0
    %3276 = vmatprep.subr.bf16.mxu0 0
    %3277 = vmatpush1.bf16.msra.mxu0 0
    %3278 = vmatprep.subr.bf16.mxu0 0
    %3279 = vmatpush1.bf16.msra.mxu0 0
    %3280 = vmatprep.subr.bf16.mxu0 0
    %3281 = vmatpush1.bf16.msra.mxu0 0
    %3282 = vmatprep.subr.bf16.mxu0 0
    %3283 = vmatpush1.bf16.msra.mxu0 0
    %3284 = vmatprep.subr.bf16.mxu0 0
    %3285 = vmatpush1.bf16.msra.mxu0 0
    %3286 = vmatprep.subr.bf16.mxu0 0
    %3287 = vmatpush1.bf16.msra.mxu0 0
    %3288 = vmatprep.subr.bf16.mxu0 0
    %3289 = vmatpush1.bf16.msra.mxu0 0
    %3290 = vmatprep.subr.bf16.mxu0 0
    %3291 = vmatpush1.bf16.msra.mxu0 0
    %3292 = vmatprep.mubr.bf16.mxu0 0
    %3293 = vmatmul.mubr.bf16.gmra.mrb[0].mxu0 %v3172
    %v3294 = vpop.f32.mrb[0].mxu0
    %v3295 = vadd.f32 %v2950, %v3294
    %v3296 = vpop.f32.mrb[0].mxu0
    %v3297 = vadd.f32 %v2954, %v3296
    %v3298 = vpop.f32.mrb[0].mxu0
    %v3299 = vadd.f32 %v2950, %v3298
    %v3300 = vpop.f32.mrb[0].mxu0
    %v3301 = vadd.f32 %v2954, %v3300
    %3302 = vdwg.mxu0
    %3303 = vmatprep.subr.bf16.mxu0 %v3114
    %3304 = vmatpush1.bf16.msra.mxu0 %v3113
    %3305 = vmatprep.subr.bf16.mxu0 %v3130
    %3306 = vmatpush1.bf16.msra.mxu0 %v3129
    %3307 = vmatprep.subr.bf16.mxu0 0
    %3308 = vmatpush1.bf16.msra.mxu0 0
    %3309 = vmatprep.subr.bf16.mxu0 0
    %3310 = vmatpush1.bf16.msra.mxu0 0
    %3311 = vmatprep.subr.bf16.mxu0 0
    %3312 = vmatpush1.bf16.msra.mxu0 0
    %3313 = vmatprep.subr.bf16.mxu0 0
    %3314 = vmatpush1.bf16.msra.mxu0 0
    %3315 = vmatprep.subr.bf16.mxu0 0
    %3316 = vmatpush1.bf16.msra.mxu0 0
    %3317 = vmatprep.subr.bf16.mxu0 0
    %3318 = vmatpush1.bf16.msra.mxu0 0
    %3319 = vmatprep.subr.bf16.mxu0 0
    %3320 = vmatpush1.bf16.msra.mxu0 0
    %3321 = vmatprep.subr.bf16.mxu0 0
    %3322 = vmatpush1.bf16.msra.mxu0 0
    %3323 = vmatprep.subr.bf16.mxu0 0
    %3324 = vmatpush1.bf16.msra.mxu0 0
    %3325 = vmatprep.subr.bf16.mxu0 0
    %3326 = vmatpush1.bf16.msra.mxu0 0
    %3327 = vmatprep.subr.bf16.mxu0 0
    %3328 = vmatpush1.bf16.msra.mxu0 0
    %3329 = vmatprep.subr.bf16.mxu0 0
    %3330 = vmatpush1.bf16.msra.mxu0 0
    %3331 = vmatprep.subr.bf16.mxu0 0
    %3332 = vmatpush1.bf16.msra.mxu0 0
    %3333 = vmatprep.subr.bf16.mxu0 0
    %3334 = vmatpush1.bf16.msra.mxu0 0
    %3335 = vmatprep.mubr.bf16.mxu0 0
    %3336 = vmatmul.mubr.bf16.gmra.mrb[0].mxu0 %v3172
    %v3337 = vpop.f32.mrb[0].mxu0
    %v3338 = vadd.f32 %v2958, %v3337
    %v3339 = vpop.f32.mrb[0].mxu0
    %v3340 = vadd.f32 %v2962, %v3339
    %v3341 = vpop.f32.mrb[0].mxu0
    %v3342 = vadd.f32 %v2958, %v3341
    %v3343 = vpop.f32.mrb[0].mxu0
    %v3344 = vadd.f32 %v2962, %v3343
    %3345 = vdwg.mxu0
    %3346 = vmatprep.subr.bf16.mxu0 %v3116
    %3347 = vmatpush1.bf16.msra.mxu0 %v3115
    %3348 = vmatprep.subr.bf16.mxu0 %v3132
    %3349 = vmatpush1.bf16.msra.mxu0 %v3131
    %3350 = vmatprep.subr.bf16.mxu0 0
    %3351 = vmatpush1.bf16.msra.mxu0 0
    %3352 = vmatprep.subr.bf16.mxu0 0
    %3353 = vmatpush1.bf16.msra.mxu0 0
    %3354 = vmatprep.subr.bf16.mxu0 0
    %3355 = vmatpush1.bf16.msra.mxu0 0
    %3356 = vmatprep.subr.bf16.mxu0 0
    %3357 = vmatpush1.bf16.msra.mxu0 0
    %3358 = vmatprep.subr.bf16.mxu0 0
    %3359 = vmatpush1.bf16.msra.mxu0 0
    %3360 = vmatprep.subr.bf16.mxu0 0
    %3361 = vmatpush1.bf16.msra.mxu0 0
    %3362 = vmatprep.subr.bf16.mxu0 0
    %3363 = vmatpush1.bf16.msra.mxu0 0
    %3364 = vmatprep.subr.bf16.mxu0 0
    %3365 = vmatpush1.bf16.msra.mxu0 0
    %3366 = vmatprep.subr.bf16.mxu0 0
    %3367 = vmatpush1.bf16.msra.mxu0 0
    %3368 = vmatprep.subr.bf16.mxu0 0
    %3369 = vmatpush1.bf16.msra.mxu0 0
    %3370 = vmatprep.subr.bf16.mxu0 0
    %3371 = vmatpush1.bf16.msra.mxu0 0
    %3372 = vmatprep.subr.bf16.mxu0 0
    %3373 = vmatpush1.bf16.msra.mxu0 0
    %3374 = vmatprep.subr.bf16.mxu0 0
    %3375 = vmatpush1.bf16.msra.mxu0 0
    %3376 = vmatprep.subr.bf16.mxu0 0
    %3377 = vmatpush1.bf16.msra.mxu0 0
    %3378 = vmatprep.mubr.bf16.mxu0 0
    %3379 = vmatmul.mubr.bf16.gmra.mrb[0].mxu0 %v3172
    %v3380 = vpop.f32.mrb[0].mxu0
    %v3381 = vadd.f32 %v2966, %v3380
    %v3382 = vpop.f32.mrb[0].mxu0
    %v3383 = vadd.f32 %v2970, %v3382
    %v3384 = vpop.f32.mrb[0].mxu0
    %v3385 = vadd.f32 %v2966, %v3384
    %v3386 = vpop.f32.mrb[0].mxu0
    %v3387 = vadd.f32 %v2970, %v3386
    %3388 = vdwg.mxu0
    %3389 = vmatprep.subr.bf16.mxu0 %v3118
    %3390 = vmatpush1.bf16.msra.mxu0 %v3117
    %3391 = vmatprep.subr.bf16.mxu0 %v3134
    %3392 = vmatpush1.bf16.msra.mxu0 %v3133
    %3393 = vmatprep.subr.bf16.mxu0 0
    %3394 = vmatpush1.bf16.msra.mxu0 0
    %3395 = vmatprep.subr.bf16.mxu0 0
    %3396 = vmatpush1.bf16.msra.mxu0 0
    %3397 = vmatprep.subr.bf16.mxu0 0
    %3398 = vmatpush1.bf16.msra.mxu0 0
    %3399 = vmatprep.subr.bf16.mxu0 0
    %3400 = vmatpush1.bf16.msra.mxu0 0
    %3401 = vmatprep.subr.bf16.mxu0 0
    %3402 = vmatpush1.bf16.msra.mxu0 0
    %3403 = vmatprep.subr.bf16.mxu0 0
    %3404 = vmatpush1.bf16.msra.mxu0 0
    %3405 = vmatprep.subr.bf16.mxu0 0
    %3406 = vmatpush1.bf16.msra.mxu0 0
    %3407 = vmatprep.subr.bf16.mxu0 0
    %3408 = vmatpush1.bf16.msra.mxu0 0
    %3409 = vmatprep.subr.bf16.mxu0 0
    %3410 = vmatpush1.bf16.msra.mxu0 0
    %3411 = vmatprep.subr.bf16.mxu0 0
    %3412 = vmatpush1.bf16.msra.mxu0 0
    %3413 = vmatprep.subr.bf16.mxu0 0
    %3414 = vmatpush1.bf16.msra.mxu0 0
    %3415 = vmatprep.subr.bf16.mxu0 0
    %3416 = vmatpush1.bf16.msra.mxu0 0
    %3417 = vmatprep.subr.bf16.mxu0 0
    %3418 = vmatpush1.bf16.msra.mxu0 0
    %3419 = vmatprep.subr.bf16.mxu0 0
    %3420 = vmatpush1.bf16.msra.mxu0 0
    %3421 = vmatprep.mubr.bf16.mxu0 0
    %3422 = vmatmul.mubr.bf16.gmra.mrb[0].mxu0 %v3172
    %v3423 = vpop.f32.mrb[0].mxu0
    %v3424 = vadd.f32 %v2974, %v3423
    %v3425 = vpop.f32.mrb[0].mxu0
    %v3426 = vadd.f32 %v2978, %v3425
    %v3427 = vpop.f32.mrb[0].mxu0
    %v3428 = vadd.f32 %v2974, %v3427
    %v3429 = vpop.f32.mrb[0].mxu0
    %v3430 = vadd.f32 %v2978, %v3429
    %3431 = vdwg.mxu0
    %3432 = vmatprep.subr.bf16.mxu0 %v3120
    %3433 = vmatpush1.bf16.msra.mxu0 %v3119
    %3434 = vmatprep.subr.bf16.mxu0 %v3136
    %3435 = vmatpush1.bf16.msra.mxu0 %v3135
    %3436 = vmatprep.subr.bf16.mxu0 0
    %3437 = vmatpush1.bf16.msra.mxu0 0
    %3438 = vmatprep.subr.bf16.mxu0 0
    %3439 = vmatpush1.bf16.msra.mxu0 0
    %3440 = vmatprep.subr.bf16.mxu0 0
    %3441 = vmatpush1.bf16.msra.mxu0 0
    %3442 = vmatprep.subr.bf16.mxu0 0
    %3443 = vmatpush1.bf16.msra.mxu0 0
    %3444 = vmatprep.subr.bf16.mxu0 0
    %3445 = vmatpush1.bf16.msra.mxu0 0
    %3446 = vmatprep.subr.bf16.mxu0 0
    %3447 = vmatpush1.bf16.msra.mxu0 0
    %3448 = vmatprep.subr.bf16.mxu0 0
    %3449 = vmatpush1.bf16.msra.mxu0 0
    %3450 = vmatprep.subr.bf16.mxu0 0
    %3451 = vmatpush1.bf16.msra.mxu0 0
    %3452 = vmatprep.subr.bf16.mxu0 0
    %3453 = vmatpush1.bf16.msra.mxu0 0
    %3454 = vmatprep.subr.bf16.mxu0 0
    %3455 = vmatpush1.bf16.msra.mxu0 0
    %3456 = vmatprep.subr.bf16.mxu0 0
    %3457 = vmatpush1.bf16.msra.mxu0 0
    %3458 = vmatprep.subr.bf16.mxu0 0
    %3459 = vmatpush1.bf16.msra.mxu0 0
    %3460 = vmatprep.subr.bf16.mxu0 0
    %3461 = vmatpush1.bf16.msra.mxu0 0
    %3462 = vmatprep.subr.bf16.mxu0 0
    %3463 = vmatpush1.bf16.msra.mxu0 0
    %3464 = vmatprep.mubr.bf16.mxu0 0
    %3465 = vmatmul.mubr.bf16.gmra.mrb[0].mxu0 %v3172
    %v3466 = vpop.f32.mrb[0].mxu0
    %v3467 = vadd.f32 %v2982, %v3466
    %v3468 = vpop.f32.mrb[0].mxu0
    %v3469 = vadd.f32 %v2986, %v3468
    %v3470 = vpop.f32.mrb[0].mxu0
    %v3471 = vadd.f32 %v2982, %v3470
    %v3472 = vpop.f32.mrb[0].mxu0
    %v3473 = vadd.f32 %v2986, %v3472
    %3474 = vdwg.mxu0
    %3475 = vmatprep.subr.bf16.mxu0 %v3122
    %3476 = vmatpush1.bf16.msra.mxu0 %v3121
    %3477 = vmatprep.subr.bf16.mxu0 %v3138
    %3478 = vmatpush1.bf16.msra.mxu0 %v3137
    %3479 = vmatprep.subr.bf16.mxu0 0
    %3480 = vmatpush1.bf16.msra.mxu0 0
    %3481 = vmatprep.subr.bf16.mxu0 0
    %3482 = vmatpush1.bf16.msra.mxu0 0
    %3483 = vmatprep.subr.bf16.mxu0 0
    %3484 = vmatpush1.bf16.msra.mxu0 0
    %3485 = vmatprep.subr.bf16.mxu0 0
    %3486 = vmatpush1.bf16.msra.mxu0 0
    %3487 = vmatprep.subr.bf16.mxu0 0
    %3488 = vmatpush1.bf16.msra.mxu0 0
    %3489 = vmatprep.subr.bf16.mxu0 0
    %3490 = vmatpush1.bf16.msra.mxu0 0
    %3491 = vmatprep.subr.bf16.mxu0 0
    %3492 = vmatpush1.bf16.msra.mxu0 0
    %3493 = vmatprep.subr.bf16.mxu0 0
    %3494 = vmatpush1.bf16.msra.mxu0 0
    %3495 = vmatprep.subr.bf16.mxu0 0
    %3496 = vmatpush1.bf16.msra.mxu0 0
    %3497 = vmatprep.subr.bf16.mxu0 0
    %3498 = vmatpush1.bf16.msra.mxu0 0
    %3499 = vmatprep.subr.bf16.mxu0 0
    %3500 = vmatpush1.bf16.msra.mxu0 0
    %3501 = vmatprep.subr.bf16.mxu0 0
    %3502 = vmatpush1.bf16.msra.mxu0 0
    %3503 = vmatprep.subr.bf16.mxu0 0
    %3504 = vmatpush1.bf16.msra.mxu0 0
    %3505 = vmatprep.subr.bf16.mxu0 0
    %3506 = vmatpush1.bf16.msra.mxu0 0
    %3507 = vmatprep.mubr.bf16.mxu0 0
    %3508 = vmatmul.mubr.bf16.gmra.mrb[0].mxu0 %v3172
    %v3509 = vpop.f32.mrb[0].mxu0
    %v3510 = vadd.f32 %v2990, %v3509
    %v3511 = vpop.f32.mrb[0].mxu0
    %v3512 = vadd.f32 %v2994, %v3511
    %v3513 = vpop.f32.mrb[0].mxu0
    %v3514 = vadd.f32 %v2990, %v3513
    %v3515 = vpop.f32.mrb[0].mxu0
    %v3516 = vadd.f32 %v2994, %v3515
    %3517 = vdwg.mxu0
    %v3518 = vmax.f32 %v3209, 0.0
    %v3519 = vmax.f32 %v3211, 0.0
    %v3520 = vmax.f32 %v3252, 0.0
    %v3521 = vmax.f32 %v3254, 0.0
    %v3522 = vmax.f32 %v3295, 0.0
    %v3523 = vmax.f32 %v3297, 0.0
    %v3524 = vmax.f32 %v3338, 0.0
    %v3525 = vmax.f32 %v3340, 0.0
    %v3526 = vmax.f32 %v3381, 0.0
    %v3527 = vmax.f32 %v3383, 0.0
    %v3528 = vmax.f32 %v3424, 0.0
    %v3529 = vmax.f32 %v3426, 0.0
    %v3530 = vmax.f32 %v3467, 0.0
    %v3531 = vmax.f32 %v3469, 0.0
    %v3532 = vmax.f32 %v3510, 0.0
    %v3533 = vmax.f32 %v3512, 0.0
    %v3534 = vmax.f32 %v3213, 0.0
    %v3535 = vmax.f32 %v3215, 0.0
    %v3536 = vmax.f32 %v3256, 0.0
    %v3537 = vmax.f32 %v3258, 0.0
    %v3538 = vmax.f32 %v3299, 0.0
    %v3539 = vmax.f32 %v3301, 0.0
    %v3540 = vmax.f32 %v3342, 0.0
    %v3541 = vmax.f32 %v3344, 0.0
    %v3542 = vmax.f32 %v3385, 0.0
    %v3543 = vmax.f32 %v3387, 0.0
    %v3544 = vmax.f32 %v3428, 0.0
    %v3545 = vmax.f32 %v3430, 0.0
    %v3546 = vmax.f32 %v3471, 0.0
    %v3547 = vmax.f32 %v3473, 0.0
    %v3548 = vmax.f32 %v3514, 0.0
    %v3549 = vmax.f32 %v3516, 0.0
    %v3550 = vpack.c.bf16 %v3534, %v3518
    %v3551 = vpack.c.bf16 %v3535, %v3519
    %v3552 = vpack.c.bf16 %v3536, %v3520
    %v3553 = vpack.c.bf16 %v3537, %v3521
    %v3554 = vpack.c.bf16 %v3538, %v3522
    %v3555 = vpack.c.bf16 %v3539, %v3523
    %v3556 = vpack.c.bf16 %v3540, %v3524
    %v3557 = vpack.c.bf16 %v3541, %v3525
    %v3558 = vpack.c.bf16 %v3542, %v3526
    %v3559 = vpack.c.bf16 %v3543, %v3527
    %v3560 = vpack.c.bf16 %v3544, %v3528
    %v3561 = vpack.c.bf16 %v3545, %v3529
    %v3562 = vpack.c.bf16 %v3546, %v3530
    %v3563 = vpack.c.bf16 %v3547, %v3531
    %v3564 = vpack.c.bf16 %v3548, %v3532
    %v3565 = vpack.c.bf16 %v3549, %v3533
    %v3566 = vld [vmem:[%s53] sm:$0xf]
    %v3567 = vld [vmem:[%s53 + $0x4] sm:$0xf]
    %v3568 = vld [vmem:[%s53 + $0x8] sm:$0xf]
    %v3569 = vld [vmem:[%s53 + $0xc] sm:$0xf]
    %v3570 = vld [vmem:[%s53 + $0x10] sm:$0xf]
    %v3571 = vld [vmem:[%s53 + $0x14] sm:$0xf]
    %v3572 = vld [vmem:[%s53 + $0x18] sm:$0xf]
    %v3573 = vld [vmem:[%s53 + $0x1c] sm:$0xf]
    %v3574 = vld [vmem:[%s53 + $0x20] sm:$0xf]
    %v3575 = vld [vmem:[%s53 + $0x24] sm:$0xf]
    %v3576 = vld [vmem:[%s53 + $0x28] sm:$0xf]
    %v3577 = vld [vmem:[%s53 + $0x2c] sm:$0xf]
    %v3578 = vld [vmem:[%s53 + $0x30] sm:$0xf]
    %v3579 = vld [vmem:[%s53 + $0x34] sm:$0xf]
    %v3580 = vld [vmem:[%s53 + $0x38] sm:$0xf]
    %v3581 = vld [vmem:[%s53 + $0x3c] sm:$0xf]
    %v3582 = vld [vmem:[%s53 + $0x40] sm:$0xf]
    %v3583 = vld [vmem:[%s53 + $0x44] sm:$0xf]
    %v3584 = vld [vmem:[%s53 + $0x48] sm:$0xf]
    %v3585 = vld [vmem:[%s53 + $0x4c] sm:$0xf]
    %v3586 = vld [vmem:[%s53 + $0x50] sm:$0xf]
    %v3587 = vld [vmem:[%s53 + $0x54] sm:$0xf]
    %v3588 = vld [vmem:[%s53 + $0x58] sm:$0xf]
    %v3589 = vld [vmem:[%s53 + $0x5c] sm:$0xf]
    %v3590 = vld [vmem:[%s53 + $0x60] sm:$0xf]
    %v3591 = vld [vmem:[%s53 + $0x64] sm:$0xf]
    %v3592 = vld [vmem:[%s53 + $0x68] sm:$0xf]
    %v3593 = vld [vmem:[%s53 + $0x6c] sm:$0xf]
    %v3594 = vld [vmem:[%s53 + $0x70] sm:$0xf]
    %v3595 = vld [vmem:[%s53 + $0x74] sm:$0xf]
    %v3596 = vld [vmem:[%s53 + $0x78] sm:$0xf]
    %v3597 = vld [vmem:[%s53 + $0x7c] sm:$0xf]
    %v3598 = vld [vmem:[%s53 + $0x80] sm:$0xf]
    %v3599 = vld [vmem:[%s53 + $0x84] sm:$0xf]
    %v3600 = vld [vmem:[%s53 + $0x88] sm:$0xf]
    %v3601 = vld [vmem:[%s53 + $0x8c] sm:$0xf]
    %v3602 = vld [vmem:[%s53 + $0x90] sm:$0xf]
    %v3603 = vld [vmem:[%s53 + $0x94] sm:$0xf]
    %v3604 = vld [vmem:[%s53 + $0x98] sm:$0xf]
    %v3605 = vld [vmem:[%s53 + $0x9c] sm:$0xf]
    %v3606 = vld [vmem:[%s53 + $0xa0] sm:$0xf]
    %v3607 = vld [vmem:[%s53 + $0xa4] sm:$0xf]
    %v3608 = vld [vmem:[%s53 + $0xa8] sm:$0xf]
    %v3609 = vld [vmem:[%s53 + $0xac] sm:$0xf]
    %v3610 = vld [vmem:[%s53 + $0xb0] sm:$0xf]
    %v3611 = vld [vmem:[%s53 + $0xb4] sm:$0xf]
    %v3612 = vld [vmem:[%s53 + $0xb8] sm:$0xf]
    %v3613 = vld [vmem:[%s53 + $0xbc] sm:$0xf]
    %v3614 = vld [vmem:[%s53 + $0xc0] sm:$0xf]
    %v3615 = vld [vmem:[%s53 + $0xc4] sm:$0xf]
    %v3616 = vld [vmem:[%s53 + $0xc8] sm:$0xf]
    %v3617 = vld [vmem:[%s53 + $0xcc] sm:$0xf]
    %v3618 = vld [vmem:[%s53 + $0xd0] sm:$0xf]
    %v3619 = vld [vmem:[%s53 + $0xd4] sm:$0xf]
    %v3620 = vld [vmem:[%s53 + $0xd8] sm:$0xf]
    %v3621 = vld [vmem:[%s53 + $0xdc] sm:$0xf]
    %v3622 = vld [vmem:[%s53 + $0xe0] sm:$0xf]
    %v3623 = vld [vmem:[%s53 + $0xe4] sm:$0xf]
    %v3624 = vld [vmem:[%s53 + $0xe8] sm:$0xf]
    %v3625 = vld [vmem:[%s53 + $0xec] sm:$0xf]
    %v3626 = vld [vmem:[%s53 + $0xf0] sm:$0xf]
    %v3627 = vld [vmem:[%s53 + $0xf4] sm:$0xf]
    %v3628 = vld [vmem:[%s53 + $0xf8] sm:$0xf]
    %v3629 = vld [vmem:[%s53 + $0xfc] sm:$0xf]
    %v3630 = vld [vmem:[%s53 + $0x100] sm:$0xf]
    %v3631 = vld [vmem:[%s53 + $0x104] sm:$0xf]
    %v3632 = vld [vmem:[%s53 + $0x108] sm:$0xf]
    %v3633 = vld [vmem:[%s53 + $0x10c] sm:$0xf]
    %v3634 = vld [vmem:[%s53 + $0x110] sm:$0xf]
    %v3635 = vld [vmem:[%s53 + $0x114] sm:$0xf]
    %v3636 = vld [vmem:[%s53 + $0x118] sm:$0xf]
    %v3637 = vld [vmem:[%s53 + $0x11c] sm:$0xf]
    %v3638 = vld [vmem:[%s53 + $0x120] sm:$0xf]
    %v3639 = vld [vmem:[%s53 + $0x124] sm:$0xf]
    %v3640 = vld [vmem:[%s53 + $0x128] sm:$0xf]
    %v3641 = vld [vmem:[%s53 + $0x12c] sm:$0xf]
    %v3642 = vld [vmem:[%s53 + $0x130] sm:$0xf]
    %v3643 = vld [vmem:[%s53 + $0x134] sm:$0xf]
    %v3644 = vld [vmem:[%s53 + $0x138] sm:$0xf]
    %v3645 = vld [vmem:[%s53 + $0x13c] sm:$0xf]
    %v3646 = vld [vmem:[%s53 + $0x140] sm:$0xf]
    %v3647 = vld [vmem:[%s53 + $0x144] sm:$0xf]
    %v3648 = vld [vmem:[%s53 + $0x148] sm:$0xf]
    %v3649 = vld [vmem:[%s53 + $0x14c] sm:$0xf]
    %v3650 = vld [vmem:[%s53 + $0x150] sm:$0xf]
    %v3651 = vld [vmem:[%s53 + $0x154] sm:$0xf]
    %v3652 = vld [vmem:[%s53 + $0x158] sm:$0xf]
    %v3653 = vld [vmem:[%s53 + $0x15c] sm:$0xf]
    %v3654 = vld [vmem:[%s53 + $0x160] sm:$0xf]
    %v3655 = vld [vmem:[%s53 + $0x164] sm:$0xf]
    %v3656 = vld [vmem:[%s53 + $0x168] sm:$0xf]
    %v3657 = vld [vmem:[%s53 + $0x16c] sm:$0xf]
    %v3658 = vld [vmem:[%s53 + $0x170] sm:$0xf]
    %v3659 = vld [vmem:[%s53 + $0x174] sm:$0xf]
    %v3660 = vld [vmem:[%s53 + $0x178] sm:$0xf]
    %v3661 = vld [vmem:[%s53 + $0x17c] sm:$0xf]
    %v3662 = vld [vmem:[%s53 + $0x180] sm:$0xf]
    %v3663 = vld [vmem:[%s53 + $0x184] sm:$0xf]
    %v3664 = vld [vmem:[%s53 + $0x188] sm:$0xf]
    %v3665 = vld [vmem:[%s53 + $0x18c] sm:$0xf]
    %v3666 = vld [vmem:[%s53 + $0x190] sm:$0xf]
    %v3667 = vld [vmem:[%s53 + $0x194] sm:$0xf]
    %v3668 = vld [vmem:[%s53 + $0x198] sm:$0xf]
    %v3669 = vld [vmem:[%s53 + $0x19c] sm:$0xf]
    %v3670 = vld [vmem:[%s53 + $0x1a0] sm:$0xf]
    %v3671 = vld [vmem:[%s53 + $0x1a4] sm:$0xf]
    %v3672 = vld [vmem:[%s53 + $0x1a8] sm:$0xf]
    %v3673 = vld [vmem:[%s53 + $0x1ac] sm:$0xf]
    %v3674 = vld [vmem:[%s53 + $0x1b0] sm:$0xf]
    %v3675 = vld [vmem:[%s53 + $0x1b4] sm:$0xf]
    %v3676 = vld [vmem:[%s53 + $0x1b8] sm:$0xf]
    %v3677 = vld [vmem:[%s53 + $0x1bc] sm:$0xf]
    %v3678 = vld [vmem:[%s53 + $0x1c0] sm:$0xf]
    %v3679 = vld [vmem:[%s53 + $0x1c4] sm:$0xf]
    %v3680 = vld [vmem:[%s53 + $0x1c8] sm:$0xf]
    %v3681 = vld [vmem:[%s53 + $0x1cc] sm:$0xf]
    %v3682 = vld [vmem:[%s53 + $0x1d0] sm:$0xf]
    %v3683 = vld [vmem:[%s53 + $0x1d4] sm:$0xf]
    %v3684 = vld [vmem:[%s53 + $0x1d8] sm:$0xf]
    %v3685 = vld [vmem:[%s53 + $0x1dc] sm:$0xf]
    %v3686 = vld [vmem:[%s53 + $0x1e0] sm:$0xf]
    %v3687 = vld [vmem:[%s53 + $0x1e4] sm:$0xf]
    %v3688 = vld [vmem:[%s53 + $0x1e8] sm:$0xf]
    %v3689 = vld [vmem:[%s53 + $0x1ec] sm:$0xf]
    %v3690 = vld [vmem:[%s53 + $0x1f0] sm:$0xf]
    %v3691 = vld [vmem:[%s53 + $0x1f4] sm:$0xf]
    %v3692 = vld [vmem:[%s53 + $0x1f8] sm:$0xf]
    %v3693 = vld [vmem:[%s53 + $0x1fc] sm:$0xf]
    %v3694 = vld [vmem:[%s53 + $0x200] sm:$0xf]
    %v3695 = vld [vmem:[%s53 + $0x204] sm:$0xf]
    %v3696 = vld [vmem:[%s53 + $0x208] sm:$0xf]
    %v3697 = vld [vmem:[%s53 + $0x20c] sm:$0xf]
    %v3698 = vld [vmem:[%s53 + $0x210] sm:$0xf]
    %v3699 = vld [vmem:[%s53 + $0x214] sm:$0xf]
    %v3700 = vld [vmem:[%s53 + $0x218] sm:$0xf]
    %v3701 = vld [vmem:[%s53 + $0x21c] sm:$0xf]
    %v3702 = vld [vmem:[%s53 + $0x220] sm:$0xf]
    %v3703 = vld [vmem:[%s53 + $0x224] sm:$0xf]
    %v3704 = vld [vmem:[%s53 + $0x228] sm:$0xf]
    %v3705 = vld [vmem:[%s53 + $0x22c] sm:$0xf]
    %v3706 = vld [vmem:[%s53 + $0x230] sm:$0xf]
    %v3707 = vld [vmem:[%s53 + $0x234] sm:$0xf]
    %v3708 = vld [vmem:[%s53 + $0x238] sm:$0xf]
    %v3709 = vld [vmem:[%s53 + $0x23c] sm:$0xf]
    %v3710 = vld [vmem:[%s53 + $0x240] sm:$0xf]
    %v3711 = vld [vmem:[%s53 + $0x244] sm:$0xf]
    %v3712 = vld [vmem:[%s53 + $0x248] sm:$0xf]
    %v3713 = vld [vmem:[%s53 + $0x24c] sm:$0xf]
    %v3714 = vld [vmem:[%s53 + $0x250] sm:$0xf]
    %v3715 = vld [vmem:[%s53 + $0x254] sm:$0xf]
    %v3716 = vld [vmem:[%s53 + $0x258] sm:$0xf]
    %v3717 = vld [vmem:[%s53 + $0x25c] sm:$0xf]
    %v3718 = vld [vmem:[%s53 + $0x260] sm:$0xf]
    %v3719 = vld [vmem:[%s53 + $0x264] sm:$0xf]
    %v3720 = vld [vmem:[%s53 + $0x268] sm:$0xf]
    %v3721 = vld [vmem:[%s53 + $0x26c] sm:$0xf]
    %v3722 = vld [vmem:[%s53 + $0x270] sm:$0xf]
    %v3723 = vld [vmem:[%s53 + $0x274] sm:$0xf]
    %v3724 = vld [vmem:[%s53 + $0x278] sm:$0xf]
    %v3725 = vld [vmem:[%s53 + $0x27c] sm:$0xf]
    %v3726 = vld [vmem:[%s53 + $0x280] sm:$0xf]
    %v3727 = vld [vmem:[%s53 + $0x284] sm:$0xf]
    %v3728 = vld [vmem:[%s53 + $0x288] sm:$0xf]
    %v3729 = vld [vmem:[%s53 + $0x28c] sm:$0xf]
    %v3730 = vld [vmem:[%s53 + $0x290] sm:$0xf]
    %v3731 = vld [vmem:[%s53 + $0x294] sm:$0xf]
    %v3732 = vld [vmem:[%s53 + $0x298] sm:$0xf]
    %v3733 = vld [vmem:[%s53 + $0x29c] sm:$0xf]
    %v3734 = vld [vmem:[%s53 + $0x2a0] sm:$0xf]
    %v3735 = vld [vmem:[%s53 + $0x2a4] sm:$0xf]
    %v3736 = vld [vmem:[%s53 + $0x2a8] sm:$0xf]
    %v3737 = vld [vmem:[%s53 + $0x2ac] sm:$0xf]
    %v3738 = vld [vmem:[%s53 + $0x2b0] sm:$0xf]
    %v3739 = vld [vmem:[%s53 + $0x2b4] sm:$0xf]
    %v3740 = vld [vmem:[%s53 + $0x2b8] sm:$0xf]
    %v3741 = vld [vmem:[%s53 + $0x2bc] sm:$0xf]
    %v3742 = vld [vmem:[%s53 + $0x2c0] sm:$0xf]
    %v3743 = vld [vmem:[%s53 + $0x2c4] sm:$0xf]
    %v3744 = vld [vmem:[%s53 + $0x2c8] sm:$0xf]
    %v3745 = vld [vmem:[%s53 + $0x2cc] sm:$0xf]
    %v3746 = vld [vmem:[%s53 + $0x2d0] sm:$0xf]
    %v3747 = vld [vmem:[%s53 + $0x2d4] sm:$0xf]
    %v3748 = vld [vmem:[%s53 + $0x2d8] sm:$0xf]
    %v3749 = vld [vmem:[%s53 + $0x2dc] sm:$0xf]
    %v3750 = vld [vmem:[%s53 + $0x2e0] sm:$0xf]
    %v3751 = vld [vmem:[%s53 + $0x2e4] sm:$0xf]
    %v3752 = vld [vmem:[%s53 + $0x2e8] sm:$0xf]
    %v3753 = vld [vmem:[%s53 + $0x2ec] sm:$0xf]
    %v3754 = vld [vmem:[%s53 + $0x2f0] sm:$0xf]
    %v3755 = vld [vmem:[%s53 + $0x2f4] sm:$0xf]
    %v3756 = vld [vmem:[%s53 + $0x2f8] sm:$0xf]
    %v3757 = vld [vmem:[%s53 + $0x2fc] sm:$0xf]
    %v3758 = vld [vmem:[%s53 + $0x300] sm:$0xf]
    %v3759 = vld [vmem:[%s53 + $0x304] sm:$0xf]
    %v3760 = vld [vmem:[%s53 + $0x308] sm:$0xf]
    %v3761 = vld [vmem:[%s53 + $0x30c] sm:$0xf]
    %v3762 = vld [vmem:[%s53 + $0x310] sm:$0xf]
    %v3763 = vld [vmem:[%s53 + $0x314] sm:$0xf]
    %v3764 = vld [vmem:[%s53 + $0x318] sm:$0xf]
    %v3765 = vld [vmem:[%s53 + $0x31c] sm:$0xf]
    %v3766 = vld [vmem:[%s53 + $0x320] sm:$0xf]
    %v3767 = vld [vmem:[%s53 + $0x324] sm:$0xf]
    %v3768 = vld [vmem:[%s53 + $0x328] sm:$0xf]
    %v3769 = vld [vmem:[%s53 + $0x32c] sm:$0xf]
    %v3770 = vld [vmem:[%s53 + $0x330] sm:$0xf]
    %v3771 = vld [vmem:[%s53 + $0x334] sm:$0xf]
    %v3772 = vld [vmem:[%s53 + $0x338] sm:$0xf]
    %v3773 = vld [vmem:[%s53 + $0x33c] sm:$0xf]
    %v3774 = vld [vmem:[%s53 + $0x340] sm:$0xf]
    %v3775 = vld [vmem:[%s53 + $0x344] sm:$0xf]
    %v3776 = vld [vmem:[%s53 + $0x348] sm:$0xf]
    %v3777 = vld [vmem:[%s53 + $0x34c] sm:$0xf]
    %v3778 = vld [vmem:[%s53 + $0x350] sm:$0xf]
    %v3779 = vld [vmem:[%s53 + $0x354] sm:$0xf]
    %v3780 = vld [vmem:[%s53 + $0x358] sm:$0xf]
    %v3781 = vld [vmem:[%s53 + $0x35c] sm:$0xf]
    %v3782 = vld [vmem:[%s53 + $0x360] sm:$0xf]
    %v3783 = vld [vmem:[%s53 + $0x364] sm:$0xf]
    %v3784 = vld [vmem:[%s53 + $0x368] sm:$0xf]
    %v3785 = vld [vmem:[%s53 + $0x36c] sm:$0xf]
    %v3786 = vld [vmem:[%s53 + $0x370] sm:$0xf]
    %v3787 = vld [vmem:[%s53 + $0x374] sm:$0xf]
    %v3788 = vld [vmem:[%s53 + $0x378] sm:$0xf]
    %v3789 = vld [vmem:[%s53 + $0x37c] sm:$0xf]
    %v3790 = vld [vmem:[%s53 + $0x380] sm:$0xf]
    %v3791 = vld [vmem:[%s53 + $0x384] sm:$0xf]
    %v3792 = vld [vmem:[%s53 + $0x388] sm:$0xf]
    %v3793 = vld [vmem:[%s53 + $0x38c] sm:$0xf]
    %v3794 = vld [vmem:[%s53 + $0x390] sm:$0xf]
    %v3795 = vld [vmem:[%s53 + $0x394] sm:$0xf]
    %v3796 = vld [vmem:[%s53 + $0x398] sm:$0xf]
    %v3797 = vld [vmem:[%s53 + $0x39c] sm:$0xf]
    %v3798 = vld [vmem:[%s53 + $0x3a0] sm:$0xf]
    %v3799 = vld [vmem:[%s53 + $0x3a4] sm:$0xf]
    %v3800 = vld [vmem:[%s53 + $0x3a8] sm:$0xf]
    %v3801 = vld [vmem:[%s53 + $0x3ac] sm:$0xf]
    %v3802 = vld [vmem:[%s53 + $0x3b0] sm:$0xf]
    %v3803 = vld [vmem:[%s53 + $0x3b4] sm:$0xf]
    %v3804 = vld [vmem:[%s53 + $0x3b8] sm:$0xf]
    %v3805 = vld [vmem:[%s53 + $0x3bc] sm:$0xf]
    %v3806 = vld [vmem:[%s53 + $0x3c0] sm:$0xf]
    %v3807 = vld [vmem:[%s53 + $0x3c4] sm:$0xf]
    %v3808 = vld [vmem:[%s53 + $0x3c8] sm:$0xf]
    %v3809 = vld [vmem:[%s53 + $0x3cc] sm:$0xf]
    %v3810 = vld [vmem:[%s53 + $0x3d0] sm:$0xf]
    %v3811 = vld [vmem:[%s53 + $0x3d4] sm:$0xf]
    %v3812 = vld [vmem:[%s53 + $0x3d8] sm:$0xf]
    %v3813 = vld [vmem:[%s53 + $0x3dc] sm:$0xf]
    %v3814 = vld [vmem:[%s53 + $0x3e0] sm:$0xf]
    %v3815 = vld [vmem:[%s53 + $0x3e4] sm:$0xf]
    %v3816 = vld [vmem:[%s53 + $0x3e8] sm:$0xf]
    %v3817 = vld [vmem:[%s53 + $0x3ec] sm:$0xf]
    %v3818 = vld [vmem:[%s53 + $0x3f0] sm:$0xf]
    %v3819 = vld [vmem:[%s53 + $0x3f4] sm:$0xf]
    %v3820 = vld [vmem:[%s53 + $0x3f8] sm:$0xf]
    %v3821 = vld [vmem:[%s53 + $0x3fc] sm:$0xf]
    %v3822 = vld [vmem:[%s37] sm:$0x1]
    %v3824 = vlaneseq
    %v3825 = vshrl.u32 %v3824, 7
    %v3826 = vsub.s32 0, %v3825
    %v3827 = vrot.slane %v3822, %v3826
    %v4085 = vunpack.c.l.b16 %v3566
    %v4086 = vunpack.c.l.b16 %v3567
    %v4087 = vunpack.c.l.b16 %v3568
    %v4088 = vunpack.c.l.b16 %v3569
    %v4089 = vunpack.c.l.b16 %v3570
    %v4090 = vunpack.c.l.b16 %v3571
    %v4091 = vunpack.c.l.b16 %v3572
    %v4092 = vunpack.c.l.b16 %v3573
    %v4093 = vunpack.c.l.b16 %v3574
    %v4094 = vunpack.c.l.b16 %v3575
    %v4095 = vunpack.c.l.b16 %v3576
    %v4096 = vunpack.c.l.b16 %v3577
    %v4097 = vunpack.c.l.b16 %v3578
    %v4098 = vunpack.c.l.b16 %v3579
    %v4099 = vunpack.c.l.b16 %v3580
    %v4100 = vunpack.c.l.b16 %v3581
    %v4101 = vunpack.c.l.b16 %v3582
    %v4102 = vunpack.c.l.b16 %v3583
    %v4103 = vunpack.c.l.b16 %v3584
    %v4104 = vunpack.c.l.b16 %v3585
    %v4105 = vunpack.c.l.b16 %v3586
    %v4106 = vunpack.c.l.b16 %v3587
    %v4107 = vunpack.c.l.b16 %v3588
    %v4108 = vunpack.c.l.b16 %v3589
    %v4109 = vunpack.c.l.b16 %v3590
    %v4110 = vunpack.c.l.b16 %v3591
    %v4111 = vunpack.c.l.b16 %v3592
    %v4112 = vunpack.c.l.b16 %v3593
    %v4113 = vunpack.c.l.b16 %v3594
    %v4114 = vunpack.c.l.b16 %v3595
    %v4115 = vunpack.c.l.b16 %v3596
    %v4116 = vunpack.c.l.b16 %v3597
    %v4117 = vunpack.c.l.b16 %v3598
    %v4118 = vunpack.c.l.b16 %v3599
    %v4119 = vunpack.c.l.b16 %v3600
    %v4120 = vunpack.c.l.b16 %v3601
    %v4121 = vunpack.c.l.b16 %v3602
    %v4122 = vunpack.c.l.b16 %v3603
    %v4123 = vunpack.c.l.b16 %v3604
    %v4124 = vunpack.c.l.b16 %v3605
    %v4125 = vunpack.c.l.b16 %v3606
    %v4126 = vunpack.c.l.b16 %v3607
    %v4127 = vunpack.c.l.b16 %v3608
    %v4128 = vunpack.c.l.b16 %v3609
    %v4129 = vunpack.c.l.b16 %v3610
    %v4130 = vunpack.c.l.b16 %v3611
    %v4131 = vunpack.c.l.b16 %v3612
    %v4132 = vunpack.c.l.b16 %v3613
    %v4133 = vunpack.c.l.b16 %v3614
    %v4134 = vunpack.c.l.b16 %v3615
    %v4135 = vunpack.c.l.b16 %v3616
    %v4136 = vunpack.c.l.b16 %v3617
    %v4137 = vunpack.c.l.b16 %v3618
    %v4138 = vunpack.c.l.b16 %v3619
    %v4139 = vunpack.c.l.b16 %v3620
    %v4140 = vunpack.c.l.b16 %v3621
    %v4141 = vunpack.c.l.b16 %v3622
    %v4142 = vunpack.c.l.b16 %v3623
    %v4143 = vunpack.c.l.b16 %v3624
    %v4144 = vunpack.c.l.b16 %v3625
    %v4145 = vunpack.c.l.b16 %v3626
    %v4146 = vunpack.c.l.b16 %v3627
    %v4147 = vunpack.c.l.b16 %v3628
    %v4148 = vunpack.c.l.b16 %v3629
    %v4149 = vunpack.c.l.b16 %v3630
    %v4150 = vunpack.c.l.b16 %v3631
    %v4151 = vunpack.c.l.b16 %v3632
    %v4152 = vunpack.c.l.b16 %v3633
    %v4153 = vunpack.c.l.b16 %v3634
    %v4154 = vunpack.c.l.b16 %v3635
    %v4155 = vunpack.c.l.b16 %v3636
    %v4156 = vunpack.c.l.b16 %v3637
    %v4157 = vunpack.c.l.b16 %v3638
    %v4158 = vunpack.c.l.b16 %v3639
    %v4159 = vunpack.c.l.b16 %v3640
    %v4160 = vunpack.c.l.b16 %v3641
    %v4161 = vunpack.c.l.b16 %v3642
    %v4162 = vunpack.c.l.b16 %v3643
    %v4163 = vunpack.c.l.b16 %v3644
    %v4164 = vunpack.c.l.b16 %v3645
    %v4165 = vunpack.c.l.b16 %v3646
    %v4166 = vunpack.c.l.b16 %v3647
    %v4167 = vunpack.c.l.b16 %v3648
    %v4168 = vunpack.c.l.b16 %v3649
    %v4169 = vunpack.c.l.b16 %v3650
    %v4170 = vunpack.c.l.b16 %v3651
    %v4171 = vunpack.c.l.b16 %v3652
    %v4172 = vunpack.c.l.b16 %v3653
    %v4173 = vunpack.c.l.b16 %v3654
    %v4174 = vunpack.c.l.b16 %v3655
    %v4175 = vunpack.c.l.b16 %v3656
    %v4176 = vunpack.c.l.b16 %v3657
    %v4177 = vunpack.c.l.b16 %v3658
    %v4178 = vunpack.c.l.b16 %v3659
    %v4179 = vunpack.c.l.b16 %v3660
    %v4180 = vunpack.c.l.b16 %v3661
    %v4181 = vunpack.c.l.b16 %v3662
    %v4182 = vunpack.c.l.b16 %v3663
    %v4183 = vunpack.c.l.b16 %v3664
    %v4184 = vunpack.c.l.b16 %v3665
    %v4185 = vunpack.c.l.b16 %v3666
    %v4186 = vunpack.c.l.b16 %v3667
    %v4187 = vunpack.c.l.b16 %v3668
    %v4188 = vunpack.c.l.b16 %v3669
    %v4189 = vunpack.c.l.b16 %v3670
    %v4190 = vunpack.c.l.b16 %v3671
    %v4191 = vunpack.c.l.b16 %v3672
    %v4192 = vunpack.c.l.b16 %v3673
    %v4193 = vunpack.c.l.b16 %v3674
    %v4194 = vunpack.c.l.b16 %v3675
    %v4195 = vunpack.c.l.b16 %v3676
    %v4196 = vunpack.c.l.b16 %v3677
    %v4197 = vunpack.c.l.b16 %v3678
    %v4198 = vunpack.c.l.b16 %v3679
    %v4199 = vunpack.c.l.b16 %v3680
    %v4200 = vunpack.c.l.b16 %v3681
    %v4201 = vunpack.c.l.b16 %v3682
    %v4202 = vunpack.c.l.b16 %v3683
    %v4203 = vunpack.c.l.b16 %v3684
    %v4204 = vunpack.c.l.b16 %v3685
    %v4205 = vunpack.c.l.b16 %v3686
    %v4206 = vunpack.c.l.b16 %v3687
    %v4207 = vunpack.c.l.b16 %v3688
    %v4208 = vunpack.c.l.b16 %v3689
    %v4209 = vunpack.c.l.b16 %v3690
    %v4210 = vunpack.c.l.b16 %v3691
    %v4211 = vunpack.c.l.b16 %v3692
    %v4212 = vunpack.c.l.b16 %v3693
    %v4213 = vunpack.c.l.b16 %v3694
    %v4214 = vunpack.c.l.b16 %v3695
    %v4215 = vunpack.c.l.b16 %v3696
    %v4216 = vunpack.c.l.b16 %v3697
    %v4217 = vunpack.c.l.b16 %v3698
    %v4218 = vunpack.c.l.b16 %v3699
    %v4219 = vunpack.c.l.b16 %v3700
    %v4220 = vunpack.c.l.b16 %v3701
    %v4221 = vunpack.c.l.b16 %v3702
    %v4222 = vunpack.c.l.b16 %v3703
    %v4223 = vunpack.c.l.b16 %v3704
    %v4224 = vunpack.c.l.b16 %v3705
    %v4225 = vunpack.c.l.b16 %v3706
    %v4226 = vunpack.c.l.b16 %v3707
    %v4227 = vunpack.c.l.b16 %v3708
    %v4228 = vunpack.c.l.b16 %v3709
    %v4229 = vunpack.c.l.b16 %v3710
    %v4230 = vunpack.c.l.b16 %v3711
    %v4231 = vunpack.c.l.b16 %v3712
    %v4232 = vunpack.c.l.b16 %v3713
    %v4233 = vunpack.c.l.b16 %v3714
    %v4234 = vunpack.c.l.b16 %v3715
    %v4235 = vunpack.c.l.b16 %v3716
    %v4236 = vunpack.c.l.b16 %v3717
    %v4237 = vunpack.c.l.b16 %v3718
    %v4238 = vunpack.c.l.b16 %v3719
    %v4239 = vunpack.c.l.b16 %v3720
    %v4240 = vunpack.c.l.b16 %v3721
    %v4241 = vunpack.c.l.b16 %v3722
    %v4242 = vunpack.c.l.b16 %v3723
    %v4243 = vunpack.c.l.b16 %v3724
    %v4244 = vunpack.c.l.b16 %v3725
    %v4245 = vunpack.c.l.b16 %v3726
    %v4246 = vunpack.c.l.b16 %v3727
    %v4247 = vunpack.c.l.b16 %v3728
    %v4248 = vunpack.c.l.b16 %v3729
    %v4249 = vunpack.c.l.b16 %v3730
    %v4250 = vunpack.c.l.b16 %v3731
    %v4251 = vunpack.c.l.b16 %v3732
    %v4252 = vunpack.c.l.b16 %v3733
    %v4253 = vunpack.c.l.b16 %v3734
    %v4254 = vunpack.c.l.b16 %v3735
    %v4255 = vunpack.c.l.b16 %v3736
    %v4256 = vunpack.c.l.b16 %v3737
    %v4257 = vunpack.c.l.b16 %v3738
    %v4258 = vunpack.c.l.b16 %v3739
    %v4259 = vunpack.c.l.b16 %v3740
    %v4260 = vunpack.c.l.b16 %v3741
    %v4261 = vunpack.c.l.b16 %v3742
    %v4262 = vunpack.c.l.b16 %v3743
    %v4263 = vunpack.c.l.b16 %v3744
    %v4264 = vunpack.c.l.b16 %v3745
    %v4265 = vunpack.c.l.b16 %v3746
    %v4266 = vunpack.c.l.b16 %v3747
    %v4267 = vunpack.c.l.b16 %v3748
    %v4268 = vunpack.c.l.b16 %v3749
    %v4269 = vunpack.c.l.b16 %v3750
    %v4270 = vunpack.c.l.b16 %v3751
    %v4271 = vunpack.c.l.b16 %v3752
    %v4272 = vunpack.c.l.b16 %v3753
    %v4273 = vunpack.c.l.b16 %v3754
    %v4274 = vunpack.c.l.b16 %v3755
    %v4275 = vunpack.c.l.b16 %v3756
    %v4276 = vunpack.c.l.b16 %v3757
    %v4277 = vunpack.c.l.b16 %v3758
    %v4278 = vunpack.c.l.b16 %v3759
    %v4279 = vunpack.c.l.b16 %v3760
    %v4280 = vunpack.c.l.b16 %v3761
    %v4281 = vunpack.c.l.b16 %v3762
    %v4282 = vunpack.c.l.b16 %v3763
    %v4283 = vunpack.c.l.b16 %v3764
    %v4284 = vunpack.c.l.b16 %v3765
    %v4285 = vunpack.c.l.b16 %v3766
    %v4286 = vunpack.c.l.b16 %v3767
    %v4287 = vunpack.c.l.b16 %v3768
    %v4288 = vunpack.c.l.b16 %v3769
    %v4289 = vunpack.c.l.b16 %v3770
    %v4290 = vunpack.c.l.b16 %v3771
    %v4291 = vunpack.c.l.b16 %v3772
    %v4292 = vunpack.c.l.b16 %v3773
    %v4293 = vunpack.c.l.b16 %v3774
    %v4294 = vunpack.c.l.b16 %v3775
    %v4295 = vunpack.c.l.b16 %v3776
    %v4296 = vunpack.c.l.b16 %v3777
    %v4297 = vunpack.c.l.b16 %v3778
    %v4298 = vunpack.c.l.b16 %v3779
    %v4299 = vunpack.c.l.b16 %v3780
    %v4300 = vunpack.c.l.b16 %v3781
    %v4301 = vunpack.c.l.b16 %v3782
    %v4302 = vunpack.c.l.b16 %v3783
    %v4303 = vunpack.c.l.b16 %v3784
    %v4304 = vunpack.c.l.b16 %v3785
    %v4305 = vunpack.c.l.b16 %v3786
    %v4306 = vunpack.c.l.b16 %v3787
    %v4307 = vunpack.c.l.b16 %v3788
    %v4308 = vunpack.c.l.b16 %v3789
    %v4309 = vunpack.c.l.b16 %v3790
    %v4310 = vunpack.c.l.b16 %v3791
    %v4311 = vunpack.c.l.b16 %v3792
    %v4312 = vunpack.c.l.b16 %v3793
    %v4313 = vunpack.c.l.b16 %v3794
    %v4314 = vunpack.c.l.b16 %v3795
    %v4315 = vunpack.c.l.b16 %v3796
    %v4316 = vunpack.c.l.b16 %v3797
    %v4317 = vunpack.c.l.b16 %v3798
    %v4318 = vunpack.c.l.b16 %v3799
    %v4319 = vunpack.c.l.b16 %v3800
    %v4320 = vunpack.c.l.b16 %v3801
    %v4321 = vunpack.c.l.b16 %v3802
    %v4322 = vunpack.c.l.b16 %v3803
    %v4323 = vunpack.c.l.b16 %v3804
    %v4324 = vunpack.c.l.b16 %v3805
    %v4325 = vunpack.c.l.b16 %v3806
    %v4326 = vunpack.c.l.b16 %v3807
    %v4327 = vunpack.c.l.b16 %v3808
    %v4328 = vunpack.c.l.b16 %v3809
    %v4329 = vunpack.c.l.b16 %v3810
    %v4330 = vunpack.c.l.b16 %v3811
    %v4331 = vunpack.c.l.b16 %v3812
    %v4332 = vunpack.c.l.b16 %v3813
    %v4333 = vunpack.c.l.b16 %v3814
    %v4334 = vunpack.c.l.b16 %v3815
    %v4335 = vunpack.c.l.b16 %v3816
    %v4336 = vunpack.c.l.b16 %v3817
    %v4337 = vunpack.c.l.b16 %v3818
    %v4338 = vunpack.c.l.b16 %v3819
    %v4339 = vunpack.c.l.b16 %v3820
    %v4340 = vunpack.c.l.b16 %v3821
    %v4341 = vpack.c.b16 %v4086, %v4085
    %v4342 = vpack.c.b16 %v4088, %v4087
    %v4343 = vpack.c.b16 %v4090, %v4089
    %v4344 = vpack.c.b16 %v4092, %v4091
    %v4345 = vpack.c.b16 %v4094, %v4093
    %v4346 = vpack.c.b16 %v4096, %v4095
    %v4347 = vpack.c.b16 %v4098, %v4097
    %v4348 = vpack.c.b16 %v4100, %v4099
    %v4349 = vpack.c.b16 %v4102, %v4101
    %v4350 = vpack.c.b16 %v4104, %v4103
    %v4351 = vpack.c.b16 %v4106, %v4105
    %v4352 = vpack.c.b16 %v4108, %v4107
    %v4353 = vpack.c.b16 %v4110, %v4109
    %v4354 = vpack.c.b16 %v4112, %v4111
    %v4355 = vpack.c.b16 %v4114, %v4113
    %v4356 = vpack.c.b16 %v4116, %v4115
    %v4357 = vpack.c.b16 %v4118, %v4117
    %v4358 = vpack.c.b16 %v4120, %v4119
    %v4359 = vpack.c.b16 %v4122, %v4121
    %v4360 = vpack.c.b16 %v4124, %v4123
    %v4361 = vpack.c.b16 %v4126, %v4125
    %v4362 = vpack.c.b16 %v4128, %v4127
    %v4363 = vpack.c.b16 %v4130, %v4129
    %v4364 = vpack.c.b16 %v4132, %v4131
    %v4365 = vpack.c.b16 %v4134, %v4133
    %v4366 = vpack.c.b16 %v4136, %v4135
    %v4367 = vpack.c.b16 %v4138, %v4137
    %v4368 = vpack.c.b16 %v4140, %v4139
    %v4369 = vpack.c.b16 %v4142, %v4141
    %v4370 = vpack.c.b16 %v4144, %v4143
    %v4371 = vpack.c.b16 %v4146, %v4145
    %v4372 = vpack.c.b16 %v4148, %v4147
    %v4373 = vpack.c.b16 %v4150, %v4149
    %v4374 = vpack.c.b16 %v4152, %v4151
    %v4375 = vpack.c.b16 %v4154, %v4153
    %v4376 = vpack.c.b16 %v4156, %v4155
    %v4377 = vpack.c.b16 %v4158, %v4157
    %v4378 = vpack.c.b16 %v4160, %v4159
    %v4379 = vpack.c.b16 %v4162, %v4161
    %v4380 = vpack.c.b16 %v4164, %v4163
    %v4381 = vpack.c.b16 %v4166, %v4165
    %v4382 = vpack.c.b16 %v4168, %v4167
    %v4383 = vpack.c.b16 %v4170, %v4169
    %v4384 = vpack.c.b16 %v4172, %v4171
    %v4385 = vpack.c.b16 %v4174, %v4173
    %v4386 = vpack.c.b16 %v4176, %v4175
    %v4387 = vpack.c.b16 %v4178, %v4177
    %v4388 = vpack.c.b16 %v4180, %v4179
    %v4389 = vpack.c.b16 %v4182, %v4181
    %v4390 = vpack.c.b16 %v4184, %v4183
    %v4391 = vpack.c.b16 %v4186, %v4185
    %v4392 = vpack.c.b16 %v4188, %v4187
    %v4393 = vpack.c.b16 %v4190, %v4189
    %v4394 = vpack.c.b16 %v4192, %v4191
    %v4395 = vpack.c.b16 %v4194, %v4193
    %v4396 = vpack.c.b16 %v4196, %v4195
    %v4397 = vpack.c.b16 %v4198, %v4197
    %v4398 = vpack.c.b16 %v4200, %v4199
    %v4399 = vpack.c.b16 %v4202, %v4201
    %v4400 = vpack.c.b16 %v4204, %v4203
    %v4401 = vpack.c.b16 %v4206, %v4205
    %v4402 = vpack.c.b16 %v4208, %v4207
    %v4403 = vpack.c.b16 %v4210, %v4209
    %v4404 = vpack.c.b16 %v4212, %v4211
    %v4405 = vpack.c.b16 %v4214, %v4213
    %v4406 = vpack.c.b16 %v4216, %v4215
    %v4407 = vpack.c.b16 %v4218, %v4217
    %v4408 = vpack.c.b16 %v4220, %v4219
    %v4409 = vpack.c.b16 %v4222, %v4221
    %v4410 = vpack.c.b16 %v4224, %v4223
    %v4411 = vpack.c.b16 %v4226, %v4225
    %v4412 = vpack.c.b16 %v4228, %v4227
    %v4413 = vpack.c.b16 %v4230, %v4229
    %v4414 = vpack.c.b16 %v4232, %v4231
    %v4415 = vpack.c.b16 %v4234, %v4233
    %v4416 = vpack.c.b16 %v4236, %v4235
    %v4417 = vpack.c.b16 %v4238, %v4237
    %v4418 = vpack.c.b16 %v4240, %v4239
    %v4419 = vpack.c.b16 %v4242, %v4241
    %v4420 = vpack.c.b16 %v4244, %v4243
    %v4421 = vpack.c.b16 %v4246, %v4245
    %v4422 = vpack.c.b16 %v4248, %v4247
    %v4423 = vpack.c.b16 %v4250, %v4249
    %v4424 = vpack.c.b16 %v4252, %v4251
    %v4425 = vpack.c.b16 %v4254, %v4253
    %v4426 = vpack.c.b16 %v4256, %v4255
    %v4427 = vpack.c.b16 %v4258, %v4257
    %v4428 = vpack.c.b16 %v4260, %v4259
    %v4429 = vpack.c.b16 %v4262, %v4261
    %v4430 = vpack.c.b16 %v4264, %v4263
    %v4431 = vpack.c.b16 %v4266, %v4265
    %v4432 = vpack.c.b16 %v4268, %v4267
    %v4433 = vpack.c.b16 %v4270, %v4269
    %v4434 = vpack.c.b16 %v4272, %v4271
    %v4435 = vpack.c.b16 %v4274, %v4273
    %v4436 = vpack.c.b16 %v4276, %v4275
    %v4437 = vpack.c.b16 %v4278, %v4277
    %v4438 = vpack.c.b16 %v4280, %v4279
    %v4439 = vpack.c.b16 %v4282, %v4281
    %v4440 = vpack.c.b16 %v4284, %v4283
    %v4441 = vpack.c.b16 %v4286, %v4285
    %v4442 = vpack.c.b16 %v4288, %v4287
    %v4443 = vpack.c.b16 %v4290, %v4289
    %v4444 = vpack.c.b16 %v4292, %v4291
    %v4445 = vpack.c.b16 %v4294, %v4293
    %v4446 = vpack.c.b16 %v4296, %v4295
    %v4447 = vpack.c.b16 %v4298, %v4297
    %v4448 = vpack.c.b16 %v4300, %v4299
    %v4449 = vpack.c.b16 %v4302, %v4301
    %v4450 = vpack.c.b16 %v4304, %v4303
    %v4451 = vpack.c.b16 %v4306, %v4305
    %v4452 = vpack.c.b16 %v4308, %v4307
    %v4453 = vpack.c.b16 %v4310, %v4309
    %v4454 = vpack.c.b16 %v4312, %v4311
    %v4455 = vpack.c.b16 %v4314, %v4313
    %v4456 = vpack.c.b16 %v4316, %v4315
    %v4457 = vpack.c.b16 %v4318, %v4317
    %v4458 = vpack.c.b16 %v4320, %v4319
    %v4459 = vpack.c.b16 %v4322, %v4321
    %v4460 = vpack.c.b16 %v4324, %v4323
    %v4461 = vpack.c.b16 %v4326, %v4325
    %v4462 = vpack.c.b16 %v4328, %v4327
    %v4463 = vpack.c.b16 %v4330, %v4329
    %v4464 = vpack.c.b16 %v4332, %v4331
    %v4465 = vpack.c.b16 %v4334, %v4333
    %v4466 = vpack.c.b16 %v4336, %v4335
    %v4467 = vpack.c.b16 %v4338, %v4337
    %v4468 = vpack.c.b16 %v4340, %v4339
    %4597 = vmatprep.subr.bf16.mxu0 0
    %4598 = vmatpush1.bf16.msra.mxu0 %v4341
    %4599 = vmatprep.subr.bf16.mxu0 0
    %4600 = vmatpush1.bf16.msra.mxu0 %v4342
    %4601 = vmatprep.subr.bf16.mxu0 0
    %4602 = vmatpush1.bf16.msra.mxu0 %v4343
    %4603 = vmatprep.subr.bf16.mxu0 0
    %4604 = vmatpush1.bf16.msra.mxu0 %v4344
    %4605 = vmatprep.subr.bf16.mxu0 0
    %4606 = vmatpush1.bf16.msra.mxu0 %v4345
    %4607 = vmatprep.subr.bf16.mxu0 0
    %4608 = vmatpush1.bf16.msra.mxu0 %v4346
    %4609 = vmatprep.subr.bf16.mxu0 0
    %4610 = vmatpush1.bf16.msra.mxu0 %v4347
    %4611 = vmatprep.subr.bf16.mxu0 0
    %4612 = vmatpush1.bf16.msra.mxu0 %v4348
    %4613 = vmatprep.subr.bf16.mxu0 0
    %4614 = vmatpush1.bf16.msra.mxu0 %v4349
    %4615 = vmatprep.subr.bf16.mxu0 0
    %4616 = vmatpush1.bf16.msra.mxu0 %v4350
    %4617 = vmatprep.subr.bf16.mxu0 0
    %4618 = vmatpush1.bf16.msra.mxu0 %v4351
    %4619 = vmatprep.subr.bf16.mxu0 0
    %4620 = vmatpush1.bf16.msra.mxu0 %v4352
    %4621 = vmatprep.subr.bf16.mxu0 0
    %4622 = vmatpush1.bf16.msra.mxu0 %v4353
    %4623 = vmatprep.subr.bf16.mxu0 0
    %4624 = vmatpush1.bf16.msra.mxu0 %v4354
    %4625 = vmatprep.subr.bf16.mxu0 0
    %4626 = vmatpush1.bf16.msra.mxu0 %v4355
    %4627 = vmatprep.subr.bf16.mxu0 0
    %4628 = vmatpush1.bf16.msra.mxu0 %v4356
    %4629 = vmatprep.mubr.bf16.mxu0 %v3551
    %4630 = vmatmul.mubr.bf16.gmra.mrb[0].mxu0 %v3550
    %v4631 = vpop.f32.mrb[0].mxu0
    %v4632 = vadd.f32 %v3827, %v4631
    %v4633 = vpop.f32.mrb[0].mxu0
    %v4634 = vpop.f32.mrb[0].mxu0
    %v4635 = vadd.f32 %v3827, %v4634
    %v4636 = vpop.f32.mrb[0].mxu0
    %4637 = vdwg.mxu0
    %4638 = vmatprep.subr.bf16.mxu0 0
    %4639 = vmatpush1.bf16.msra.mxu0 %v4357
    %4640 = vmatprep.subr.bf16.mxu0 0
    %4641 = vmatpush1.bf16.msra.mxu0 %v4358
    %4642 = vmatprep.subr.bf16.mxu0 0
    %4643 = vmatpush1.bf16.msra.mxu0 %v4359
    %4644 = vmatprep.subr.bf16.mxu0 0
    %4645 = vmatpush1.bf16.msra.mxu0 %v4360
    %4646 = vmatprep.subr.bf16.mxu0 0
    %4647 = vmatpush1.bf16.msra.mxu0 %v4361
    %4648 = vmatprep.subr.bf16.mxu0 0
    %4649 = vmatpush1.bf16.msra.mxu0 %v4362
    %4650 = vmatprep.subr.bf16.mxu0 0
    %4651 = vmatpush1.bf16.msra.mxu0 %v4363
    %4652 = vmatprep.subr.bf16.mxu0 0
    %4653 = vmatpush1.bf16.msra.mxu0 %v4364
    %4654 = vmatprep.subr.bf16.mxu0 0
    %4655 = vmatpush1.bf16.msra.mxu0 %v4365
    %4656 = vmatprep.subr.bf16.mxu0 0
    %4657 = vmatpush1.bf16.msra.mxu0 %v4366
    %4658 = vmatprep.subr.bf16.mxu0 0
    %4659 = vmatpush1.bf16.msra.mxu0 %v4367
    %4660 = vmatprep.subr.bf16.mxu0 0
    %4661 = vmatpush1.bf16.msra.mxu0 %v4368
    %4662 = vmatprep.subr.bf16.mxu0 0
    %4663 = vmatpush1.bf16.msra.mxu0 %v4369
    %4664 = vmatprep.subr.bf16.mxu0 0
    %4665 = vmatpush1.bf16.msra.mxu0 %v4370
    %4666 = vmatprep.subr.bf16.mxu0 0
    %4667 = vmatpush1.bf16.msra.mxu0 %v4371
    %4668 = vmatprep.subr.bf16.mxu0 0
    %4669 = vmatpush1.bf16.msra.mxu0 %v4372
    %4670 = vmatprep.mubr.bf16.mxu0 %v3553
    %4671 = vmatmul.mubr.bf16.gmra.mrb[0].mxu0 %v3552
    %v4672 = vpop.f32.mrb[0].mxu0
    %v4673 = vadd.f32 %v4632, %v4672
    %v4674 = vpop.f32.mrb[0].mxu0
    %v4675 = vpop.f32.mrb[0].mxu0
    %v4676 = vadd.f32 %v4635, %v4675
    %v4677 = vpop.f32.mrb[0].mxu0
    %4678 = vdwg.mxu0
    %4679 = vmatprep.subr.bf16.mxu0 0
    %4680 = vmatpush1.bf16.msra.mxu0 %v4373
    %4681 = vmatprep.subr.bf16.mxu0 0
    %4682 = vmatpush1.bf16.msra.mxu0 %v4374
    %4683 = vmatprep.subr.bf16.mxu0 0
    %4684 = vmatpush1.bf16.msra.mxu0 %v4375
    %4685 = vmatprep.subr.bf16.mxu0 0
    %4686 = vmatpush1.bf16.msra.mxu0 %v4376
    %4687 = vmatprep.subr.bf16.mxu0 0
    %4688 = vmatpush1.bf16.msra.mxu0 %v4377
    %4689 = vmatprep.subr.bf16.mxu0 0
    %4690 = vmatpush1.bf16.msra.mxu0 %v4378
    %4691 = vmatprep.subr.bf16.mxu0 0
    %4692 = vmatpush1.bf16.msra.mxu0 %v4379
    %4693 = vmatprep.subr.bf16.mxu0 0
    %4694 = vmatpush1.bf16.msra.mxu0 %v4380
    %4695 = vmatprep.subr.bf16.mxu0 0
    %4696 = vmatpush1.bf16.msra.mxu0 %v4381
    %4697 = vmatprep.subr.bf16.mxu0 0
    %4698 = vmatpush1.bf16.msra.mxu0 %v4382
    %4699 = vmatprep.subr.bf16.mxu0 0
    %4700 = vmatpush1.bf16.msra.mxu0 %v4383
    %4701 = vmatprep.subr.bf16.mxu0 0
    %4702 = vmatpush1.bf16.msra.mxu0 %v4384
    %4703 = vmatprep.subr.bf16.mxu0 0
    %4704 = vmatpush1.bf16.msra.mxu0 %v4385
    %4705 = vmatprep.subr.bf16.mxu0 0
    %4706 = vmatpush1.bf16.msra.mxu0 %v4386
    %4707 = vmatprep.subr.bf16.mxu0 0
    %4708 = vmatpush1.bf16.msra.mxu0 %v4387
    %4709 = vmatprep.subr.bf16.mxu0 0
    %4710 = vmatpush1.bf16.msra.mxu0 %v4388
    %4711 = vmatprep.mubr.bf16.mxu0 %v3555
    %4712 = vmatmul.mubr.bf16.gmra.mrb[0].mxu0 %v3554
    %v4713 = vpop.f32.mrb[0].mxu0
    %v4714 = vadd.f32 %v4673, %v4713
    %v4715 = vpop.f32.mrb[0].mxu0
    %v4716 = vpop.f32.mrb[0].mxu0
    %v4717 = vadd.f32 %v4676, %v4716
    %v4718 = vpop.f32.mrb[0].mxu0
    %4719 = vdwg.mxu0
    %4720 = vmatprep.subr.bf16.mxu0 0
    %4721 = vmatpush1.bf16.msra.mxu0 %v4389
    %4722 = vmatprep.subr.bf16.mxu0 0
    %4723 = vmatpush1.bf16.msra.mxu0 %v4390
    %4724 = vmatprep.subr.bf16.mxu0 0
    %4725 = vmatpush1.bf16.msra.mxu0 %v4391
    %4726 = vmatprep.subr.bf16.mxu0 0
    %4727 = vmatpush1.bf16.msra.mxu0 %v4392
    %4728 = vmatprep.subr.bf16.mxu0 0
    %4729 = vmatpush1.bf16.msra.mxu0 %v4393
    %4730 = vmatprep.subr.bf16.mxu0 0
    %4731 = vmatpush1.bf16.msra.mxu0 %v4394
    %4732 = vmatprep.subr.bf16.mxu0 0
    %4733 = vmatpush1.bf16.msra.mxu0 %v4395
    %4734 = vmatprep.subr.bf16.mxu0 0
    %4735 = vmatpush1.bf16.msra.mxu0 %v4396
    %4736 = vmatprep.subr.bf16.mxu0 0
    %4737 = vmatpush1.bf16.msra.mxu0 %v4397
    %4738 = vmatprep.subr.bf16.mxu0 0
    %4739 = vmatpush1.bf16.msra.mxu0 %v4398
    %4740 = vmatprep.subr.bf16.mxu0 0
    %4741 = vmatpush1.bf16.msra.mxu0 %v4399
    %4742 = vmatprep.subr.bf16.mxu0 0
    %4743 = vmatpush1.bf16.msra.mxu0 %v4400
    %4744 = vmatprep.subr.bf16.mxu0 0
    %4745 = vmatpush1.bf16.msra.mxu0 %v4401
    %4746 = vmatprep.subr.bf16.mxu0 0
    %4747 = vmatpush1.bf16.msra.mxu0 %v4402
    %4748 = vmatprep.subr.bf16.mxu0 0
    %4749 = vmatpush1.bf16.msra.mxu0 %v4403
    %4750 = vmatprep.subr.bf16.mxu0 0
    %4751 = vmatpush1.bf16.msra.mxu0 %v4404
    %4752 = vmatprep.mubr.bf16.mxu0 %v3557
    %4753 = vmatmul.mubr.bf16.gmra.mrb[0].mxu0 %v3556
    %v4754 = vpop.f32.mrb[0].mxu0
    %v4755 = vadd.f32 %v4714, %v4754
    %v4756 = vpop.f32.mrb[0].mxu0
    %v4757 = vpop.f32.mrb[0].mxu0
    %v4758 = vadd.f32 %v4717, %v4757
    %v4759 = vpop.f32.mrb[0].mxu0
    %4760 = vdwg.mxu0
    %4761 = vmatprep.subr.bf16.mxu0 0
    %4762 = vmatpush1.bf16.msra.mxu0 %v4405
    %4763 = vmatprep.subr.bf16.mxu0 0
    %4764 = vmatpush1.bf16.msra.mxu0 %v4406
    %4765 = vmatprep.subr.bf16.mxu0 0
    %4766 = vmatpush1.bf16.msra.mxu0 %v4407
    %4767 = vmatprep.subr.bf16.mxu0 0
    %4768 = vmatpush1.bf16.msra.mxu0 %v4408
    %4769 = vmatprep.subr.bf16.mxu0 0
    %4770 = vmatpush1.bf16.msra.mxu0 %v4409
    %4771 = vmatprep.subr.bf16.mxu0 0
    %4772 = vmatpush1.bf16.msra.mxu0 %v4410
    %4773 = vmatprep.subr.bf16.mxu0 0
    %4774 = vmatpush1.bf16.msra.mxu0 %v4411
    %4775 = vmatprep.subr.bf16.mxu0 0
    %4776 = vmatpush1.bf16.msra.mxu0 %v4412
    %4777 = vmatprep.subr.bf16.mxu0 0
    %4778 = vmatpush1.bf16.msra.mxu0 %v4413
    %4779 = vmatprep.subr.bf16.mxu0 0
    %4780 = vmatpush1.bf16.msra.mxu0 %v4414
    %4781 = vmatprep.subr.bf16.mxu0 0
    %4782 = vmatpush1.bf16.msra.mxu0 %v4415
    %4783 = vmatprep.subr.bf16.mxu0 0
    %4784 = vmatpush1.bf16.msra.mxu0 %v4416
    %4785 = vmatprep.subr.bf16.mxu0 0
    %4786 = vmatpush1.bf16.msra.mxu0 %v4417
    %4787 = vmatprep.subr.bf16.mxu0 0
    %4788 = vmatpush1.bf16.msra.mxu0 %v4418
    %4789 = vmatprep.subr.bf16.mxu0 0
    %4790 = vmatpush1.bf16.msra.mxu0 %v4419
    %4791 = vmatprep.subr.bf16.mxu0 0
    %4792 = vmatpush1.bf16.msra.mxu0 %v4420
    %4793 = vmatprep.mubr.bf16.mxu0 %v3559
    %4794 = vmatmul.mubr.bf16.gmra.mrb[0].mxu0 %v3558
    %v4795 = vpop.f32.mrb[0].mxu0
    %v4796 = vadd.f32 %v4755, %v4795
    %v4797 = vpop.f32.mrb[0].mxu0
    %v4798 = vpop.f32.mrb[0].mxu0
    %v4799 = vadd.f32 %v4758, %v4798
    %v4800 = vpop.f32.mrb[0].mxu0
    %4801 = vdwg.mxu0
    %4802 = vmatprep.subr.bf16.mxu0 0
    %4803 = vmatpush1.bf16.msra.mxu0 %v4421
    %4804 = vmatprep.subr.bf16.mxu0 0
    %4805 = vmatpush1.bf16.msra.mxu0 %v4422
    %4806 = vmatprep.subr.bf16.mxu0 0
    %4807 = vmatpush1.bf16.msra.mxu0 %v4423
    %4808 = vmatprep.subr.bf16.mxu0 0
    %4809 = vmatpush1.bf16.msra.mxu0 %v4424
    %4810 = vmatprep.subr.bf16.mxu0 0
    %4811 = vmatpush1.bf16.msra.mxu0 %v4425
    %4812 = vmatprep.subr.bf16.mxu0 0
    %4813 = vmatpush1.bf16.msra.mxu0 %v4426
    %4814 = vmatprep.subr.bf16.mxu0 0
    %4815 = vmatpush1.bf16.msra.mxu0 %v4427
    %4816 = vmatprep.subr.bf16.mxu0 0
    %4817 = vmatpush1.bf16.msra.mxu0 %v4428
    %4818 = vmatprep.subr.bf16.mxu0 0
    %4819 = vmatpush1.bf16.msra.mxu0 %v4429
    %4820 = vmatprep.subr.bf16.mxu0 0
    %4821 = vmatpush1.bf16.msra.mxu0 %v4430
    %4822 = vmatprep.subr.bf16.mxu0 0
    %4823 = vmatpush1.bf16.msra.mxu0 %v4431
    %4824 = vmatprep.subr.bf16.mxu0 0
    %4825 = vmatpush1.bf16.msra.mxu0 %v4432
    %4826 = vmatprep.subr.bf16.mxu0 0
    %4827 = vmatpush1.bf16.msra.mxu0 %v4433
    %4828 = vmatprep.subr.bf16.mxu0 0
    %4829 = vmatpush1.bf16.msra.mxu0 %v4434
    %4830 = vmatprep.subr.bf16.mxu0 0
    %4831 = vmatpush1.bf16.msra.mxu0 %v4435
    %4832 = vmatprep.subr.bf16.mxu0 0
    %4833 = vmatpush1.bf16.msra.mxu0 %v4436
    %4834 = vmatprep.mubr.bf16.mxu0 %v3561
    %4835 = vmatmul.mubr.bf16.gmra.mrb[0].mxu0 %v3560
    %v4836 = vpop.f32.mrb[0].mxu0
    %v4837 = vadd.f32 %v4796, %v4836
    %v4838 = vpop.f32.mrb[0].mxu0
    %v4839 = vpop.f32.mrb[0].mxu0
    %v4840 = vadd.f32 %v4799, %v4839
    %v4841 = vpop.f32.mrb[0].mxu0
    %4842 = vdwg.mxu0
    %4843 = vmatprep.subr.bf16.mxu0 0
    %4844 = vmatpush1.bf16.msra.mxu0 %v4437
    %4845 = vmatprep.subr.bf16.mxu0 0
    %4846 = vmatpush1.bf16.msra.mxu0 %v4438
    %4847 = vmatprep.subr.bf16.mxu0 0
    %4848 = vmatpush1.bf16.msra.mxu0 %v4439
    %4849 = vmatprep.subr.bf16.mxu0 0
    %4850 = vmatpush1.bf16.msra.mxu0 %v4440
    %4851 = vmatprep.subr.bf16.mxu0 0
    %4852 = vmatpush1.bf16.msra.mxu0 %v4441
    %4853 = vmatprep.subr.bf16.mxu0 0
    %4854 = vmatpush1.bf16.msra.mxu0 %v4442
    %4855 = vmatprep.subr.bf16.mxu0 0
    %4856 = vmatpush1.bf16.msra.mxu0 %v4443
    %4857 = vmatprep.subr.bf16.mxu0 0
    %4858 = vmatpush1.bf16.msra.mxu0 %v4444
    %4859 = vmatprep.subr.bf16.mxu0 0
    %4860 = vmatpush1.bf16.msra.mxu0 %v4445
    %4861 = vmatprep.subr.bf16.mxu0 0
    %4862 = vmatpush1.bf16.msra.mxu0 %v4446
    %4863 = vmatprep.subr.bf16.mxu0 0
    %4864 = vmatpush1.bf16.msra.mxu0 %v4447
    %4865 = vmatprep.subr.bf16.mxu0 0
    %4866 = vmatpush1.bf16.msra.mxu0 %v4448
    %4867 = vmatprep.subr.bf16.mxu0 0
    %4868 = vmatpush1.bf16.msra.mxu0 %v4449
    %4869 = vmatprep.subr.bf16.mxu0 0
    %4870 = vmatpush1.bf16.msra.mxu0 %v4450
    %4871 = vmatprep.subr.bf16.mxu0 0
    %4872 = vmatpush1.bf16.msra.mxu0 %v4451
    %4873 = vmatprep.subr.bf16.mxu0 0
    %4874 = vmatpush1.bf16.msra.mxu0 %v4452
    %4875 = vmatprep.mubr.bf16.mxu0 %v3563
    %4876 = vmatmul.mubr.bf16.gmra.mrb[0].mxu0 %v3562
    %v4877 = vpop.f32.mrb[0].mxu0
    %v4878 = vadd.f32 %v4837, %v4877
    %v4879 = vpop.f32.mrb[0].mxu0
    %v4880 = vpop.f32.mrb[0].mxu0
    %v4881 = vadd.f32 %v4840, %v4880
    %v4882 = vpop.f32.mrb[0].mxu0
    %4883 = vdwg.mxu0
    %4884 = vmatprep.subr.bf16.mxu0 0
    %4885 = vmatpush1.bf16.msra.mxu0 %v4453
    %4886 = vmatprep.subr.bf16.mxu0 0
    %4887 = vmatpush1.bf16.msra.mxu0 %v4454
    %4888 = vmatprep.subr.bf16.mxu0 0
    %4889 = vmatpush1.bf16.msra.mxu0 %v4455
    %4890 = vmatprep.subr.bf16.mxu0 0
    %4891 = vmatpush1.bf16.msra.mxu0 %v4456
    %4892 = vmatprep.subr.bf16.mxu0 0
    %4893 = vmatpush1.bf16.msra.mxu0 %v4457
    %4894 = vmatprep.subr.bf16.mxu0 0
    %4895 = vmatpush1.bf16.msra.mxu0 %v4458
    %4896 = vmatprep.subr.bf16.mxu0 0
    %4897 = vmatpush1.bf16.msra.mxu0 %v4459
    %4898 = vmatprep.subr.bf16.mxu0 0
    %4899 = vmatpush1.bf16.msra.mxu0 %v4460
    %4900 = vmatprep.subr.bf16.mxu0 0
    %4901 = vmatpush1.bf16.msra.mxu0 %v4461
    %4902 = vmatprep.subr.bf16.mxu0 0
    %4903 = vmatpush1.bf16.msra.mxu0 %v4462
    %4904 = vmatprep.subr.bf16.mxu0 0
    %4905 = vmatpush1.bf16.msra.mxu0 %v4463
    %4906 = vmatprep.subr.bf16.mxu0 0
    %4907 = vmatpush1.bf16.msra.mxu0 %v4464
    %4908 = vmatprep.subr.bf16.mxu0 0
    %4909 = vmatpush1.bf16.msra.mxu0 %v4465
    %4910 = vmatprep.subr.bf16.mxu0 0
    %4911 = vmatpush1.bf16.msra.mxu0 %v4466
    %4912 = vmatprep.subr.bf16.mxu0 0
    %4913 = vmatpush1.bf16.msra.mxu0 %v4467
    %4914 = vmatprep.subr.bf16.mxu0 0
    %4915 = vmatpush1.bf16.msra.mxu0 %v4468
    %4916 = vmatprep.mubr.bf16.mxu0 %v3565
    %4917 = vmatmul.mubr.bf16.gmra.mrb[0].mxu0 %v3564
    %v4918 = vpop.f32.mrb[0].mxu0
    %v4919 = vadd.f32 %v4878, %v4918
    %v4920 = vpop.f32.mrb[0].mxu0
    %v4921 = vpop.f32.mrb[0].mxu0
    %v4922 = vadd.f32 %v4881, %v4921
    %v4923 = vpop.f32.mrb[0].mxu0
    %4924 = vdwg.mxu0
    %v4925 = vadd.f32 %v2892, %v4919
    %v4926 = vadd.f32 %v2893, %v4922
    %v4927 = vsel %vm366, %v4925, 0.0
    %4928 = vadd.xlane.f32.xlu0 %v4927
    %v4929 = vpop.xlane.xlu0 %4928
    %v4930 = vsel %vm366, %v4926, 0.0
    %4931 = vadd.xlane.f32.xlu0 %v4930
    %v4932 = vpop.xlane.xlu0 %4931
    %v4933 = vmul.f32 %v4929, %v548
    %v4934 = vmul.f32 %v4932, %v548
    %v4935 = vsub.f32 %v4925, %v4933
    %v4936 = vsub.f32 %v4926, %v4934
    %v4937 = vmul.f32 %v4935, %v4935
    %v4938 = vmul.f32 %v4936, %v4936
    %v4939 = vsel %vm366, %v4937, 0.0
    %4940 = vadd.xlane.f32.xlu0 %v4939
    %v4941 = vpop.xlane.xlu0 %4940
    %v4942 = vsel %vm366, %v4938, 0.0
    %4943 = vadd.xlane.f32.xlu0 %v4942
    %v4944 = vpop.xlane.xlu0 %4943
    %v4945 = vmul.f32 %v4941, %v548
    %v4946 = vmul.f32 %v4944, %v548
    %v4947 = vadd.f32 %v4945, 1e-05
    %v4948 = vadd.f32 %v4946, 1e-05
    %v4949 = vrsqrt.pop %v4947
    %v4950 = vrsqrt.pop %v4948
    %v4951 = vmul.f32 %v4935, %v4949
    %v4952 = vmul.f32 %v4936, %v4950
    %v4953 = vld [vmem:[%s49] sm:$0x1]
    %v4955 = vlaneseq
    %v4956 = vshrl.u32 %v4955, 7
    %v4957 = vsub.s32 0, %v4956
    %v4958 = vrot.slane %v4953, %v4957
    %v4960 = vmul.f32 %v4951, %v4958
    %v4961 = vmul.f32 %v4952, %v4958
    %v4962 = vld [vmem:[%s47] sm:$0x1]
    %v4964 = vlaneseq
    %v4965 = vshrl.u32 %v4964, 7
    %v4966 = vsub.s32 0, %v4965
    %v4967 = vrot.slane %v4962, %v4966
    %v4969 = vadd.f32 %v4960, %v4967
    %v4970 = vadd.f32 %v4961, %v4967
    %v4971 = vld [vmem:[%s9] sm:$0xff]
    %v4972 = vld [vmem:[%s9 + $0x8] sm:$0xff]
    %v4973 = vld [vmem:[%s9 + $0x10] sm:$0xff]
    %v4974 = vld [vmem:[%s9 + $0x18] sm:$0xff]
    %v4975 = vld [vmem:[%s7] sm:$0x1]
    %v4977 = vlaneseq
    %v4978 = vshrl.u32 %v4977, 7
    %v4979 = vsub.s32 0, %v4978
    %v4980 = vrot.slane %v4975, %v4979
    %v4983 = vsel %vm366, %v4969, 0
    %v4986 = vsel %vm366, %v4970, 0
    %4988 = vmatprep.subr.mxu0 0.0
    %4989 = vmatpush1.msra.mxu0 %v4971
    %4990 = vmatprep.subr.mxu0 0.0
    %4991 = vmatpush1.msra.mxu0 %v4972
    %4992 = vmatprep.subr.mxu0 0.0
    %4993 = vmatpush1.msra.mxu0 %v4973
    %4994 = vmatprep.subr.mxu0 0.0
    %4995 = vmatpush1.msra.mxu0 %v4974
    %4996 = vmatprep.subr.mxu0 0.0
    %4997 = vmatpush1.msra.mxu0 0.0
    %4998 = vmatprep.subr.mxu0 0.0
    %4999 = vmatpush1.msra.mxu0 0.0
    %5000 = vmatprep.subr.mxu0 0.0
    %5001 = vmatpush1.msra.mxu0 0.0
    %5002 = vmatprep.subr.mxu0 0.0
    %5003 = vmatpush1.msra.mxu0 0.0
    %5004 = vmatprep.subr.mxu0 0.0
    %5005 = vmatpush1.msra.mxu0 0.0
    %5006 = vmatprep.subr.mxu0 0.0
    %5007 = vmatpush1.msra.mxu0 0.0
    %5008 = vmatprep.subr.mxu0 0.0
    %5009 = vmatpush1.msra.mxu0 0.0
    %5010 = vmatprep.subr.mxu0 0.0
    %5011 = vmatpush1.msra.mxu0 0.0
    %5012 = vmatprep.subr.mxu0 0.0
    %5013 = vmatpush1.msra.mxu0 0.0
    %5014 = vmatprep.subr.mxu0 0.0
    %5015 = vmatpush1.msra.mxu0 0.0
    %5016 = vmatprep.subr.mxu0 0.0
    %5017 = vmatpush1.msra.mxu0 0.0
    %5018 = vmatprep.subr.mxu0 0.0
    %5019 = vmatpush1.msra.mxu0 0.0
    %5020 = vmatprep.subr.mxu0 0.0
    %5021 = vmatpush1.msra.mxu0 0.0
    %5022 = vmatprep.subr.mxu0 0.0
    %5023 = vmatpush1.msra.mxu0 0.0
    %5024 = vmatprep.subr.mxu0 0.0
    %5025 = vmatpush1.msra.mxu0 0.0
    %5026 = vmatprep.subr.mxu0 0.0
    %5027 = vmatpush1.msra.mxu0 0.0
    %5028 = vmatprep.subr.mxu0 0.0
    %5029 = vmatpush1.msra.mxu0 0.0
    %5030 = vmatprep.subr.mxu0 0.0
    %5031 = vmatpush1.msra.mxu0 0.0
    %5032 = vmatprep.subr.mxu0 0.0
    %5033 = vmatpush1.msra.mxu0 0.0
    %5034 = vmatprep.subr.mxu0 0.0
    %5035 = vmatpush1.msra.mxu0 0.0
    %5036 = vmatprep.subr.mxu0 0.0
    %5037 = vmatpush1.msra.mxu0 0.0
    %5038 = vmatprep.subr.mxu0 0.0
    %5039 = vmatpush1.msra.mxu0 0.0
    %5040 = vmatprep.subr.mxu0 0.0
    %5041 = vmatpush1.msra.mxu0 0.0
    %5042 = vmatprep.subr.mxu0 0.0
    %5043 = vmatpush1.msra.mxu0 0.0
    %5044 = vmatprep.subr.mxu0 0.0
    %5045 = vmatpush1.msra.mxu0 0.0
    %5046 = vmatprep.subr.mxu0 0.0
    %5047 = vmatpush1.msra.mxu0 0.0
    %5048 = vmatprep.subr.mxu0 0.0
    %5049 = vmatpush1.msra.mxu0 0.0
    %5050 = vmatprep.subr.mxu0 0.0
    %5051 = vmatpush1.msra.mxu0 0.0
    %5052 = vmatprep.mubr.f32.mxu0 0.0
    %5053 = vmatmul.mubr.f32.gmra.mrb[0].mxu0 %v4983
    %v5054 = vpop.f32.mrb[0].mxu0
    %v5055 = vadd.f32 %v4980, %v5054
    %v5056 = vpop.f32.mrb[0].mxu0
    %5057 = vmatprep.mubr.f32.mxu0 0.0
    %5058 = vmatmul.mubr.f32.gmra.mrb[0].mxu0 %v4986
    %v5059 = vpop.f32.mrb[0].mxu0
    %v5060 = vadd.f32 %v4980, %v5059
    %v5061 = vpop.f32.mrb[0].mxu0
    %5062 = vdwg.mxu0
    %v5063 = vld [vmem:[%s89] sm:$0xff]
    %v5064 = vld [vmem:[%s89 + $0x8] sm:$0xff]
    %v5065 = vld [vmem:[%s89 + $0x10] sm:$0xff]
    %v5066 = vld [vmem:[%s89 + $0x18] sm:$0xff]
    %v5067 = vld [vmem:[#allocation7] sm:$0x1]
    %v5069 = vlaneseq
    %v5070 = vshrl.u32 %v5069, 7
    %v5071 = vsub.s32 0, %v5070
    %v5072 = vrot.slane %v5067, %v5071
    %v5075 = vsel %vm366, %v5055, 0
    %5077 = vmatprep.subr.mxu0 0.0
    %5078 = vmatpush1.msra.mxu0 %v5063
    %5079 = vmatprep.subr.mxu0 0.0
    %5080 = vmatpush1.msra.mxu0 %v5064
    %5081 = vmatprep.subr.mxu0 0.0
    %5082 = vmatpush1.msra.mxu0 %v5065
    %5083 = vmatprep.subr.mxu0 0.0
    %5084 = vmatpush1.msra.mxu0 %v5066
    %5085 = vmatprep.subr.mxu0 0.0
    %5086 = vmatpush1.msra.mxu0 0.0
    %5087 = vmatprep.subr.mxu0 0.0
    %5088 = vmatpush1.msra.mxu0 0.0
    %5089 = vmatprep.subr.mxu0 0.0
    %5090 = vmatpush1.msra.mxu0 0.0
    %5091 = vmatprep.subr.mxu0 0.0
    %5092 = vmatpush1.msra.mxu0 0.0
    %5093 = vmatprep.subr.mxu0 0.0
    %5094 = vmatpush1.msra.mxu0 0.0
    %5095 = vmatprep.subr.mxu0 0.0
    %5096 = vmatpush1.msra.mxu0 0.0
    %5097 = vmatprep.subr.mxu0 0.0
    %5098 = vmatpush1.msra.mxu0 0.0
    %5099 = vmatprep.subr.mxu0 0.0
    %5100 = vmatpush1.msra.mxu0 0.0
    %5101 = vmatprep.subr.mxu0 0.0
    %5102 = vmatpush1.msra.mxu0 0.0
    %5103 = vmatprep.subr.mxu0 0.0
    %5104 = vmatpush1.msra.mxu0 0.0
    %5105 = vmatprep.subr.mxu0 0.0
    %5106 = vmatpush1.msra.mxu0 0.0
    %5107 = vmatprep.subr.mxu0 0.0
    %5108 = vmatpush1.msra.mxu0 0.0
    %5109 = vmatprep.subr.mxu0 0.0
    %5110 = vmatpush1.msra.mxu0 0.0
    %5111 = vmatprep.subr.mxu0 0.0
    %5112 = vmatpush1.msra.mxu0 0.0
    %5113 = vmatprep.subr.mxu0 0.0
    %5114 = vmatpush1.msra.mxu0 0.0
    %5115 = vmatprep.subr.mxu0 0.0
    %5116 = vmatpush1.msra.mxu0 0.0
    %5117 = vmatprep.subr.mxu0 0.0
    %5118 = vmatpush1.msra.mxu0 0.0
    %5119 = vmatprep.subr.mxu0 0.0
    %5120 = vmatpush1.msra.mxu0 0.0
    %5121 = vmatprep.subr.mxu0 0.0
    %5122 = vmatpush1.msra.mxu0 0.0
    %5123 = vmatprep.subr.mxu0 0.0
    %5124 = vmatpush1.msra.mxu0 0.0
    %5125 = vmatprep.subr.mxu0 0.0
    %5126 = vmatpush1.msra.mxu0 0.0
    %5127 = vmatprep.subr.mxu0 0.0
    %5128 = vmatpush1.msra.mxu0 0.0
    %5129 = vmatprep.subr.mxu0 0.0
    %5130 = vmatpush1.msra.mxu0 0.0
    %5131 = vmatprep.subr.mxu0 0.0
    %5132 = vmatpush1.msra.mxu0 0.0
    %5133 = vmatprep.subr.mxu0 0.0
    %5134 = vmatpush1.msra.mxu0 0.0
    %5135 = vmatprep.subr.mxu0 0.0
    %5136 = vmatpush1.msra.mxu0 0.0
    %5137 = vmatprep.subr.mxu0 0.0
    %5138 = vmatpush1.msra.mxu0 0.0
    %5139 = vmatprep.subr.mxu0 0.0
    %5140 = vmatpush1.msra.mxu0 0.0
    %5141 = vmatprep.mubr.f32.mxu0 0.0
    %5142 = vmatmul.mubr.f32.gmra.mrb[0].mxu0 %v5075
    %v5143 = vpop.f32.mrb[0].mxu0
    %v5144 = vadd.f32 %v5072, %v5143
    %v5145 = vpop.f32.mrb[0].mxu0
    %5146 = vdwg.mxu0
    %v5147 = vsel %vm366, %v5144, 0.0
    %v5148 = vrot.slane %v5147, 4
    %v5149 = vadd.f32 %v5147, %v5148
    %v5150 = vrot.slane %v5149, 2
    %v5151 = vadd.f32 %v5149, %v5150
    %v5152 = vrot.slane %v5151, 1
    %v5153 = vadd.f32 %v5151, %v5152
    %v5154 = vrcp.pop 8.0
    %v5155 = vmul.f32 %v5153, %v5154
    %v5156 = vsub.f32 %v5144, %v5155
    %v5157 = vmul.f32 %v5156, %v5156
    %v5158 = vsel %vm366, %v5157, 0.0
    %v5159 = vrot.slane %v5158, 4
    %v5160 = vadd.f32 %v5158, %v5159
    %v5161 = vrot.slane %v5160, 2
    %v5162 = vadd.f32 %v5160, %v5161
    %v5163 = vrot.slane %v5162, 1
    %v5164 = vadd.f32 %v5162, %v5163
    %v5165 = vmul.f32 %v5164, %v5154
    %v5166 = vadd.f32 %v5165, 1e-05
    %v5167 = vrsqrt.pop %v5166
    %v5168 = vmul.f32 %v5156, %v5167
    %v5169 = vld [vmem:[%s81] sm:$0x1]
    %v5171 = vlaneseq
    %v5172 = vshrl.u32 %v5171, 7
    %v5173 = vsub.s32 0, %v5172
    %v5174 = vrot.slane %v5169, %v5173
    %v5176 = vmul.f32 %v5168, %v5174
    %v5177 = vld [vmem:[%s79] sm:$0x1]
    %v5179 = vlaneseq
    %v5180 = vshrl.u32 %v5179, 7
    %v5181 = vsub.s32 0, %v5180
    %v5182 = vrot.slane %v5177, %v5181
    %v5184 = vadd.f32 %v5176, %v5182
    %v5185 = vmax.f32 %v5184, 0.0
    %v5186 = vld [vmem:[%s93] sm:$0xff]
    %v5187 = vld [vmem:[%s93 + $0x8] sm:$0xff]
    %v5188 = vld [vmem:[%s93 + $0x10] sm:$0xff]
    %v5189 = vld [vmem:[%s93 + $0x18] sm:$0xff]
    %v5190 = vld [vmem:[#allocation8] sm:$0x1]
    %v5192 = vlaneseq
    %v5193 = vshrl.u32 %v5192, 7
    %v5194 = vsub.s32 0, %v5193
    %v5195 = vrot.slane %v5190, %v5194
    %v5198 = vsel %vm366, %v5185, 0
    %5200 = vmatprep.subr.mxu0 0.0
    %5201 = vmatpush1.msra.mxu0 %v5186
    %5202 = vmatprep.subr.mxu0 0.0
    %5203 = vmatpush1.msra.mxu0 %v5187
    %5204 = vmatprep.subr.mxu0 0.0
    %5205 = vmatpush1.msra.mxu0 %v5188
    %5206 = vmatprep.subr.mxu0 0.0
    %5207 = vmatpush1.msra.mxu0 %v5189
    %5208 = vmatprep.subr.mxu0 0.0
    %5209 = vmatpush1.msra.mxu0 0.0
    %5210 = vmatprep.subr.mxu0 0.0
    %5211 = vmatpush1.msra.mxu0 0.0
    %5212 = vmatprep.subr.mxu0 0.0
    %5213 = vmatpush1.msra.mxu0 0.0
    %5214 = vmatprep.subr.mxu0 0.0
    %5215 = vmatpush1.msra.mxu0 0.0
    %5216 = vmatprep.subr.mxu0 0.0
    %5217 = vmatpush1.msra.mxu0 0.0
    %5218 = vmatprep.subr.mxu0 0.0
    %5219 = vmatpush1.msra.mxu0 0.0
    %5220 = vmatprep.subr.mxu0 0.0
    %5221 = vmatpush1.msra.mxu0 0.0
    %5222 = vmatprep.subr.mxu0 0.0
    %5223 = vmatpush1.msra.mxu0 0.0
    %5224 = vmatprep.subr.mxu0 0.0
    %5225 = vmatpush1.msra.mxu0 0.0
    %5226 = vmatprep.subr.mxu0 0.0
    %5227 = vmatpush1.msra.mxu0 0.0
    %5228 = vmatprep.subr.mxu0 0.0
    %5229 = vmatpush1.msra.mxu0 0.0
    %5230 = vmatprep.subr.mxu0 0.0
    %5231 = vmatpush1.msra.mxu0 0.0
    %5232 = vmatprep.subr.mxu0 0.0
    %5233 = vmatpush1.msra.mxu0 0.0
    %5234 = vmatprep.subr.mxu0 0.0
    %5235 = vmatpush1.msra.mxu0 0.0
    %5236 = vmatprep.subr.mxu0 0.0
    %5237 = vmatpush1.msra.mxu0 0.0
    %5238 = vmatprep.subr.mxu0 0.0
    %5239 = vmatpush1.msra.mxu0 0.0
    %5240 = vmatprep.subr.mxu0 0.0
    %5241 = vmatpush1.msra.mxu0 0.0
    %5242 = vmatprep.subr.mxu0 0.0
    %5243 = vmatpush1.msra.mxu0 0.0
    %5244 = vmatprep.subr.mxu0 0.0
    %5245 = vmatpush1.msra.mxu0 0.0
    %5246 = vmatprep.subr.mxu0 0.0
    %5247 = vmatpush1.msra.mxu0 0.0
    %5248 = vmatprep.subr.mxu0 0.0
    %5249 = vmatpush1.msra.mxu0 0.0
    %5250 = vmatprep.subr.mxu0 0.0
    %5251 = vmatpush1.msra.mxu0 0.0
    %5252 = vmatprep.subr.mxu0 0.0
    %5253 = vmatpush1.msra.mxu0 0.0
    %5254 = vmatprep.subr.mxu0 0.0
    %5255 = vmatpush1.msra.mxu0 0.0
    %5256 = vmatprep.subr.mxu0 0.0
    %5257 = vmatpush1.msra.mxu0 0.0
    %5258 = vmatprep.subr.mxu0 0.0
    %5259 = vmatpush1.msra.mxu0 0.0
    %5260 = vmatprep.subr.mxu0 0.0
    %5261 = vmatpush1.msra.mxu0 0.0
    %5262 = vmatprep.subr.mxu0 0.0
    %5263 = vmatpush1.msra.mxu0 0.0
    %5264 = vmatprep.mubr.f32.mxu0 0.0
    %5265 = vmatmul.mubr.f32.gmra.mrb[0].mxu0 %v5198
    %v5266 = vpop.f32.mrb[0].mxu0
    %v5267 = vadd.f32 %v5195, %v5266
    %v5268 = vpop.f32.mrb[0].mxu0
    %5269 = vdwg.mxu0
    %v5270 = vsel %vm366, %v5267, 0.0
    %v5271 = vrot.slane %v5270, 4
    %v5272 = vadd.f32 %v5270, %v5271
    %v5273 = vrot.slane %v5272, 2
    %v5274 = vadd.f32 %v5272, %v5273
    %v5275 = vrot.slane %v5274, 1
    %v5276 = vadd.f32 %v5274, %v5275
    %v5277 = vmul.f32 %v5276, %v5154
    %v5278 = vsub.f32 %v5267, %v5277
    %v5279 = vmul.f32 %v5278, %v5278
    %v5280 = vsel %vm366, %v5279, 0.0
    %v5281 = vrot.slane %v5280, 4
    %v5282 = vadd.f32 %v5280, %v5281
    %v5283 = vrot.slane %v5282, 2
    %v5284 = vadd.f32 %v5282, %v5283
    %v5285 = vrot.slane %v5284, 1
    %v5286 = vadd.f32 %v5284, %v5285
    %v5287 = vmul.f32 %v5286, %v5154
    %v5288 = vadd.f32 %v5287, 1e-05
    %v5289 = vrsqrt.pop %v5288
    %v5290 = vmul.f32 %v5278, %v5289
    %v5291 = vld [vmem:[#allocation5] sm:$0x1]
    %v5293 = vlaneseq
    %v5294 = vshrl.u32 %v5293, 7
    %v5295 = vsub.s32 0, %v5294
    %v5296 = vrot.slane %v5291, %v5295
    %v5298 = vmul.f32 %v5290, %v5296
    %v5299 = vld [vmem:[#allocation2] sm:$0x1]
    %v5301 = vlaneseq
    %v5302 = vshrl.u32 %v5301, 7
    %v5303 = vsub.s32 0, %v5302
    %v5304 = vrot.slane %v5299, %v5303
    %v5306 = vadd.f32 %v5298, %v5304
    %v5307 = vmax.f32 %v5306, 0.0
    %v5308 = vld [vmem:[%s97] sm:$0xff]
    %v5309 = vld [vmem:[%s97 + $0x8] sm:$0xff]
    %v5310 = vld [vmem:[%s97 + $0x10] sm:$0xff]
    %v5311 = vld [vmem:[%s97 + $0x18] sm:$0xff]
    %v5312 = vld [vmem:[#allocation10] sm:$0x1]
    %v5314 = vlaneseq
    %v5315 = vshrl.u32 %v5314, 7
    %v5316 = vsub.s32 0, %v5315
    %v5317 = vrot.slane %v5312, %v5316
    %v5320 = vsel %vm366, %v5307, 0
    %5322 = vmatprep.subr.mxu0 0.0
    %5323 = vmatpush1.msra.mxu0 %v5308
    %5324 = vmatprep.subr.mxu0 0.0
    %5325 = vmatpush1.msra.mxu0 %v5309
    %5326 = vmatprep.subr.mxu0 0.0
    %5327 = vmatpush1.msra.mxu0 %v5310
    %5328 = vmatprep.subr.mxu0 0.0
    %5329 = vmatpush1.msra.mxu0 %v5311
    %5330 = vmatprep.subr.mxu0 0.0
    %5331 = vmatpush1.msra.mxu0 0.0
    %5332 = vmatprep.subr.mxu0 0.0
    %5333 = vmatpush1.msra.mxu0 0.0
    %5334 = vmatprep.subr.mxu0 0.0
    %5335 = vmatpush1.msra.mxu0 0.0
    %5336 = vmatprep.subr.mxu0 0.0
    %5337 = vmatpush1.msra.mxu0 0.0
    %5338 = vmatprep.subr.mxu0 0.0
    %5339 = vmatpush1.msra.mxu0 0.0
    %5340 = vmatprep.subr.mxu0 0.0
    %5341 = vmatpush1.msra.mxu0 0.0
    %5342 = vmatprep.subr.mxu0 0.0
    %5343 = vmatpush1.msra.mxu0 0.0
    %5344 = vmatprep.subr.mxu0 0.0
    %5345 = vmatpush1.msra.mxu0 0.0
    %5346 = vmatprep.subr.mxu0 0.0
    %5347 = vmatpush1.msra.mxu0 0.0
    %5348 = vmatprep.subr.mxu0 0.0
    %5349 = vmatpush1.msra.mxu0 0.0
    %5350 = vmatprep.subr.mxu0 0.0
    %5351 = vmatpush1.msra.mxu0 0.0
    %5352 = vmatprep.subr.mxu0 0.0
    %5353 = vmatpush1.msra.mxu0 0.0
    %5354 = vmatprep.subr.mxu0 0.0
    %5355 = vmatpush1.msra.mxu0 0.0
    %5356 = vmatprep.subr.mxu0 0.0
    %5357 = vmatpush1.msra.mxu0 0.0
    %5358 = vmatprep.subr.mxu0 0.0
    %5359 = vmatpush1.msra.mxu0 0.0
    %5360 = vmatprep.subr.mxu0 0.0
    %5361 = vmatpush1.msra.mxu0 0.0
    %5362 = vmatprep.subr.mxu0 0.0
    %5363 = vmatpush1.msra.mxu0 0.0
    %5364 = vmatprep.subr.mxu0 0.0
    %5365 = vmatpush1.msra.mxu0 0.0
    %5366 = vmatprep.subr.mxu0 0.0
    %5367 = vmatpush1.msra.mxu0 0.0
    %5368 = vmatprep.subr.mxu0 0.0
    %5369 = vmatpush1.msra.mxu0 0.0
    %5370 = vmatprep.subr.mxu0 0.0
    %5371 = vmatpush1.msra.mxu0 0.0
    %5372 = vmatprep.subr.mxu0 0.0
    %5373 = vmatpush1.msra.mxu0 0.0
    %5374 = vmatprep.subr.mxu0 0.0
    %5375 = vmatpush1.msra.mxu0 0.0
    %5376 = vmatprep.subr.mxu0 0.0
    %5377 = vmatpush1.msra.mxu0 0.0
    %5378 = vmatprep.subr.mxu0 0.0
    %5379 = vmatpush1.msra.mxu0 0.0
    %5380 = vmatprep.subr.mxu0 0.0
    %5381 = vmatpush1.msra.mxu0 0.0
    %5382 = vmatprep.subr.mxu0 0.0
    %5383 = vmatpush1.msra.mxu0 0.0
    %5384 = vmatprep.subr.mxu0 0.0
    %5385 = vmatpush1.msra.mxu0 0.0
    %5386 = vmatprep.mubr.f32.mxu0 0.0
    %5387 = vmatmul.mubr.f32.gmra.mrb[0].mxu0 %v5320
    %v5388 = vpop.f32.mrb[0].mxu0
    %v5389 = vadd.f32 %v5317, %v5388
    %v5390 = vpop.f32.mrb[0].mxu0
    %5391 = vdwg.mxu0
    %v5393 = vsel %vm366, %v5060, 0
    %5395 = vmatprep.subr.mxu0 0.0
    %5396 = vmatpush1.msra.mxu0 %v5063
    %5397 = vmatprep.subr.mxu0 0.0
    %5398 = vmatpush1.msra.mxu0 %v5064
    %5399 = vmatprep.subr.mxu0 0.0
    %5400 = vmatpush1.msra.mxu0 %v5065
    %5401 = vmatprep.subr.mxu0 0.0
    %5402 = vmatpush1.msra.mxu0 %v5066
    %5403 = vmatprep.subr.mxu0 0.0
    %5404 = vmatpush1.msra.mxu0 0.0
    %5405 = vmatprep.subr.mxu0 0.0
    %5406 = vmatpush1.msra.mxu0 0.0
    %5407 = vmatprep.subr.mxu0 0.0
    %5408 = vmatpush1.msra.mxu0 0.0
    %5409 = vmatprep.subr.mxu0 0.0
    %5410 = vmatpush1.msra.mxu0 0.0
    %5411 = vmatprep.subr.mxu0 0.0
    %5412 = vmatpush1.msra.mxu0 0.0
    %5413 = vmatprep.subr.mxu0 0.0
    %5414 = vmatpush1.msra.mxu0 0.0
    %5415 = vmatprep.subr.mxu0 0.0
    %5416 = vmatpush1.msra.mxu0 0.0
    %5417 = vmatprep.subr.mxu0 0.0
    %5418 = vmatpush1.msra.mxu0 0.0
    %5419 = vmatprep.subr.mxu0 0.0
    %5420 = vmatpush1.msra.mxu0 0.0
    %5421 = vmatprep.subr.mxu0 0.0
    %5422 = vmatpush1.msra.mxu0 0.0
    %5423 = vmatprep.subr.mxu0 0.0
    %5424 = vmatpush1.msra.mxu0 0.0
    %5425 = vmatprep.subr.mxu0 0.0
    %5426 = vmatpush1.msra.mxu0 0.0
    %5427 = vmatprep.subr.mxu0 0.0
    %5428 = vmatpush1.msra.mxu0 0.0
    %5429 = vmatprep.subr.mxu0 0.0
    %5430 = vmatpush1.msra.mxu0 0.0
    %5431 = vmatprep.subr.mxu0 0.0
    %5432 = vmatpush1.msra.mxu0 0.0
    %5433 = vmatprep.subr.mxu0 0.0
    %5434 = vmatpush1.msra.mxu0 0.0
    %5435 = vmatprep.subr.mxu0 0.0
    %5436 = vmatpush1.msra.mxu0 0.0
    %5437 = vmatprep.subr.mxu0 0.0
    %5438 = vmatpush1.msra.mxu0 0.0
    %5439 = vmatprep.subr.mxu0 0.0
    %5440 = vmatpush1.msra.mxu0 0.0
    %5441 = vmatprep.subr.mxu0 0.0
    %5442 = vmatpush1.msra.mxu0 0.0
    %5443 = vmatprep.subr.mxu0 0.0
    %5444 = vmatpush1.msra.mxu0 0.0
    %5445 = vmatprep.subr.mxu0 0.0
    %5446 = vmatpush1.msra.mxu0 0.0
    %5447 = vmatprep.subr.mxu0 0.0
    %5448 = vmatpush1.msra.mxu0 0.0
    %5449 = vmatprep.subr.mxu0 0.0
    %5450 = vmatpush1.msra.mxu0 0.0
    %5451 = vmatprep.subr.mxu0 0.0
    %5452 = vmatpush1.msra.mxu0 0.0
    %5453 = vmatprep.subr.mxu0 0.0
    %5454 = vmatpush1.msra.mxu0 0.0
    %5455 = vmatprep.subr.mxu0 0.0
    %5456 = vmatpush1.msra.mxu0 0.0
    %5457 = vmatprep.subr.mxu0 0.0
    %5458 = vmatpush1.msra.mxu0 0.0
    %5459 = vmatprep.mubr.f32.mxu0 0.0
    %5460 = vmatmul.mubr.f32.gmra.mrb[0].mxu0 %v5393
    %v5461 = vpop.f32.mrb[0].mxu0
    %v5462 = vadd.f32 %v5072, %v5461
    %v5463 = vpop.f32.mrb[0].mxu0
    %5464 = vdwg.mxu0
    %v5465 = vsel %vm366, %v5462, 0.0
    %v5466 = vrot.slane %v5465, 4
    %v5467 = vadd.f32 %v5465, %v5466
    %v5468 = vrot.slane %v5467, 2
    %v5469 = vadd.f32 %v5467, %v5468
    %v5470 = vrot.slane %v5469, 1
    %v5471 = vadd.f32 %v5469, %v5470
    %v5472 = vmul.f32 %v5471, %v5154
    %v5473 = vsub.f32 %v5462, %v5472
    %v5474 = vmul.f32 %v5473, %v5473
    %v5475 = vsel %vm366, %v5474, 0.0
    %v5476 = vrot.slane %v5475, 4
    %v5477 = vadd.f32 %v5475, %v5476
    %v5478 = vrot.slane %v5477, 2
    %v5479 = vadd.f32 %v5477, %v5478
    %v5480 = vrot.slane %v5479, 1
    %v5481 = vadd.f32 %v5479, %v5480
    %v5482 = vmul.f32 %v5481, %v5154
    %v5483 = vadd.f32 %v5482, 1e-05
    %v5484 = vrsqrt.pop %v5483
    %v5485 = vmul.f32 %v5473, %v5484
    %v5486 = vmul.f32 %v5485, %v5174
    %v5487 = vadd.f32 %v5486, %v5182
    %v5488 = vmax.f32 %v5487, 0.0
    %v5490 = vsel %vm366, %v5488, 0
    %5492 = vmatprep.subr.mxu0 0.0
    %5493 = vmatpush1.msra.mxu0 %v5186
    %5494 = vmatprep.subr.mxu0 0.0
    %5495 = vmatpush1.msra.mxu0 %v5187
    %5496 = vmatprep.subr.mxu0 0.0
    %5497 = vmatpush1.msra.mxu0 %v5188
    %5498 = vmatprep.subr.mxu0 0.0
    %5499 = vmatpush1.msra.mxu0 %v5189
    %5500 = vmatprep.subr.mxu0 0.0
    %5501 = vmatpush1.msra.mxu0 0.0
    %5502 = vmatprep.subr.mxu0 0.0
    %5503 = vmatpush1.msra.mxu0 0.0
    %5504 = vmatprep.subr.mxu0 0.0
    %5505 = vmatpush1.msra.mxu0 0.0
    %5506 = vmatprep.subr.mxu0 0.0
    %5507 = vmatpush1.msra.mxu0 0.0
    %5508 = vmatprep.subr.mxu0 0.0
    %5509 = vmatpush1.msra.mxu0 0.0
    %5510 = vmatprep.subr.mxu0 0.0
    %5511 = vmatpush1.msra.mxu0 0.0
    %5512 = vmatprep.subr.mxu0 0.0
    %5513 = vmatpush1.msra.mxu0 0.0
    %5514 = vmatprep.subr.mxu0 0.0
    %5515 = vmatpush1.msra.mxu0 0.0
    %5516 = vmatprep.subr.mxu0 0.0
    %5517 = vmatpush1.msra.mxu0 0.0
    %5518 = vmatprep.subr.mxu0 0.0
    %5519 = vmatpush1.msra.mxu0 0.0
    %5520 = vmatprep.subr.mxu0 0.0
    %5521 = vmatpush1.msra.mxu0 0.0
    %5522 = vmatprep.subr.mxu0 0.0
    %5523 = vmatpush1.msra.mxu0 0.0
    %5524 = vmatprep.subr.mxu0 0.0
    %5525 = vmatpush1.msra.mxu0 0.0
    %5526 = vmatprep.subr.mxu0 0.0
    %5527 = vmatpush1.msra.mxu0 0.0
    %5528 = vmatprep.subr.mxu0 0.0
    %5529 = vmatpush1.msra.mxu0 0.0
    %5530 = vmatprep.subr.mxu0 0.0
    %5531 = vmatpush1.msra.mxu0 0.0
    %5532 = vmatprep.subr.mxu0 0.0
    %5533 = vmatpush1.msra.mxu0 0.0
    %5534 = vmatprep.subr.mxu0 0.0
    %5535 = vmatpush1.msra.mxu0 0.0
    %5536 = vmatprep.subr.mxu0 0.0
    %5537 = vmatpush1.msra.mxu0 0.0
    %5538 = vmatprep.subr.mxu0 0.0
    %5539 = vmatpush1.msra.mxu0 0.0
    %5540 = vmatprep.subr.mxu0 0.0
    %5541 = vmatpush1.msra.mxu0 0.0
    %5542 = vmatprep.subr.mxu0 0.0
    %5543 = vmatpush1.msra.mxu0 0.0
    %5544 = vmatprep.subr.mxu0 0.0
    %5545 = vmatpush1.msra.mxu0 0.0
    %5546 = vmatprep.subr.mxu0 0.0
    %5547 = vmatpush1.msra.mxu0 0.0
    %5548 = vmatprep.subr.mxu0 0.0
    %5549 = vmatpush1.msra.mxu0 0.0
    %5550 = vmatprep.subr.mxu0 0.0
    %5551 = vmatpush1.msra.mxu0 0.0
    %5552 = vmatprep.subr.mxu0 0.0
    %5553 = vmatpush1.msra.mxu0 0.0
    %5554 = vmatprep.subr.mxu0 0.0
    %5555 = vmatpush1.msra.mxu0 0.0
    %5556 = vmatprep.mubr.f32.mxu0 0.0
    %5557 = vmatmul.mubr.f32.gmra.mrb[0].mxu0 %v5490
    %v5558 = vpop.f32.mrb[0].mxu0
    %v5559 = vadd.f32 %v5195, %v5558
    %v5560 = vpop.f32.mrb[0].mxu0
    %5561 = vdwg.mxu0
    %v5562 = vsel %vm366, %v5559, 0.0
    %v5563 = vrot.slane %v5562, 4
    %v5564 = vadd.f32 %v5562, %v5563
    %v5565 = vrot.slane %v5564, 2
    %v5566 = vadd.f32 %v5564, %v5565
    %v5567 = vrot.slane %v5566, 1
    %v5568 = vadd.f32 %v5566, %v5567
    %v5569 = vmul.f32 %v5568, %v5154
    %v5570 = vsub.f32 %v5559, %v5569
    %v5571 = vmul.f32 %v5570, %v5570
    %v5572 = vsel %vm366, %v5571, 0.0
    %v5573 = vrot.slane %v5572, 4
    %v5574 = vadd.f32 %v5572, %v5573
    %v5575 = vrot.slane %v5574, 2
    %v5576 = vadd.f32 %v5574, %v5575
    %v5577 = vrot.slane %v5576, 1
    %v5578 = vadd.f32 %v5576, %v5577
    %v5579 = vmul.f32 %v5578, %v5154
    %v5580 = vadd.f32 %v5579, 1e-05
    %v5581 = vrsqrt.pop %v5580
    %v5582 = vmul.f32 %v5570, %v5581
    %v5583 = vmul.f32 %v5582, %v5296
    %v5584 = vadd.f32 %v5583, %v5304
    %v5585 = vmax.f32 %v5584, 0.0
    %v5587 = vsel %vm366, %v5585, 0
    %5589 = vmatprep.subr.mxu0 0.0
    %5590 = vmatpush1.msra.mxu0 %v5308
    %5591 = vmatprep.subr.mxu0 0.0
    %5592 = vmatpush1.msra.mxu0 %v5309
    %5593 = vmatprep.subr.mxu0 0.0
    %5594 = vmatpush1.msra.mxu0 %v5310
    %5595 = vmatprep.subr.mxu0 0.0
    %5596 = vmatpush1.msra.mxu0 %v5311
    %5597 = vmatprep.subr.mxu0 0.0
    %5598 = vmatpush1.msra.mxu0 0.0
    %5599 = vmatprep.subr.mxu0 0.0
    %5600 = vmatpush1.msra.mxu0 0.0
    %5601 = vmatprep.subr.mxu0 0.0
    %5602 = vmatpush1.msra.mxu0 0.0
    %5603 = vmatprep.subr.mxu0 0.0
    %5604 = vmatpush1.msra.mxu0 0.0
    %5605 = vmatprep.subr.mxu0 0.0
    %5606 = vmatpush1.msra.mxu0 0.0
    %5607 = vmatprep.subr.mxu0 0.0
    %5608 = vmatpush1.msra.mxu0 0.0
    %5609 = vmatprep.subr.mxu0 0.0
    %5610 = vmatpush1.msra.mxu0 0.0
    %5611 = vmatprep.subr.mxu0 0.0
    %5612 = vmatpush1.msra.mxu0 0.0
    %5613 = vmatprep.subr.mxu0 0.0
    %5614 = vmatpush1.msra.mxu0 0.0
    %5615 = vmatprep.subr.mxu0 0.0
    %5616 = vmatpush1.msra.mxu0 0.0
    %5617 = vmatprep.subr.mxu0 0.0
    %5618 = vmatpush1.msra.mxu0 0.0
    %5619 = vmatprep.subr.mxu0 0.0
    %5620 = vmatpush1.msra.mxu0 0.0
    %5621 = vmatprep.subr.mxu0 0.0
    %5622 = vmatpush1.msra.mxu0 0.0
    %5623 = vmatprep.subr.mxu0 0.0
    %5624 = vmatpush1.msra.mxu0 0.0
    %5625 = vmatprep.subr.mxu0 0.0
    %5626 = vmatpush1.msra.mxu0 0.0
    %5627 = vmatprep.subr.mxu0 0.0
    %5628 = vmatpush1.msra.mxu0 0.0
    %5629 = vmatprep.subr.mxu0 0.0
    %5630 = vmatpush1.msra.mxu0 0.0
    %5631 = vmatprep.subr.mxu0 0.0
    %5632 = vmatpush1.msra.mxu0 0.0
    %5633 = vmatprep.subr.mxu0 0.0
    %5634 = vmatpush1.msra.mxu0 0.0
    %5635 = vmatprep.subr.mxu0 0.0
    %5636 = vmatpush1.msra.mxu0 0.0
    %5637 = vmatprep.subr.mxu0 0.0
    %5638 = vmatpush1.msra.mxu0 0.0
    %5639 = vmatprep.subr.mxu0 0.0
    %5640 = vmatpush1.msra.mxu0 0.0
    %5641 = vmatprep.subr.mxu0 0.0
    %5642 = vmatpush1.msra.mxu0 0.0
    %5643 = vmatprep.subr.mxu0 0.0
    %5644 = vmatpush1.msra.mxu0 0.0
    %5645 = vmatprep.subr.mxu0 0.0
    %5646 = vmatpush1.msra.mxu0 0.0
    %5647 = vmatprep.subr.mxu0 0.0
    %5648 = vmatpush1.msra.mxu0 0.0
    %5649 = vmatprep.subr.mxu0 0.0
    %5650 = vmatpush1.msra.mxu0 0.0
    %5651 = vmatprep.subr.mxu0 0.0
    %5652 = vmatpush1.msra.mxu0 0.0
    %5653 = vmatprep.mubr.f32.mxu0 0.0
    %5654 = vmatmul.mubr.f32.gmra.mrb[0].mxu0 %v5587
    %v5655 = vpop.f32.mrb[0].mxu0
    %v5656 = vadd.f32 %v5317, %v5655
    %v5657 = vpop.f32.mrb[0].mxu0
    %5658 = vdwg.mxu0
    %v5659 = vld [vmem:[%s69] sm:$0xff]
    %v5660 = vld [vmem:[%s69 + $0x8] sm:$0xff]
    %v5661 = vld [vmem:[%s67] sm:$0x1]
    %v5663 = vlaneseq
    %v5664 = vshrl.u32 %v5663, 7
    %v5665 = vsub.s32 0, %v5664
    %v5666 = vrot.slane %v5661, %v5665
    %v5669 = vsel %vm273, %v5389, 0
    %5671 = vmatprep.subr.mxu0 0.0
    %5672 = vmatpush1.msra.mxu0 %v5659
    %5673 = vmatprep.subr.mxu0 0.0
    %5674 = vmatpush1.msra.mxu0 %v5660
    %5675 = vmatprep.subr.mxu0 0.0
    %5676 = vmatpush1.msra.mxu0 0.0
    %5677 = vmatprep.subr.mxu0 0.0
    %5678 = vmatpush1.msra.mxu0 0.0
    %5679 = vmatprep.subr.mxu0 0.0
    %5680 = vmatpush1.msra.mxu0 0.0
    %5681 = vmatprep.subr.mxu0 0.0
    %5682 = vmatpush1.msra.mxu0 0.0
    %5683 = vmatprep.subr.mxu0 0.0
    %5684 = vmatpush1.msra.mxu0 0.0
    %5685 = vmatprep.subr.mxu0 0.0
    %5686 = vmatpush1.msra.mxu0 0.0
    %5687 = vmatprep.subr.mxu0 0.0
    %5688 = vmatpush1.msra.mxu0 0.0
    %5689 = vmatprep.subr.mxu0 0.0
    %5690 = vmatpush1.msra.mxu0 0.0
    %5691 = vmatprep.subr.mxu0 0.0
    %5692 = vmatpush1.msra.mxu0 0.0
    %5693 = vmatprep.subr.mxu0 0.0
    %5694 = vmatpush1.msra.mxu0 0.0
    %5695 = vmatprep.subr.mxu0 0.0
    %5696 = vmatpush1.msra.mxu0 0.0
    %5697 = vmatprep.subr.mxu0 0.0
    %5698 = vmatpush1.msra.mxu0 0.0
    %5699 = vmatprep.subr.mxu0 0.0
    %5700 = vmatpush1.msra.mxu0 0.0
    %5701 = vmatprep.subr.mxu0 0.0
    %5702 = vmatpush1.msra.mxu0 0.0
    %5703 = vmatprep.subr.mxu0 0.0
    %5704 = vmatpush1.msra.mxu0 0.0
    %5705 = vmatprep.subr.mxu0 0.0
    %5706 = vmatpush1.msra.mxu0 0.0
    %5707 = vmatprep.subr.mxu0 0.0
    %5708 = vmatpush1.msra.mxu0 0.0
    %5709 = vmatprep.subr.mxu0 0.0
    %5710 = vmatpush1.msra.mxu0 0.0
    %5711 = vmatprep.subr.mxu0 0.0
    %5712 = vmatpush1.msra.mxu0 0.0
    %5713 = vmatprep.subr.mxu0 0.0
    %5714 = vmatpush1.msra.mxu0 0.0
    %5715 = vmatprep.subr.mxu0 0.0
    %5716 = vmatpush1.msra.mxu0 0.0
    %5717 = vmatprep.subr.mxu0 0.0
    %5718 = vmatpush1.msra.mxu0 0.0
    %5719 = vmatprep.subr.mxu0 0.0
    %5720 = vmatpush1.msra.mxu0 0.0
    %5721 = vmatprep.subr.mxu0 0.0
    %5722 = vmatpush1.msra.mxu0 0.0
    %5723 = vmatprep.subr.mxu0 0.0
    %5724 = vmatpush1.msra.mxu0 0.0
    %5725 = vmatprep.subr.mxu0 0.0
    %5726 = vmatpush1.msra.mxu0 0.0
    %5727 = vmatprep.subr.mxu0 0.0
    %5728 = vmatpush1.msra.mxu0 0.0
    %5729 = vmatprep.subr.mxu0 0.0
    %5730 = vmatpush1.msra.mxu0 0.0
    %5731 = vmatprep.subr.mxu0 0.0
    %5732 = vmatpush1.msra.mxu0 0.0
    %5733 = vmatprep.subr.mxu0 0.0
    %5734 = vmatpush1.msra.mxu0 0.0
    %5735 = vmatprep.mubr.f32.mxu0 0.0
    %5736 = vmatmul.mubr.f32.gmra.mrb[0].mxu0 %v5669
    %v5737 = vpop.f32.mrb[0].mxu0
    %v5738 = vadd.f32 %v5666, %v5737
    %v5739 = vpop.f32.mrb[0].mxu0
    %5740 = vdwg.mxu0
    %v5741 = vsel %vm366, %v5738, 0.0
    %v5742 = vrot.slane %v5741, 4
    %v5743 = vadd.f32 %v5741, %v5742
    %v5744 = vrot.slane %v5743, 2
    %v5745 = vadd.f32 %v5743, %v5744
    %v5746 = vrot.slane %v5745, 1
    %v5747 = vadd.f32 %v5745, %v5746
    %v5748 = vmul.f32 %v5747, %v5154
    %v5749 = vsub.f32 %v5738, %v5748
    %v5750 = vmul.f32 %v5749, %v5749
    %v5751 = vsel %vm366, %v5750, 0.0
    %v5752 = vrot.slane %v5751, 4
    %v5753 = vadd.f32 %v5751, %v5752
    %v5754 = vrot.slane %v5753, 2
    %v5755 = vadd.f32 %v5753, %v5754
    %v5756 = vrot.slane %v5755, 1
    %v5757 = vadd.f32 %v5755, %v5756
    %v5758 = vmul.f32 %v5757, %v5154
    %v5759 = vadd.f32 %v5758, 1e-05
    %v5760 = vrsqrt.pop %v5759
    %v5761 = vmul.f32 %v5749, %v5760
    %v5762 = vld [vmem:[%s61] sm:$0x1]
    %v5764 = vlaneseq
    %v5765 = vshrl.u32 %v5764, 7
    %v5766 = vsub.s32 0, %v5765
    %v5767 = vrot.slane %v5762, %v5766
    %v5769 = vmul.f32 %v5761, %v5767
    %v5770 = vld [vmem:[%s59] sm:$0x1]
    %v5772 = vlaneseq
    %v5773 = vshrl.u32 %v5772, 7
    %v5774 = vsub.s32 0, %v5773
    %v5775 = vrot.slane %v5770, %v5774
    %v5777 = vadd.f32 %v5769, %v5775
    %v5778 = vmax.f32 %v5777, 0.0
    %v5779 = vld [vmem:[%s73] sm:$0xff]
    %v5780 = vld [vmem:[%s73 + $0x8] sm:$0xff]
    %v5781 = vld [vmem:[%s73 + $0x10] sm:$0xff]
    %v5782 = vld [vmem:[%s73 + $0x18] sm:$0xff]
    %v5783 = vld [vmem:[%s71] sm:$0x1]
    %v5785 = vlaneseq
    %v5786 = vshrl.u32 %v5785, 7
    %v5787 = vsub.s32 0, %v5786
    %v5788 = vrot.slane %v5783, %v5787
    %v5791 = vsel %vm366, %v5778, 0
    %5793 = vmatprep.subr.mxu0 0.0
    %5794 = vmatpush1.msra.mxu0 %v5779
    %5795 = vmatprep.subr.mxu0 0.0
    %5796 = vmatpush1.msra.mxu0 %v5780
    %5797 = vmatprep.subr.mxu0 0.0
    %5798 = vmatpush1.msra.mxu0 %v5781
    %5799 = vmatprep.subr.mxu0 0.0
    %5800 = vmatpush1.msra.mxu0 %v5782
    %5801 = vmatprep.subr.mxu0 0.0
    %5802 = vmatpush1.msra.mxu0 0.0
    %5803 = vmatprep.subr.mxu0 0.0
    %5804 = vmatpush1.msra.mxu0 0.0
    %5805 = vmatprep.subr.mxu0 0.0
    %5806 = vmatpush1.msra.mxu0 0.0
    %5807 = vmatprep.subr.mxu0 0.0
    %5808 = vmatpush1.msra.mxu0 0.0
    %5809 = vmatprep.subr.mxu0 0.0
    %5810 = vmatpush1.msra.mxu0 0.0
    %5811 = vmatprep.subr.mxu0 0.0
    %5812 = vmatpush1.msra.mxu0 0.0
    %5813 = vmatprep.subr.mxu0 0.0
    %5814 = vmatpush1.msra.mxu0 0.0
    %5815 = vmatprep.subr.mxu0 0.0
    %5816 = vmatpush1.msra.mxu0 0.0
    %5817 = vmatprep.subr.mxu0 0.0
    %5818 = vmatpush1.msra.mxu0 0.0
    %5819 = vmatprep.subr.mxu0 0.0
    %5820 = vmatpush1.msra.mxu0 0.0
    %5821 = vmatprep.subr.mxu0 0.0
    %5822 = vmatpush1.msra.mxu0 0.0
    %5823 = vmatprep.subr.mxu0 0.0
    %5824 = vmatpush1.msra.mxu0 0.0
    %5825 = vmatprep.subr.mxu0 0.0
    %5826 = vmatpush1.msra.mxu0 0.0
    %5827 = vmatprep.subr.mxu0 0.0
    %5828 = vmatpush1.msra.mxu0 0.0
    %5829 = vmatprep.subr.mxu0 0.0
    %5830 = vmatpush1.msra.mxu0 0.0
    %5831 = vmatprep.subr.mxu0 0.0
    %5832 = vmatpush1.msra.mxu0 0.0
    %5833 = vmatprep.subr.mxu0 0.0
    %5834 = vmatpush1.msra.mxu0 0.0
    %5835 = vmatprep.subr.mxu0 0.0
    %5836 = vmatpush1.msra.mxu0 0.0
    %5837 = vmatprep.subr.mxu0 0.0
    %5838 = vmatpush1.msra.mxu0 0.0
    %5839 = vmatprep.subr.mxu0 0.0
    %5840 = vmatpush1.msra.mxu0 0.0
    %5841 = vmatprep.subr.mxu0 0.0
    %5842 = vmatpush1.msra.mxu0 0.0
    %5843 = vmatprep.subr.mxu0 0.0
    %5844 = vmatpush1.msra.mxu0 0.0
    %5845 = vmatprep.subr.mxu0 0.0
    %5846 = vmatpush1.msra.mxu0 0.0
    %5847 = vmatprep.subr.mxu0 0.0
    %5848 = vmatpush1.msra.mxu0 0.0
    %5849 = vmatprep.subr.mxu0 0.0
    %5850 = vmatpush1.msra.mxu0 0.0
    %5851 = vmatprep.subr.mxu0 0.0
    %5852 = vmatpush1.msra.mxu0 0.0
    %5853 = vmatprep.subr.mxu0 0.0
    %5854 = vmatpush1.msra.mxu0 0.0
    %5855 = vmatprep.subr.mxu0 0.0
    %5856 = vmatpush1.msra.mxu0 0.0
    %5857 = vmatprep.mubr.f32.mxu0 0.0
    %5858 = vmatmul.mubr.f32.gmra.mrb[0].mxu0 %v5791
    %v5859 = vpop.f32.mrb[0].mxu0
    %v5860 = vadd.f32 %v5788, %v5859
    %v5861 = vpop.f32.mrb[0].mxu0
    %5862 = vdwg.mxu0
    %v5863 = vsel %vm366, %v5860, 0.0
    %v5864 = vrot.slane %v5863, 4
    %v5865 = vadd.f32 %v5863, %v5864
    %v5866 = vrot.slane %v5865, 2
    %v5867 = vadd.f32 %v5865, %v5866
    %v5868 = vrot.slane %v5867, 1
    %v5869 = vadd.f32 %v5867, %v5868
    %v5870 = vmul.f32 %v5869, %v5154
    %v5871 = vsub.f32 %v5860, %v5870
    %v5872 = vmul.f32 %v5871, %v5871
    %v5873 = vsel %vm366, %v5872, 0.0
    %v5874 = vrot.slane %v5873, 4
    %v5875 = vadd.f32 %v5873, %v5874
    %v5876 = vrot.slane %v5875, 2
    %v5877 = vadd.f32 %v5875, %v5876
    %v5878 = vrot.slane %v5877, 1
    %v5879 = vadd.f32 %v5877, %v5878
    %v5880 = vmul.f32 %v5879, %v5154
    %v5881 = vadd.f32 %v5880, 1e-05
    %v5882 = vrsqrt.pop %v5881
    %v5883 = vmul.f32 %v5871, %v5882
    %v5884 = vld [vmem:[%s65] sm:$0x1]
    %v5886 = vlaneseq
    %v5887 = vshrl.u32 %v5886, 7
    %v5888 = vsub.s32 0, %v5887
    %v5889 = vrot.slane %v5884, %v5888
    %v5891 = vmul.f32 %v5883, %v5889
    %v5892 = vld [vmem:[%s63] sm:$0x1]
    %v5894 = vlaneseq
    %v5895 = vshrl.u32 %v5894, 7
    %v5896 = vsub.s32 0, %v5895
    %v5897 = vrot.slane %v5892, %v5896
    %v5899 = vadd.f32 %v5891, %v5897
    %v5900 = vmax.f32 %v5899, 0.0
    %v5901 = vld [vmem:[%s77] sm:$0xff]
    %v5902 = vld [vmem:[%s77 + $0x8] sm:$0xff]
    %v5903 = vld [vmem:[%s77 + $0x10] sm:$0xff]
    %v5904 = vld [vmem:[%s77 + $0x18] sm:$0xff]
    %v5905 = vld [vmem:[%s75] sm:$0x1]
    %v5907 = vlaneseq
    %v5908 = vshrl.u32 %v5907, 7
    %v5909 = vsub.s32 0, %v5908
    %v5910 = vrot.slane %v5905, %v5909
    %v5913 = vsel %vm366, %v5900, 0
    %5915 = vmatprep.subr.mxu0 0.0
    %5916 = vmatpush1.msra.mxu0 %v5901
    %5917 = vmatprep.subr.mxu0 0.0
    %5918 = vmatpush1.msra.mxu0 %v5902
    %5919 = vmatprep.subr.mxu0 0.0
    %5920 = vmatpush1.msra.mxu0 %v5903
    %5921 = vmatprep.subr.mxu0 0.0
    %5922 = vmatpush1.msra.mxu0 %v5904
    %5923 = vmatprep.subr.mxu0 0.0
    %5924 = vmatpush1.msra.mxu0 0.0
    %5925 = vmatprep.subr.mxu0 0.0
    %5926 = vmatpush1.msra.mxu0 0.0
    %5927 = vmatprep.subr.mxu0 0.0
    %5928 = vmatpush1.msra.mxu0 0.0
    %5929 = vmatprep.subr.mxu0 0.0
    %5930 = vmatpush1.msra.mxu0 0.0
    %5931 = vmatprep.subr.mxu0 0.0
    %5932 = vmatpush1.msra.mxu0 0.0
    %5933 = vmatprep.subr.mxu0 0.0
    %5934 = vmatpush1.msra.mxu0 0.0
    %5935 = vmatprep.subr.mxu0 0.0
    %5936 = vmatpush1.msra.mxu0 0.0
    %5937 = vmatprep.subr.mxu0 0.0
    %5938 = vmatpush1.msra.mxu0 0.0
    %5939 = vmatprep.subr.mxu0 0.0
    %5940 = vmatpush1.msra.mxu0 0.0
    %5941 = vmatprep.subr.mxu0 0.0
    %5942 = vmatpush1.msra.mxu0 0.0
    %5943 = vmatprep.subr.mxu0 0.0
    %5944 = vmatpush1.msra.mxu0 0.0
    %5945 = vmatprep.subr.mxu0 0.0
    %5946 = vmatpush1.msra.mxu0 0.0
    %5947 = vmatprep.subr.mxu0 0.0
    %5948 = vmatpush1.msra.mxu0 0.0
    %5949 = vmatprep.subr.mxu0 0.0
    %5950 = vmatpush1.msra.mxu0 0.0
    %5951 = vmatprep.subr.mxu0 0.0
    %5952 = vmatpush1.msra.mxu0 0.0
    %5953 = vmatprep.subr.mxu0 0.0
    %5954 = vmatpush1.msra.mxu0 0.0
    %5955 = vmatprep.subr.mxu0 0.0
    %5956 = vmatpush1.msra.mxu0 0.0
    %5957 = vmatprep.subr.mxu0 0.0
    %5958 = vmatpush1.msra.mxu0 0.0
    %5959 = vmatprep.subr.mxu0 0.0
    %5960 = vmatpush1.msra.mxu0 0.0
    %5961 = vmatprep.subr.mxu0 0.0
    %5962 = vmatpush1.msra.mxu0 0.0
    %5963 = vmatprep.subr.mxu0 0.0
    %5964 = vmatpush1.msra.mxu0 0.0
    %5965 = vmatprep.subr.mxu0 0.0
    %5966 = vmatpush1.msra.mxu0 0.0
    %5967 = vmatprep.subr.mxu0 0.0
    %5968 = vmatpush1.msra.mxu0 0.0
    %5969 = vmatprep.subr.mxu0 0.0
    %5970 = vmatpush1.msra.mxu0 0.0
    %5971 = vmatprep.subr.mxu0 0.0
    %5972 = vmatpush1.msra.mxu0 0.0
    %5973 = vmatprep.subr.mxu0 0.0
    %5974 = vmatpush1.msra.mxu0 0.0
    %5975 = vmatprep.subr.mxu0 0.0
    %5976 = vmatpush1.msra.mxu0 0.0
    %5977 = vmatprep.subr.mxu0 0.0
    %5978 = vmatpush1.msra.mxu0 0.0
    %5979 = vmatprep.mubr.f32.mxu0 0.0
    %5980 = vmatmul.mubr.f32.gmra.mrb[0].mxu0 %v5913
    %v5981 = vpop.f32.mrb[0].mxu0
    %v5982 = vadd.f32 %v5910, %v5981
    %v5983 = vpop.f32.mrb[0].mxu0
    %5984 = vdwg.mxu0
    %v5986 = vsel %vm273, %v5656, 0
    %5988 = vmatprep.subr.mxu0 0.0
    %5989 = vmatpush1.msra.mxu0 %v5659
    %5990 = vmatprep.subr.mxu0 0.0
    %5991 = vmatpush1.msra.mxu0 %v5660
    %5992 = vmatprep.subr.mxu0 0.0
    %5993 = vmatpush1.msra.mxu0 0.0
    %5994 = vmatprep.subr.mxu0 0.0
    %5995 = vmatpush1.msra.mxu0 0.0
    %5996 = vmatprep.subr.mxu0 0.0
    %5997 = vmatpush1.msra.mxu0 0.0
    %5998 = vmatprep.subr.mxu0 0.0
    %5999 = vmatpush1.msra.mxu0 0.0
    %6000 = vmatprep.subr.mxu0 0.0
    %6001 = vmatpush1.msra.mxu0 0.0
    %6002 = vmatprep.subr.mxu0 0.0
    %6003 = vmatpush1.msra.mxu0 0.0
    %6004 = vmatprep.subr.mxu0 0.0
    %6005 = vmatpush1.msra.mxu0 0.0
    %6006 = vmatprep.subr.mxu0 0.0
    %6007 = vmatpush1.msra.mxu0 0.0
    %6008 = vmatprep.subr.mxu0 0.0
    %6009 = vmatpush1.msra.mxu0 0.0
    %6010 = vmatprep.subr.mxu0 0.0
    %6011 = vmatpush1.msra.mxu0 0.0
    %6012 = vmatprep.subr.mxu0 0.0
    %6013 = vmatpush1.msra.mxu0 0.0
    %6014 = vmatprep.subr.mxu0 0.0
    %6015 = vmatpush1.msra.mxu0 0.0
    %6016 = vmatprep.subr.mxu0 0.0
    %6017 = vmatpush1.msra.mxu0 0.0
    %6018 = vmatprep.subr.mxu0 0.0
    %6019 = vmatpush1.msra.mxu0 0.0
    %6020 = vmatprep.subr.mxu0 0.0
    %6021 = vmatpush1.msra.mxu0 0.0
    %6022 = vmatprep.subr.mxu0 0.0
    %6023 = vmatpush1.msra.mxu0 0.0
    %6024 = vmatprep.subr.mxu0 0.0
    %6025 = vmatpush1.msra.mxu0 0.0
    %6026 = vmatprep.subr.mxu0 0.0
    %6027 = vmatpush1.msra.mxu0 0.0
    %6028 = vmatprep.subr.mxu0 0.0
    %6029 = vmatpush1.msra.mxu0 0.0
    %6030 = vmatprep.subr.mxu0 0.0
    %6031 = vmatpush1.msra.mxu0 0.0
    %6032 = vmatprep.subr.mxu0 0.0
    %6033 = vmatpush1.msra.mxu0 0.0
    %6034 = vmatprep.subr.mxu0 0.0
    %6035 = vmatpush1.msra.mxu0 0.0
    %6036 = vmatprep.subr.mxu0 0.0
    %6037 = vmatpush1.msra.mxu0 0.0
    %6038 = vmatprep.subr.mxu0 0.0
    %6039 = vmatpush1.msra.mxu0 0.0
    %6040 = vmatprep.subr.mxu0 0.0
    %6041 = vmatpush1.msra.mxu0 0.0
    %6042 = vmatprep.subr.mxu0 0.0
    %6043 = vmatpush1.msra.mxu0 0.0
    %6044 = vmatprep.subr.mxu0 0.0
    %6045 = vmatpush1.msra.mxu0 0.0
    %6046 = vmatprep.subr.mxu0 0.0
    %6047 = vmatpush1.msra.mxu0 0.0
    %6048 = vmatprep.subr.mxu0 0.0
    %6049 = vmatpush1.msra.mxu0 0.0
    %6050 = vmatprep.subr.mxu0 0.0
    %6051 = vmatpush1.msra.mxu0 0.0
    %6052 = vmatprep.mubr.f32.mxu0 0.0
    %6053 = vmatmul.mubr.f32.gmra.mrb[0].mxu0 %v5986
    %v6054 = vpop.f32.mrb[0].mxu0
    %v6055 = vadd.f32 %v5666, %v6054
    %v6056 = vpop.f32.mrb[0].mxu0
    %6057 = vdwg.mxu0
    %v6058 = vsel %vm366, %v6055, 0.0
    %v6059 = vrot.slane %v6058, 4
    %v6060 = vadd.f32 %v6058, %v6059
    %v6061 = vrot.slane %v6060, 2
    %v6062 = vadd.f32 %v6060, %v6061
    %v6063 = vrot.slane %v6062, 1
    %v6064 = vadd.f32 %v6062, %v6063
    %v6065 = vmul.f32 %v6064, %v5154
    %v6066 = vsub.f32 %v6055, %v6065
    %v6067 = vmul.f32 %v6066, %v6066
    %v6068 = vsel %vm366, %v6067, 0.0
    %v6069 = vrot.slane %v6068, 4
    %v6070 = vadd.f32 %v6068, %v6069
    %v6071 = vrot.slane %v6070, 2
    %v6072 = vadd.f32 %v6070, %v6071
    %v6073 = vrot.slane %v6072, 1
    %v6074 = vadd.f32 %v6072, %v6073
    %v6075 = vmul.f32 %v6074, %v5154
    %v6076 = vadd.f32 %v6075, 1e-05
    %v6077 = vrsqrt.pop %v6076
    %v6078 = vmul.f32 %v6066, %v6077
    %v6079 = vmul.f32 %v6078, %v5767
    %v6080 = vadd.f32 %v6079, %v5775
    %v6081 = vmax.f32 %v6080, 0.0
    %v6083 = vsel %vm366, %v6081, 0
    %6085 = vmatprep.subr.mxu0 0.0
    %6086 = vmatpush1.msra.mxu0 %v5779
    %6087 = vmatprep.subr.mxu0 0.0
    %6088 = vmatpush1.msra.mxu0 %v5780
    %6089 = vmatprep.subr.mxu0 0.0
    %6090 = vmatpush1.msra.mxu0 %v5781
    %6091 = vmatprep.subr.mxu0 0.0
    %6092 = vmatpush1.msra.mxu0 %v5782
    %6093 = vmatprep.subr.mxu0 0.0
    %6094 = vmatpush1.msra.mxu0 0.0
    %6095 = vmatprep.subr.mxu0 0.0
    %6096 = vmatpush1.msra.mxu0 0.0
    %6097 = vmatprep.subr.mxu0 0.0
    %6098 = vmatpush1.msra.mxu0 0.0
    %6099 = vmatprep.subr.mxu0 0.0
    %6100 = vmatpush1.msra.mxu0 0.0
    %6101 = vmatprep.subr.mxu0 0.0
    %6102 = vmatpush1.msra.mxu0 0.0
    %6103 = vmatprep.subr.mxu0 0.0
    %6104 = vmatpush1.msra.mxu0 0.0
    %6105 = vmatprep.subr.mxu0 0.0
    %6106 = vmatpush1.msra.mxu0 0.0
    %6107 = vmatprep.subr.mxu0 0.0
    %6108 = vmatpush1.msra.mxu0 0.0
    %6109 = vmatprep.subr.mxu0 0.0
    %6110 = vmatpush1.msra.mxu0 0.0
    %6111 = vmatprep.subr.mxu0 0.0
    %6112 = vmatpush1.msra.mxu0 0.0
    %6113 = vmatprep.subr.mxu0 0.0
    %6114 = vmatpush1.msra.mxu0 0.0
    %6115 = vmatprep.subr.mxu0 0.0
    %6116 = vmatpush1.msra.mxu0 0.0
    %6117 = vmatprep.subr.mxu0 0.0
    %6118 = vmatpush1.msra.mxu0 0.0
    %6119 = vmatprep.subr.mxu0 0.0
    %6120 = vmatpush1.msra.mxu0 0.0
    %6121 = vmatprep.subr.mxu0 0.0
    %6122 = vmatpush1.msra.mxu0 0.0
    %6123 = vmatprep.subr.mxu0 0.0
    %6124 = vmatpush1.msra.mxu0 0.0
    %6125 = vmatprep.subr.mxu0 0.0
    %6126 = vmatpush1.msra.mxu0 0.0
    %6127 = vmatprep.subr.mxu0 0.0
    %6128 = vmatpush1.msra.mxu0 0.0
    %6129 = vmatprep.subr.mxu0 0.0
    %6130 = vmatpush1.msra.mxu0 0.0
    %6131 = vmatprep.subr.mxu0 0.0
    %6132 = vmatpush1.msra.mxu0 0.0
    %6133 = vmatprep.subr.mxu0 0.0
    %6134 = vmatpush1.msra.mxu0 0.0
    %6135 = vmatprep.subr.mxu0 0.0
    %6136 = vmatpush1.msra.mxu0 0.0
    %6137 = vmatprep.subr.mxu0 0.0
    %6138 = vmatpush1.msra.mxu0 0.0
    %6139 = vmatprep.subr.mxu0 0.0
    %6140 = vmatpush1.msra.mxu0 0.0
    %6141 = vmatprep.subr.mxu0 0.0
    %6142 = vmatpush1.msra.mxu0 0.0
    %6143 = vmatprep.subr.mxu0 0.0
    %6144 = vmatpush1.msra.mxu0 0.0
    %6145 = vmatprep.subr.mxu0 0.0
    %6146 = vmatpush1.msra.mxu0 0.0
    %6147 = vmatprep.subr.mxu0 0.0
    %6148 = vmatpush1.msra.mxu0 0.0
    %6149 = vmatprep.mubr.f32.mxu0 0.0
    %6150 = vmatmul.mubr.f32.gmra.mrb[0].mxu0 %v6083
    %v6151 = vpop.f32.mrb[0].mxu0
    %v6152 = vadd.f32 %v5788, %v6151
    %v6153 = vpop.f32.mrb[0].mxu0
    %6154 = vdwg.mxu0
    %v6155 = vsel %vm366, %v6152, 0.0
    %v6156 = vrot.slane %v6155, 4
    %v6157 = vadd.f32 %v6155, %v6156
    %v6158 = vrot.slane %v6157, 2
    %v6159 = vadd.f32 %v6157, %v6158
    %v6160 = vrot.slane %v6159, 1
    %v6161 = vadd.f32 %v6159, %v6160
    %v6162 = vmul.f32 %v6161, %v5154
    %v6163 = vsub.f32 %v6152, %v6162
    %v6164 = vmul.f32 %v6163, %v6163
    %v6165 = vsel %vm366, %v6164, 0.0
    %v6166 = vrot.slane %v6165, 4
    %v6167 = vadd.f32 %v6165, %v6166
    %v6168 = vrot.slane %v6167, 2
    %v6169 = vadd.f32 %v6167, %v6168
    %v6170 = vrot.slane %v6169, 1
    %v6171 = vadd.f32 %v6169, %v6170
    %v6172 = vmul.f32 %v6171, %v5154
    %v6173 = vadd.f32 %v6172, 1e-05
    %v6174 = vrsqrt.pop %v6173
    %v6175 = vmul.f32 %v6163, %v6174
    %v6176 = vmul.f32 %v6175, %v5889
    %v6177 = vadd.f32 %v6176, %v5897
    %v6178 = vmax.f32 %v6177, 0.0
    %v6180 = vsel %vm366, %v6178, 0
    %6182 = vmatprep.subr.mxu0 0.0
    %6183 = vmatpush1.msra.mxu0 %v5901
    %6184 = vmatprep.subr.mxu0 0.0
    %6185 = vmatpush1.msra.mxu0 %v5902
    %6186 = vmatprep.subr.mxu0 0.0
    %6187 = vmatpush1.msra.mxu0 %v5903
    %6188 = vmatprep.subr.mxu0 0.0
    %6189 = vmatpush1.msra.mxu0 %v5904
    %6190 = vmatprep.subr.mxu0 0.0
    %6191 = vmatpush1.msra.mxu0 0.0
    %6192 = vmatprep.subr.mxu0 0.0
    %6193 = vmatpush1.msra.mxu0 0.0
    %6194 = vmatprep.subr.mxu0 0.0
    %6195 = vmatpush1.msra.mxu0 0.0
    %6196 = vmatprep.subr.mxu0 0.0
    %6197 = vmatpush1.msra.mxu0 0.0
    %6198 = vmatprep.subr.mxu0 0.0
    %6199 = vmatpush1.msra.mxu0 0.0
    %6200 = vmatprep.subr.mxu0 0.0
    %6201 = vmatpush1.msra.mxu0 0.0
    %6202 = vmatprep.subr.mxu0 0.0
    %6203 = vmatpush1.msra.mxu0 0.0
    %6204 = vmatprep.subr.mxu0 0.0
    %6205 = vmatpush1.msra.mxu0 0.0
    %6206 = vmatprep.subr.mxu0 0.0
    %6207 = vmatpush1.msra.mxu0 0.0
    %6208 = vmatprep.subr.mxu0 0.0
    %6209 = vmatpush1.msra.mxu0 0.0
    %6210 = vmatprep.subr.mxu0 0.0
    %6211 = vmatpush1.msra.mxu0 0.0
    %6212 = vmatprep.subr.mxu0 0.0
    %6213 = vmatpush1.msra.mxu0 0.0
    %6214 = vmatprep.subr.mxu0 0.0
    %6215 = vmatpush1.msra.mxu0 0.0
    %6216 = vmatprep.subr.mxu0 0.0
    %6217 = vmatpush1.msra.mxu0 0.0
    %6218 = vmatprep.subr.mxu0 0.0
    %6219 = vmatpush1.msra.mxu0 0.0
    %6220 = vmatprep.subr.mxu0 0.0
    %6221 = vmatpush1.msra.mxu0 0.0
    %6222 = vmatprep.subr.mxu0 0.0
    %6223 = vmatpush1.msra.mxu0 0.0
    %6224 = vmatprep.subr.mxu0 0.0
    %6225 = vmatpush1.msra.mxu0 0.0
    %6226 = vmatprep.subr.mxu0 0.0
    %6227 = vmatpush1.msra.mxu0 0.0
    %6228 = vmatprep.subr.mxu0 0.0
    %6229 = vmatpush1.msra.mxu0 0.0
    %6230 = vmatprep.subr.mxu0 0.0
    %6231 = vmatpush1.msra.mxu0 0.0
    %6232 = vmatprep.subr.mxu0 0.0
    %6233 = vmatpush1.msra.mxu0 0.0
    %6234 = vmatprep.subr.mxu0 0.0
    %6235 = vmatpush1.msra.mxu0 0.0
    %6236 = vmatprep.subr.mxu0 0.0
    %6237 = vmatpush1.msra.mxu0 0.0
    %6238 = vmatprep.subr.mxu0 0.0
    %6239 = vmatpush1.msra.mxu0 0.0
    %6240 = vmatprep.subr.mxu0 0.0
    %6241 = vmatpush1.msra.mxu0 0.0
    %6242 = vmatprep.subr.mxu0 0.0
    %6243 = vmatpush1.msra.mxu0 0.0
    %6244 = vmatprep.subr.mxu0 0.0
    %6245 = vmatpush1.msra.mxu0 0.0
    %6246 = vmatprep.mubr.f32.mxu0 0.0
    %6247 = vmatmul.mubr.f32.gmra.mrb[0].mxu0 %v6180
    %v6248 = vpop.f32.mrb[0].mxu0
    %v6249 = vadd.f32 %v5910, %v6248
    %v6250 = vpop.f32.mrb[0].mxu0
    %6251 = vdwg.mxu0
    %v6252 = vsub.f32 %v5982, %v5656
    %v6253 = vsub.f32 %v6249, %v5389
    %v6254 = vmul.f32 %v6252, %v6252
    %v6255 = vmul.f32 %v6253, %v6253
    %v6256 = vadd.f32 %v6254, %v6255
    %v6257 = vsel %vm273, %v6256, 0.0
    %6258 = vadd.xlane.f32.xlu0 %v6257
    %v6259 = vpop.xlane.xlu0 %6258
    %v6260 = vrot.slane %v6259, 4
    %v6261 = vadd.f32 %v6259, %v6260
    %v6262 = vrot.slane %v6261, 2
    %v6263 = vadd.f32 %v6261, %v6262
    %v6264 = vrot.slane %v6263, 1
    %v6265 = vadd.f32 %v6263, %v6264
    %v6266 = vrcp.pop 128.0
    %v6267 = vmul.f32 %v6265, %v6266
    %vm6268 = vcmask 0
    %6269 = vst.msk [vmem:[#allocation11] sm:$0x1] %vm6268, %v6267
    // Predicated region
    $region218: #{byol_forward.1} parent=1 // pred_check
      _
    $region219: #{byol_forward.1} parent=1 // pred_check_branch
      %6271 = sbr.rel (0) target = $region221
    $region220: #{byol_forward.1} parent=1 // pred_region
      %s6273 = ssub.s32 16, 16
      %6274 = vsyncadd [#allocation4], %s6273
      %s6276 = sshll.u32 [#allocation11], 4
      %s6277 = int_to_ptr.vmem [resolvable:$true] %s6276
      %6279 = dma.vmem_to_hbm [thread:$0]  %s6277, 16, %s99, [#allocation4]
    $region221: #{byol_forward.1} parent=1 // pred_fallthru
      _
    // Predicated region
    $region222: #{byol_forward.1} parent=1 // pred_check
      _
    $region223: #{byol_forward.1} parent=1 // pred_check_branch
      %6281 = sbr.rel (0) target = $region225
    $region224: #{byol_forward.1} parent=1 // pred_region
      %6282 = dma.done [#allocation4], 16
    $region225: #{byol_forward.1} parent=1 // pred_fallthru
      _
    %6283 = vsyncpa [#allocation3], 1
    %6284 = vsyncpa [#allocation6], 1
    %6285 = vsyncpa [#allocation9], 1
    %6286 = vsyncpa [#allocation4], 1

</llo_original>
